<compile_context>
chip_gen: v6e
topology: v6e:2x2x1
jax: 0.10.0
libtpu: 0.0.40
codegen_flags: <defaults>
</compile_context>

<pallas_src>
import functools
import math

import jax
import jax.numpy as jnp
import numpy as np
from jax.experimental import pallas as pl
from jax.experimental.pallas import tpu as pltpu


def _layer_norm(z, gamma, beta, eps=1e-5):
    mu = jnp.mean(z, axis=-1, keepdims=True)
    var = jnp.mean((z - mu) ** 2, axis=-1, keepdims=True)
    return (z - mu) * jax.lax.rsqrt(var + eps) * gamma + beta


def decoder_kernel(x_ref, pos_ref, wqkv_ref, wo_ref, w1_ref, w2_ref, cvec_ref,
                   b1_ref, o_ref, *, n_steps, n_heads, d_k, s_real):
    bb, S, H = x_ref.shape
    R = bb * S
    G = bb * n_heads
    f32 = jnp.float32
    bf = jnp.bfloat16

    # Token-flatten: per-token work runs on a (bb*S, H) slab to fill MXU M.
    x = (x_ref[...].astype(f32) + pos_ref[...][None]).reshape(R, H)

    # Pre-fused bf16 weights stay resident in VMEM across the whole recurrence.
    wqkv = wqkv_ref[...]                 # (H, 3H)     bf16, Q cols pre-scaled
    wo = wo_ref[...]                     # (H, H)      bf16
    w1 = w1_ref[...]                     # (H, inner)  bf16
    w2 = w2_ref[...]                     # (inner, H)  bf16
    b1 = b1_ref[...]                     # (1, inner)  f32
    cv = cvec_ref[...]                   # (6, H) packed f32 vectors
    bo, g1, be1, b2, g2, be2 = (cv[0:1], cv[1:2], cv[2:3],
                                cv[3:4], cv[4:5], cv[5:6])

    def step(_, x):
        # ---- multi-head self-attention (head-batched, no per-head loop) ----
        residual = x
        qkv = jnp.dot(x.astype(bf), wqkv, preferred_element_type=f32)      # (R, 3H)
        # Rearrange to head-batched form using only leading reshapes and
        # last-two-dim swaps (supported transposes).
        qkvT = jnp.swapaxes(qkv.astype(bf).reshape(bb, S, 3 * H), 1, 2)    # (bb, 3H, S)
        qkvT = qkvT.reshape(bb, 3 * n_heads, d_k, S)
        q = jnp.swapaxes(qkvT[:, :n_heads].reshape(G, d_k, S), 1, 2)       # (G, S, dk)
        k = jnp.swapaxes(qkvT[:, n_heads:2 * n_heads].reshape(G, d_k, S), 1, 2)
        v = qkvT[:, 2 * n_heads:].reshape(G, d_k, S)                       # (G, dk, S)

        # Transposed scores (G, T, S); Q already carries the 1/sqrt(d_k) scale.
        scT = jnp.einsum("gtd,gsd->gts", k, q, preferred_element_type=f32)
        if s_real != S:   # static branch: mask padded keys
            t_idx = jax.lax.broadcasted_iota(jnp.int32, (1, S, 1), 1)
            scT = scT + jnp.where(t_idx >= s_real, -1e30, 0.0).astype(f32)
        mx = jnp.max(scT, axis=1, keepdims=True)                           # (G, 1, S)
        p = jnp.exp(scT - mx)                                              # f32
        sp = jnp.sum(p, axis=1, keepdims=True)                             # (G, 1, S)
        # AV matmul with unnormalized bf16 probabilities; normalization is
        # deferred to the (G, dk, S) context via the EUP reciprocal.
        ctxT = jnp.einsum("gdt,gts->gds", v, p.astype(bf),
                          preferred_element_type=f32)                      # (G, dk, S)
        ctxT = ctxT * pl.reciprocal(sp, approx=True)
        ctx = jnp.swapaxes(ctxT.astype(bf).reshape(bb, H, S), 1, 2).reshape(R, H)
        attn_out = jnp.dot(ctx, wo, preferred_element_type=f32) + bo
        x = _layer_norm(attn_out + residual, g1, be1)

        # ---- position-wise feed-forward (1x1 convs == per-token linears) ----
        residual = x
        hid = jnp.maximum(
            jnp.dot(x.astype(bf), w1, preferred_element_type=f32) + b1, 0.0
        ).astype(bf)                                                       # bf16 producer cast
        ffn = jnp.dot(hid, w2, preferred_element_type=f32) + b2
        return _layer_norm(ffn + residual, g2, be2)

    x = jax.lax.fori_loop(0, n_steps, step, x, unroll=(n_steps <= 4))
    o_ref[...] = x.reshape(bb, S, H).astype(o_ref.dtype)


def _tpu_defaults():
    """(rows_target, vmem_limit_bytes, prefer_even_grid) per TPU generation."""
    kind = ""
    try:
        kind = jax.devices()[0].device_kind.lower()
    except Exception:
        pass
    if "v5 lite" in kind or "v5lite" in kind or "v5e" in kind:
        return 128, 96 * 1024 * 1024, False      # 128x128 MXU, 128 MiB VMEM
    if "v6" in kind:
        return 256, 96 * 1024 * 1024, False      # 256-wide MXU, 128 MiB VMEM
    if "v7" in kind:
        return 256, 56 * 1024 * 1024, True       # 64 MiB VMEM, 2 TCs/chip
    return 256, 64 * 1024 * 1024, False


def _pick_batch_block(B, S, rows_target, prefer_even_grid):
    """Pack ~rows_target token rows per grid step; on v7x prefer an even grid."""
    bb = min(B, max(1, pl.cdiv(rows_target, S)))
    while bb > 1 and B % bb:
        bb -= 1
    if prefer_even_grid and B >= 2:
        while bb > 1 and (B // bb) % 2:
            nb = bb - 1
            while nb > 1 and B % nb:
                nb -= 1
            bb = nb
    return max(bb, 1)


def _const_spec(shape, single_buffer):
    index_map = lambda i, n=len(shape): (0,) * n
    if single_buffer:
        try:
            # Grid-invariant block: one VMEM buffer, fetched once, resident
            # across every grid step (reclaims the double-buffer copy).
            return pl.BlockSpec(shape, index_map, pipeline_mode=pl.Buffered(1))
        except (AttributeError, TypeError):
            pass
    return pl.BlockSpec(shape, index_map)


def recurrent_self_attention_decoder(x, params, *, n_steps, n_heads, batch_block=None):
    B, S, H = x.shape
    assert H % n_heads == 0
    d_k = H // n_heads
    inner = params["w1"].shape[1]
    scale = 1.0 / math.sqrt(d_k)

    rows_target, vmem_limit, prefer_even = _tpu_defaults()

    # Pad S to a sublane multiple so (R,H)<->(bb,S,H) reshapes stay tile-aligned;
    # padded keys are masked inside the kernel and padded rows sliced off here.
    S_pad = int(pl.cdiv(S, 8) * 8)
    pos = params["pos"].astype(jnp.float32)
    x_in = x
    if S_pad != S:
        x_in = jnp.pad(x, ((0, 0), (0, S_pad - S), (0, 0)))
        pos = jnp.pad(pos, ((0, S_pad - S), (0, 0)))

    bb = batch_block if batch_block is not None else _pick_batch_block(
        B, S_pad, rows_target, prefer_even)
    assert B % bb == 0

    # --- one-time weight prep (tiny XLA ops, outside the hot kernel) ---
    def fuse_heads(w):                       # (n_heads, H, d_k) -> (H, n_heads*d_k)
        return jnp.transpose(w, (1, 0, 2)).reshape(H, n_heads * d_k)

    wqkv = jnp.concatenate([fuse_heads(params["wq"]) * scale,
                            fuse_heads(params["wk"]),
                            fuse_heads(params["wv"])], axis=1).astype(jnp.bfloat16)
    wo = params["wo"].reshape(n_heads * d_k, H).astype(jnp.bfloat16)
    w1 = params["w1"].astype(jnp.bfloat16)
    w2 = params["w2"].astype(jnp.bfloat16)
    # Pack the six small (1,H) f32 vectors into a single operand.
    cvec = jnp.concatenate([params["bo"], params["ln1_g"], params["ln1_b"],
                            params["b2"], params["ln2_g"], params["ln2_b"]],
                           axis=0).astype(jnp.float32)                     # (6, H)
    b1 = params["b1"].astype(jnp.float32)                                  # (1, inner)

    operands = (x_in, pos, wqkv, wo, w1, w2, cvec, b1)
    kernel = functools.partial(decoder_kernel, n_steps=n_steps, n_heads=n_heads,
                               d_k=d_k, s_real=S)

    # Advisory cost estimate: the n_steps recurrence makes this kernel far more
    # expensive than its I/O footprint suggests.
    Rt = B * S_pad
    flops_step = (2 * Rt * H * 3 * H + 2 * Rt * H * H + 4 * Rt * H * inner
                  + 4 * B * S_pad * S_pad * H)
    cost = pl.CostEstimate(
        flops=int(n_steps * flops_step),
        transcendentals=int(n_steps * B * n_heads * S_pad * S_pad),
        bytes_accessed=int(2 * Rt * H * 4 + 2 * (3 * H * H + H * H + 2 * H * inner)),
    )

    def build(single_buffer_weights):
        in_specs = [pl.BlockSpec((bb, S_pad, H), lambda i: (i, 0, 0))] + [
            _const_spec(a.shape, single_buffer_weights) for a in operands[1:]]
        return pl.pallas_call(
            kernel,
            out_shape=jax.ShapeDtypeStruct((B, S_pad, H), x.dtype),
            grid=(B // bb,),
            in_specs=in_specs,
            out_specs=pl.BlockSpec((bb, S_pad, H), lambda i: (i, 0, 0)),
            compiler_params=pltpu.CompilerParams(
                dimension_semantics=("parallel",),
                vmem_limit_bytes=vmem_limit,
            ),
            cost_estimate=cost,
        )

    try:
        out = build(True)(*operands)
    except Exception:
        # Fallback for jax versions where single-buffered (Buffered(1)) weight
        # blocks are rejected; identical kernel, default double-buffered specs.
        out = build(False)(*operands)

    if S_pad != S:
        out = out[:, :S]
    return out


def sinusoid_position_encoding(seq_len, hidden):
    pos = np.arange(seq_len)[:, None].astype(np.float64)
    j = np.arange(hidden)[None, :]
    angle = pos / np.power(10000.0, (2.0 * (j // 2)) / hidden)
    pe = np.where(j % 2 == 0, np.sin(angle), np.cos(angle))
    return jnp.asarray(pe, dtype=jnp.float32)


def init_params(key, seq_len, hidden, n_heads, inner_factor):
    d_k = hidden // n_heads
    inner = hidden * inner_factor
    ks = jax.random.split(key, 6)
    return {
        "pos": sinusoid_position_encoding(seq_len, hidden),
        "wq": jax.random.normal(ks[0], (n_heads, hidden, d_k), jnp.float32) / np.sqrt(hidden),
        "wk": jax.random.normal(ks[1], (n_heads, hidden, d_k), jnp.float32) / np.sqrt(hidden),
        "wv": jax.random.normal(ks[2], (n_heads, hidden, d_k), jnp.float32) / np.sqrt(hidden),
        "wo": jax.random.normal(ks[3], (n_heads, d_k, hidden), jnp.float32) / np.sqrt(n_heads * d_k),
        "bo": jnp.zeros((1, hidden), jnp.float32),
        "ln1_g": jnp.ones((1, hidden), jnp.float32),
        "ln1_b": jnp.zeros((1, hidden), jnp.float32),
        "w1": jax.random.normal(ks[4], (hidden, inner), jnp.float32) / np.sqrt(hidden),
        "b1": jnp.zeros((1, inner), jnp.float32),
        "w2": jax.random.normal(ks[5], (inner, hidden), jnp.float32) / np.sqrt(inner),
        "b2": jnp.zeros((1, hidden), jnp.float32),
        "ln2_g": jnp.ones((1, hidden), jnp.float32),
        "ln2_b": jnp.zeros((1, hidden), jnp.float32),
    }


def reference_forward(x, params, *, n_steps, n_heads, compute_dtype=jnp.bfloat16):
    """Pure-JAX reference mirroring the PyTorch module (eval mode).

    Matmul operands are cast to compute_dtype (f32 accumulation) to mirror the
    kernel's MXU precision; pass compute_dtype=jnp.float32 for exact f32 math.
    """
    B, S, H = x.shape
    d_k = H // n_heads
    scale = 1.0 / math.sqrt(d_k)
    c = compute_dtype
    f32 = jnp.float32

    wq = (params["wq"] * scale).astype(c)   # same scale-folded weights as the kernel
    wk = params["wk"].astype(c)
    wv = params["wv"].astype(c)
    wo = params["wo"].astype(c)
    w1 = params["w1"].astype(c)
    w2 = params["w2"].astype(c)

    x = x + params["pos"][None]
    for _ in range(n_steps):
        residual = x
        q = jnp.einsum("bsh,nhd->bnsd", x.astype(c), wq, preferred_element_type=f32)
        k = jnp.einsum("bsh,nhd->bnsd", x.astype(c), wk, preferred_element_type=f32)
        v = jnp.einsum("bsh,nhd->bnsd", x.astype(c), wv, preferred_element_type=f32)
        sc = jnp.einsum("bnsd,bntd->bnst", q.astype(c), k.astype(c), preferred_element_type=f32)
        attn = jax.nn.softmax(sc, axis=-1)
        heads = jnp.einsum("bnst,bntd->bnsd", attn.astype(c), v.astype(c), preferred_element_type=f32)
        out = jnp.einsum("bnsd,ndh->bsh", heads.astype(c), wo, preferred_element_type=f32) + params["bo"]
        x = _layer_norm(out + residual, params["ln1_g"], params["ln1_b"])

        residual = x
        hid = jax.nn.relu(jnp.einsum("bsh,hi->bsi", x.astype(c), w1, preferred_element_type=f32) + params["b1"])
        ffn = jnp.einsum("bsi,ih->bsh", hid.astype(c), w2, preferred_element_type=f32) + params["b2"]
        x = _layer_norm(ffn + residual, params["ln2_g"], params["ln2_b"])
    return x


if __name__ == "__main__":
    B, S, H = 2, 8, 32
    n_heads, n_steps, inner_factor = 4, 3, 2

    key = jax.random.PRNGKey(0)
    k_x, k_p = jax.random.split(key)
    x = jax.random.normal(k_x, (B, S, H), jnp.float32)
    params = init_params(k_p, S, H, n_heads, inner_factor)

    out = recurrent_self_attention_decoder(x, params, n_steps=n_steps, n_heads=n_heads)
    out = jax.block_until_ready(out)

    ref = jax.block_until_ready(
        reference_forward(x, params, n_steps=n_steps, n_heads=n_heads))
    np.testing.assert_allclose(np.asarray(out), np.asarray(ref), rtol=2e-2, atol=2e-2)

    print("KERNEL_OK")
</pallas_src>

<mosaic_0001>
module attributes {stable_mosaic.version = 11 : i64} {
  func.func @decoder_kernel(%arg0: i32, %arg1: memref<2x8x32xf32, #tpu.memory_space<vmem>>, %arg2: memref<8x32xf32, #tpu.memory_space<vmem>>, %arg3: memref<32x96xbf16, #tpu.memory_space<vmem>>, %arg4: memref<32x32xbf16, #tpu.memory_space<vmem>>, %arg5: memref<32x64xbf16, #tpu.memory_space<vmem>>, %arg6: memref<64x32xbf16, #tpu.memory_space<vmem>>, %arg7: memref<6x32xf32, #tpu.memory_space<vmem>>, %arg8: memref<1x64xf32, #tpu.memory_space<vmem>>, %arg9: memref<2x8x32xf32, #tpu.memory_space<vmem>>) attributes {dimension_semantics = [#tpu.dimension_semantics<parallel>], iteration_bounds = array<i64: 1>, scalar_prefetch = 0 : i64, scratch_operands = 0 : i64, tpu.core_type = #tpu.core_type<tc>, window_params = [{transform_indices = @transform_0, window_bounds = array<i64: 2, 8, 32>}, {pipeline_mode = #tpu.pipeline_mode<synchronous>, transform_indices = @transform_1, window_bounds = array<i64: 8, 32>}, {pipeline_mode = #tpu.pipeline_mode<synchronous>, transform_indices = @transform_2, window_bounds = array<i64: 32, 96>}, {pipeline_mode = #tpu.pipeline_mode<synchronous>, transform_indices = @transform_3, window_bounds = array<i64: 32, 32>}, {pipeline_mode = #tpu.pipeline_mode<synchronous>, transform_indices = @transform_4, window_bounds = array<i64: 32, 64>}, {pipeline_mode = #tpu.pipeline_mode<synchronous>, transform_indices = @transform_5, window_bounds = array<i64: 64, 32>}, {pipeline_mode = #tpu.pipeline_mode<synchronous>, transform_indices = @transform_6, window_bounds = array<i64: 6, 32>}, {pipeline_mode = #tpu.pipeline_mode<synchronous>, transform_indices = @transform_7, window_bounds = array<i64: 1, 64>}, {transform_indices = @transform_8, window_bounds = array<i64: 2, 8, 32>}]} {
    %c0 = arith.constant 0 : index
    %c0_0 = arith.constant 0 : index
    %c0_1 = arith.constant 0 : index
    %0 = vector.load %arg1[%c0, %c0_0, %c0_1] : memref<2x8x32xf32, #tpu.memory_space<vmem>>, vector<2x8x32xf32>
    %c0_2 = arith.constant 0 : index
    %c0_3 = arith.constant 0 : index
    %1 = vector.load %arg2[%c0_2, %c0_3] : memref<8x32xf32, #tpu.memory_space<vmem>>, vector<8x32xf32>
    %2 = vector.shape_cast %1 : vector<8x32xf32> to vector<1x8x32xf32>
    %3 = vector.broadcast %2 : vector<1x8x32xf32> to vector<2x8x32xf32>
    %4 = arith.addf %0, %3 : vector<2x8x32xf32>
    %5 = vector.shape_cast %4 : vector<2x8x32xf32> to vector<16x32xf32>
    %c0_4 = arith.constant 0 : index
    %c0_5 = arith.constant 0 : index
    %6 = vector.load %arg3[%c0_4, %c0_5] : memref<32x96xbf16, #tpu.memory_space<vmem>>, vector<32x96xbf16>
    %c0_6 = arith.constant 0 : index
    %c0_7 = arith.constant 0 : index
    %7 = vector.load %arg4[%c0_6, %c0_7] : memref<32x32xbf16, #tpu.memory_space<vmem>>, vector<32x32xbf16>
    %c0_8 = arith.constant 0 : index
    %c0_9 = arith.constant 0 : index
    %8 = vector.load %arg5[%c0_8, %c0_9] : memref<32x64xbf16, #tpu.memory_space<vmem>>, vector<32x64xbf16>
    %c0_10 = arith.constant 0 : index
    %c0_11 = arith.constant 0 : index
    %9 = vector.load %arg6[%c0_10, %c0_11] : memref<64x32xbf16, #tpu.memory_space<vmem>>, vector<64x32xbf16>
    %c0_12 = arith.constant 0 : index
    %c0_13 = arith.constant 0 : index
    %10 = vector.load %arg8[%c0_12, %c0_13] : memref<1x64xf32, #tpu.memory_space<vmem>>, vector<1x64xf32>
    %c0_14 = arith.constant 0 : index
    %c0_15 = arith.constant 0 : index
    %11 = vector.load %arg7[%c0_14, %c0_15] : memref<6x32xf32, #tpu.memory_space<vmem>>, vector<6x32xf32>
    %12 = vector.extract_strided_slice %11 {offsets = [0, 0], sizes = [1, 32], strides = [1, 1]} : vector<6x32xf32> to vector<1x32xf32>
    %13 = vector.extract_strided_slice %11 {offsets = [1, 0], sizes = [1, 32], strides = [1, 1]} : vector<6x32xf32> to vector<1x32xf32>
    %14 = vector.extract_strided_slice %11 {offsets = [2, 0], sizes = [1, 32], strides = [1, 1]} : vector<6x32xf32> to vector<1x32xf32>
    %15 = vector.extract_strided_slice %11 {offsets = [3, 0], sizes = [1, 32], strides = [1, 1]} : vector<6x32xf32> to vector<1x32xf32>
    %16 = vector.extract_strided_slice %11 {offsets = [4, 0], sizes = [1, 32], strides = [1, 1]} : vector<6x32xf32> to vector<1x32xf32>
    %17 = vector.extract_strided_slice %11 {offsets = [5, 0], sizes = [1, 32], strides = [1, 1]} : vector<6x32xf32> to vector<1x32xf32>
    %c0_i32 = arith.constant 0 : i32
    %18 = arith.truncf %5 : vector<16x32xf32> to vector<16x32xbf16>
    %cst = arith.constant dense<0.000000e+00> : vector<16x96xf32>
    %19 = tpu.matmul %18, %6, %cst {dimension_numbers = #tpu.dot_dimension_numbers<[1], [0], [0], [1], [0, 0, 1, 1], [], []>} : vector<16x32xbf16>, vector<32x96xbf16>, vector<16x96xf32> -> vector<16x96xf32>
    %20 = arith.truncf %19 : vector<16x96xf32> to vector<16x96xbf16>
    %21 = vector.shape_cast %20 : vector<16x96xbf16> to vector<2x8x96xbf16>
    %22 = tpu.transpose %21, [0, 2, 1] : vector<2x8x96xbf16> -> vector<2x96x8xbf16>
    %23 = vector.shape_cast %22 : vector<2x96x8xbf16> to vector<2x12x8x8xbf16>
    %24 = vector.extract_strided_slice %23 {offsets = [0, 0, 0, 0], sizes = [2, 4, 8, 8], strides = [1, 1, 1, 1]} : vector<2x12x8x8xbf16> to vector<2x4x8x8xbf16>
    %25 = vector.shape_cast %24 : vector<2x4x8x8xbf16> to vector<8x8x8xbf16>
    %26 = tpu.transpose %25, [0, 2, 1] : vector<8x8x8xbf16> -> vector<8x8x8xbf16>
    %27 = vector.extract_strided_slice %23 {offsets = [0, 4, 0, 0], sizes = [2, 4, 8, 8], strides = [1, 1, 1, 1]} : vector<2x12x8x8xbf16> to vector<2x4x8x8xbf16>
    %28 = vector.shape_cast %27 : vector<2x4x8x8xbf16> to vector<8x8x8xbf16>
    %29 = tpu.transpose %28, [0, 2, 1] : vector<8x8x8xbf16> -> vector<8x8x8xbf16>
    %30 = vector.extract_strided_slice %23 {offsets = [0, 8, 0, 0], sizes = [2, 4, 8, 8], strides = [1, 1, 1, 1]} : vector<2x12x8x8xbf16> to vector<2x4x8x8xbf16>
    %31 = vector.shape_cast %30 : vector<2x4x8x8xbf16> to vector<8x8x8xbf16>
    "tpu.trace_start"() <{level = 10 : i32, message = "gtd,gsd->gts"}> : () -> ()
    %cst_16 = arith.constant dense<0.000000e+00> : vector<8x8x8xf32>
    %32 = tpu.matmul %29, %26, %cst_16 {dimension_numbers = #tpu.dot_dimension_numbers<[2], [2], [1], [1], [0, 0, 0, 1, 1, 1], [0], [0]>} : vector<8x8x8xbf16>, vector<8x8x8xbf16>, vector<8x8x8xf32> -> vector<8x8x8xf32>
    "tpu.trace_stop"() : () -> ()
    %cst_17 = arith.constant dense<0xFF800000> : vector<8x8xf32>
    %33 = vector.multi_reduction <maximumf>, %32, %cst_17 [1] : vector<8x8x8xf32> to vector<8x8xf32>
    %34 = vector.shape_cast %33 : vector<8x8xf32> to vector<8x1x8xf32>
    %35 = vector.broadcast %34 : vector<8x1x8xf32> to vector<8x8x8xf32>
    %36 = arith.subf %32, %35 : vector<8x8x8xf32>
    %37 = math.exp %36 : vector<8x8x8xf32>
    %cst_18 = arith.constant dense<0.000000e+00> : vector<8x8xf32>
    %38 = vector.multi_reduction <add>, %37, %cst_18 [1] : vector<8x8x8xf32> to vector<8x8xf32>
    %39 = vector.shape_cast %38 : vector<8x8xf32> to vector<8x1x8xf32>
    %40 = arith.truncf %37 : vector<8x8x8xf32> to vector<8x8x8xbf16>
    "tpu.trace_start"() <{level = 10 : i32, message = "gdt,gts->gds"}> : () -> ()
    %cst_19 = arith.constant dense<0.000000e+00> : vector<8x8x8xf32>
    %41 = tpu.matmul %31, %40, %cst_19 {dimension_numbers = #tpu.dot_dimension_numbers<[2], [1], [1], [2], [0, 0, 0, 1, 1, 2], [0], [0]>} : vector<8x8x8xbf16>, vector<8x8x8xbf16>, vector<8x8x8xf32> -> vector<8x8x8xf32>
    "tpu.trace_stop"() : () -> ()
    %42 = tpu.reciprocal %39 {approx = true} : vector<8x1x8xf32> -> vector<8x1x8xf32>
    %43 = vector.broadcast %42 : vector<8x1x8xf32> to vector<8x8x8xf32>
    %44 = arith.mulf %41, %43 : vector<8x8x8xf32>
    %45 = arith.truncf %44 : vector<8x8x8xf32> to vector<8x8x8xbf16>
    %46 = vector.shape_cast %45 : vector<8x8x8xbf16> to vector<2x32x8xbf16>
    %47 = tpu.transpose %46, [0, 2, 1] : vector<2x32x8xbf16> -> vector<2x8x32xbf16>
    %48 = vector.shape_cast %47 : vector<2x8x32xbf16> to vector<16x32xbf16>
    %cst_20 = arith.constant dense<0.000000e+00> : vector<16x32xf32>
    %49 = tpu.matmul %48, %7, %cst_20 {dimension_numbers = #tpu.dot_dimension_numbers<[1], [0], [0], [1], [0, 0, 1, 1], [], []>} : vector<16x32xbf16>, vector<32x32xbf16>, vector<16x32xf32> -> vector<16x32xf32>
    %50 = vector.broadcast %12 : vector<1x32xf32> to vector<16x32xf32>
    %51 = arith.addf %49, %50 : vector<16x32xf32>
    %52 = arith.addf %51, %5 : vector<16x32xf32>
    %cst_21 = arith.constant dense<0.000000e+00> : vector<16xf32>
    %53 = vector.multi_reduction <add>, %52, %cst_21 [1] : vector<16x32xf32> to vector<16xf32>
    %54 = vector.shape_cast %53 : vector<16xf32> to vector<16x1xf32>
    %cst_22 = arith.constant 3.200000e+01 : f32
    %55 = vector.broadcast %cst_22 : f32 to vector<16x1xf32>
    %56 = arith.divf %54, %55 : vector<16x1xf32>
    %57 = vector.broadcast %56 : vector<16x1xf32> to vector<16x32xf32>
    %58 = arith.subf %52, %57 : vector<16x32xf32>
    %59 = arith.mulf %58, %58 : vector<16x32xf32>
    %cst_23 = arith.constant dense<0.000000e+00> : vector<16xf32>
    %60 = vector.multi_reduction <add>, %59, %cst_23 [1] : vector<16x32xf32> to vector<16xf32>
    %61 = vector.shape_cast %60 : vector<16xf32> to vector<16x1xf32>
    %cst_24 = arith.constant 3.200000e+01 : f32
    %62 = vector.broadcast %cst_24 : f32 to vector<16x1xf32>
    %63 = arith.divf %61, %62 : vector<16x1xf32>
    %64 = vector.broadcast %56 : vector<16x1xf32> to vector<16x32xf32>
    %65 = arith.subf %52, %64 : vector<16x32xf32>
    %cst_25 = arith.constant 9.99999974E-6 : f32
    %66 = vector.broadcast %cst_25 : f32 to vector<16x1xf32>
    %67 = arith.addf %63, %66 : vector<16x1xf32>
    %68 = math.rsqrt %67 : vector<16x1xf32>
    %69 = vector.broadcast %68 : vector<16x1xf32> to vector<16x32xf32>
    %70 = arith.mulf %65, %69 : vector<16x32xf32>
    %71 = vector.broadcast %13 : vector<1x32xf32> to vector<16x32xf32>
    %72 = arith.mulf %70, %71 : vector<16x32xf32>
    %73 = vector.broadcast %14 : vector<1x32xf32> to vector<16x32xf32>
    %74 = arith.addf %72, %73 : vector<16x32xf32>
    %75 = arith.truncf %74 : vector<16x32xf32> to vector<16x32xbf16>
    %cst_26 = arith.constant dense<0.000000e+00> : vector<16x64xf32>
    %76 = tpu.matmul %75, %8, %cst_26 {dimension_numbers = #tpu.dot_dimension_numbers<[1], [0], [0], [1], [0, 0, 1, 1], [], []>} : vector<16x32xbf16>, vector<32x64xbf16>, vector<16x64xf32> -> vector<16x64xf32>
    %77 = vector.broadcast %10 : vector<1x64xf32> to vector<16x64xf32>
    %78 = arith.addf %76, %77 : vector<16x64xf32>
    %cst_27 = arith.constant 0.000000e+00 : f32
    %79 = vector.broadcast %cst_27 : f32 to vector<16x64xf32>
    %80 = arith.maximumf %78, %79 : vector<16x64xf32>
    %81 = arith.truncf %80 : vector<16x64xf32> to vector<16x64xbf16>
    %cst_28 = arith.constant dense<0.000000e+00> : vector<16x32xf32>
    %82 = tpu.matmul %81, %9, %cst_28 {dimension_numbers = #tpu.dot_dimension_numbers<[1], [0], [0], [1], [0, 0, 1, 1], [], []>} : vector<16x64xbf16>, vector<64x32xbf16>, vector<16x32xf32> -> vector<16x32xf32>
    %83 = vector.broadcast %15 : vector<1x32xf32> to vector<16x32xf32>
    %84 = arith.addf %82, %83 : vector<16x32xf32>
    %85 = arith.addf %84, %74 : vector<16x32xf32>
    %cst_29 = arith.constant dense<0.000000e+00> : vector<16xf32>
    %86 = vector.multi_reduction <add>, %85, %cst_29 [1] : vector<16x32xf32> to vector<16xf32>
    %87 = vector.shape_cast %86 : vector<16xf32> to vector<16x1xf32>
    %cst_30 = arith.constant 3.200000e+01 : f32
    %88 = vector.broadcast %cst_30 : f32 to vector<16x1xf32>
    %89 = arith.divf %87, %88 : vector<16x1xf32>
    %90 = vector.broadcast %89 : vector<16x1xf32> to vector<16x32xf32>
    %91 = arith.subf %85, %90 : vector<16x32xf32>
    %92 = arith.mulf %91, %91 : vector<16x32xf32>
    %cst_31 = arith.constant dense<0.000000e+00> : vector<16xf32>
    %93 = vector.multi_reduction <add>, %92, %cst_31 [1] : vector<16x32xf32> to vector<16xf32>
    %94 = vector.shape_cast %93 : vector<16xf32> to vector<16x1xf32>
    %cst_32 = arith.constant 3.200000e+01 : f32
    %95 = vector.broadcast %cst_32 : f32 to vector<16x1xf32>
    %96 = arith.divf %94, %95 : vector<16x1xf32>
    %97 = vector.broadcast %89 : vector<16x1xf32> to vector<16x32xf32>
    %98 = arith.subf %85, %97 : vector<16x32xf32>
    %cst_33 = arith.constant 9.99999974E-6 : f32
    %99 = vector.broadcast %cst_33 : f32 to vector<16x1xf32>
    %100 = arith.addf %96, %99 : vector<16x1xf32>
    %101 = math.rsqrt %100 : vector<16x1xf32>
    %102 = vector.broadcast %101 : vector<16x1xf32> to vector<16x32xf32>
    %103 = arith.mulf %98, %102 : vector<16x32xf32>
    %104 = vector.broadcast %16 : vector<1x32xf32> to vector<16x32xf32>
    %105 = arith.mulf %103, %104 : vector<16x32xf32>
    %106 = vector.broadcast %17 : vector<1x32xf32> to vector<16x32xf32>
    %107 = arith.addf %105, %106 : vector<16x32xf32>
    %c1_i32 = arith.constant 1 : i32
    %108 = arith.truncf %107 : vector<16x32xf32> to vector<16x32xbf16>
    %cst_34 = arith.constant dense<0.000000e+00> : vector<16x96xf32>
    %109 = tpu.matmul %108, %6, %cst_34 {dimension_numbers = #tpu.dot_dimension_numbers<[1], [0], [0], [1], [0, 0, 1, 1], [], []>} : vector<16x32xbf16>, vector<32x96xbf16>, vector<16x96xf32> -> vector<16x96xf32>
    %110 = arith.truncf %109 : vector<16x96xf32> to vector<16x96xbf16>
    %111 = vector.shape_cast %110 : vector<16x96xbf16> to vector<2x8x96xbf16>
    %112 = tpu.transpose %111, [0, 2, 1] : vector<2x8x96xbf16> -> vector<2x96x8xbf16>
    %113 = vector.shape_cast %112 : vector<2x96x8xbf16> to vector<2x12x8x8xbf16>
    %114 = vector.extract_strided_slice %113 {offsets = [0, 0, 0, 0], sizes = [2, 4, 8, 8], strides = [1, 1, 1, 1]} : vector<2x12x8x8xbf16> to vector<2x4x8x8xbf16>
    %115 = vector.shape_cast %114 : vector<2x4x8x8xbf16> to vector<8x8x8xbf16>
    %116 = tpu.transpose %115, [0, 2, 1] : vector<8x8x8xbf16> -> vector<8x8x8xbf16>
    %117 = vector.extract_strided_slice %113 {offsets = [0, 4, 0, 0], sizes = [2, 4, 8, 8], strides = [1, 1, 1, 1]} : vector<2x12x8x8xbf16> to vector<2x4x8x8xbf16>
    %118 = vector.shape_cast %117 : vector<2x4x8x8xbf16> to vector<8x8x8xbf16>
    %119 = tpu.transpose %118, [0, 2, 1] : vector<8x8x8xbf16> -> vector<8x8x8xbf16>
    %120 = vector.extract_strided_slice %113 {offsets = [0, 8, 0, 0], sizes = [2, 4, 8, 8], strides = [1, 1, 1, 1]} : vector<2x12x8x8xbf16> to vector<2x4x8x8xbf16>
    %121 = vector.shape_cast %120 : vector<2x4x8x8xbf16> to vector<8x8x8xbf16>
    "tpu.trace_start"() <{level = 10 : i32, message = "gtd,gsd->gts"}> : () -> ()
    %cst_35 = arith.constant dense<0.000000e+00> : vector<8x8x8xf32>
    %122 = tpu.matmul %119, %116, %cst_35 {dimension_numbers = #tpu.dot_dimension_numbers<[2], [2], [1], [1], [0, 0, 0, 1, 1, 1], [0], [0]>} : vector<8x8x8xbf16>, vector<8x8x8xbf16>, vector<8x8x8xf32> -> vector<8x8x8xf32>
    "tpu.trace_stop"() : () -> ()
    %cst_36 = arith.constant dense<0xFF800000> : vector<8x8xf32>
    %123 = vector.multi_reduction <maximumf>, %122, %cst_36 [1] : vector<8x8x8xf32> to vector<8x8xf32>
    %124 = vector.shape_cast %123 : vector<8x8xf32> to vector<8x1x8xf32>
    %125 = vector.broadcast %124 : vector<8x1x8xf32> to vector<8x8x8xf32>
    %126 = arith.subf %122, %125 : vector<8x8x8xf32>
    %127 = math.exp %126 : vector<8x8x8xf32>
    %cst_37 = arith.constant dense<0.000000e+00> : vector<8x8xf32>
    %128 = vector.multi_reduction <add>, %127, %cst_37 [1] : vector<8x8x8xf32> to vector<8x8xf32>
    %129 = vector.shape_cast %128 : vector<8x8xf32> to vector<8x1x8xf32>
    %130 = arith.truncf %127 : vector<8x8x8xf32> to vector<8x8x8xbf16>
    "tpu.trace_start"() <{level = 10 : i32, message = "gdt,gts->gds"}> : () -> ()
    %cst_38 = arith.constant dense<0.000000e+00> : vector<8x8x8xf32>
    %131 = tpu.matmul %121, %130, %cst_38 {dimension_numbers = #tpu.dot_dimension_numbers<[2], [1], [1], [2], [0, 0, 0, 1, 1, 2], [0], [0]>} : vector<8x8x8xbf16>, vector<8x8x8xbf16>, vector<8x8x8xf32> -> vector<8x8x8xf32>
    "tpu.trace_stop"() : () -> ()
    %132 = tpu.reciprocal %129 {approx = true} : vector<8x1x8xf32> -> vector<8x1x8xf32>
    %133 = vector.broadcast %132 : vector<8x1x8xf32> to vector<8x8x8xf32>
    %134 = arith.mulf %131, %133 : vector<8x8x8xf32>
    %135 = arith.truncf %134 : vector<8x8x8xf32> to vector<8x8x8xbf16>
    %136 = vector.shape_cast %135 : vector<8x8x8xbf16> to vector<2x32x8xbf16>
    %137 = tpu.transpose %136, [0, 2, 1] : vector<2x32x8xbf16> -> vector<2x8x32xbf16>
    %138 = vector.shape_cast %137 : vector<2x8x32xbf16> to vector<16x32xbf16>
    %cst_39 = arith.constant dense<0.000000e+00> : vector<16x32xf32>
    %139 = tpu.matmul %138, %7, %cst_39 {dimension_numbers = #tpu.dot_dimension_numbers<[1], [0], [0], [1], [0, 0, 1, 1], [], []>} : vector<16x32xbf16>, vector<32x32xbf16>, vector<16x32xf32> -> vector<16x32xf32>
    %140 = vector.broadcast %12 : vector<1x32xf32> to vector<16x32xf32>
    %141 = arith.addf %139, %140 : vector<16x32xf32>
    %142 = arith.addf %141, %107 : vector<16x32xf32>
    %cst_40 = arith.constant dense<0.000000e+00> : vector<16xf32>
    %143 = vector.multi_reduction <add>, %142, %cst_40 [1] : vector<16x32xf32> to vector<16xf32>
    %144 = vector.shape_cast %143 : vector<16xf32> to vector<16x1xf32>
    %cst_41 = arith.constant 3.200000e+01 : f32
    %145 = vector.broadcast %cst_41 : f32 to vector<16x1xf32>
    %146 = arith.divf %144, %145 : vector<16x1xf32>
    %147 = vector.broadcast %146 : vector<16x1xf32> to vector<16x32xf32>
    %148 = arith.subf %142, %147 : vector<16x32xf32>
    %149 = arith.mulf %148, %148 : vector<16x32xf32>
    %cst_42 = arith.constant dense<0.000000e+00> : vector<16xf32>
    %150 = vector.multi_reduction <add>, %149, %cst_42 [1] : vector<16x32xf32> to vector<16xf32>
    %151 = vector.shape_cast %150 : vector<16xf32> to vector<16x1xf32>
    %cst_43 = arith.constant 3.200000e+01 : f32
    %152 = vector.broadcast %cst_43 : f32 to vector<16x1xf32>
    %153 = arith.divf %151, %152 : vector<16x1xf32>
    %154 = vector.broadcast %146 : vector<16x1xf32> to vector<16x32xf32>
    %155 = arith.subf %142, %154 : vector<16x32xf32>
    %cst_44 = arith.constant 9.99999974E-6 : f32
    %156 = vector.broadcast %cst_44 : f32 to vector<16x1xf32>
    %157 = arith.addf %153, %156 : vector<16x1xf32>
    %158 = math.rsqrt %157 : vector<16x1xf32>
    %159 = vector.broadcast %158 : vector<16x1xf32> to vector<16x32xf32>
    %160 = arith.mulf %155, %159 : vector<16x32xf32>
    %161 = vector.broadcast %13 : vector<1x32xf32> to vector<16x32xf32>
    %162 = arith.mulf %160, %161 : vector<16x32xf32>
    %163 = vector.broadcast %14 : vector<1x32xf32> to vector<16x32xf32>
    %164 = arith.addf %162, %163 : vector<16x32xf32>
    %165 = arith.truncf %164 : vector<16x32xf32> to vector<16x32xbf16>
    %cst_45 = arith.constant dense<0.000000e+00> : vector<16x64xf32>
    %166 = tpu.matmul %165, %8, %cst_45 {dimension_numbers = #tpu.dot_dimension_numbers<[1], [0], [0], [1], [0, 0, 1, 1], [], []>} : vector<16x32xbf16>, vector<32x64xbf16>, vector<16x64xf32> -> vector<16x64xf32>
    %167 = vector.broadcast %10 : vector<1x64xf32> to vector<16x64xf32>
    %168 = arith.addf %166, %167 : vector<16x64xf32>
    %cst_46 = arith.constant 0.000000e+00 : f32
    %169 = vector.broadcast %cst_46 : f32 to vector<16x64xf32>
    %170 = arith.maximumf %168, %169 : vector<16x64xf32>
    %171 = arith.truncf %170 : vector<16x64xf32> to vector<16x64xbf16>
    %cst_47 = arith.constant dense<0.000000e+00> : vector<16x32xf32>
    %172 = tpu.matmul %171, %9, %cst_47 {dimension_numbers = #tpu.dot_dimension_numbers<[1], [0], [0], [1], [0, 0, 1, 1], [], []>} : vector<16x64xbf16>, vector<64x32xbf16>, vector<16x32xf32> -> vector<16x32xf32>
    %173 = vector.broadcast %15 : vector<1x32xf32> to vector<16x32xf32>
    %174 = arith.addf %172, %173 : vector<16x32xf32>
    %175 = arith.addf %174, %164 : vector<16x32xf32>
    %cst_48 = arith.constant dense<0.000000e+00> : vector<16xf32>
    %176 = vector.multi_reduction <add>, %175, %cst_48 [1] : vector<16x32xf32> to vector<16xf32>
    %177 = vector.shape_cast %176 : vector<16xf32> to vector<16x1xf32>
    %cst_49 = arith.constant 3.200000e+01 : f32
    %178 = vector.broadcast %cst_49 : f32 to vector<16x1xf32>
    %179 = arith.divf %177, %178 : vector<16x1xf32>
    %180 = vector.broadcast %179 : vector<16x1xf32> to vector<16x32xf32>
    %181 = arith.subf %175, %180 : vector<16x32xf32>
    %182 = arith.mulf %181, %181 : vector<16x32xf32>
    %cst_50 = arith.constant dense<0.000000e+00> : vector<16xf32>
    %183 = vector.multi_reduction <add>, %182, %cst_50 [1] : vector<16x32xf32> to vector<16xf32>
    %184 = vector.shape_cast %183 : vector<16xf32> to vector<16x1xf32>
    %cst_51 = arith.constant 3.200000e+01 : f32
    %185 = vector.broadcast %cst_51 : f32 to vector<16x1xf32>
    %186 = arith.divf %184, %185 : vector<16x1xf32>
    %187 = vector.broadcast %179 : vector<16x1xf32> to vector<16x32xf32>
    %188 = arith.subf %175, %187 : vector<16x32xf32>
    %cst_52 = arith.constant 9.99999974E-6 : f32
    %189 = vector.broadcast %cst_52 : f32 to vector<16x1xf32>
    %190 = arith.addf %186, %189 : vector<16x1xf32>
    %191 = math.rsqrt %190 : vector<16x1xf32>
    %192 = vector.broadcast %191 : vector<16x1xf32> to vector<16x32xf32>
    %193 = arith.mulf %188, %192 : vector<16x32xf32>
    %194 = vector.broadcast %16 : vector<1x32xf32> to vector<16x32xf32>
    %195 = arith.mulf %193, %194 : vector<16x32xf32>
    %196 = vector.broadcast %17 : vector<1x32xf32> to vector<16x32xf32>
    %197 = arith.addf %195, %196 : vector<16x32xf32>
    %c2_i32 = arith.constant 2 : i32
    %198 = arith.truncf %197 : vector<16x32xf32> to vector<16x32xbf16>
    %cst_53 = arith.constant dense<0.000000e+00> : vector<16x96xf32>
    %199 = tpu.matmul %198, %6, %cst_53 {dimension_numbers = #tpu.dot_dimension_numbers<[1], [0], [0], [1], [0, 0, 1, 1], [], []>} : vector<16x32xbf16>, vector<32x96xbf16>, vector<16x96xf32> -> vector<16x96xf32>
    %200 = arith.truncf %199 : vector<16x96xf32> to vector<16x96xbf16>
    %201 = vector.shape_cast %200 : vector<16x96xbf16> to vector<2x8x96xbf16>
    %202 = tpu.transpose %201, [0, 2, 1] : vector<2x8x96xbf16> -> vector<2x96x8xbf16>
    %203 = vector.shape_cast %202 : vector<2x96x8xbf16> to vector<2x12x8x8xbf16>
    %204 = vector.extract_strided_slice %203 {offsets = [0, 0, 0, 0], sizes = [2, 4, 8, 8], strides = [1, 1, 1, 1]} : vector<2x12x8x8xbf16> to vector<2x4x8x8xbf16>
    %205 = vector.shape_cast %204 : vector<2x4x8x8xbf16> to vector<8x8x8xbf16>
    %206 = tpu.transpose %205, [0, 2, 1] : vector<8x8x8xbf16> -> vector<8x8x8xbf16>
    %207 = vector.extract_strided_slice %203 {offsets = [0, 4, 0, 0], sizes = [2, 4, 8, 8], strides = [1, 1, 1, 1]} : vector<2x12x8x8xbf16> to vector<2x4x8x8xbf16>
    %208 = vector.shape_cast %207 : vector<2x4x8x8xbf16> to vector<8x8x8xbf16>
    %209 = tpu.transpose %208, [0, 2, 1] : vector<8x8x8xbf16> -> vector<8x8x8xbf16>
    %210 = vector.extract_strided_slice %203 {offsets = [0, 8, 0, 0], sizes = [2, 4, 8, 8], strides = [1, 1, 1, 1]} : vector<2x12x8x8xbf16> to vector<2x4x8x8xbf16>
    %211 = vector.shape_cast %210 : vector<2x4x8x8xbf16> to vector<8x8x8xbf16>
    "tpu.trace_start"() <{level = 10 : i32, message = "gtd,gsd->gts"}> : () -> ()
    %cst_54 = arith.constant dense<0.000000e+00> : vector<8x8x8xf32>
    %212 = tpu.matmul %209, %206, %cst_54 {dimension_numbers = #tpu.dot_dimension_numbers<[2], [2], [1], [1], [0, 0, 0, 1, 1, 1], [0], [0]>} : vector<8x8x8xbf16>, vector<8x8x8xbf16>, vector<8x8x8xf32> -> vector<8x8x8xf32>
    "tpu.trace_stop"() : () -> ()
    %cst_55 = arith.constant dense<0xFF800000> : vector<8x8xf32>
    %213 = vector.multi_reduction <maximumf>, %212, %cst_55 [1] : vector<8x8x8xf32> to vector<8x8xf32>
    %214 = vector.shape_cast %213 : vector<8x8xf32> to vector<8x1x8xf32>
    %215 = vector.broadcast %214 : vector<8x1x8xf32> to vector<8x8x8xf32>
    %216 = arith.subf %212, %215 : vector<8x8x8xf32>
    %217 = math.exp %216 : vector<8x8x8xf32>
    %cst_56 = arith.constant dense<0.000000e+00> : vector<8x8xf32>
    %218 = vector.multi_reduction <add>, %217, %cst_56 [1] : vector<8x8x8xf32> to vector<8x8xf32>
    %219 = vector.shape_cast %218 : vector<8x8xf32> to vector<8x1x8xf32>
    %220 = arith.truncf %217 : vector<8x8x8xf32> to vector<8x8x8xbf16>
    "tpu.trace_start"() <{level = 10 : i32, message = "gdt,gts->gds"}> : () -> ()
    %cst_57 = arith.constant dense<0.000000e+00> : vector<8x8x8xf32>
    %221 = tpu.matmul %211, %220, %cst_57 {dimension_numbers = #tpu.dot_dimension_numbers<[2], [1], [1], [2], [0, 0, 0, 1, 1, 2], [0], [0]>} : vector<8x8x8xbf16>, vector<8x8x8xbf16>, vector<8x8x8xf32> -> vector<8x8x8xf32>
    "tpu.trace_stop"() : () -> ()
    %222 = tpu.reciprocal %219 {approx = true} : vector<8x1x8xf32> -> vector<8x1x8xf32>
    %223 = vector.broadcast %222 : vector<8x1x8xf32> to vector<8x8x8xf32>
    %224 = arith.mulf %221, %223 : vector<8x8x8xf32>
    %225 = arith.truncf %224 : vector<8x8x8xf32> to vector<8x8x8xbf16>
    %226 = vector.shape_cast %225 : vector<8x8x8xbf16> to vector<2x32x8xbf16>
    %227 = tpu.transpose %226, [0, 2, 1] : vector<2x32x8xbf16> -> vector<2x8x32xbf16>
    %228 = vector.shape_cast %227 : vector<2x8x32xbf16> to vector<16x32xbf16>
    %cst_58 = arith.constant dense<0.000000e+00> : vector<16x32xf32>
    %229 = tpu.matmul %228, %7, %cst_58 {dimension_numbers = #tpu.dot_dimension_numbers<[1], [0], [0], [1], [0, 0, 1, 1], [], []>} : vector<16x32xbf16>, vector<32x32xbf16>, vector<16x32xf32> -> vector<16x32xf32>
    %230 = vector.broadcast %12 : vector<1x32xf32> to vector<16x32xf32>
    %231 = arith.addf %229, %230 : vector<16x32xf32>
    %232 = arith.addf %231, %197 : vector<16x32xf32>
    %cst_59 = arith.constant dense<0.000000e+00> : vector<16xf32>
    %233 = vector.multi_reduction <add>, %232, %cst_59 [1] : vector<16x32xf32> to vector<16xf32>
    %234 = vector.shape_cast %233 : vector<16xf32> to vector<16x1xf32>
    %cst_60 = arith.constant 3.200000e+01 : f32
    %235 = vector.broadcast %cst_60 : f32 to vector<16x1xf32>
    %236 = arith.divf %234, %235 : vector<16x1xf32>
    %237 = vector.broadcast %236 : vector<16x1xf32> to vector<16x32xf32>
    %238 = arith.subf %232, %237 : vector<16x32xf32>
    %239 = arith.mulf %238, %238 : vector<16x32xf32>
    %cst_61 = arith.constant dense<0.000000e+00> : vector<16xf32>
    %240 = vector.multi_reduction <add>, %239, %cst_61 [1] : vector<16x32xf32> to vector<16xf32>
    %241 = vector.shape_cast %240 : vector<16xf32> to vector<16x1xf32>
    %cst_62 = arith.constant 3.200000e+01 : f32
    %242 = vector.broadcast %cst_62 : f32 to vector<16x1xf32>
    %243 = arith.divf %241, %242 : vector<16x1xf32>
    %244 = vector.broadcast %236 : vector<16x1xf32> to vector<16x32xf32>
    %245 = arith.subf %232, %244 : vector<16x32xf32>
    %cst_63 = arith.constant 9.99999974E-6 : f32
    %246 = vector.broadcast %cst_63 : f32 to vector<16x1xf32>
    %247 = arith.addf %243, %246 : vector<16x1xf32>
    %248 = math.rsqrt %247 : vector<16x1xf32>
    %249 = vector.broadcast %248 : vector<16x1xf32> to vector<16x32xf32>
    %250 = arith.mulf %245, %249 : vector<16x32xf32>
    %251 = vector.broadcast %13 : vector<1x32xf32> to vector<16x32xf32>
    %252 = arith.mulf %250, %251 : vector<16x32xf32>
    %253 = vector.broadcast %14 : vector<1x32xf32> to vector<16x32xf32>
    %254 = arith.addf %252, %253 : vector<16x32xf32>
    %255 = arith.truncf %254 : vector<16x32xf32> to vector<16x32xbf16>
    %cst_64 = arith.constant dense<0.000000e+00> : vector<16x64xf32>
    %256 = tpu.matmul %255, %8, %cst_64 {dimension_numbers = #tpu.dot_dimension_numbers<[1], [0], [0], [1], [0, 0, 1, 1], [], []>} : vector<16x32xbf16>, vector<32x64xbf16>, vector<16x64xf32> -> vector<16x64xf32>
    %257 = vector.broadcast %10 : vector<1x64xf32> to vector<16x64xf32>
    %258 = arith.addf %256, %257 : vector<16x64xf32>
    %cst_65 = arith.constant 0.000000e+00 : f32
    %259 = vector.broadcast %cst_65 : f32 to vector<16x64xf32>
    %260 = arith.maximumf %258, %259 : vector<16x64xf32>
    %261 = arith.truncf %260 : vector<16x64xf32> to vector<16x64xbf16>
    %cst_66 = arith.constant dense<0.000000e+00> : vector<16x32xf32>
    %262 = tpu.matmul %261, %9, %cst_66 {dimension_numbers = #tpu.dot_dimension_numbers<[1], [0], [0], [1], [0, 0, 1, 1], [], []>} : vector<16x64xbf16>, vector<64x32xbf16>, vector<16x32xf32> -> vector<16x32xf32>
    %263 = vector.broadcast %15 : vector<1x32xf32> to vector<16x32xf32>
    %264 = arith.addf %262, %263 : vector<16x32xf32>
    %265 = arith.addf %264, %254 : vector<16x32xf32>
    %cst_67 = arith.constant dense<0.000000e+00> : vector<16xf32>
    %266 = vector.multi_reduction <add>, %265, %cst_67 [1] : vector<16x32xf32> to vector<16xf32>
    %267 = vector.shape_cast %266 : vector<16xf32> to vector<16x1xf32>
    %cst_68 = arith.constant 3.200000e+01 : f32
    %268 = vector.broadcast %cst_68 : f32 to vector<16x1xf32>
    %269 = arith.divf %267, %268 : vector<16x1xf32>
    %270 = vector.broadcast %269 : vector<16x1xf32> to vector<16x32xf32>
    %271 = arith.subf %265, %270 : vector<16x32xf32>
    %272 = arith.mulf %271, %271 : vector<16x32xf32>
    %cst_69 = arith.constant dense<0.000000e+00> : vector<16xf32>
    %273 = vector.multi_reduction <add>, %272, %cst_69 [1] : vector<16x32xf32> to vector<16xf32>
    %274 = vector.shape_cast %273 : vector<16xf32> to vector<16x1xf32>
    %cst_70 = arith.constant 3.200000e+01 : f32
    %275 = vector.broadcast %cst_70 : f32 to vector<16x1xf32>
    %276 = arith.divf %274, %275 : vector<16x1xf32>
    %277 = vector.broadcast %269 : vector<16x1xf32> to vector<16x32xf32>
    %278 = arith.subf %265, %277 : vector<16x32xf32>
    %cst_71 = arith.constant 9.99999974E-6 : f32
    %279 = vector.broadcast %cst_71 : f32 to vector<16x1xf32>
    %280 = arith.addf %276, %279 : vector<16x1xf32>
    %281 = math.rsqrt %280 : vector<16x1xf32>
    %282 = vector.broadcast %281 : vector<16x1xf32> to vector<16x32xf32>
    %283 = arith.mulf %278, %282 : vector<16x32xf32>
    %284 = vector.broadcast %16 : vector<1x32xf32> to vector<16x32xf32>
    %285 = arith.mulf %283, %284 : vector<16x32xf32>
    %286 = vector.broadcast %17 : vector<1x32xf32> to vector<16x32xf32>
    %287 = arith.addf %285, %286 : vector<16x32xf32>
    %288 = vector.shape_cast %287 : vector<16x32xf32> to vector<2x8x32xf32>
    %c0_72 = arith.constant 0 : index
    %c0_73 = arith.constant 0 : index
    %c0_74 = arith.constant 0 : index
    %289 = vector.load %arg9[%c0_72, %c0_73, %c0_74] : memref<2x8x32xf32, #tpu.memory_space<vmem>>, vector<2x8x32xf32>
    tpu.vector_store %arg9[%c0_72, %c0_73, %c0_74], %288 {strides = array<i32>} : memref<2x8x32xf32, #tpu.memory_space<vmem>>, vector<2x8x32xf32>,
    return
  }
  func.func @transform_0(%arg0: i32) -> (i32, i32, i32) {
    %c0_i32 = arith.constant 0 : i32
    %c0_i32_0 = arith.constant 0 : i32
    %c0_i32_1 = arith.constant 0 : i32
    return %arg0, %c0_i32, %c0_i32_0 : i32, i32, i32
  }
  func.func @transform_1(%arg0: i32) -> (i32, i32) {
    %c0_i32 = arith.constant 0 : i32
    %c0_i32_0 = arith.constant 0 : i32
    %c0_i32_1 = arith.constant 0 : i32
    return %c0_i32, %c0_i32_0 : i32, i32
  }
  func.func @transform_2(%arg0: i32) -> (i32, i32) {
    %c0_i32 = arith.constant 0 : i32
    %c0_i32_0 = arith.constant 0 : i32
    %c0_i32_1 = arith.constant 0 : i32
    return %c0_i32, %c0_i32_0 : i32, i32
  }
  func.func @transform_3(%arg0: i32) -> (i32, i32) {
    %c0_i32 = arith.constant 0 : i32
    %c0_i32_0 = arith.constant 0 : i32
    %c0_i32_1 = arith.constant 0 : i32
    return %c0_i32, %c0_i32_0 : i32, i32
  }
  func.func @transform_4(%arg0: i32) -> (i32, i32) {
    %c0_i32 = arith.constant 0 : i32
    %c0_i32_0 = arith.constant 0 : i32
    %c0_i32_1 = arith.constant 0 : i32
    return %c0_i32, %c0_i32_0 : i32, i32
  }
  func.func @transform_5(%arg0: i32) -> (i32, i32) {
    %c0_i32 = arith.constant 0 : i32
    %c0_i32_0 = arith.constant 0 : i32
    %c0_i32_1 = arith.constant 0 : i32
    return %c0_i32, %c0_i32_0 : i32, i32
  }
  func.func @transform_6(%arg0: i32) -> (i32, i32) {
    %c0_i32 = arith.constant 0 : i32
    %c0_i32_0 = arith.constant 0 : i32
    %c0_i32_1 = arith.constant 0 : i32
    return %c0_i32, %c0_i32_0 : i32, i32
  }
  func.func @transform_7(%arg0: i32) -> (i32, i32) {
    %c0_i32 = arith.constant 0 : i32
    %c0_i32_0 = arith.constant 0 : i32
    %c0_i32_1 = arith.constant 0 : i32
    return %c0_i32, %c0_i32_0 : i32, i32
  }
  func.func @transform_8(%arg0: i32) -> (i32, i32, i32) {
    %c0_i32 = arith.constant 0 : i32
    %c0_i32_0 = arith.constant 0 : i32
    %c0_i32_1 = arith.constant 0 : i32
    return %arg0, %c0_i32, %c0_i32_0 : i32, i32, i32
  }
}

module attributes {stable_mosaic.version = 11 : i64} {
  func.func @decoder_kernel(%arg0: i32, %arg1: memref<2x8x32xf32, #tpu.memory_space<vmem>>, %arg2: memref<8x32xf32, #tpu.memory_space<vmem>>, %arg3: memref<32x96xbf16, #tpu.memory_space<vmem>>, %arg4: memref<32x32xbf16, #tpu.memory_space<vmem>>, %arg5: memref<32x64xbf16, #tpu.memory_space<vmem>>, %arg6: memref<64x32xbf16, #tpu.memory_space<vmem>>, %arg7: memref<6x32xf32, #tpu.memory_space<vmem>>, %arg8: memref<1x64xf32, #tpu.memory_space<vmem>>, %arg9: memref<2x8x32xf32, #tpu.memory_space<vmem>>) attributes {dimension_semantics = [#tpu.dimension_semantics<parallel>], iteration_bounds = array<i64: 1>, scalar_prefetch = 0 : i64, scratch_operands = 0 : i64, tpu.core_type = #tpu.core_type<tc>, window_params = [{transform_indices = @transform_0, window_bounds = array<i64: 2, 8, 32>}, {pipeline_mode = #tpu.pipeline_mode<synchronous>, transform_indices = @transform_1, window_bounds = array<i64: 8, 32>}, {pipeline_mode = #tpu.pipeline_mode<synchronous>, transform_indices = @transform_2, window_bounds = array<i64: 32, 96>}, {pipeline_mode = #tpu.pipeline_mode<synchronous>, transform_indices = @transform_3, window_bounds = array<i64: 32, 32>}, {pipeline_mode = #tpu.pipeline_mode<synchronous>, transform_indices = @transform_4, window_bounds = array<i64: 32, 64>}, {pipeline_mode = #tpu.pipeline_mode<synchronous>, transform_indices = @transform_5, window_bounds = array<i64: 64, 32>}, {pipeline_mode = #tpu.pipeline_mode<synchronous>, transform_indices = @transform_6, window_bounds = array<i64: 6, 32>}, {pipeline_mode = #tpu.pipeline_mode<synchronous>, transform_indices = @transform_7, window_bounds = array<i64: 1, 64>}, {transform_indices = @transform_8, window_bounds = array<i64: 2, 8, 32>}]} {
    %c0 = arith.constant 0 : index
    %c0_0 = arith.constant 0 : index
    %c0_1 = arith.constant 0 : index
    %0 = vector.load %arg1[%c0, %c0_0, %c0_1] : memref<2x8x32xf32, #tpu.memory_space<vmem>>, vector<2x8x32xf32>
    %c0_2 = arith.constant 0 : index
    %c0_3 = arith.constant 0 : index
    %1 = vector.load %arg2[%c0_2, %c0_3] : memref<8x32xf32, #tpu.memory_space<vmem>>, vector<8x32xf32>
    %2 = vector.shape_cast %1 : vector<8x32xf32> to vector<1x8x32xf32>
    %3 = vector.broadcast %2 : vector<1x8x32xf32> to vector<2x8x32xf32>
    %4 = arith.addf %0, %3 : vector<2x8x32xf32>
    %5 = vector.shape_cast %4 : vector<2x8x32xf32> to vector<16x32xf32>
    %c0_4 = arith.constant 0 : index
    %c0_5 = arith.constant 0 : index
    %6 = vector.load %arg3[%c0_4, %c0_5] : memref<32x96xbf16, #tpu.memory_space<vmem>>, vector<32x96xbf16>
    %c0_6 = arith.constant 0 : index
    %c0_7 = arith.constant 0 : index
    %7 = vector.load %arg4[%c0_6, %c0_7] : memref<32x32xbf16, #tpu.memory_space<vmem>>, vector<32x32xbf16>
    %c0_8 = arith.constant 0 : index
    %c0_9 = arith.constant 0 : index
    %8 = vector.load %arg5[%c0_8, %c0_9] : memref<32x64xbf16, #tpu.memory_space<vmem>>, vector<32x64xbf16>
    %c0_10 = arith.constant 0 : index
    %c0_11 = arith.constant 0 : index
    %9 = vector.load %arg6[%c0_10, %c0_11] : memref<64x32xbf16, #tpu.memory_space<vmem>>, vector<64x32xbf16>
    %c0_12 = arith.constant 0 : index
    %c0_13 = arith.constant 0 : index
    %10 = vector.load %arg8[%c0_12, %c0_13] : memref<1x64xf32, #tpu.memory_space<vmem>>, vector<1x64xf32>
    %c0_14 = arith.constant 0 : index
    %c0_15 = arith.constant 0 : index
    %11 = vector.load %arg7[%c0_14, %c0_15] : memref<6x32xf32, #tpu.memory_space<vmem>>, vector<6x32xf32>
    %12 = vector.extract_strided_slice %11 {offsets = [0, 0], sizes = [1, 32], strides = [1, 1]} : vector<6x32xf32> to vector<1x32xf32>
    %13 = vector.extract_strided_slice %11 {offsets = [1, 0], sizes = [1, 32], strides = [1, 1]} : vector<6x32xf32> to vector<1x32xf32>
    %14 = vector.extract_strided_slice %11 {offsets = [2, 0], sizes = [1, 32], strides = [1, 1]} : vector<6x32xf32> to vector<1x32xf32>
    %15 = vector.extract_strided_slice %11 {offsets = [3, 0], sizes = [1, 32], strides = [1, 1]} : vector<6x32xf32> to vector<1x32xf32>
    %16 = vector.extract_strided_slice %11 {offsets = [4, 0], sizes = [1, 32], strides = [1, 1]} : vector<6x32xf32> to vector<1x32xf32>
    %17 = vector.extract_strided_slice %11 {offsets = [5, 0], sizes = [1, 32], strides = [1, 1]} : vector<6x32xf32> to vector<1x32xf32>
    %c0_i32 = arith.constant 0 : i32
    %18 = arith.truncf %5 : vector<16x32xf32> to vector<16x32xbf16>
    %cst = arith.constant dense<0.000000e+00> : vector<16x96xf32>
    %19 = tpu.matmul %18, %6, %cst {dimension_numbers = #tpu.dot_dimension_numbers<[1], [0], [0], [1], [0, 0, 1, 1], [], []>} : vector<16x32xbf16>, vector<32x96xbf16>, vector<16x96xf32> -> vector<16x96xf32>
    %20 = arith.truncf %19 : vector<16x96xf32> to vector<16x96xbf16>
    %21 = vector.shape_cast %20 : vector<16x96xbf16> to vector<2x8x96xbf16>
    %22 = tpu.transpose %21, [0, 2, 1] : vector<2x8x96xbf16> -> vector<2x96x8xbf16>
    %23 = vector.shape_cast %22 : vector<2x96x8xbf16> to vector<2x12x8x8xbf16>
    %24 = vector.extract_strided_slice %23 {offsets = [0, 0, 0, 0], sizes = [2, 4, 8, 8], strides = [1, 1, 1, 1]} : vector<2x12x8x8xbf16> to vector<2x4x8x8xbf16>
    %25 = vector.shape_cast %24 : vector<2x4x8x8xbf16> to vector<8x8x8xbf16>
    %26 = tpu.transpose %25, [0, 2, 1] : vector<8x8x8xbf16> -> vector<8x8x8xbf16>
    %27 = vector.extract_strided_slice %23 {offsets = [0, 4, 0, 0], sizes = [2, 4, 8, 8], strides = [1, 1, 1, 1]} : vector<2x12x8x8xbf16> to vector<2x4x8x8xbf16>
    %28 = vector.shape_cast %27 : vector<2x4x8x8xbf16> to vector<8x8x8xbf16>
    %29 = tpu.transpose %28, [0, 2, 1] : vector<8x8x8xbf16> -> vector<8x8x8xbf16>
    %30 = vector.extract_strided_slice %23 {offsets = [0, 8, 0, 0], sizes = [2, 4, 8, 8], strides = [1, 1, 1, 1]} : vector<2x12x8x8xbf16> to vector<2x4x8x8xbf16>
    %31 = vector.shape_cast %30 : vector<2x4x8x8xbf16> to vector<8x8x8xbf16>
    "tpu.trace_start"() <{level = 10 : i32, message = "gtd,gsd->gts"}> : () -> ()
    %cst_16 = arith.constant dense<0.000000e+00> : vector<8x8x8xf32>
    %32 = tpu.matmul %29, %26, %cst_16 {dimension_numbers = #tpu.dot_dimension_numbers<[2], [2], [1], [1], [0, 0, 0, 1, 1, 1], [0], [0]>} : vector<8x8x8xbf16>, vector<8x8x8xbf16>, vector<8x8x8xf32> -> vector<8x8x8xf32>
    "tpu.trace_stop"() : () -> ()
    %cst_17 = arith.constant dense<0xFF800000> : vector<8x8xf32>
    %33 = vector.multi_reduction <maximumf>, %32, %cst_17 [1] : vector<8x8x8xf32> to vector<8x8xf32>
    %34 = vector.shape_cast %33 : vector<8x8xf32> to vector<8x1x8xf32>
    %35 = vector.broadcast %34 : vector<8x1x8xf32> to vector<8x8x8xf32>
    %36 = arith.subf %32, %35 : vector<8x8x8xf32>
    %37 = math.exp %36 : vector<8x8x8xf32>
    %cst_18 = arith.constant dense<0.000000e+00> : vector<8x8xf32>
    %38 = vector.multi_reduction <add>, %37, %cst_18 [1] : vector<8x8x8xf32> to vector<8x8xf32>
    %39 = vector.shape_cast %38 : vector<8x8xf32> to vector<8x1x8xf32>
    %40 = arith.truncf %37 : vector<8x8x8xf32> to vector<8x8x8xbf16>
    "tpu.trace_start"() <{level = 10 : i32, message = "gdt,gts->gds"}> : () -> ()
    %cst_19 = arith.constant dense<0.000000e+00> : vector<8x8x8xf32>
    %41 = tpu.matmul %31, %40, %cst_19 {dimension_numbers = #tpu.dot_dimension_numbers<[2], [1], [1], [2], [0, 0, 0, 1, 1, 2], [0], [0]>} : vector<8x8x8xbf16>, vector<8x8x8xbf16>, vector<8x8x8xf32> -> vector<8x8x8xf32>
    "tpu.trace_stop"() : () -> ()
    %42 = tpu.reciprocal %39 {approx = true} : vector<8x1x8xf32> -> vector<8x1x8xf32>
    %43 = vector.broadcast %42 : vector<8x1x8xf32> to vector<8x8x8xf32>
    %44 = arith.mulf %41, %43 : vector<8x8x8xf32>
    %45 = arith.truncf %44 : vector<8x8x8xf32> to vector<8x8x8xbf16>
    %46 = vector.shape_cast %45 : vector<8x8x8xbf16> to vector<2x32x8xbf16>
    %47 = tpu.transpose %46, [0, 2, 1] : vector<2x32x8xbf16> -> vector<2x8x32xbf16>
    %48 = vector.shape_cast %47 : vector<2x8x32xbf16> to vector<16x32xbf16>
    %cst_20 = arith.constant dense<0.000000e+00> : vector<16x32xf32>
    %49 = tpu.matmul %48, %7, %cst_20 {dimension_numbers = #tpu.dot_dimension_numbers<[1], [0], [0], [1], [0, 0, 1, 1], [], []>} : vector<16x32xbf16>, vector<32x32xbf16>, vector<16x32xf32> -> vector<16x32xf32>
    %50 = vector.broadcast %12 : vector<1x32xf32> to vector<16x32xf32>
    %51 = arith.addf %49, %50 : vector<16x32xf32>
    %52 = arith.addf %51, %5 : vector<16x32xf32>
    %cst_21 = arith.constant dense<0.000000e+00> : vector<16xf32>
    %53 = vector.multi_reduction <add>, %52, %cst_21 [1] : vector<16x32xf32> to vector<16xf32>
    %54 = vector.shape_cast %53 : vector<16xf32> to vector<16x1xf32>
    %cst_22 = arith.constant 3.200000e+01 : f32
    %55 = vector.broadcast %cst_22 : f32 to vector<16x1xf32>
    %56 = arith.divf %54, %55 : vector<16x1xf32>
    %57 = vector.broadcast %56 : vector<16x1xf32> to vector<16x32xf32>
    %58 = arith.subf %52, %57 : vector<16x32xf32>
    %59 = arith.mulf %58, %58 : vector<16x32xf32>
    %cst_23 = arith.constant dense<0.000000e+00> : vector<16xf32>
    %60 = vector.multi_reduction <add>, %59, %cst_23 [1] : vector<16x32xf32> to vector<16xf32>
    %61 = vector.shape_cast %60 : vector<16xf32> to vector<16x1xf32>
    %cst_24 = arith.constant 3.200000e+01 : f32
    %62 = vector.broadcast %cst_24 : f32 to vector<16x1xf32>
    %63 = arith.divf %61, %62 : vector<16x1xf32>
    %64 = vector.broadcast %56 : vector<16x1xf32> to vector<16x32xf32>
    %65 = arith.subf %52, %64 : vector<16x32xf32>
    %cst_25 = arith.constant 9.99999974E-6 : f32
    %66 = vector.broadcast %cst_25 : f32 to vector<16x1xf32>
    %67 = arith.addf %63, %66 : vector<16x1xf32>
    %68 = math.rsqrt %67 : vector<16x1xf32>
    %69 = vector.broadcast %68 : vector<16x1xf32> to vector<16x32xf32>
    %70 = arith.mulf %65, %69 : vector<16x32xf32>
    %71 = vector.broadcast %13 : vector<1x32xf32> to vector<16x32xf32>
    %72 = arith.mulf %70, %71 : vector<16x32xf32>
    %73 = vector.broadcast %14 : vector<1x32xf32> to vector<16x32xf32>
    %74 = arith.addf %72, %73 : vector<16x32xf32>
    %75 = arith.truncf %74 : vector<16x32xf32> to vector<16x32xbf16>
    %cst_26 = arith.constant dense<0.000000e+00> : vector<16x64xf32>
    %76 = tpu.matmul %75, %8, %cst_26 {dimension_numbers = #tpu.dot_dimension_numbers<[1], [0], [0], [1], [0, 0, 1, 1], [], []>} : vector<16x32xbf16>, vector<32x64xbf16>, vector<16x64xf32> -> vector<16x64xf32>
    %77 = vector.broadcast %10 : vector<1x64xf32> to vector<16x64xf32>
    %78 = arith.addf %76, %77 : vector<16x64xf32>
    %cst_27 = arith.constant 0.000000e+00 : f32
    %79 = vector.broadcast %cst_27 : f32 to vector<16x64xf32>
    %80 = arith.maximumf %78, %79 : vector<16x64xf32>
    %81 = arith.truncf %80 : vector<16x64xf32> to vector<16x64xbf16>
    %cst_28 = arith.constant dense<0.000000e+00> : vector<16x32xf32>
    %82 = tpu.matmul %81, %9, %cst_28 {dimension_numbers = #tpu.dot_dimension_numbers<[1], [0], [0], [1], [0, 0, 1, 1], [], []>} : vector<16x64xbf16>, vector<64x32xbf16>, vector<16x32xf32> -> vector<16x32xf32>
    %83 = vector.broadcast %15 : vector<1x32xf32> to vector<16x32xf32>
    %84 = arith.addf %82, %83 : vector<16x32xf32>
    %85 = arith.addf %84, %74 : vector<16x32xf32>
    %cst_29 = arith.constant dense<0.000000e+00> : vector<16xf32>
    %86 = vector.multi_reduction <add>, %85, %cst_29 [1] : vector<16x32xf32> to vector<16xf32>
    %87 = vector.shape_cast %86 : vector<16xf32> to vector<16x1xf32>
    %cst_30 = arith.constant 3.200000e+01 : f32
    %88 = vector.broadcast %cst_30 : f32 to vector<16x1xf32>
    %89 = arith.divf %87, %88 : vector<16x1xf32>
    %90 = vector.broadcast %89 : vector<16x1xf32> to vector<16x32xf32>
    %91 = arith.subf %85, %90 : vector<16x32xf32>
    %92 = arith.mulf %91, %91 : vector<16x32xf32>
    %cst_31 = arith.constant dense<0.000000e+00> : vector<16xf32>
    %93 = vector.multi_reduction <add>, %92, %cst_31 [1] : vector<16x32xf32> to vector<16xf32>
    %94 = vector.shape_cast %93 : vector<16xf32> to vector<16x1xf32>
    %cst_32 = arith.constant 3.200000e+01 : f32
    %95 = vector.broadcast %cst_32 : f32 to vector<16x1xf32>
    %96 = arith.divf %94, %95 : vector<16x1xf32>
    %97 = vector.broadcast %89 : vector<16x1xf32> to vector<16x32xf32>
    %98 = arith.subf %85, %97 : vector<16x32xf32>
    %cst_33 = arith.constant 9.99999974E-6 : f32
    %99 = vector.broadcast %cst_33 : f32 to vector<16x1xf32>
    %100 = arith.addf %96, %99 : vector<16x1xf32>
    %101 = math.rsqrt %100 : vector<16x1xf32>
    %102 = vector.broadcast %101 : vector<16x1xf32> to vector<16x32xf32>
    %103 = arith.mulf %98, %102 : vector<16x32xf32>
    %104 = vector.broadcast %16 : vector<1x32xf32> to vector<16x32xf32>
    %105 = arith.mulf %103, %104 : vector<16x32xf32>
    %106 = vector.broadcast %17 : vector<1x32xf32> to vector<16x32xf32>
    %107 = arith.addf %105, %106 : vector<16x32xf32>
    %c1_i32 = arith.constant 1 : i32
    %108 = arith.truncf %107 : vector<16x32xf32> to vector<16x32xbf16>
    %cst_34 = arith.constant dense<0.000000e+00> : vector<16x96xf32>
    %109 = tpu.matmul %108, %6, %cst_34 {dimension_numbers = #tpu.dot_dimension_numbers<[1], [0], [0], [1], [0, 0, 1, 1], [], []>} : vector<16x32xbf16>, vector<32x96xbf16>, vector<16x96xf32> -> vector<16x96xf32>
    %110 = arith.truncf %109 : vector<16x96xf32> to vector<16x96xbf16>
    %111 = vector.shape_cast %110 : vector<16x96xbf16> to vector<2x8x96xbf16>
    %112 = tpu.transpose %111, [0, 2, 1] : vector<2x8x96xbf16> -> vector<2x96x8xbf16>
    %113 = vector.shape_cast %112 : vector<2x96x8xbf16> to vector<2x12x8x8xbf16>
    %114 = vector.extract_strided_slice %113 {offsets = [0, 0, 0, 0], sizes = [2, 4, 8, 8], strides = [1, 1, 1, 1]} : vector<2x12x8x8xbf16> to vector<2x4x8x8xbf16>
    %115 = vector.shape_cast %114 : vector<2x4x8x8xbf16> to vector<8x8x8xbf16>
    %116 = tpu.transpose %115, [0, 2, 1] : vector<8x8x8xbf16> -> vector<8x8x8xbf16>
    %117 = vector.extract_strided_slice %113 {offsets = [0, 4, 0, 0], sizes = [2, 4, 8, 8], strides = [1, 1, 1, 1]} : vector<2x12x8x8xbf16> to vector<2x4x8x8xbf16>
    %118 = vector.shape_cast %117 : vector<2x4x8x8xbf16> to vector<8x8x8xbf16>
    %119 = tpu.transpose %118, [0, 2, 1] : vector<8x8x8xbf16> -> vector<8x8x8xbf16>
    %120 = vector.extract_strided_slice %113 {offsets = [0, 8, 0, 0], sizes = [2, 4, 8, 8], strides = [1, 1, 1, 1]} : vector<2x12x8x8xbf16> to vector<2x4x8x8xbf16>
    %121 = vector.shape_cast %120 : vector<2x4x8x8xbf16> to vector<8x8x8xbf16>
    "tpu.trace_start"() <{level = 10 : i32, message = "gtd,gsd->gts"}> : () -> ()
    %cst_35 = arith.constant dense<0.000000e+00> : vector<8x8x8xf32>
    %122 = tpu.matmul %119, %116, %cst_35 {dimension_numbers = #tpu.dot_dimension_numbers<[2], [2], [1], [1], [0, 0, 0, 1, 1, 1], [0], [0]>} : vector<8x8x8xbf16>, vector<8x8x8xbf16>, vector<8x8x8xf32> -> vector<8x8x8xf32>
    "tpu.trace_stop"() : () -> ()
    %cst_36 = arith.constant dense<0xFF800000> : vector<8x8xf32>
    %123 = vector.multi_reduction <maximumf>, %122, %cst_36 [1] : vector<8x8x8xf32> to vector<8x8xf32>
    %124 = vector.shape_cast %123 : vector<8x8xf32> to vector<8x1x8xf32>
    %125 = vector.broadcast %124 : vector<8x1x8xf32> to vector<8x8x8xf32>
    %126 = arith.subf %122, %125 : vector<8x8x8xf32>
    %127 = math.exp %126 : vector<8x8x8xf32>
    %cst_37 = arith.constant dense<0.000000e+00> : vector<8x8xf32>
    %128 = vector.multi_reduction <add>, %127, %cst_37 [1] : vector<8x8x8xf32> to vector<8x8xf32>
    %129 = vector.shape_cast %128 : vector<8x8xf32> to vector<8x1x8xf32>
    %130 = arith.truncf %127 : vector<8x8x8xf32> to vector<8x8x8xbf16>
    "tpu.trace_start"() <{level = 10 : i32, message = "gdt,gts->gds"}> : () -> ()
    %cst_38 = arith.constant dense<0.000000e+00> : vector<8x8x8xf32>
    %131 = tpu.matmul %121, %130, %cst_38 {dimension_numbers = #tpu.dot_dimension_numbers<[2], [1], [1], [2], [0, 0, 0, 1, 1, 2], [0], [0]>} : vector<8x8x8xbf16>, vector<8x8x8xbf16>, vector<8x8x8xf32> -> vector<8x8x8xf32>
    "tpu.trace_stop"() : () -> ()
    %132 = tpu.reciprocal %129 {approx = true} : vector<8x1x8xf32> -> vector<8x1x8xf32>
    %133 = vector.broadcast %132 : vector<8x1x8xf32> to vector<8x8x8xf32>
    %134 = arith.mulf %131, %133 : vector<8x8x8xf32>
    %135 = arith.truncf %134 : vector<8x8x8xf32> to vector<8x8x8xbf16>
    %136 = vector.shape_cast %135 : vector<8x8x8xbf16> to vector<2x32x8xbf16>
    %137 = tpu.transpose %136, [0, 2, 1] : vector<2x32x8xbf16> -> vector<2x8x32xbf16>
    %138 = vector.shape_cast %137 : vector<2x8x32xbf16> to vector<16x32xbf16>
    %cst_39 = arith.constant dense<0.000000e+00> : vector<16x32xf32>
    %139 = tpu.matmul %138, %7, %cst_39 {dimension_numbers = #tpu.dot_dimension_numbers<[1], [0], [0], [1], [0, 0, 1, 1], [], []>} : vector<16x32xbf16>, vector<32x32xbf16>, vector<16x32xf32> -> vector<16x32xf32>
    %140 = vector.broadcast %12 : vector<1x32xf32> to vector<16x32xf32>
    %141 = arith.addf %139, %140 : vector<16x32xf32>
    %142 = arith.addf %141, %107 : vector<16x32xf32>
    %cst_40 = arith.constant dense<0.000000e+00> : vector<16xf32>
    %143 = vector.multi_reduction <add>, %142, %cst_40 [1] : vector<16x32xf32> to vector<16xf32>
    %144 = vector.shape_cast %143 : vector<16xf32> to vector<16x1xf32>
    %cst_41 = arith.constant 3.200000e+01 : f32
    %145 = vector.broadcast %cst_41 : f32 to vector<16x1xf32>
    %146 = arith.divf %144, %145 : vector<16x1xf32>
    %147 = vector.broadcast %146 : vector<16x1xf32> to vector<16x32xf32>
    %148 = arith.subf %142, %147 : vector<16x32xf32>
    %149 = arith.mulf %148, %148 : vector<16x32xf32>
    %cst_42 = arith.constant dense<0.000000e+00> : vector<16xf32>
    %150 = vector.multi_reduction <add>, %149, %cst_42 [1] : vector<16x32xf32> to vector<16xf32>
    %151 = vector.shape_cast %150 : vector<16xf32> to vector<16x1xf32>
    %cst_43 = arith.constant 3.200000e+01 : f32
    %152 = vector.broadcast %cst_43 : f32 to vector<16x1xf32>
    %153 = arith.divf %151, %152 : vector<16x1xf32>
    %154 = vector.broadcast %146 : vector<16x1xf32> to vector<16x32xf32>
    %155 = arith.subf %142, %154 : vector<16x32xf32>
    %cst_44 = arith.constant 9.99999974E-6 : f32
    %156 = vector.broadcast %cst_44 : f32 to vector<16x1xf32>
    %157 = arith.addf %153, %156 : vector<16x1xf32>
    %158 = math.rsqrt %157 : vector<16x1xf32>
    %159 = vector.broadcast %158 : vector<16x1xf32> to vector<16x32xf32>
    %160 = arith.mulf %155, %159 : vector<16x32xf32>
    %161 = vector.broadcast %13 : vector<1x32xf32> to vector<16x32xf32>
    %162 = arith.mulf %160, %161 : vector<16x32xf32>
    %163 = vector.broadcast %14 : vector<1x32xf32> to vector<16x32xf32>
    %164 = arith.addf %162, %163 : vector<16x32xf32>
    %165 = arith.truncf %164 : vector<16x32xf32> to vector<16x32xbf16>
    %cst_45 = arith.constant dense<0.000000e+00> : vector<16x64xf32>
    %166 = tpu.matmul %165, %8, %cst_45 {dimension_numbers = #tpu.dot_dimension_numbers<[1], [0], [0], [1], [0, 0, 1, 1], [], []>} : vector<16x32xbf16>, vector<32x64xbf16>, vector<16x64xf32> -> vector<16x64xf32>
    %167 = vector.broadcast %10 : vector<1x64xf32> to vector<16x64xf32>
    %168 = arith.addf %166, %167 : vector<16x64xf32>
    %cst_46 = arith.constant 0.000000e+00 : f32
    %169 = vector.broadcast %cst_46 : f32 to vector<16x64xf32>
    %170 = arith.maximumf %168, %169 : vector<16x64xf32>
    %171 = arith.truncf %170 : vector<16x64xf32> to vector<16x64xbf16>
    %cst_47 = arith.constant dense<0.000000e+00> : vector<16x32xf32>
    %172 = tpu.matmul %171, %9, %cst_47 {dimension_numbers = #tpu.dot_dimension_numbers<[1], [0], [0], [1], [0, 0, 1, 1], [], []>} : vector<16x64xbf16>, vector<64x32xbf16>, vector<16x32xf32> -> vector<16x32xf32>
    %173 = vector.broadcast %15 : vector<1x32xf32> to vector<16x32xf32>
    %174 = arith.addf %172, %173 : vector<16x32xf32>
    %175 = arith.addf %174, %164 : vector<16x32xf32>
    %cst_48 = arith.constant dense<0.000000e+00> : vector<16xf32>
    %176 = vector.multi_reduction <add>, %175, %cst_48 [1] : vector<16x32xf32> to vector<16xf32>
    %177 = vector.shape_cast %176 : vector<16xf32> to vector<16x1xf32>
    %cst_49 = arith.constant 3.200000e+01 : f32
    %178 = vector.broadcast %cst_49 : f32 to vector<16x1xf32>
    %179 = arith.divf %177, %178 : vector<16x1xf32>
    %180 = vector.broadcast %179 : vector<16x1xf32> to vector<16x32xf32>
    %181 = arith.subf %175, %180 : vector<16x32xf32>
    %182 = arith.mulf %181, %181 : vector<16x32xf32>
    %cst_50 = arith.constant dense<0.000000e+00> : vector<16xf32>
    %183 = vector.multi_reduction <add>, %182, %cst_50 [1] : vector<16x32xf32> to vector<16xf32>
    %184 = vector.shape_cast %183 : vector<16xf32> to vector<16x1xf32>
    %cst_51 = arith.constant 3.200000e+01 : f32
    %185 = vector.broadcast %cst_51 : f32 to vector<16x1xf32>
    %186 = arith.divf %184, %185 : vector<16x1xf32>
    %187 = vector.broadcast %179 : vector<16x1xf32> to vector<16x32xf32>
    %188 = arith.subf %175, %187 : vector<16x32xf32>
    %cst_52 = arith.constant 9.99999974E-6 : f32
    %189 = vector.broadcast %cst_52 : f32 to vector<16x1xf32>
    %190 = arith.addf %186, %189 : vector<16x1xf32>
    %191 = math.rsqrt %190 : vector<16x1xf32>
    %192 = vector.broadcast %191 : vector<16x1xf32> to vector<16x32xf32>
    %193 = arith.mulf %188, %192 : vector<16x32xf32>
    %194 = vector.broadcast %16 : vector<1x32xf32> to vector<16x32xf32>
    %195 = arith.mulf %193, %194 : vector<16x32xf32>
    %196 = vector.broadcast %17 : vector<1x32xf32> to vector<16x32xf32>
    %197 = arith.addf %195, %196 : vector<16x32xf32>
    %c2_i32 = arith.constant 2 : i32
    %198 = arith.truncf %197 : vector<16x32xf32> to vector<16x32xbf16>
    %cst_53 = arith.constant dense<0.000000e+00> : vector<16x96xf32>
    %199 = tpu.matmul %198, %6, %cst_53 {dimension_numbers = #tpu.dot_dimension_numbers<[1], [0], [0], [1], [0, 0, 1, 1], [], []>} : vector<16x32xbf16>, vector<32x96xbf16>, vector<16x96xf32> -> vector<16x96xf32>
    %200 = arith.truncf %199 : vector<16x96xf32> to vector<16x96xbf16>
    %201 = vector.shape_cast %200 : vector<16x96xbf16> to vector<2x8x96xbf16>
    %202 = tpu.transpose %201, [0, 2, 1] : vector<2x8x96xbf16> -> vector<2x96x8xbf16>
    %203 = vector.shape_cast %202 : vector<2x96x8xbf16> to vector<2x12x8x8xbf16>
    %204 = vector.extract_strided_slice %203 {offsets = [0, 0, 0, 0], sizes = [2, 4, 8, 8], strides = [1, 1, 1, 1]} : vector<2x12x8x8xbf16> to vector<2x4x8x8xbf16>
    %205 = vector.shape_cast %204 : vector<2x4x8x8xbf16> to vector<8x8x8xbf16>
    %206 = tpu.transpose %205, [0, 2, 1] : vector<8x8x8xbf16> -> vector<8x8x8xbf16>
    %207 = vector.extract_strided_slice %203 {offsets = [0, 4, 0, 0], sizes = [2, 4, 8, 8], strides = [1, 1, 1, 1]} : vector<2x12x8x8xbf16> to vector<2x4x8x8xbf16>
    %208 = vector.shape_cast %207 : vector<2x4x8x8xbf16> to vector<8x8x8xbf16>
    %209 = tpu.transpose %208, [0, 2, 1] : vector<8x8x8xbf16> -> vector<8x8x8xbf16>
    %210 = vector.extract_strided_slice %203 {offsets = [0, 8, 0, 0], sizes = [2, 4, 8, 8], strides = [1, 1, 1, 1]} : vector<2x12x8x8xbf16> to vector<2x4x8x8xbf16>
    %211 = vector.shape_cast %210 : vector<2x4x8x8xbf16> to vector<8x8x8xbf16>
    "tpu.trace_start"() <{level = 10 : i32, message = "gtd,gsd->gts"}> : () -> ()
    %cst_54 = arith.constant dense<0.000000e+00> : vector<8x8x8xf32>
    %212 = tpu.matmul %209, %206, %cst_54 {dimension_numbers = #tpu.dot_dimension_numbers<[2], [2], [1], [1], [0, 0, 0, 1, 1, 1], [0], [0]>} : vector<8x8x8xbf16>, vector<8x8x8xbf16>, vector<8x8x8xf32> -> vector<8x8x8xf32>
    "tpu.trace_stop"() : () -> ()
    %cst_55 = arith.constant dense<0xFF800000> : vector<8x8xf32>
    %213 = vector.multi_reduction <maximumf>, %212, %cst_55 [1] : vector<8x8x8xf32> to vector<8x8xf32>
    %214 = vector.shape_cast %213 : vector<8x8xf32> to vector<8x1x8xf32>
    %215 = vector.broadcast %214 : vector<8x1x8xf32> to vector<8x8x8xf32>
    %216 = arith.subf %212, %215 : vector<8x8x8xf32>
    %217 = math.exp %216 : vector<8x8x8xf32>
    %cst_56 = arith.constant dense<0.000000e+00> : vector<8x8xf32>
    %218 = vector.multi_reduction <add>, %217, %cst_56 [1] : vector<8x8x8xf32> to vector<8x8xf32>
    %219 = vector.shape_cast %218 : vector<8x8xf32> to vector<8x1x8xf32>
    %220 = arith.truncf %217 : vector<8x8x8xf32> to vector<8x8x8xbf16>
    "tpu.trace_start"() <{level = 10 : i32, message = "gdt,gts->gds"}> : () -> ()
    %cst_57 = arith.constant dense<0.000000e+00> : vector<8x8x8xf32>
    %221 = tpu.matmul %211, %220, %cst_57 {dimension_numbers = #tpu.dot_dimension_numbers<[2], [1], [1], [2], [0, 0, 0, 1, 1, 2], [0], [0]>} : vector<8x8x8xbf16>, vector<8x8x8xbf16>, vector<8x8x8xf32> -> vector<8x8x8xf32>
    "tpu.trace_stop"() : () -> ()
    %222 = tpu.reciprocal %219 {approx = true} : vector<8x1x8xf32> -> vector<8x1x8xf32>
    %223 = vector.broadcast %222 : vector<8x1x8xf32> to vector<8x8x8xf32>
    %224 = arith.mulf %221, %223 : vector<8x8x8xf32>
    %225 = arith.truncf %224 : vector<8x8x8xf32> to vector<8x8x8xbf16>
    %226 = vector.shape_cast %225 : vector<8x8x8xbf16> to vector<2x32x8xbf16>
    %227 = tpu.transpose %226, [0, 2, 1] : vector<2x32x8xbf16> -> vector<2x8x32xbf16>
    %228 = vector.shape_cast %227 : vector<2x8x32xbf16> to vector<16x32xbf16>
    %cst_58 = arith.constant dense<0.000000e+00> : vector<16x32xf32>
    %229 = tpu.matmul %228, %7, %cst_58 {dimension_numbers = #tpu.dot_dimension_numbers<[1], [0], [0], [1], [0, 0, 1, 1], [], []>} : vector<16x32xbf16>, vector<32x32xbf16>, vector<16x32xf32> -> vector<16x32xf32>
    %230 = vector.broadcast %12 : vector<1x32xf32> to vector<16x32xf32>
    %231 = arith.addf %229, %230 : vector<16x32xf32>
    %232 = arith.addf %231, %197 : vector<16x32xf32>
    %cst_59 = arith.constant dense<0.000000e+00> : vector<16xf32>
    %233 = vector.multi_reduction <add>, %232, %cst_59 [1] : vector<16x32xf32> to vector<16xf32>
    %234 = vector.shape_cast %233 : vector<16xf32> to vector<16x1xf32>
    %cst_60 = arith.constant 3.200000e+01 : f32
    %235 = vector.broadcast %cst_60 : f32 to vector<16x1xf32>
    %236 = arith.divf %234, %235 : vector<16x1xf32>
    %237 = vector.broadcast %236 : vector<16x1xf32> to vector<16x32xf32>
    %238 = arith.subf %232, %237 : vector<16x32xf32>
    %239 = arith.mulf %238, %238 : vector<16x32xf32>
    %cst_61 = arith.constant dense<0.000000e+00> : vector<16xf32>
    %240 = vector.multi_reduction <add>, %239, %cst_61 [1] : vector<16x32xf32> to vector<16xf32>
    %241 = vector.shape_cast %240 : vector<16xf32> to vector<16x1xf32>
    %cst_62 = arith.constant 3.200000e+01 : f32
    %242 = vector.broadcast %cst_62 : f32 to vector<16x1xf32>
    %243 = arith.divf %241, %242 : vector<16x1xf32>
    %244 = vector.broadcast %236 : vector<16x1xf32> to vector<16x32xf32>
    %245 = arith.subf %232, %244 : vector<16x32xf32>
    %cst_63 = arith.constant 9.99999974E-6 : f32
    %246 = vector.broadcast %cst_63 : f32 to vector<16x1xf32>
    %247 = arith.addf %243, %246 : vector<16x1xf32>
    %248 = math.rsqrt %247 : vector<16x1xf32>
    %249 = vector.broadcast %248 : vector<16x1xf32> to vector<16x32xf32>
    %250 = arith.mulf %245, %249 : vector<16x32xf32>
    %251 = vector.broadcast %13 : vector<1x32xf32> to vector<16x32xf32>
    %252 = arith.mulf %250, %251 : vector<16x32xf32>
    %253 = vector.broadcast %14 : vector<1x32xf32> to vector<16x32xf32>
    %254 = arith.addf %252, %253 : vector<16x32xf32>
    %255 = arith.truncf %254 : vector<16x32xf32> to vector<16x32xbf16>
    %cst_64 = arith.constant dense<0.000000e+00> : vector<16x64xf32>
    %256 = tpu.matmul %255, %8, %cst_64 {dimension_numbers = #tpu.dot_dimension_numbers<[1], [0], [0], [1], [0, 0, 1, 1], [], []>} : vector<16x32xbf16>, vector<32x64xbf16>, vector<16x64xf32> -> vector<16x64xf32>
    %257 = vector.broadcast %10 : vector<1x64xf32> to vector<16x64xf32>
    %258 = arith.addf %256, %257 : vector<16x64xf32>
    %cst_65 = arith.constant 0.000000e+00 : f32
    %259 = vector.broadcast %cst_65 : f32 to vector<16x64xf32>
    %260 = arith.maximumf %258, %259 : vector<16x64xf32>
    %261 = arith.truncf %260 : vector<16x64xf32> to vector<16x64xbf16>
    %cst_66 = arith.constant dense<0.000000e+00> : vector<16x32xf32>
    %262 = tpu.matmul %261, %9, %cst_66 {dimension_numbers = #tpu.dot_dimension_numbers<[1], [0], [0], [1], [0, 0, 1, 1], [], []>} : vector<16x64xbf16>, vector<64x32xbf16>, vector<16x32xf32> -> vector<16x32xf32>
    %263 = vector.broadcast %15 : vector<1x32xf32> to vector<16x32xf32>
    %264 = arith.addf %262, %263 : vector<16x32xf32>
    %265 = arith.addf %264, %254 : vector<16x32xf32>
    %cst_67 = arith.constant dense<0.000000e+00> : vector<16xf32>
    %266 = vector.multi_reduction <add>, %265, %cst_67 [1] : vector<16x32xf32> to vector<16xf32>
    %267 = vector.shape_cast %266 : vector<16xf32> to vector<16x1xf32>
    %cst_68 = arith.constant 3.200000e+01 : f32
    %268 = vector.broadcast %cst_68 : f32 to vector<16x1xf32>
    %269 = arith.divf %267, %268 : vector<16x1xf32>
    %270 = vector.broadcast %269 : vector<16x1xf32> to vector<16x32xf32>
    %271 = arith.subf %265, %270 : vector<16x32xf32>
    %272 = arith.mulf %271, %271 : vector<16x32xf32>
    %cst_69 = arith.constant dense<0.000000e+00> : vector<16xf32>
    %273 = vector.multi_reduction <add>, %272, %cst_69 [1] : vector<16x32xf32> to vector<16xf32>
    %274 = vector.shape_cast %273 : vector<16xf32> to vector<16x1xf32>
    %cst_70 = arith.constant 3.200000e+01 : f32
    %275 = vector.broadcast %cst_70 : f32 to vector<16x1xf32>
    %276 = arith.divf %274, %275 : vector<16x1xf32>
    %277 = vector.broadcast %269 : vector<16x1xf32> to vector<16x32xf32>
    %278 = arith.subf %265, %277 : vector<16x32xf32>
    %cst_71 = arith.constant 9.99999974E-6 : f32
    %279 = vector.broadcast %cst_71 : f32 to vector<16x1xf32>
    %280 = arith.addf %276, %279 : vector<16x1xf32>
    %281 = math.rsqrt %280 : vector<16x1xf32>
    %282 = vector.broadcast %281 : vector<16x1xf32> to vector<16x32xf32>
    %283 = arith.mulf %278, %282 : vector<16x32xf32>
    %284 = vector.broadcast %16 : vector<1x32xf32> to vector<16x32xf32>
    %285 = arith.mulf %283, %284 : vector<16x32xf32>
    %286 = vector.broadcast %17 : vector<1x32xf32> to vector<16x32xf32>
    %287 = arith.addf %285, %286 : vector<16x32xf32>
    %288 = vector.shape_cast %287 : vector<16x32xf32> to vector<2x8x32xf32>
    %c0_72 = arith.constant 0 : index
    %c0_73 = arith.constant 0 : index
    %c0_74 = arith.constant 0 : index
    %289 = vector.load %arg9[%c0_72, %c0_73, %c0_74] : memref<2x8x32xf32, #tpu.memory_space<vmem>>, vector<2x8x32xf32>
    tpu.vector_store %arg9[%c0_72, %c0_73, %c0_74], %288 {strides = array<i32>} : memref<2x8x32xf32, #tpu.memory_space<vmem>>, vector<2x8x32xf32>,
    return
  }
  func.func @transform_0(%arg0: i32) -> (i32, i32, i32) {
    %c0_i32 = arith.constant 0 : i32
    %c0_i32_0 = arith.constant 0 : i32
    %c0_i32_1 = arith.constant 0 : i32
    return %arg0, %c0_i32, %c0_i32_0 : i32, i32, i32
  }
  func.func @transform_1(%arg0: i32) -> (i32, i32) {
    %c0_i32 = arith.constant 0 : i32
    %c0_i32_0 = arith.constant 0 : i32
    %c0_i32_1 = arith.constant 0 : i32
    return %c0_i32, %c0_i32_0 : i32, i32
  }
  func.func @transform_2(%arg0: i32) -> (i32, i32) {
    %c0_i32 = arith.constant 0 : i32
    %c0_i32_0 = arith.constant 0 : i32
    %c0_i32_1 = arith.constant 0 : i32
    return %c0_i32, %c0_i32_0 : i32, i32
  }
  func.func @transform_3(%arg0: i32) -> (i32, i32) {
    %c0_i32 = arith.constant 0 : i32
    %c0_i32_0 = arith.constant 0 : i32
    %c0_i32_1 = arith.constant 0 : i32
    return %c0_i32, %c0_i32_0 : i32, i32
  }
  func.func @transform_4(%arg0: i32) -> (i32, i32) {
    %c0_i32 = arith.constant 0 : i32
    %c0_i32_0 = arith.constant 0 : i32
    %c0_i32_1 = arith.constant 0 : i32
    return %c0_i32, %c0_i32_0 : i32, i32
  }
  func.func @transform_5(%arg0: i32) -> (i32, i32) {
    %c0_i32 = arith.constant 0 : i32
    %c0_i32_0 = arith.constant 0 : i32
    %c0_i32_1 = arith.constant 0 : i32
    return %c0_i32, %c0_i32_0 : i32, i32
  }
  func.func @transform_6(%arg0: i32) -> (i32, i32) {
    %c0_i32 = arith.constant 0 : i32
    %c0_i32_0 = arith.constant 0 : i32
    %c0_i32_1 = arith.constant 0 : i32
    return %c0_i32, %c0_i32_0 : i32, i32
  }
  func.func @transform_7(%arg0: i32) -> (i32, i32) {
    %c0_i32 = arith.constant 0 : i32
    %c0_i32_0 = arith.constant 0 : i32
    %c0_i32_1 = arith.constant 0 : i32
    return %c0_i32, %c0_i32_0 : i32, i32
  }
  func.func @transform_8(%arg0: i32) -> (i32, i32, i32) {
    %c0_i32 = arith.constant 0 : i32
    %c0_i32_0 = arith.constant 0 : i32
    %c0_i32_1 = arith.constant 0 : i32
    return %arg0, %c0_i32, %c0_i32_0 : i32, i32, i32
  }
}

</mosaic_0001>

<llo_original>
// kernel: tpu_custom_call.1
$region0: #{tpu_custom_call.1}
  #allocation0 [shape = 'u32[]', space=smem, size = 0x4, offset = 0x4, fixed_abs, tag = 'smem constant byte address 0x4 - core index']
  #allocation1 [shape = 'u32[144,128]{1,0:T(1,128)}', space=vmem, size = 0x12000, scoped, tag = 'internal scratch']
  %s0 = inlined_call_operand.vmem [shape: f32[2,8,32], index: 0, kind: input, shape index: {}]
  %s1 = inlined_call_operand.hbm [shape: f32[8,32], index: 1, kind: input, shape index: {}]
  %s2 = inlined_call_operand.vmem [shape: bf16[32,96], index: 2, kind: input, shape index: {}]
  %s3 = inlined_call_operand.vmem [shape: bf16[32,32], index: 3, kind: input, shape index: {}]
  %s4 = inlined_call_operand.hbm [shape: bf16[32,64], index: 4, kind: input, shape index: {}]
  %s5 = inlined_call_operand.vmem [shape: bf16[64,32], index: 5, kind: input, shape index: {}]
  %s6 = inlined_call_operand.vmem [shape: f32[6,32], index: 6, kind: input, shape index: {}]
  %s7 = inlined_call_operand.vmem [shape: f32[1,64], index: 7, kind: input, shape index: {}]
  %s8 = inlined_call_operand.hbm [shape: f32[2,8,32], index: 8, kind: output, shape index: {}]
  %s9 = sld [smem:[#allocation0]]
  $region50: #{tpu_custom_call.1} parent=0
    _
  %s11 = ssub.s32 1, %s9
  %s12 = scalar_select 0, %s11, %s9
  $region1: #{tpu_custom_call.1} parent=0
    #allocation2 [shape = 'u8[4096]{0}', space=vmem, size = 0x1000, scoped, tag = 'input window, operand 1, single buffered']
    #allocation3 [shape = 's32[1]{0}', space=sflag, size = 0x4, scoped, tag = 'scoped memory for tpu_custom_call.1']
    #allocation4 [shape = 's32[1]{0}', space=sflag, size = 0x4, scoped, tag = 'scoped memory for tpu_custom_call.1']
    #allocation5 [shape = 'u8[8192]{0}', space=vmem, size = 0x2000, scoped, tag = 'input window, operand 4, single buffered']
    #allocation6 [shape = 's32[1]{0}', space=sflag, size = 0x4, scoped, tag = 'scoped memory for tpu_custom_call.1']
    #allocation7 [shape = 'u8[8192]{0}', space=vmem, size = 0x2000, scoped, tag = 'output window, operand 0, single buffered']
    %13 = vsyncpa [#allocation3], 0
    %14 = vsyncpa [#allocation6], 0
    %15 = vsyncpa [#allocation4], 0
    // Predicated region
    $region2: #{tpu_custom_call.1} parent=1 // pred_check
      _
    $region3: #{tpu_custom_call.1} parent=1 // pred_check_branch
      %17 = sbr.rel (0) target = $region5
    $region4: #{tpu_custom_call.1} parent=1 // pred_region
      _
    $region5: #{tpu_custom_call.1} parent=1 // pred_fallthru
      _
    // Predicated region
    $region6: #{tpu_custom_call.1} parent=1 // pred_check
      _
    $region7: #{tpu_custom_call.1} parent=1 // pred_check_branch
      %19 = sbr.rel (0) target = $region9
    $region8: #{tpu_custom_call.1} parent=1 // pred_region
      %s21 = ssub.s32 128, 128
      %22 = vsyncadd [#allocation3], %s21
      %s24 = sshll.u32 [#allocation2], 4
      %s25 = int_to_ptr.vmem [resolvable:$true] %s24
      %27 = dma.hbm_to_vmem [thread:$0]  %s1, 128, %s25, [#allocation3]
    $region9: #{tpu_custom_call.1} parent=1 // pred_fallthru
      _
    // Predicated region
    $region10: #{tpu_custom_call.1} parent=1 // pred_check
      _
    $region11: #{tpu_custom_call.1} parent=1 // pred_check_branch
      %29 = sbr.rel (0) target = $region13
    $region12: #{tpu_custom_call.1} parent=1 // pred_region
      _
    $region13: #{tpu_custom_call.1} parent=1 // pred_fallthru
      _
    // Predicated region
    $region14: #{tpu_custom_call.1} parent=1 // pred_check
      _
    $region15: #{tpu_custom_call.1} parent=1 // pred_check_branch
      %31 = sbr.rel (0) target = $region17
    $region16: #{tpu_custom_call.1} parent=1 // pred_region
      _
    $region17: #{tpu_custom_call.1} parent=1 // pred_fallthru
      _
    // Predicated region
    $region18: #{tpu_custom_call.1} parent=1 // pred_check
      _
    $region19: #{tpu_custom_call.1} parent=1 // pred_check_branch
      %33 = sbr.rel (0) target = $region21
    $region20: #{tpu_custom_call.1} parent=1 // pred_region
      %s35 = ssub.s32 256, 256
      %36 = vsyncadd [#allocation6], %s35
      %s37 = sshll.u32 [#allocation5], 4
      %s38 = int_to_ptr.vmem [resolvable:$true] %s37
      %43 = dma.hbm_to_vmem [thread:$0]  %s4, 256, %s38, [#allocation6], 64, 64, 4
    $region21: #{tpu_custom_call.1} parent=1 // pred_fallthru
      _
    // Predicated region
    $region22: #{tpu_custom_call.1} parent=1 // pred_check
      _
    $region23: #{tpu_custom_call.1} parent=1 // pred_check_branch
      %45 = sbr.rel (0) target = $region25
    $region24: #{tpu_custom_call.1} parent=1 // pred_region
      _
    $region25: #{tpu_custom_call.1} parent=1 // pred_fallthru
      _
    // Predicated region
    $region26: #{tpu_custom_call.1} parent=1 // pred_check
      _
    $region27: #{tpu_custom_call.1} parent=1 // pred_check_branch
      %47 = sbr.rel (0) target = $region29
    $region28: #{tpu_custom_call.1} parent=1 // pred_region
      _
    $region29: #{tpu_custom_call.1} parent=1 // pred_fallthru
      _
    // Predicated region
    $region30: #{tpu_custom_call.1} parent=1 // pred_check
      _
    $region31: #{tpu_custom_call.1} parent=1 // pred_check_branch
      %49 = sbr.rel (0) target = $region33
    $region32: #{tpu_custom_call.1} parent=1 // pred_region
      _
    $region33: #{tpu_custom_call.1} parent=1 // pred_fallthru
      _
    // Predicated region
    $region34: #{tpu_custom_call.1} parent=1 // pred_check
      _
    $region35: #{tpu_custom_call.1} parent=1 // pred_check_branch
      %51 = sbr.rel (0) target = $region37
    $region36: #{tpu_custom_call.1} parent=1 // pred_region
      %52 = dma.done [#allocation3], 128
    $region37: #{tpu_custom_call.1} parent=1 // pred_fallthru
      _
    // Predicated region
    $region38: #{tpu_custom_call.1} parent=1 // pred_check
      _
    $region39: #{tpu_custom_call.1} parent=1 // pred_check_branch
      %54 = sbr.rel (0) target = $region41
    $region40: #{tpu_custom_call.1} parent=1 // pred_region
      %55 = dma.done [#allocation6], 256
    $region41: #{tpu_custom_call.1} parent=1 // pred_fallthru
      _
    %v57 = vld [vmem:[%s0] sm:$0xff]
    %v58 = vld [vmem:[%s0 + $0x8] sm:$0xff]
    %v59 = vld [vmem:[#allocation2] sm:$0xff]
    %v60 = vadd.f32 %v57, %v59
    %v61 = vadd.f32 %v58, %v59
    %v62 = vld [vmem:[%s2] sm:$0xf]
    %v63 = vld [vmem:[%s2 + $0x4] sm:$0xf]
    %v64 = vld [vmem:[%s2 + $0x8] sm:$0xf]
    %v65 = vld [vmem:[%s2 + $0xc] sm:$0xf]
    %v66 = vld [vmem:[%s3] sm:$0xf]
    %v67 = vld [vmem:[%s3 + $0x4] sm:$0xf]
    %v68 = vld [vmem:[%s3 + $0x8] sm:$0xf]
    %v69 = vld [vmem:[%s3 + $0xc] sm:$0xf]
    %v70 = vld [vmem:[#allocation5] sm:$0xf]
    %v71 = vld [vmem:[#allocation5 + $0x4] sm:$0xf]
    %v72 = vld [vmem:[#allocation5 + $0x8] sm:$0xf]
    %v73 = vld [vmem:[#allocation5 + $0xc] sm:$0xf]
    %v74 = vld [vmem:[%s5] sm:$0xf]
    %v75 = vld [vmem:[%s5 + $0x4] sm:$0xf]
    %v76 = vld [vmem:[%s5 + $0x8] sm:$0xf]
    %v77 = vld [vmem:[%s5 + $0xc] sm:$0xf]
    %v78 = vld [vmem:[%s5 + $0x10] sm:$0xf]
    %v79 = vld [vmem:[%s5 + $0x14] sm:$0xf]
    %v80 = vld [vmem:[%s5 + $0x18] sm:$0xf]
    %v81 = vld [vmem:[%s5 + $0x1c] sm:$0xf]
    %v82 = vld [vmem:[%s7] sm:$0x1]
    %v83 = vld [vmem:[%s6] sm:$0x3f]
    %v84 = vpack.c.bf16 %v61, %v60
    %v89 = vunpack.c.l.b16 %v62
    %v90 = vunpack.c.l.b16 %v63
    %v91 = vunpack.c.l.b16 %v64
    %v92 = vunpack.c.l.b16 %v65
    %v93 = vpack.c.b16 %v90, %v89
    %v94 = vpack.c.b16 %v92, %v91
    %vm97 = vcmask 261120
    %v99 = vsel %vm97, %v84, 0
    %101 = vmatprep.subr.bf16.mxu0 0
    %102 = vmatpush1.bf16.msra.mxu0 0
    %103 = vmatprep.subr.bf16.mxu0 0
    %104 = vmatpush1.bf16.msra.mxu0 0
    %105 = vmatprep.subr.bf16.mxu0 0
    %106 = vmatpush1.bf16.msra.mxu0 0
    %107 = vmatprep.subr.bf16.mxu0 0
    %108 = vmatpush1.bf16.msra.mxu0 0
    %109 = vmatprep.subr.bf16.mxu0 0
    %110 = vmatpush1.bf16.msra.mxu0 0
    %111 = vmatprep.subr.bf16.mxu0 0
    %112 = vmatpush1.bf16.msra.mxu0 0
    %113 = vmatprep.subr.bf16.mxu0 0
    %114 = vmatpush1.bf16.msra.mxu0 %v94
    %115 = vmatprep.subr.bf16.mxu0 0
    %116 = vmatpush1.bf16.msra.mxu0 %v93
    %117 = vmatprep.subr.bf16.mxu0 0
    %118 = vmatpush2.bf16.msra.mxu0 0
    %119 = vmatprep.subr.bf16.mxu0 0
    %120 = vmatpush2.bf16.msra.mxu0 0
    %121 = vmatprep.subr.bf16.mxu0 0
    %122 = vmatpush2.bf16.msra.mxu0 0
    %123 = vmatprep.subr.bf16.mxu0 0
    %124 = vmatpush2.bf16.msra.mxu0 0
    %125 = vmatprep.subr.bf16.mxu0 0
    %126 = vmatpush2.bf16.msra.mxu0 0
    %127 = vmatprep.subr.bf16.mxu0 0
    %128 = vmatpush2.bf16.msra.mxu0 0
    %129 = vmatprep.subr.bf16.mxu0 0
    %130 = vmatpush2.bf16.msra.mxu0 0
    %131 = vmatprep.subr.bf16.mxu0 0
    %132 = vmatpush2.bf16.msra.mxu0 0
    %133 = vmatprep.mubr.bf16.mxu0 0
    %134 = vmatmul.mubr.bf16.gmra.mxu0 %v99
    %v135 = vpop.f32.mrf.mxu0
    %v136 = vadd.f32 0.0, %v135
    %v137 = vpop.f32.mrf.mxu0
    %v138 = vpop.f32.mrf.mxu0
    %v139 = vadd.f32 0.0, %v138
    %v140 = vpop.f32.mrf.mxu0
    %141 = vdwg.mxu0
    %v142 = vpack.c.bf16 %v139, %v136
    %v144 = vunpack.c.l.b16 %v142
    %v145 = vunpack.c.h.b16 %v142
    %v146 = vpack.c.b16 %v144, %v144
    %v147 = vpack.c.b16 %v145, %v145
    %150 = vxpose.xlu0.c.b16.start [1/8] %v146, 128
    %151 = vxpose.xlu0.c.b16.cont [2/8] 0, 128
    %152 = vxpose.xlu0.c.b16.cont [3/8] 0, 128
    %153 = vxpose.xlu0.c.b16.cont [4/8] 0, 128
    %154 = vxpose.xlu0.c.b16.cont [5/8] 0, 128
    %155 = vxpose.xlu0.c.b16.cont [6/8] 0, 128
    %156 = vxpose.xlu0.c.b16.cont [7/8] 0, 128
    %157 = vxpose.xlu0.c.b16.end [8/8] 0, 128
    %v158 = vpop.trf.xlu0
    %v159 = vpop.trf.xlu0
    %v160 = vpop.trf.xlu0
    %v161 = vpop.trf.xlu0
    %v162 = vpop.trf.xlu0
    %v163 = vpop.trf.xlu0
    %v164 = vpop.trf.xlu0
    %v165 = vpop.trf.xlu0
    %166 = vxpose.xlu0.c.b16.start [1/8] %v147, 128
    %167 = vxpose.xlu0.c.b16.cont [2/8] 0, 128
    %168 = vxpose.xlu0.c.b16.cont [3/8] 0, 128
    %169 = vxpose.xlu0.c.b16.cont [4/8] 0, 128
    %170 = vxpose.xlu0.c.b16.cont [5/8] 0, 128
    %171 = vxpose.xlu0.c.b16.cont [6/8] 0, 128
    %172 = vxpose.xlu0.c.b16.cont [7/8] 0, 128
    %173 = vxpose.xlu0.c.b16.end [8/8] 0, 128
    %v174 = vpop.trf.xlu0
    %v175 = vpop.trf.xlu0
    %v176 = vpop.trf.xlu0
    %v177 = vpop.trf.xlu0
    %v178 = vpop.trf.xlu0
    %v179 = vpop.trf.xlu0
    %v180 = vpop.trf.xlu0
    %v181 = vpop.trf.xlu0
    %v194 = vunpack.c.l.b16 %v158
    %v195 = vunpack.c.h.b16 %v158
    %v196 = vunpack.c.l.b16 %v159
    %v197 = vunpack.c.h.b16 %v159
    %v198 = vunpack.c.l.b16 %v160
    %v199 = vunpack.c.h.b16 %v160
    %v200 = vunpack.c.l.b16 %v161
    %v201 = vunpack.c.h.b16 %v161
    %v202 = vunpack.c.l.b16 %v162
    %v203 = vunpack.c.h.b16 %v162
    %v204 = vunpack.c.l.b16 %v163
    %v205 = vunpack.c.h.b16 %v163
    %v206 = vunpack.c.l.b16 %v174
    %v207 = vunpack.c.h.b16 %v174
    %v208 = vunpack.c.l.b16 %v175
    %v209 = vunpack.c.h.b16 %v175
    %v210 = vunpack.c.l.b16 %v176
    %v211 = vunpack.c.h.b16 %v176
    %v212 = vunpack.c.l.b16 %v177
    %v213 = vunpack.c.h.b16 %v177
    %v214 = vunpack.c.l.b16 %v178
    %v215 = vunpack.c.h.b16 %v178
    %v216 = vunpack.c.l.b16 %v179
    %v217 = vunpack.c.h.b16 %v179
    %v218 = vpack.c.b16 %v194, %v194
    %v219 = vpack.c.b16 %v195, %v195
    %v220 = vpack.c.b16 %v196, %v196
    %v221 = vpack.c.b16 %v197, %v197
    %v222 = vpack.c.b16 %v198, %v198
    %v223 = vpack.c.b16 %v199, %v199
    %v224 = vpack.c.b16 %v200, %v200
    %v225 = vpack.c.b16 %v201, %v201
    %v226 = vpack.c.b16 %v202, %v202
    %v227 = vpack.c.b16 %v203, %v203
    %v228 = vpack.c.b16 %v204, %v204
    %v229 = vpack.c.b16 %v205, %v205
    %v230 = vpack.c.b16 %v206, %v206
    %v231 = vpack.c.b16 %v207, %v207
    %v232 = vpack.c.b16 %v208, %v208
    %v233 = vpack.c.b16 %v209, %v209
    %v234 = vpack.c.b16 %v210, %v210
    %v235 = vpack.c.b16 %v211, %v211
    %v236 = vpack.c.b16 %v212, %v212
    %v237 = vpack.c.b16 %v213, %v213
    %v238 = vpack.c.b16 %v214, %v214
    %v239 = vpack.c.b16 %v215, %v215
    %v240 = vpack.c.b16 %v216, %v216
    %v241 = vpack.c.b16 %v217, %v217
    %250 = vxpose.xlu0.c.b16.start [1/8] %v222, 128
    %251 = vxpose.xlu0.c.b16.cont [2/8] 0, 128
    %252 = vxpose.xlu0.c.b16.cont [3/8] 0, 128
    %253 = vxpose.xlu0.c.b16.cont [4/8] 0, 128
    %254 = vxpose.xlu0.c.b16.cont [5/8] 0, 128
    %255 = vxpose.xlu0.c.b16.cont [6/8] 0, 128
    %256 = vxpose.xlu0.c.b16.cont [7/8] 0, 128
    %257 = vxpose.xlu0.c.b16.end [8/8] 0, 128
    %v258 = vpop.trf.xlu0
    %v259 = vpop.trf.xlu0
    %v260 = vpop.trf.xlu0
    %v261 = vpop.trf.xlu0
    %v262 = vpop.trf.xlu0
    %v263 = vpop.trf.xlu0
    %v264 = vpop.trf.xlu0
    %v265 = vpop.trf.xlu0
    %266 = vxpose.xlu0.c.b16.start [1/8] %v223, 128
    %267 = vxpose.xlu0.c.b16.cont [2/8] 0, 128
    %268 = vxpose.xlu0.c.b16.cont [3/8] 0, 128
    %269 = vxpose.xlu0.c.b16.cont [4/8] 0, 128
    %270 = vxpose.xlu0.c.b16.cont [5/8] 0, 128
    %271 = vxpose.xlu0.c.b16.cont [6/8] 0, 128
    %272 = vxpose.xlu0.c.b16.cont [7/8] 0, 128
    %273 = vxpose.xlu0.c.b16.end [8/8] 0, 128
    %v274 = vpop.trf.xlu0
    %v275 = vpop.trf.xlu0
    %v276 = vpop.trf.xlu0
    %v277 = vpop.trf.xlu0
    %v278 = vpop.trf.xlu0
    %v279 = vpop.trf.xlu0
    %v280 = vpop.trf.xlu0
    %v281 = vpop.trf.xlu0
    %282 = vxpose.xlu0.c.b16.start [1/8] %v224, 128
    %283 = vxpose.xlu0.c.b16.cont [2/8] 0, 128
    %284 = vxpose.xlu0.c.b16.cont [3/8] 0, 128
    %285 = vxpose.xlu0.c.b16.cont [4/8] 0, 128
    %286 = vxpose.xlu0.c.b16.cont [5/8] 0, 128
    %287 = vxpose.xlu0.c.b16.cont [6/8] 0, 128
    %288 = vxpose.xlu0.c.b16.cont [7/8] 0, 128
    %289 = vxpose.xlu0.c.b16.end [8/8] 0, 128
    %v290 = vpop.trf.xlu0
    %v291 = vpop.trf.xlu0
    %v292 = vpop.trf.xlu0
    %v293 = vpop.trf.xlu0
    %v294 = vpop.trf.xlu0
    %v295 = vpop.trf.xlu0
    %v296 = vpop.trf.xlu0
    %v297 = vpop.trf.xlu0
    %298 = vxpose.xlu0.c.b16.start [1/8] %v225, 128
    %299 = vxpose.xlu0.c.b16.cont [2/8] 0, 128
    %300 = vxpose.xlu0.c.b16.cont [3/8] 0, 128
    %301 = vxpose.xlu0.c.b16.cont [4/8] 0, 128
    %302 = vxpose.xlu0.c.b16.cont [5/8] 0, 128
    %303 = vxpose.xlu0.c.b16.cont [6/8] 0, 128
    %304 = vxpose.xlu0.c.b16.cont [7/8] 0, 128
    %305 = vxpose.xlu0.c.b16.end [8/8] 0, 128
    %v306 = vpop.trf.xlu0
    %v307 = vpop.trf.xlu0
    %v308 = vpop.trf.xlu0
    %v309 = vpop.trf.xlu0
    %v310 = vpop.trf.xlu0
    %v311 = vpop.trf.xlu0
    %v312 = vpop.trf.xlu0
    %v313 = vpop.trf.xlu0
    %314 = vxpose.xlu0.c.b16.start [1/8] %v234, 128
    %315 = vxpose.xlu0.c.b16.cont [2/8] 0, 128
    %316 = vxpose.xlu0.c.b16.cont [3/8] 0, 128
    %317 = vxpose.xlu0.c.b16.cont [4/8] 0, 128
    %318 = vxpose.xlu0.c.b16.cont [5/8] 0, 128
    %319 = vxpose.xlu0.c.b16.cont [6/8] 0, 128
    %320 = vxpose.xlu0.c.b16.cont [7/8] 0, 128
    %321 = vxpose.xlu0.c.b16.end [8/8] 0, 128
    %v322 = vpop.trf.xlu0
    %v323 = vpop.trf.xlu0
    %v324 = vpop.trf.xlu0
    %v325 = vpop.trf.xlu0
    %v326 = vpop.trf.xlu0
    %v327 = vpop.trf.xlu0
    %v328 = vpop.trf.xlu0
    %v329 = vpop.trf.xlu0
    %330 = vxpose.xlu0.c.b16.start [1/8] %v235, 128
    %331 = vxpose.xlu0.c.b16.cont [2/8] 0, 128
    %332 = vxpose.xlu0.c.b16.cont [3/8] 0, 128
    %333 = vxpose.xlu0.c.b16.cont [4/8] 0, 128
    %334 = vxpose.xlu0.c.b16.cont [5/8] 0, 128
    %335 = vxpose.xlu0.c.b16.cont [6/8] 0, 128
    %336 = vxpose.xlu0.c.b16.cont [7/8] 0, 128
    %337 = vxpose.xlu0.c.b16.end [8/8] 0, 128
    %v338 = vpop.trf.xlu0
    %v339 = vpop.trf.xlu0
    %v340 = vpop.trf.xlu0
    %v341 = vpop.trf.xlu0
    %v342 = vpop.trf.xlu0
    %v343 = vpop.trf.xlu0
    %v344 = vpop.trf.xlu0
    %v345 = vpop.trf.xlu0
    %346 = vxpose.xlu0.c.b16.start [1/8] %v236, 128
    %347 = vxpose.xlu0.c.b16.cont [2/8] 0, 128
    %348 = vxpose.xlu0.c.b16.cont [3/8] 0, 128
    %349 = vxpose.xlu0.c.b16.cont [4/8] 0, 128
    %350 = vxpose.xlu0.c.b16.cont [5/8] 0, 128
    %351 = vxpose.xlu0.c.b16.cont [6/8] 0, 128
    %352 = vxpose.xlu0.c.b16.cont [7/8] 0, 128
    %353 = vxpose.xlu0.c.b16.end [8/8] 0, 128
    %v354 = vpop.trf.xlu0
    %v355 = vpop.trf.xlu0
    %v356 = vpop.trf.xlu0
    %v357 = vpop.trf.xlu0
    %v358 = vpop.trf.xlu0
    %v359 = vpop.trf.xlu0
    %v360 = vpop.trf.xlu0
    %v361 = vpop.trf.xlu0
    %362 = vxpose.xlu0.c.b16.start [1/8] %v237, 128
    %363 = vxpose.xlu0.c.b16.cont [2/8] 0, 128
    %364 = vxpose.xlu0.c.b16.cont [3/8] 0, 128
    %365 = vxpose.xlu0.c.b16.cont [4/8] 0, 128
    %366 = vxpose.xlu0.c.b16.cont [5/8] 0, 128
    %367 = vxpose.xlu0.c.b16.cont [6/8] 0, 128
    %368 = vxpose.xlu0.c.b16.cont [7/8] 0, 128
    %369 = vxpose.xlu0.c.b16.end [8/8] 0, 128
    %v370 = vpop.trf.xlu0
    %v371 = vpop.trf.xlu0
    %v372 = vpop.trf.xlu0
    %v373 = vpop.trf.xlu0
    %v374 = vpop.trf.xlu0
    %v375 = vpop.trf.xlu0
    %v376 = vpop.trf.xlu0
    %v377 = vpop.trf.xlu0
    %vm378 = vcmask 64512
    %v380 = vsel %vm378, %v258, 0
    %vm382 = vcmask 1043456
    %v384 = vsel %vm382, %v218, 0
    %386 = vmatprep.subr.bf16.mxu0 0
    %387 = vmatpush1.bf16.msra.mxu0 0
    %388 = vmatprep.subr.bf16.mxu0 0
    %389 = vmatpush1.bf16.msra.mxu0 0
    %390 = vmatprep.subr.bf16.mxu0 0
    %391 = vmatpush1.bf16.msra.mxu0 0
    %392 = vmatprep.subr.bf16.mxu0 0
    %393 = vmatpush1.bf16.msra.mxu0 0
    %394 = vmatprep.subr.bf16.mxu0 0
    %395 = vmatpush1.bf16.msra.mxu0 0
    %396 = vmatprep.subr.bf16.mxu0 0
    %397 = vmatpush1.bf16.msra.mxu0 0
    %398 = vmatprep.subr.bf16.mxu0 0
    %399 = vmatpush1.bf16.msra.mxu0 0
    %400 = vmatprep.subr.bf16.mxu0 0
    %401 = vmatpush1.bf16.msra.mxu0 %v384
    %402 = vmatprep.subr.bf16.mxu0 0
    %403 = vmatpush2.bf16.msra.mxu0 0
    %404 = vmatprep.subr.bf16.mxu0 0
    %405 = vmatpush2.bf16.msra.mxu0 0
    %406 = vmatprep.subr.bf16.mxu0 0
    %407 = vmatpush2.bf16.msra.mxu0 0
    %408 = vmatprep.subr.bf16.mxu0 0
    %409 = vmatpush2.bf16.msra.mxu0 0
    %410 = vmatprep.subr.bf16.mxu0 0
    %411 = vmatpush2.bf16.msra.mxu0 0
    %412 = vmatprep.subr.bf16.mxu0 0
    %413 = vmatpush2.bf16.msra.mxu0 0
    %414 = vmatprep.subr.bf16.mxu0 0
    %415 = vmatpush2.bf16.msra.mxu0 0
    %416 = vmatprep.subr.bf16.mxu0 0
    %417 = vmatpush2.bf16.msra.mxu0 0
    %418 = vmatprep.mubr.bf16.mxu0 0
    %419 = vmatmul.mubr.bf16.gmra.mxu0 %v380
    %v420 = vpop.f32.mrf.mxu0
    %v421 = vadd.f32 0.0, %v420
    %v422 = vpop.f32.mrf.mxu0
    %v423 = vpop.f32.mrf.mxu0
    %v424 = vpop.f32.mrf.mxu0
    %425 = vdwg.mxu0
    %v427 = vsel %vm378, %v274, 0
    %v430 = vsel %vm382, %v219, 0
    %432 = vmatprep.subr.bf16.mxu0 0
    %433 = vmatpush1.bf16.msra.mxu0 0
    %434 = vmatprep.subr.bf16.mxu0 0
    %435 = vmatpush1.bf16.msra.mxu0 0
    %436 = vmatprep.subr.bf16.mxu0 0
    %437 = vmatpush1.bf16.msra.mxu0 0
    %438 = vmatprep.subr.bf16.mxu0 0
    %439 = vmatpush1.bf16.msra.mxu0 0
    %440 = vmatprep.subr.bf16.mxu0 0
    %441 = vmatpush1.bf16.msra.mxu0 0
    %442 = vmatprep.subr.bf16.mxu0 0
    %443 = vmatpush1.bf16.msra.mxu0 0
    %444 = vmatprep.subr.bf16.mxu0 0
    %445 = vmatpush1.bf16.msra.mxu0 0
    %446 = vmatprep.subr.bf16.mxu0 0
    %447 = vmatpush1.bf16.msra.mxu0 %v430
    %448 = vmatprep.subr.bf16.mxu0 0
    %449 = vmatpush2.bf16.msra.mxu0 0
    %450 = vmatprep.subr.bf16.mxu0 0
    %451 = vmatpush2.bf16.msra.mxu0 0
    %452 = vmatprep.subr.bf16.mxu0 0
    %453 = vmatpush2.bf16.msra.mxu0 0
    %454 = vmatprep.subr.bf16.mxu0 0
    %455 = vmatpush2.bf16.msra.mxu0 0
    %456 = vmatprep.subr.bf16.mxu0 0
    %457 = vmatpush2.bf16.msra.mxu0 0
    %458 = vmatprep.subr.bf16.mxu0 0
    %459 = vmatpush2.bf16.msra.mxu0 0
    %460 = vmatprep.subr.bf16.mxu0 0
    %461 = vmatpush2.bf16.msra.mxu0 0
    %462 = vmatprep.subr.bf16.mxu0 0
    %463 = vmatpush2.bf16.msra.mxu0 0
    %464 = vmatprep.mubr.bf16.mxu0 0
    %465 = vmatmul.mubr.bf16.gmra.mxu0 %v427
    %v466 = vpop.f32.mrf.mxu0
    %v467 = vadd.f32 0.0, %v466
    %v468 = vpop.f32.mrf.mxu0
    %v469 = vpop.f32.mrf.mxu0
    %v470 = vpop.f32.mrf.mxu0
    %471 = vdwg.mxu0
    %v473 = vsel %vm378, %v290, 0
    %v476 = vsel %vm382, %v220, 0
    %478 = vmatprep.subr.bf16.mxu0 0
    %479 = vmatpush1.bf16.msra.mxu0 0
    %480 = vmatprep.subr.bf16.mxu0 0
    %481 = vmatpush1.bf16.msra.mxu0 0
    %482 = vmatprep.subr.bf16.mxu0 0
    %483 = vmatpush1.bf16.msra.mxu0 0
    %484 = vmatprep.subr.bf16.mxu0 0
    %485 = vmatpush1.bf16.msra.mxu0 0
    %486 = vmatprep.subr.bf16.mxu0 0
    %487 = vmatpush1.bf16.msra.mxu0 0
    %488 = vmatprep.subr.bf16.mxu0 0
    %489 = vmatpush1.bf16.msra.mxu0 0
    %490 = vmatprep.subr.bf16.mxu0 0
    %491 = vmatpush1.bf16.msra.mxu0 0
    %492 = vmatprep.subr.bf16.mxu0 0
    %493 = vmatpush1.bf16.msra.mxu0 %v476
    %494 = vmatprep.subr.bf16.mxu0 0
    %495 = vmatpush2.bf16.msra.mxu0 0
    %496 = vmatprep.subr.bf16.mxu0 0
    %497 = vmatpush2.bf16.msra.mxu0 0
    %498 = vmatprep.subr.bf16.mxu0 0
    %499 = vmatpush2.bf16.msra.mxu0 0
    %500 = vmatprep.subr.bf16.mxu0 0
    %501 = vmatpush2.bf16.msra.mxu0 0
    %502 = vmatprep.subr.bf16.mxu0 0
    %503 = vmatpush2.bf16.msra.mxu0 0
    %504 = vmatprep.subr.bf16.mxu0 0
    %505 = vmatpush2.bf16.msra.mxu0 0
    %506 = vmatprep.subr.bf16.mxu0 0
    %507 = vmatpush2.bf16.msra.mxu0 0
    %508 = vmatprep.subr.bf16.mxu0 0
    %509 = vmatpush2.bf16.msra.mxu0 0
    %510 = vmatprep.mubr.bf16.mxu0 0
    %511 = vmatmul.mubr.bf16.gmra.mxu0 %v473
    %v512 = vpop.f32.mrf.mxu0
    %v513 = vadd.f32 0.0, %v512
    %v514 = vpop.f32.mrf.mxu0
    %v515 = vpop.f32.mrf.mxu0
    %v516 = vpop.f32.mrf.mxu0
    %517 = vdwg.mxu0
    %v519 = vsel %vm378, %v306, 0
    %v522 = vsel %vm382, %v221, 0
    %524 = vmatprep.subr.bf16.mxu0 0
    %525 = vmatpush1.bf16.msra.mxu0 0
    %526 = vmatprep.subr.bf16.mxu0 0
    %527 = vmatpush1.bf16.msra.mxu0 0
    %528 = vmatprep.subr.bf16.mxu0 0
    %529 = vmatpush1.bf16.msra.mxu0 0
    %530 = vmatprep.subr.bf16.mxu0 0
    %531 = vmatpush1.bf16.msra.mxu0 0
    %532 = vmatprep.subr.bf16.mxu0 0
    %533 = vmatpush1.bf16.msra.mxu0 0
    %534 = vmatprep.subr.bf16.mxu0 0
    %535 = vmatpush1.bf16.msra.mxu0 0
    %536 = vmatprep.subr.bf16.mxu0 0
    %537 = vmatpush1.bf16.msra.mxu0 0
    %538 = vmatprep.subr.bf16.mxu0 0
    %539 = vmatpush1.bf16.msra.mxu0 %v522
    %540 = vmatprep.subr.bf16.mxu0 0
    %541 = vmatpush2.bf16.msra.mxu0 0
    %542 = vmatprep.subr.bf16.mxu0 0
    %543 = vmatpush2.bf16.msra.mxu0 0
    %544 = vmatprep.subr.bf16.mxu0 0
    %545 = vmatpush2.bf16.msra.mxu0 0
    %546 = vmatprep.subr.bf16.mxu0 0
    %547 = vmatpush2.bf16.msra.mxu0 0
    %548 = vmatprep.subr.bf16.mxu0 0
    %549 = vmatpush2.bf16.msra.mxu0 0
    %550 = vmatprep.subr.bf16.mxu0 0
    %551 = vmatpush2.bf16.msra.mxu0 0
    %552 = vmatprep.subr.bf16.mxu0 0
    %553 = vmatpush2.bf16.msra.mxu0 0
    %554 = vmatprep.subr.bf16.mxu0 0
    %555 = vmatpush2.bf16.msra.mxu0 0
    %556 = vmatprep.mubr.bf16.mxu0 0
    %557 = vmatmul.mubr.bf16.gmra.mxu0 %v519
    %v558 = vpop.f32.mrf.mxu0
    %v559 = vadd.f32 0.0, %v558
    %v560 = vpop.f32.mrf.mxu0
    %v561 = vpop.f32.mrf.mxu0
    %v562 = vpop.f32.mrf.mxu0
    %563 = vdwg.mxu0
    %v565 = vsel %vm378, %v322, 0
    %v568 = vsel %vm382, %v230, 0
    %570 = vmatprep.subr.bf16.mxu0 0
    %571 = vmatpush1.bf16.msra.mxu0 0
    %572 = vmatprep.subr.bf16.mxu0 0
    %573 = vmatpush1.bf16.msra.mxu0 0
    %574 = vmatprep.subr.bf16.mxu0 0
    %575 = vmatpush1.bf16.msra.mxu0 0
    %576 = vmatprep.subr.bf16.mxu0 0
    %577 = vmatpush1.bf16.msra.mxu0 0
    %578 = vmatprep.subr.bf16.mxu0 0
    %579 = vmatpush1.bf16.msra.mxu0 0
    %580 = vmatprep.subr.bf16.mxu0 0
    %581 = vmatpush1.bf16.msra.mxu0 0
    %582 = vmatprep.subr.bf16.mxu0 0
    %583 = vmatpush1.bf16.msra.mxu0 0
    %584 = vmatprep.subr.bf16.mxu0 0
    %585 = vmatpush1.bf16.msra.mxu0 %v568
    %586 = vmatprep.subr.bf16.mxu0 0
    %587 = vmatpush2.bf16.msra.mxu0 0
    %588 = vmatprep.subr.bf16.mxu0 0
    %589 = vmatpush2.bf16.msra.mxu0 0
    %590 = vmatprep.subr.bf16.mxu0 0
    %591 = vmatpush2.bf16.msra.mxu0 0
    %592 = vmatprep.subr.bf16.mxu0 0
    %593 = vmatpush2.bf16.msra.mxu0 0
    %594 = vmatprep.subr.bf16.mxu0 0
    %595 = vmatpush2.bf16.msra.mxu0 0
    %596 = vmatprep.subr.bf16.mxu0 0
    %597 = vmatpush2.bf16.msra.mxu0 0
    %598 = vmatprep.subr.bf16.mxu0 0
    %599 = vmatpush2.bf16.msra.mxu0 0
    %600 = vmatprep.subr.bf16.mxu0 0
    %601 = vmatpush2.bf16.msra.mxu0 0
    %602 = vmatprep.mubr.bf16.mxu0 0
    %603 = vmatmul.mubr.bf16.gmra.mxu0 %v565
    %v604 = vpop.f32.mrf.mxu0
    %v605 = vadd.f32 0.0, %v604
    %v606 = vpop.f32.mrf.mxu0
    %v607 = vpop.f32.mrf.mxu0
    %v608 = vpop.f32.mrf.mxu0
    %609 = vdwg.mxu0
    %v611 = vsel %vm378, %v338, 0
    %v614 = vsel %vm382, %v231, 0
    %616 = vmatprep.subr.bf16.mxu0 0
    %617 = vmatpush1.bf16.msra.mxu0 0
    %618 = vmatprep.subr.bf16.mxu0 0
    %619 = vmatpush1.bf16.msra.mxu0 0
    %620 = vmatprep.subr.bf16.mxu0 0
    %621 = vmatpush1.bf16.msra.mxu0 0
    %622 = vmatprep.subr.bf16.mxu0 0
    %623 = vmatpush1.bf16.msra.mxu0 0
    %624 = vmatprep.subr.bf16.mxu0 0
    %625 = vmatpush1.bf16.msra.mxu0 0
    %626 = vmatprep.subr.bf16.mxu0 0
    %627 = vmatpush1.bf16.msra.mxu0 0
    %628 = vmatprep.subr.bf16.mxu0 0
    %629 = vmatpush1.bf16.msra.mxu0 0
    %630 = vmatprep.subr.bf16.mxu0 0
    %631 = vmatpush1.bf16.msra.mxu0 %v614
    %632 = vmatprep.subr.bf16.mxu0 0
    %633 = vmatpush2.bf16.msra.mxu0 0
    %634 = vmatprep.subr.bf16.mxu0 0
    %635 = vmatpush2.bf16.msra.mxu0 0
    %636 = vmatprep.subr.bf16.mxu0 0
    %637 = vmatpush2.bf16.msra.mxu0 0
    %638 = vmatprep.subr.bf16.mxu0 0
    %639 = vmatpush2.bf16.msra.mxu0 0
    %640 = vmatprep.subr.bf16.mxu0 0
    %641 = vmatpush2.bf16.msra.mxu0 0
    %642 = vmatprep.subr.bf16.mxu0 0
    %643 = vmatpush2.bf16.msra.mxu0 0
    %644 = vmatprep.subr.bf16.mxu0 0
    %645 = vmatpush2.bf16.msra.mxu0 0
    %646 = vmatprep.subr.bf16.mxu0 0
    %647 = vmatpush2.bf16.msra.mxu0 0
    %648 = vmatprep.mubr.bf16.mxu0 0
    %649 = vmatmul.mubr.bf16.gmra.mxu0 %v611
    %v650 = vpop.f32.mrf.mxu0
    %v651 = vadd.f32 0.0, %v650
    %v652 = vpop.f32.mrf.mxu0
    %v653 = vpop.f32.mrf.mxu0
    %v654 = vpop.f32.mrf.mxu0
    %655 = vdwg.mxu0
    %v657 = vsel %vm378, %v354, 0
    %v660 = vsel %vm382, %v232, 0
    %662 = vmatprep.subr.bf16.mxu0 0
    %663 = vmatpush1.bf16.msra.mxu0 0
    %664 = vmatprep.subr.bf16.mxu0 0
    %665 = vmatpush1.bf16.msra.mxu0 0
    %666 = vmatprep.subr.bf16.mxu0 0
    %667 = vmatpush1.bf16.msra.mxu0 0
    %668 = vmatprep.subr.bf16.mxu0 0
    %669 = vmatpush1.bf16.msra.mxu0 0
    %670 = vmatprep.subr.bf16.mxu0 0
    %671 = vmatpush1.bf16.msra.mxu0 0
    %672 = vmatprep.subr.bf16.mxu0 0
    %673 = vmatpush1.bf16.msra.mxu0 0
    %674 = vmatprep.subr.bf16.mxu0 0
    %675 = vmatpush1.bf16.msra.mxu0 0
    %676 = vmatprep.subr.bf16.mxu0 0
    %677 = vmatpush1.bf16.msra.mxu0 %v660
    %678 = vmatprep.subr.bf16.mxu0 0
    %679 = vmatpush2.bf16.msra.mxu0 0
    %680 = vmatprep.subr.bf16.mxu0 0
    %681 = vmatpush2.bf16.msra.mxu0 0
    %682 = vmatprep.subr.bf16.mxu0 0
    %683 = vmatpush2.bf16.msra.mxu0 0
    %684 = vmatprep.subr.bf16.mxu0 0
    %685 = vmatpush2.bf16.msra.mxu0 0
    %686 = vmatprep.subr.bf16.mxu0 0
    %687 = vmatpush2.bf16.msra.mxu0 0
    %688 = vmatprep.subr.bf16.mxu0 0
    %689 = vmatpush2.bf16.msra.mxu0 0
    %690 = vmatprep.subr.bf16.mxu0 0
    %691 = vmatpush2.bf16.msra.mxu0 0
    %692 = vmatprep.subr.bf16.mxu0 0
    %693 = vmatpush2.bf16.msra.mxu0 0
    %694 = vmatprep.mubr.bf16.mxu0 0
    %695 = vmatmul.mubr.bf16.gmra.mxu0 %v657
    %v696 = vpop.f32.mrf.mxu0
    %v697 = vadd.f32 0.0, %v696
    %v698 = vpop.f32.mrf.mxu0
    %v699 = vpop.f32.mrf.mxu0
    %v700 = vpop.f32.mrf.mxu0
    %701 = vdwg.mxu0
    %v703 = vsel %vm378, %v370, 0
    %v706 = vsel %vm382, %v233, 0
    %708 = vmatprep.subr.bf16.mxu0 0
    %709 = vmatpush1.bf16.msra.mxu0 0
    %710 = vmatprep.subr.bf16.mxu0 0
    %711 = vmatpush1.bf16.msra.mxu0 0
    %712 = vmatprep.subr.bf16.mxu0 0
    %713 = vmatpush1.bf16.msra.mxu0 0
    %714 = vmatprep.subr.bf16.mxu0 0
    %715 = vmatpush1.bf16.msra.mxu0 0
    %716 = vmatprep.subr.bf16.mxu0 0
    %717 = vmatpush1.bf16.msra.mxu0 0
    %718 = vmatprep.subr.bf16.mxu0 0
    %719 = vmatpush1.bf16.msra.mxu0 0
    %720 = vmatprep.subr.bf16.mxu0 0
    %721 = vmatpush1.bf16.msra.mxu0 0
    %722 = vmatprep.subr.bf16.mxu0 0
    %723 = vmatpush1.bf16.msra.mxu0 %v706
    %724 = vmatprep.subr.bf16.mxu0 0
    %725 = vmatpush2.bf16.msra.mxu0 0
    %726 = vmatprep.subr.bf16.mxu0 0
    %727 = vmatpush2.bf16.msra.mxu0 0
    %728 = vmatprep.subr.bf16.mxu0 0
    %729 = vmatpush2.bf16.msra.mxu0 0
    %730 = vmatprep.subr.bf16.mxu0 0
    %731 = vmatpush2.bf16.msra.mxu0 0
    %732 = vmatprep.subr.bf16.mxu0 0
    %733 = vmatpush2.bf16.msra.mxu0 0
    %734 = vmatprep.subr.bf16.mxu0 0
    %735 = vmatpush2.bf16.msra.mxu0 0
    %736 = vmatprep.subr.bf16.mxu0 0
    %737 = vmatpush2.bf16.msra.mxu0 0
    %738 = vmatprep.subr.bf16.mxu0 0
    %739 = vmatpush2.bf16.msra.mxu0 0
    %740 = vmatprep.mubr.bf16.mxu0 0
    %741 = vmatmul.mubr.bf16.gmra.mxu0 %v703
    %v742 = vpop.f32.mrf.mxu0
    %v743 = vadd.f32 0.0, %v742
    %v744 = vpop.f32.mrf.mxu0
    %v745 = vpop.f32.mrf.mxu0
    %v746 = vpop.f32.mrf.mxu0
    %747 = vdwg.mxu0
    %v748 = vsel %vm378, %v421, -inf
    %v749 = vrot.slane %v748, 4
    %v750 = vmax.f32 %v748, %v749
    %v751 = vrot.slane %v750, 2
    %v752 = vmax.f32 %v750, %v751
    %v753 = vrot.slane %v752, 1
    %v754 = vmax.f32 %v752, %v753
    %v755 = vsel %vm378, %v467, -inf
    %v756 = vrot.slane %v755, 4
    %v757 = vmax.f32 %v755, %v756
    %v758 = vrot.slane %v757, 2
    %v759 = vmax.f32 %v757, %v758
    %v760 = vrot.slane %v759, 1
    %v761 = vmax.f32 %v759, %v760
    %v762 = vsel %vm378, %v513, -inf
    %v763 = vrot.slane %v762, 4
    %v764 = vmax.f32 %v762, %v763
    %v765 = vrot.slane %v764, 2
    %v766 = vmax.f32 %v764, %v765
    %v767 = vrot.slane %v766, 1
    %v768 = vmax.f32 %v766, %v767
    %v769 = vsel %vm378, %v559, -inf
    %v770 = vrot.slane %v769, 4
    %v771 = vmax.f32 %v769, %v770
    %v772 = vrot.slane %v771, 2
    %v773 = vmax.f32 %v771, %v772
    %v774 = vrot.slane %v773, 1
    %v775 = vmax.f32 %v773, %v774
    %v776 = vsel %vm378, %v605, -inf
    %v777 = vrot.slane %v776, 4
    %v778 = vmax.f32 %v776, %v777
    %v779 = vrot.slane %v778, 2
    %v780 = vmax.f32 %v778, %v779
    %v781 = vrot.slane %v780, 1
    %v782 = vmax.f32 %v780, %v781
    %v783 = vsel %vm378, %v651, -inf
    %v784 = vrot.slane %v783, 4
    %v785 = vmax.f32 %v783, %v784
    %v786 = vrot.slane %v785, 2
    %v787 = vmax.f32 %v785, %v786
    %v788 = vrot.slane %v787, 1
    %v789 = vmax.f32 %v787, %v788
    %v790 = vsel %vm378, %v697, -inf
    %v791 = vrot.slane %v790, 4
    %v792 = vmax.f32 %v790, %v791
    %v793 = vrot.slane %v792, 2
    %v794 = vmax.f32 %v792, %v793
    %v795 = vrot.slane %v794, 1
    %v796 = vmax.f32 %v794, %v795
    %v797 = vsel %vm378, %v743, -inf
    %v798 = vrot.slane %v797, 4
    %v799 = vmax.f32 %v797, %v798
    %v800 = vrot.slane %v799, 2
    %v801 = vmax.f32 %v799, %v800
    %v802 = vrot.slane %v801, 1
    %v803 = vmax.f32 %v801, %v802
    %v804 = vsub.f32 %v421, %v754
    %v805 = vsub.f32 %v467, %v761
    %v806 = vsub.f32 %v513, %v768
    %v807 = vsub.f32 %v559, %v775
    %v808 = vsub.f32 %v605, %v782
    %v809 = vsub.f32 %v651, %v789
    %v810 = vsub.f32 %v697, %v796
    %v811 = vsub.f32 %v743, %v803
    %v812 = vmul.f32 %v804, 1.442695
    %v813 = vpow.pop %v812
    %v814 = vmul.f32 %v805, 1.442695
    %v815 = vpow.pop %v814
    %v816 = vmul.f32 %v806, 1.442695
    %v817 = vpow.pop %v816
    %v818 = vmul.f32 %v807, 1.442695
    %v819 = vpow.pop %v818
    %v820 = vmul.f32 %v808, 1.442695
    %v821 = vpow.pop %v820
    %v822 = vmul.f32 %v809, 1.442695
    %v823 = vpow.pop %v822
    %v824 = vmul.f32 %v810, 1.442695
    %v825 = vpow.pop %v824
    %v826 = vmul.f32 %v811, 1.442695
    %v827 = vpow.pop %v826
    %v828 = vsel %vm378, %v813, 0.0
    %v829 = vrot.slane %v828, 4
    %v830 = vadd.f32 %v828, %v829
    %v831 = vrot.slane %v830, 2
    %v832 = vadd.f32 %v830, %v831
    %v833 = vrot.slane %v832, 1
    %v834 = vadd.f32 %v832, %v833
    %v835 = vsel %vm378, %v815, 0.0
    %v836 = vrot.slane %v835, 4
    %v837 = vadd.f32 %v835, %v836
    %v838 = vrot.slane %v837, 2
    %v839 = vadd.f32 %v837, %v838
    %v840 = vrot.slane %v839, 1
    %v841 = vadd.f32 %v839, %v840
    %v842 = vsel %vm378, %v817, 0.0
    %v843 = vrot.slane %v842, 4
    %v844 = vadd.f32 %v842, %v843
    %v845 = vrot.slane %v844, 2
    %v846 = vadd.f32 %v844, %v845
    %v847 = vrot.slane %v846, 1
    %v848 = vadd.f32 %v846, %v847
    %v849 = vsel %vm378, %v819, 0.0
    %v850 = vrot.slane %v849, 4
    %v851 = vadd.f32 %v849, %v850
    %v852 = vrot.slane %v851, 2
    %v853 = vadd.f32 %v851, %v852
    %v854 = vrot.slane %v853, 1
    %v855 = vadd.f32 %v853, %v854
    %v856 = vsel %vm378, %v821, 0.0
    %v857 = vrot.slane %v856, 4
    %v858 = vadd.f32 %v856, %v857
    %v859 = vrot.slane %v858, 2
    %v860 = vadd.f32 %v858, %v859
    %v861 = vrot.slane %v860, 1
    %v862 = vadd.f32 %v860, %v861
    %v863 = vsel %vm378, %v823, 0.0
    %v864 = vrot.slane %v863, 4
    %v865 = vadd.f32 %v863, %v864
    %v866 = vrot.slane %v865, 2
    %v867 = vadd.f32 %v865, %v866
    %v868 = vrot.slane %v867, 1
    %v869 = vadd.f32 %v867, %v868
    %v870 = vsel %vm378, %v825, 0.0
    %v871 = vrot.slane %v870, 4
    %v872 = vadd.f32 %v870, %v871
    %v873 = vrot.slane %v872, 2
    %v874 = vadd.f32 %v872, %v873
    %v875 = vrot.slane %v874, 1
    %v876 = vadd.f32 %v874, %v875
    %v877 = vsel %vm378, %v827, 0.0
    %v878 = vrot.slane %v877, 4
    %v879 = vadd.f32 %v877, %v878
    %v880 = vrot.slane %v879, 2
    %v881 = vadd.f32 %v879, %v880
    %v882 = vrot.slane %v881, 1
    %v883 = vadd.f32 %v881, %v882
    %v884 = vpack.c.bf16 %v813, %v813
    %v885 = vpack.c.bf16 %v815, %v815
    %v886 = vpack.c.bf16 %v817, %v817
    %v887 = vpack.c.bf16 %v819, %v819
    %v888 = vpack.c.bf16 %v821, %v821
    %v889 = vpack.c.bf16 %v823, %v823
    %v890 = vpack.c.bf16 %v825, %v825
    %v891 = vpack.c.bf16 %v827, %v827
    %v893 = vsel %vm378, %v226, 0
    %v896 = vsel %vm382, %v884, 0
    %898 = vmatprep.subr.bf16.mxu0 0
    %899 = vmatpush1.bf16.msra.mxu0 0
    %900 = vmatprep.subr.bf16.mxu0 0
    %901 = vmatpush1.bf16.msra.mxu0 0
    %902 = vmatprep.subr.bf16.mxu0 0
    %903 = vmatpush1.bf16.msra.mxu0 0
    %904 = vmatprep.subr.bf16.mxu0 0
    %905 = vmatpush1.bf16.msra.mxu0 0
    %906 = vmatprep.subr.bf16.mxu0 0
    %907 = vmatpush1.bf16.msra.mxu0 0
    %908 = vmatprep.subr.bf16.mxu0 0
    %909 = vmatpush1.bf16.msra.mxu0 0
    %910 = vmatprep.subr.bf16.mxu0 0
    %911 = vmatpush1.bf16.msra.mxu0 0
    %912 = vmatprep.subr.bf16.mxu0 0
    %913 = vmatpush1.bf16.msra.mxu0 %v896
    %914 = vmatprep.subr.bf16.mxu0 0
    %915 = vmatpush2.bf16.msra.mxu0 0
    %916 = vmatprep.subr.bf16.mxu0 0
    %917 = vmatpush2.bf16.msra.mxu0 0
    %918 = vmatprep.subr.bf16.mxu0 0
    %919 = vmatpush2.bf16.msra.mxu0 0
    %920 = vmatprep.subr.bf16.mxu0 0
    %921 = vmatpush2.bf16.msra.mxu0 0
    %922 = vmatprep.subr.bf16.mxu0 0
    %923 = vmatpush2.bf16.msra.mxu0 0
    %924 = vmatprep.subr.bf16.mxu0 0
    %925 = vmatpush2.bf16.msra.mxu0 0
    %926 = vmatprep.subr.bf16.mxu0 0
    %927 = vmatpush2.bf16.msra.mxu0 0
    %928 = vmatprep.subr.bf16.mxu0 0
    %929 = vmatpush2.bf16.msra.mxu0 0
    %930 = vmatprep.mubr.bf16.mxu0 0
    %931 = vmatmul.mubr.bf16.gmra.mxu0 %v893
    %v932 = vpop.f32.mrf.mxu0
    %v933 = vadd.f32 0.0, %v932
    %v934 = vpop.f32.mrf.mxu0
    %v935 = vpop.f32.mrf.mxu0
    %v936 = vpop.f32.mrf.mxu0
    %937 = vdwg.mxu0
    %v939 = vsel %vm378, %v227, 0
    %v942 = vsel %vm382, %v885, 0
    %944 = vmatprep.subr.bf16.mxu0 0
    %945 = vmatpush1.bf16.msra.mxu0 0
    %946 = vmatprep.subr.bf16.mxu0 0
    %947 = vmatpush1.bf16.msra.mxu0 0
    %948 = vmatprep.subr.bf16.mxu0 0
    %949 = vmatpush1.bf16.msra.mxu0 0
    %950 = vmatprep.subr.bf16.mxu0 0
    %951 = vmatpush1.bf16.msra.mxu0 0
    %952 = vmatprep.subr.bf16.mxu0 0
    %953 = vmatpush1.bf16.msra.mxu0 0
    %954 = vmatprep.subr.bf16.mxu0 0
    %955 = vmatpush1.bf16.msra.mxu0 0
    %956 = vmatprep.subr.bf16.mxu0 0
    %957 = vmatpush1.bf16.msra.mxu0 0
    %958 = vmatprep.subr.bf16.mxu0 0
    %959 = vmatpush1.bf16.msra.mxu0 %v942
    %960 = vmatprep.subr.bf16.mxu0 0
    %961 = vmatpush2.bf16.msra.mxu0 0
    %962 = vmatprep.subr.bf16.mxu0 0
    %963 = vmatpush2.bf16.msra.mxu0 0
    %964 = vmatprep.subr.bf16.mxu0 0
    %965 = vmatpush2.bf16.msra.mxu0 0
    %966 = vmatprep.subr.bf16.mxu0 0
    %967 = vmatpush2.bf16.msra.mxu0 0
    %968 = vmatprep.subr.bf16.mxu0 0
    %969 = vmatpush2.bf16.msra.mxu0 0
    %970 = vmatprep.subr.bf16.mxu0 0
    %971 = vmatpush2.bf16.msra.mxu0 0
    %972 = vmatprep.subr.bf16.mxu0 0
    %973 = vmatpush2.bf16.msra.mxu0 0
    %974 = vmatprep.subr.bf16.mxu0 0
    %975 = vmatpush2.bf16.msra.mxu0 0
    %976 = vmatprep.mubr.bf16.mxu0 0
    %977 = vmatmul.mubr.bf16.gmra.mxu0 %v939
    %v978 = vpop.f32.mrf.mxu0
    %v979 = vadd.f32 0.0, %v978
    %v980 = vpop.f32.mrf.mxu0
    %v981 = vpop.f32.mrf.mxu0
    %v982 = vpop.f32.mrf.mxu0
    %983 = vdwg.mxu0
    %v985 = vsel %vm378, %v228, 0
    %v988 = vsel %vm382, %v886, 0
    %990 = vmatprep.subr.bf16.mxu0 0
    %991 = vmatpush1.bf16.msra.mxu0 0
    %992 = vmatprep.subr.bf16.mxu0 0
    %993 = vmatpush1.bf16.msra.mxu0 0
    %994 = vmatprep.subr.bf16.mxu0 0
    %995 = vmatpush1.bf16.msra.mxu0 0
    %996 = vmatprep.subr.bf16.mxu0 0
    %997 = vmatpush1.bf16.msra.mxu0 0
    %998 = vmatprep.subr.bf16.mxu0 0
    %999 = vmatpush1.bf16.msra.mxu0 0
    %1000 = vmatprep.subr.bf16.mxu0 0
    %1001 = vmatpush1.bf16.msra.mxu0 0
    %1002 = vmatprep.subr.bf16.mxu0 0
    %1003 = vmatpush1.bf16.msra.mxu0 0
    %1004 = vmatprep.subr.bf16.mxu0 0
    %1005 = vmatpush1.bf16.msra.mxu0 %v988
    %1006 = vmatprep.subr.bf16.mxu0 0
    %1007 = vmatpush2.bf16.msra.mxu0 0
    %1008 = vmatprep.subr.bf16.mxu0 0
    %1009 = vmatpush2.bf16.msra.mxu0 0
    %1010 = vmatprep.subr.bf16.mxu0 0
    %1011 = vmatpush2.bf16.msra.mxu0 0
    %1012 = vmatprep.subr.bf16.mxu0 0
    %1013 = vmatpush2.bf16.msra.mxu0 0
    %1014 = vmatprep.subr.bf16.mxu0 0
    %1015 = vmatpush2.bf16.msra.mxu0 0
    %1016 = vmatprep.subr.bf16.mxu0 0
    %1017 = vmatpush2.bf16.msra.mxu0 0
    %1018 = vmatprep.subr.bf16.mxu0 0
    %1019 = vmatpush2.bf16.msra.mxu0 0
    %1020 = vmatprep.subr.bf16.mxu0 0
    %1021 = vmatpush2.bf16.msra.mxu0 0
    %1022 = vmatprep.mubr.bf16.mxu0 0
    %1023 = vmatmul.mubr.bf16.gmra.mxu0 %v985
    %v1024 = vpop.f32.mrf.mxu0
    %v1025 = vadd.f32 0.0, %v1024
    %v1026 = vpop.f32.mrf.mxu0
    %v1027 = vpop.f32.mrf.mxu0
    %v1028 = vpop.f32.mrf.mxu0
    %1029 = vdwg.mxu0
    %v1031 = vsel %vm378, %v229, 0
    %v1034 = vsel %vm382, %v887, 0
    %1036 = vmatprep.subr.bf16.mxu0 0
    %1037 = vmatpush1.bf16.msra.mxu0 0
    %1038 = vmatprep.subr.bf16.mxu0 0
    %1039 = vmatpush1.bf16.msra.mxu0 0
    %1040 = vmatprep.subr.bf16.mxu0 0
    %1041 = vmatpush1.bf16.msra.mxu0 0
    %1042 = vmatprep.subr.bf16.mxu0 0
    %1043 = vmatpush1.bf16.msra.mxu0 0
    %1044 = vmatprep.subr.bf16.mxu0 0
    %1045 = vmatpush1.bf16.msra.mxu0 0
    %1046 = vmatprep.subr.bf16.mxu0 0
    %1047 = vmatpush1.bf16.msra.mxu0 0
    %1048 = vmatprep.subr.bf16.mxu0 0
    %1049 = vmatpush1.bf16.msra.mxu0 0
    %1050 = vmatprep.subr.bf16.mxu0 0
    %1051 = vmatpush1.bf16.msra.mxu0 %v1034
    %1052 = vmatprep.subr.bf16.mxu0 0
    %1053 = vmatpush2.bf16.msra.mxu0 0
    %1054 = vmatprep.subr.bf16.mxu0 0
    %1055 = vmatpush2.bf16.msra.mxu0 0
    %1056 = vmatprep.subr.bf16.mxu0 0
    %1057 = vmatpush2.bf16.msra.mxu0 0
    %1058 = vmatprep.subr.bf16.mxu0 0
    %1059 = vmatpush2.bf16.msra.mxu0 0
    %1060 = vmatprep.subr.bf16.mxu0 0
    %1061 = vmatpush2.bf16.msra.mxu0 0
    %1062 = vmatprep.subr.bf16.mxu0 0
    %1063 = vmatpush2.bf16.msra.mxu0 0
    %1064 = vmatprep.subr.bf16.mxu0 0
    %1065 = vmatpush2.bf16.msra.mxu0 0
    %1066 = vmatprep.subr.bf16.mxu0 0
    %1067 = vmatpush2.bf16.msra.mxu0 0
    %1068 = vmatprep.mubr.bf16.mxu0 0
    %1069 = vmatmul.mubr.bf16.gmra.mxu0 %v1031
    %v1070 = vpop.f32.mrf.mxu0
    %v1071 = vadd.f32 0.0, %v1070
    %v1072 = vpop.f32.mrf.mxu0
    %v1073 = vpop.f32.mrf.mxu0
    %v1074 = vpop.f32.mrf.mxu0
    %1075 = vdwg.mxu0
    %v1077 = vsel %vm378, %v238, 0
    %v1080 = vsel %vm382, %v888, 0
    %1082 = vmatprep.subr.bf16.mxu0 0
    %1083 = vmatpush1.bf16.msra.mxu0 0
    %1084 = vmatprep.subr.bf16.mxu0 0
    %1085 = vmatpush1.bf16.msra.mxu0 0
    %1086 = vmatprep.subr.bf16.mxu0 0
    %1087 = vmatpush1.bf16.msra.mxu0 0
    %1088 = vmatprep.subr.bf16.mxu0 0
    %1089 = vmatpush1.bf16.msra.mxu0 0
    %1090 = vmatprep.subr.bf16.mxu0 0
    %1091 = vmatpush1.bf16.msra.mxu0 0
    %1092 = vmatprep.subr.bf16.mxu0 0
    %1093 = vmatpush1.bf16.msra.mxu0 0
    %1094 = vmatprep.subr.bf16.mxu0 0
    %1095 = vmatpush1.bf16.msra.mxu0 0
    %1096 = vmatprep.subr.bf16.mxu0 0
    %1097 = vmatpush1.bf16.msra.mxu0 %v1080
    %1098 = vmatprep.subr.bf16.mxu0 0
    %1099 = vmatpush2.bf16.msra.mxu0 0
    %1100 = vmatprep.subr.bf16.mxu0 0
    %1101 = vmatpush2.bf16.msra.mxu0 0
    %1102 = vmatprep.subr.bf16.mxu0 0
    %1103 = vmatpush2.bf16.msra.mxu0 0
    %1104 = vmatprep.subr.bf16.mxu0 0
    %1105 = vmatpush2.bf16.msra.mxu0 0
    %1106 = vmatprep.subr.bf16.mxu0 0
    %1107 = vmatpush2.bf16.msra.mxu0 0
    %1108 = vmatprep.subr.bf16.mxu0 0
    %1109 = vmatpush2.bf16.msra.mxu0 0
    %1110 = vmatprep.subr.bf16.mxu0 0
    %1111 = vmatpush2.bf16.msra.mxu0 0
    %1112 = vmatprep.subr.bf16.mxu0 0
    %1113 = vmatpush2.bf16.msra.mxu0 0
    %1114 = vmatprep.mubr.bf16.mxu0 0
    %1115 = vmatmul.mubr.bf16.gmra.mxu0 %v1077
    %v1116 = vpop.f32.mrf.mxu0
    %v1117 = vadd.f32 0.0, %v1116
    %v1118 = vpop.f32.mrf.mxu0
    %v1119 = vpop.f32.mrf.mxu0
    %v1120 = vpop.f32.mrf.mxu0
    %1121 = vdwg.mxu0
    %v1123 = vsel %vm378, %v239, 0
    %v1126 = vsel %vm382, %v889, 0
    %1128 = vmatprep.subr.bf16.mxu0 0
    %1129 = vmatpush1.bf16.msra.mxu0 0
    %1130 = vmatprep.subr.bf16.mxu0 0
    %1131 = vmatpush1.bf16.msra.mxu0 0
    %1132 = vmatprep.subr.bf16.mxu0 0
    %1133 = vmatpush1.bf16.msra.mxu0 0
    %1134 = vmatprep.subr.bf16.mxu0 0
    %1135 = vmatpush1.bf16.msra.mxu0 0
    %1136 = vmatprep.subr.bf16.mxu0 0
    %1137 = vmatpush1.bf16.msra.mxu0 0
    %1138 = vmatprep.subr.bf16.mxu0 0
    %1139 = vmatpush1.bf16.msra.mxu0 0
    %1140 = vmatprep.subr.bf16.mxu0 0
    %1141 = vmatpush1.bf16.msra.mxu0 0
    %1142 = vmatprep.subr.bf16.mxu0 0
    %1143 = vmatpush1.bf16.msra.mxu0 %v1126
    %1144 = vmatprep.subr.bf16.mxu0 0
    %1145 = vmatpush2.bf16.msra.mxu0 0
    %1146 = vmatprep.subr.bf16.mxu0 0
    %1147 = vmatpush2.bf16.msra.mxu0 0
    %1148 = vmatprep.subr.bf16.mxu0 0
    %1149 = vmatpush2.bf16.msra.mxu0 0
    %1150 = vmatprep.subr.bf16.mxu0 0
    %1151 = vmatpush2.bf16.msra.mxu0 0
    %1152 = vmatprep.subr.bf16.mxu0 0
    %1153 = vmatpush2.bf16.msra.mxu0 0
    %1154 = vmatprep.subr.bf16.mxu0 0
    %1155 = vmatpush2.bf16.msra.mxu0 0
    %1156 = vmatprep.subr.bf16.mxu0 0
    %1157 = vmatpush2.bf16.msra.mxu0 0
    %1158 = vmatprep.subr.bf16.mxu0 0
    %1159 = vmatpush2.bf16.msra.mxu0 0
    %1160 = vmatprep.mubr.bf16.mxu0 0
    %1161 = vmatmul.mubr.bf16.gmra.mxu0 %v1123
    %v1162 = vpop.f32.mrf.mxu0
    %v1163 = vadd.f32 0.0, %v1162
    %v1164 = vpop.f32.mrf.mxu0
    %v1165 = vpop.f32.mrf.mxu0
    %v1166 = vpop.f32.mrf.mxu0
    %1167 = vdwg.mxu0
    %v1169 = vsel %vm378, %v240, 0
    %v1172 = vsel %vm382, %v890, 0
    %1174 = vmatprep.subr.bf16.mxu0 0
    %1175 = vmatpush1.bf16.msra.mxu0 0
    %1176 = vmatprep.subr.bf16.mxu0 0
    %1177 = vmatpush1.bf16.msra.mxu0 0
    %1178 = vmatprep.subr.bf16.mxu0 0
    %1179 = vmatpush1.bf16.msra.mxu0 0
    %1180 = vmatprep.subr.bf16.mxu0 0
    %1181 = vmatpush1.bf16.msra.mxu0 0
    %1182 = vmatprep.subr.bf16.mxu0 0
    %1183 = vmatpush1.bf16.msra.mxu0 0
    %1184 = vmatprep.subr.bf16.mxu0 0
    %1185 = vmatpush1.bf16.msra.mxu0 0
    %1186 = vmatprep.subr.bf16.mxu0 0
    %1187 = vmatpush1.bf16.msra.mxu0 0
    %1188 = vmatprep.subr.bf16.mxu0 0
    %1189 = vmatpush1.bf16.msra.mxu0 %v1172
    %1190 = vmatprep.subr.bf16.mxu0 0
    %1191 = vmatpush2.bf16.msra.mxu0 0
    %1192 = vmatprep.subr.bf16.mxu0 0
    %1193 = vmatpush2.bf16.msra.mxu0 0
    %1194 = vmatprep.subr.bf16.mxu0 0
    %1195 = vmatpush2.bf16.msra.mxu0 0
    %1196 = vmatprep.subr.bf16.mxu0 0
    %1197 = vmatpush2.bf16.msra.mxu0 0
    %1198 = vmatprep.subr.bf16.mxu0 0
    %1199 = vmatpush2.bf16.msra.mxu0 0
    %1200 = vmatprep.subr.bf16.mxu0 0
    %1201 = vmatpush2.bf16.msra.mxu0 0
    %1202 = vmatprep.subr.bf16.mxu0 0
    %1203 = vmatpush2.bf16.msra.mxu0 0
    %1204 = vmatprep.subr.bf16.mxu0 0
    %1205 = vmatpush2.bf16.msra.mxu0 0
    %1206 = vmatprep.mubr.bf16.mxu0 0
    %1207 = vmatmul.mubr.bf16.gmra.mxu0 %v1169
    %v1208 = vpop.f32.mrf.mxu0
    %v1209 = vadd.f32 0.0, %v1208
    %v1210 = vpop.f32.mrf.mxu0
    %v1211 = vpop.f32.mrf.mxu0
    %v1212 = vpop.f32.mrf.mxu0
    %1213 = vdwg.mxu0
    %v1215 = vsel %vm378, %v241, 0
    %v1218 = vsel %vm382, %v891, 0
    %1220 = vmatprep.subr.bf16.mxu0 0
    %1221 = vmatpush1.bf16.msra.mxu0 0
    %1222 = vmatprep.subr.bf16.mxu0 0
    %1223 = vmatpush1.bf16.msra.mxu0 0
    %1224 = vmatprep.subr.bf16.mxu0 0
    %1225 = vmatpush1.bf16.msra.mxu0 0
    %1226 = vmatprep.subr.bf16.mxu0 0
    %1227 = vmatpush1.bf16.msra.mxu0 0
    %1228 = vmatprep.subr.bf16.mxu0 0
    %1229 = vmatpush1.bf16.msra.mxu0 0
    %1230 = vmatprep.subr.bf16.mxu0 0
    %1231 = vmatpush1.bf16.msra.mxu0 0
    %1232 = vmatprep.subr.bf16.mxu0 0
    %1233 = vmatpush1.bf16.msra.mxu0 0
    %1234 = vmatprep.subr.bf16.mxu0 0
    %1235 = vmatpush1.bf16.msra.mxu0 %v1218
    %1236 = vmatprep.subr.bf16.mxu0 0
    %1237 = vmatpush2.bf16.msra.mxu0 0
    %1238 = vmatprep.subr.bf16.mxu0 0
    %1239 = vmatpush2.bf16.msra.mxu0 0
    %1240 = vmatprep.subr.bf16.mxu0 0
    %1241 = vmatpush2.bf16.msra.mxu0 0
    %1242 = vmatprep.subr.bf16.mxu0 0
    %1243 = vmatpush2.bf16.msra.mxu0 0
    %1244 = vmatprep.subr.bf16.mxu0 0
    %1245 = vmatpush2.bf16.msra.mxu0 0
    %1246 = vmatprep.subr.bf16.mxu0 0
    %1247 = vmatpush2.bf16.msra.mxu0 0
    %1248 = vmatprep.subr.bf16.mxu0 0
    %1249 = vmatpush2.bf16.msra.mxu0 0
    %1250 = vmatprep.subr.bf16.mxu0 0
    %1251 = vmatpush2.bf16.msra.mxu0 0
    %1252 = vmatprep.mubr.bf16.mxu0 0
    %1253 = vmatmul.mubr.bf16.gmra.mxu0 %v1215
    %v1254 = vpop.f32.mrf.mxu0
    %v1255 = vadd.f32 0.0, %v1254
    %v1256 = vpop.f32.mrf.mxu0
    %v1257 = vpop.f32.mrf.mxu0
    %v1258 = vpop.f32.mrf.mxu0
    %1259 = vdwg.mxu0
    %v1260 = vrcp.pop %v834
    %v1261 = vrcp.pop %v841
    %v1262 = vrcp.pop %v848
    %v1263 = vrcp.pop %v855
    %v1264 = vrcp.pop %v862
    %v1265 = vrcp.pop %v869
    %v1266 = vrcp.pop %v876
    %v1267 = vrcp.pop %v883
    %v1268 = vmul.f32 %v933, %v1260
    %v1269 = vmul.f32 %v979, %v1261
    %v1270 = vmul.f32 %v1025, %v1262
    %v1271 = vmul.f32 %v1071, %v1263
    %v1272 = vmul.f32 %v1117, %v1264
    %v1273 = vmul.f32 %v1163, %v1265
    %v1274 = vmul.f32 %v1209, %v1266
    %v1275 = vmul.f32 %v1255, %v1267
    %v1276 = vpack.c.bf16 %v1268, %v1268
    %v1277 = vpack.c.bf16 %v1269, %v1269
    %v1278 = vpack.c.bf16 %v1270, %v1270
    %v1279 = vpack.c.bf16 %v1271, %v1271
    %v1280 = vpack.c.bf16 %v1272, %v1272
    %v1281 = vpack.c.bf16 %v1273, %v1273
    %v1282 = vpack.c.bf16 %v1274, %v1274
    %v1283 = vpack.c.bf16 %v1275, %v1275
    %v1292 = vunpack.c.l.b16 %v1276
    %v1293 = vunpack.c.l.b16 %v1277
    %v1294 = vunpack.c.l.b16 %v1278
    %v1295 = vunpack.c.l.b16 %v1279
    %v1296 = vunpack.c.l.b16 %v1280
    %v1297 = vunpack.c.l.b16 %v1281
    %v1298 = vunpack.c.l.b16 %v1282
    %v1299 = vunpack.c.l.b16 %v1283
    %v1300 = vpack.c.b16 %v1293, %v1292
    %v1301 = vpack.c.b16 %v1295, %v1294
    %v1302 = vpack.c.b16 %v1297, %v1296
    %v1303 = vpack.c.b16 %v1299, %v1298
    %1308 = vxpose.xlu0.c.b16.start [1/8] %v1300, 128
    %1309 = vxpose.xlu0.c.b16.cont [2/8] %v1301, 128
    %1310 = vxpose.xlu0.c.b16.cont [3/8] 0, 128
    %1311 = vxpose.xlu0.c.b16.cont [4/8] 0, 128
    %1312 = vxpose.xlu0.c.b16.cont [5/8] 0, 128
    %1313 = vxpose.xlu0.c.b16.cont [6/8] 0, 128
    %1314 = vxpose.xlu0.c.b16.cont [7/8] 0, 128
    %1315 = vxpose.xlu0.c.b16.end [8/8] 0, 128
    %v1316 = vpop.trf.xlu0
    %v1317 = vpop.trf.xlu0
    %v1318 = vpop.trf.xlu0
    %v1319 = vpop.trf.xlu0
    %v1320 = vpop.trf.xlu0
    %v1321 = vpop.trf.xlu0
    %v1322 = vpop.trf.xlu0
    %v1323 = vpop.trf.xlu0
    %1324 = vxpose.xlu0.c.b16.start [1/8] %v1302, 128
    %1325 = vxpose.xlu0.c.b16.cont [2/8] %v1303, 128
    %1326 = vxpose.xlu0.c.b16.cont [3/8] 0, 128
    %1327 = vxpose.xlu0.c.b16.cont [4/8] 0, 128
    %1328 = vxpose.xlu0.c.b16.cont [5/8] 0, 128
    %1329 = vxpose.xlu0.c.b16.cont [6/8] 0, 128
    %1330 = vxpose.xlu0.c.b16.cont [7/8] 0, 128
    %1331 = vxpose.xlu0.c.b16.end [8/8] 0, 128
    %v1332 = vpop.trf.xlu0
    %v1333 = vpop.trf.xlu0
    %v1334 = vpop.trf.xlu0
    %v1335 = vpop.trf.xlu0
    %v1336 = vpop.trf.xlu0
    %v1337 = vpop.trf.xlu0
    %v1338 = vpop.trf.xlu0
    %v1339 = vpop.trf.xlu0
    %v1340 = vlaneseq
    %v1341 = vshrl.u32 %v1340, 7
    %v1342 = vsub.s32 0, %v1341
    %v1343 = vrot.slane %v83, %v1342
    %v1346 = vunpack.c.l.b16 %v1316
    %v1347 = vunpack.c.l.b16 %v1332
    %v1348 = vpack.c.b16 %v1347, %v1346
    %v1353 = vunpack.c.l.b16 %v66
    %v1354 = vunpack.c.l.b16 %v67
    %v1355 = vunpack.c.l.b16 %v68
    %v1356 = vunpack.c.l.b16 %v69
    %v1357 = vpack.c.b16 %v1354, %v1353
    %v1358 = vpack.c.b16 %v1356, %v1355
    %v1362 = vsel %vm97, %v1348, 0
    %1364 = vmatprep.subr.bf16.mxu0 0
    %1365 = vmatpush1.bf16.msra.mxu0 0
    %1366 = vmatprep.subr.bf16.mxu0 0
    %1367 = vmatpush1.bf16.msra.mxu0 0
    %1368 = vmatprep.subr.bf16.mxu0 0
    %1369 = vmatpush1.bf16.msra.mxu0 0
    %1370 = vmatprep.subr.bf16.mxu0 0
    %1371 = vmatpush1.bf16.msra.mxu0 0
    %1372 = vmatprep.subr.bf16.mxu0 0
    %1373 = vmatpush1.bf16.msra.mxu0 0
    %1374 = vmatprep.subr.bf16.mxu0 0
    %1375 = vmatpush1.bf16.msra.mxu0 0
    %1376 = vmatprep.subr.bf16.mxu0 0
    %1377 = vmatpush1.bf16.msra.mxu0 %v1358
    %1378 = vmatprep.subr.bf16.mxu0 0
    %1379 = vmatpush1.bf16.msra.mxu0 %v1357
    %1380 = vmatprep.subr.bf16.mxu0 0
    %1381 = vmatpush2.bf16.msra.mxu0 0
    %1382 = vmatprep.subr.bf16.mxu0 0
    %1383 = vmatpush2.bf16.msra.mxu0 0
    %1384 = vmatprep.subr.bf16.mxu0 0
    %1385 = vmatpush2.bf16.msra.mxu0 0
    %1386 = vmatprep.subr.bf16.mxu0 0
    %1387 = vmatpush2.bf16.msra.mxu0 0
    %1388 = vmatprep.subr.bf16.mxu0 0
    %1389 = vmatpush2.bf16.msra.mxu0 0
    %1390 = vmatprep.subr.bf16.mxu0 0
    %1391 = vmatpush2.bf16.msra.mxu0 0
    %1392 = vmatprep.subr.bf16.mxu0 0
    %1393 = vmatpush2.bf16.msra.mxu0 0
    %1394 = vmatprep.subr.bf16.mxu0 0
    %1395 = vmatpush2.bf16.msra.mxu0 0
    %1396 = vmatprep.mubr.bf16.mxu0 0
    %1397 = vmatmul.mubr.bf16.gmra.mxu0 %v1362
    %v1398 = vpop.f32.mrf.mxu0
    %v1399 = vadd.f32 %v1343, %v1398
    %v1400 = vpop.f32.mrf.mxu0
    %v1401 = vpop.f32.mrf.mxu0
    %v1402 = vadd.f32 %v1343, %v1401
    %v1403 = vpop.f32.mrf.mxu0
    %1404 = vdwg.mxu0
    %v1405 = vadd.f32 %v1399, %v60
    %v1406 = vadd.f32 %v1402, %v61
    %v1407 = vsel %vm97, %v1405, 0.0
    %1408 = vadd.xlane.f32.xlu0 %v1407
    %v1409 = vpop.xlane.xlu0 %1408
    %v1410 = vsel %vm97, %v1406, 0.0
    %1411 = vadd.xlane.f32.xlu0 %v1410
    %v1412 = vpop.xlane.xlu0 %1411
    %v1413 = vrcp.pop 32.0
    %v1414 = vmul.f32 %v1409, %v1413
    %v1415 = vmul.f32 %v1412, %v1413
    %v1416 = vsub.f32 %v1405, %v1414
    %v1417 = vsub.f32 %v1406, %v1415
    %v1418 = vmul.f32 %v1416, %v1416
    %v1419 = vmul.f32 %v1417, %v1417
    %v1420 = vsel %vm97, %v1418, 0.0
    %1421 = vadd.xlane.f32.xlu0 %v1420
    %v1422 = vpop.xlane.xlu0 %1421
    %v1423 = vsel %vm97, %v1419, 0.0
    %1424 = vadd.xlane.f32.xlu0 %v1423
    %v1425 = vpop.xlane.xlu0 %1424
    %v1426 = vmul.f32 %v1422, %v1413
    %v1427 = vmul.f32 %v1425, %v1413
    %v1428 = vadd.f32 %v1426, 1e-05
    %v1429 = vadd.f32 %v1427, 1e-05
    %v1430 = vrsqrt.pop %v1428
    %v1431 = vrsqrt.pop %v1429
    %v1432 = vmul.f32 %v1416, %v1430
    %v1433 = vmul.f32 %v1417, %v1431
    %v1434 = vlaneseq
    %v1435 = vshrl.u32 %v1434, 7
    %v1436 = vsub.s32 1, %v1435
    %v1437 = vrot.slane %v83, %v1436
    %v1438 = vmul.f32 %v1432, %v1437
    %v1439 = vmul.f32 %v1433, %v1437
    %v1440 = vlaneseq
    %v1441 = vshrl.u32 %v1440, 7
    %v1442 = vsub.s32 2, %v1441
    %v1443 = vrot.slane %v83, %v1442
    %v1444 = vadd.f32 %v1438, %v1443
    %v1445 = vadd.f32 %v1439, %v1443
    %v1446 = vpack.c.bf16 %v1445, %v1444
    %v1448 = vlaneseq
    %v1449 = vshrl.u32 %v1448, 7
    %v1450 = vsub.s32 0, %v1449
    %v1451 = vrot.slane %v82, %v1450
    %v1457 = vunpack.c.l.b16 %v70
    %v1458 = vunpack.c.l.b16 %v71
    %v1459 = vunpack.c.l.b16 %v72
    %v1460 = vunpack.c.l.b16 %v73
    %v1461 = vpack.c.b16 %v1458, %v1457
    %v1462 = vpack.c.b16 %v1460, %v1459
    %v1466 = vsel %vm97, %v1446, 0
    %1468 = vmatprep.subr.bf16.mxu0 0
    %1469 = vmatpush1.bf16.msra.mxu0 0
    %1470 = vmatprep.subr.bf16.mxu0 0
    %1471 = vmatpush1.bf16.msra.mxu0 0
    %1472 = vmatprep.subr.bf16.mxu0 0
    %1473 = vmatpush1.bf16.msra.mxu0 0
    %1474 = vmatprep.subr.bf16.mxu0 0
    %1475 = vmatpush1.bf16.msra.mxu0 0
    %1476 = vmatprep.subr.bf16.mxu0 0
    %1477 = vmatpush1.bf16.msra.mxu0 0
    %1478 = vmatprep.subr.bf16.mxu0 0
    %1479 = vmatpush1.bf16.msra.mxu0 0
    %1480 = vmatprep.subr.bf16.mxu0 0
    %1481 = vmatpush1.bf16.msra.mxu0 %v1462
    %1482 = vmatprep.subr.bf16.mxu0 0
    %1483 = vmatpush1.bf16.msra.mxu0 %v1461
    %1484 = vmatprep.subr.bf16.mxu0 0
    %1485 = vmatpush2.bf16.msra.mxu0 0
    %1486 = vmatprep.subr.bf16.mxu0 0
    %1487 = vmatpush2.bf16.msra.mxu0 0
    %1488 = vmatprep.subr.bf16.mxu0 0
    %1489 = vmatpush2.bf16.msra.mxu0 0
    %1490 = vmatprep.subr.bf16.mxu0 0
    %1491 = vmatpush2.bf16.msra.mxu0 0
    %1492 = vmatprep.subr.bf16.mxu0 0
    %1493 = vmatpush2.bf16.msra.mxu0 0
    %1494 = vmatprep.subr.bf16.mxu0 0
    %1495 = vmatpush2.bf16.msra.mxu0 0
    %1496 = vmatprep.subr.bf16.mxu0 0
    %1497 = vmatpush2.bf16.msra.mxu0 0
    %1498 = vmatprep.subr.bf16.mxu0 0
    %1499 = vmatpush2.bf16.msra.mxu0 0
    %1500 = vmatprep.mubr.bf16.mxu0 0
    %1501 = vmatmul.mubr.bf16.gmra.mxu0 %v1466
    %v1502 = vpop.f32.mrf.mxu0
    %v1503 = vadd.f32 %v1451, %v1502
    %v1504 = vpop.f32.mrf.mxu0
    %v1505 = vpop.f32.mrf.mxu0
    %v1506 = vadd.f32 %v1451, %v1505
    %v1507 = vpop.f32.mrf.mxu0
    %1508 = vdwg.mxu0
    %v1509 = vmax.f32 %v1503, 0.0
    %v1510 = vmax.f32 %v1506, 0.0
    %v1511 = vpack.c.bf16 %v1510, %v1509
    %v1512 = vlaneseq
    %v1513 = vshrl.u32 %v1512, 7
    %v1514 = vsub.s32 3, %v1513
    %v1515 = vrot.slane %v83, %v1514
    %v1524 = vunpack.c.l.b16 %v74
    %v1525 = vunpack.c.l.b16 %v75
    %v1526 = vunpack.c.l.b16 %v76
    %v1527 = vunpack.c.l.b16 %v77
    %v1528 = vunpack.c.l.b16 %v78
    %v1529 = vunpack.c.l.b16 %v79
    %v1530 = vunpack.c.l.b16 %v80
    %v1531 = vunpack.c.l.b16 %v81
    %v1532 = vpack.c.b16 %v1525, %v1524
    %v1533 = vpack.c.b16 %v1527, %v1526
    %v1534 = vpack.c.b16 %v1529, %v1528
    %v1535 = vpack.c.b16 %v1531, %v1530
    %vm1540 = vcmask 523264
    %v1542 = vsel %vm1540, %v1511, 0
    %1544 = vmatprep.subr.bf16.mxu0 0
    %1545 = vmatpush1.bf16.msra.mxu0 0
    %1546 = vmatprep.subr.bf16.mxu0 0
    %1547 = vmatpush1.bf16.msra.mxu0 0
    %1548 = vmatprep.subr.bf16.mxu0 0
    %1549 = vmatpush1.bf16.msra.mxu0 0
    %1550 = vmatprep.subr.bf16.mxu0 0
    %1551 = vmatpush1.bf16.msra.mxu0 0
    %1552 = vmatprep.subr.bf16.mxu0 0
    %1553 = vmatpush1.bf16.msra.mxu0 %v1535
    %1554 = vmatprep.subr.bf16.mxu0 0
    %1555 = vmatpush1.bf16.msra.mxu0 %v1534
    %1556 = vmatprep.subr.bf16.mxu0 0
    %1557 = vmatpush1.bf16.msra.mxu0 %v1533
    %1558 = vmatprep.subr.bf16.mxu0 0
    %1559 = vmatpush1.bf16.msra.mxu0 %v1532
    %1560 = vmatprep.subr.bf16.mxu0 0
    %1561 = vmatpush2.bf16.msra.mxu0 0
    %1562 = vmatprep.subr.bf16.mxu0 0
    %1563 = vmatpush2.bf16.msra.mxu0 0
    %1564 = vmatprep.subr.bf16.mxu0 0
    %1565 = vmatpush2.bf16.msra.mxu0 0
    %1566 = vmatprep.subr.bf16.mxu0 0
    %1567 = vmatpush2.bf16.msra.mxu0 0
    %1568 = vmatprep.subr.bf16.mxu0 0
    %1569 = vmatpush2.bf16.msra.mxu0 0
    %1570 = vmatprep.subr.bf16.mxu0 0
    %1571 = vmatpush2.bf16.msra.mxu0 0
    %1572 = vmatprep.subr.bf16.mxu0 0
    %1573 = vmatpush2.bf16.msra.mxu0 0
    %1574 = vmatprep.subr.bf16.mxu0 0
    %1575 = vmatpush2.bf16.msra.mxu0 0
    %1576 = vmatprep.mubr.bf16.mxu0 0
    %1577 = vmatmul.mubr.bf16.gmra.mxu0 %v1542
    %v1578 = vpop.f32.mrf.mxu0
    %v1579 = vadd.f32 %v1515, %v1578
    %v1580 = vpop.f32.mrf.mxu0
    %v1581 = vpop.f32.mrf.mxu0
    %v1582 = vadd.f32 %v1515, %v1581
    %v1583 = vpop.f32.mrf.mxu0
    %1584 = vdwg.mxu0
    %v1585 = vadd.f32 %v1579, %v1444
    %v1586 = vadd.f32 %v1582, %v1445
    %v1587 = vsel %vm97, %v1585, 0.0
    %1588 = vadd.xlane.f32.xlu0 %v1587
    %v1589 = vpop.xlane.xlu0 %1588
    %v1590 = vsel %vm97, %v1586, 0.0
    %1591 = vadd.xlane.f32.xlu0 %v1590
    %v1592 = vpop.xlane.xlu0 %1591
    %v1593 = vmul.f32 %v1589, %v1413
    %v1594 = vmul.f32 %v1592, %v1413
    %v1595 = vsub.f32 %v1585, %v1593
    %v1596 = vsub.f32 %v1586, %v1594
    %v1597 = vmul.f32 %v1595, %v1595
    %v1598 = vmul.f32 %v1596, %v1596
    %v1599 = vsel %vm97, %v1597, 0.0
    %1600 = vadd.xlane.f32.xlu0 %v1599
    %v1601 = vpop.xlane.xlu0 %1600
    %v1602 = vsel %vm97, %v1598, 0.0
    %1603 = vadd.xlane.f32.xlu0 %v1602
    %v1604 = vpop.xlane.xlu0 %1603
    %v1605 = vmul.f32 %v1601, %v1413
    %v1606 = vmul.f32 %v1604, %v1413
    %v1607 = vadd.f32 %v1605, 1e-05
    %v1608 = vadd.f32 %v1606, 1e-05
    %v1609 = vrsqrt.pop %v1607
    %v1610 = vrsqrt.pop %v1608
    %v1611 = vmul.f32 %v1595, %v1609
    %v1612 = vmul.f32 %v1596, %v1610
    %v1613 = vlaneseq
    %v1614 = vshrl.u32 %v1613, 7
    %v1615 = vsub.s32 4, %v1614
    %v1616 = vrot.slane %v83, %v1615
    %v1617 = vmul.f32 %v1611, %v1616
    %v1618 = vmul.f32 %v1612, %v1616
    %v1619 = vlaneseq
    %v1620 = vshrl.u32 %v1619, 7
    %v1621 = vsub.s32 5, %v1620
    %v1622 = vrot.slane %v83, %v1621
    %v1623 = vadd.f32 %v1617, %v1622
    %v1624 = vadd.f32 %v1618, %v1622
    %v1625 = vpack.c.bf16 %v1624, %v1623
    %v1627 = vsel %vm97, %v1625, 0
    %1629 = vmatprep.subr.bf16.mxu0 0
    %1630 = vmatpush1.bf16.msra.mxu0 0
    %1631 = vmatprep.subr.bf16.mxu0 0
    %1632 = vmatpush1.bf16.msra.mxu0 0
    %1633 = vmatprep.subr.bf16.mxu0 0
    %1634 = vmatpush1.bf16.msra.mxu0 0
    %1635 = vmatprep.subr.bf16.mxu0 0
    %1636 = vmatpush1.bf16.msra.mxu0 0
    %1637 = vmatprep.subr.bf16.mxu0 0
    %1638 = vmatpush1.bf16.msra.mxu0 0
    %1639 = vmatprep.subr.bf16.mxu0 0
    %1640 = vmatpush1.bf16.msra.mxu0 0
    %1641 = vmatprep.subr.bf16.mxu0 0
    %1642 = vmatpush1.bf16.msra.mxu0 %v94
    %1643 = vmatprep.subr.bf16.mxu0 0
    %1644 = vmatpush1.bf16.msra.mxu0 %v93
    %1645 = vmatprep.subr.bf16.mxu0 0
    %1646 = vmatpush2.bf16.msra.mxu0 0
    %1647 = vmatprep.subr.bf16.mxu0 0
    %1648 = vmatpush2.bf16.msra.mxu0 0
    %1649 = vmatprep.subr.bf16.mxu0 0
    %1650 = vmatpush2.bf16.msra.mxu0 0
    %1651 = vmatprep.subr.bf16.mxu0 0
    %1652 = vmatpush2.bf16.msra.mxu0 0
    %1653 = vmatprep.subr.bf16.mxu0 0
    %1654 = vmatpush2.bf16.msra.mxu0 0
    %1655 = vmatprep.subr.bf16.mxu0 0
    %1656 = vmatpush2.bf16.msra.mxu0 0
    %1657 = vmatprep.subr.bf16.mxu0 0
    %1658 = vmatpush2.bf16.msra.mxu0 0
    %1659 = vmatprep.subr.bf16.mxu0 0
    %1660 = vmatpush2.bf16.msra.mxu0 0
    %1661 = vmatprep.mubr.bf16.mxu0 0
    %1662 = vmatmul.mubr.bf16.gmra.mxu0 %v1627
    %v1663 = vpop.f32.mrf.mxu0
    %v1664 = vadd.f32 0.0, %v1663
    %v1665 = vpop.f32.mrf.mxu0
    %v1666 = vpop.f32.mrf.mxu0
    %v1667 = vadd.f32 0.0, %v1666
    %v1668 = vpop.f32.mrf.mxu0
    %1669 = vdwg.mxu0
    %v1670 = vpack.c.bf16 %v1667, %v1664
    %v1672 = vunpack.c.l.b16 %v1670
    %v1673 = vunpack.c.h.b16 %v1670
    %v1674 = vpack.c.b16 %v1672, %v1672
    %v1675 = vpack.c.b16 %v1673, %v1673
    %1678 = vxpose.xlu0.c.b16.start [1/8] %v1674, 128
    %1679 = vxpose.xlu0.c.b16.cont [2/8] 0, 128
    %1680 = vxpose.xlu0.c.b16.cont [3/8] 0, 128
    %1681 = vxpose.xlu0.c.b16.cont [4/8] 0, 128
    %1682 = vxpose.xlu0.c.b16.cont [5/8] 0, 128
    %1683 = vxpose.xlu0.c.b16.cont [6/8] 0, 128
    %1684 = vxpose.xlu0.c.b16.cont [7/8] 0, 128
    %1685 = vxpose.xlu0.c.b16.end [8/8] 0, 128
    %v1686 = vpop.trf.xlu0
    %v1687 = vpop.trf.xlu0
    %v1688 = vpop.trf.xlu0
    %v1689 = vpop.trf.xlu0
    %v1690 = vpop.trf.xlu0
    %v1691 = vpop.trf.xlu0
    %v1692 = vpop.trf.xlu0
    %v1693 = vpop.trf.xlu0
    %1694 = vxpose.xlu0.c.b16.start [1/8] %v1675, 128
    %1695 = vxpose.xlu0.c.b16.cont [2/8] 0, 128
    %1696 = vxpose.xlu0.c.b16.cont [3/8] 0, 128
    %1697 = vxpose.xlu0.c.b16.cont [4/8] 0, 128
    %1698 = vxpose.xlu0.c.b16.cont [5/8] 0, 128
    %1699 = vxpose.xlu0.c.b16.cont [6/8] 0, 128
    %1700 = vxpose.xlu0.c.b16.cont [7/8] 0, 128
    %1701 = vxpose.xlu0.c.b16.end [8/8] 0, 128
    %v1702 = vpop.trf.xlu0
    %v1703 = vpop.trf.xlu0
    %v1704 = vpop.trf.xlu0
    %v1705 = vpop.trf.xlu0
    %v1706 = vpop.trf.xlu0
    %v1707 = vpop.trf.xlu0
    %v1708 = vpop.trf.xlu0
    %v1709 = vpop.trf.xlu0
    %v1722 = vunpack.c.l.b16 %v1686
    %v1723 = vunpack.c.h.b16 %v1686
    %v1724 = vunpack.c.l.b16 %v1687
    %v1725 = vunpack.c.h.b16 %v1687
    %v1726 = vunpack.c.l.b16 %v1688
    %v1727 = vunpack.c.h.b16 %v1688
    %v1728 = vunpack.c.l.b16 %v1689
    %v1729 = vunpack.c.h.b16 %v1689
    %v1730 = vunpack.c.l.b16 %v1690
    %v1731 = vunpack.c.h.b16 %v1690
    %v1732 = vunpack.c.l.b16 %v1691
    %v1733 = vunpack.c.h.b16 %v1691
    %v1734 = vunpack.c.l.b16 %v1702
    %v1735 = vunpack.c.h.b16 %v1702
    %v1736 = vunpack.c.l.b16 %v1703
    %v1737 = vunpack.c.h.b16 %v1703
    %v1738 = vunpack.c.l.b16 %v1704
    %v1739 = vunpack.c.h.b16 %v1704
    %v1740 = vunpack.c.l.b16 %v1705
    %v1741 = vunpack.c.h.b16 %v1705
    %v1742 = vunpack.c.l.b16 %v1706
    %v1743 = vunpack.c.h.b16 %v1706
    %v1744 = vunpack.c.l.b16 %v1707
    %v1745 = vunpack.c.h.b16 %v1707
    %v1746 = vpack.c.b16 %v1722, %v1722
    %v1747 = vpack.c.b16 %v1723, %v1723
    %v1748 = vpack.c.b16 %v1724, %v1724
    %v1749 = vpack.c.b16 %v1725, %v1725
    %v1750 = vpack.c.b16 %v1726, %v1726
    %v1751 = vpack.c.b16 %v1727, %v1727
    %v1752 = vpack.c.b16 %v1728, %v1728
    %v1753 = vpack.c.b16 %v1729, %v1729
    %v1754 = vpack.c.b16 %v1730, %v1730
    %v1755 = vpack.c.b16 %v1731, %v1731
    %v1756 = vpack.c.b16 %v1732, %v1732
    %v1757 = vpack.c.b16 %v1733, %v1733
    %v1758 = vpack.c.b16 %v1734, %v1734
    %v1759 = vpack.c.b16 %v1735, %v1735
    %v1760 = vpack.c.b16 %v1736, %v1736
    %v1761 = vpack.c.b16 %v1737, %v1737
    %v1762 = vpack.c.b16 %v1738, %v1738
    %v1763 = vpack.c.b16 %v1739, %v1739
    %v1764 = vpack.c.b16 %v1740, %v1740
    %v1765 = vpack.c.b16 %v1741, %v1741
    %v1766 = vpack.c.b16 %v1742, %v1742
    %v1767 = vpack.c.b16 %v1743, %v1743
    %v1768 = vpack.c.b16 %v1744, %v1744
    %v1769 = vpack.c.b16 %v1745, %v1745
    %1778 = vxpose.xlu0.c.b16.start [1/8] %v1750, 128
    %1779 = vxpose.xlu0.c.b16.cont [2/8] 0, 128
    %1780 = vxpose.xlu0.c.b16.cont [3/8] 0, 128
    %1781 = vxpose.xlu0.c.b16.cont [4/8] 0, 128
    %1782 = vxpose.xlu0.c.b16.cont [5/8] 0, 128
    %1783 = vxpose.xlu0.c.b16.cont [6/8] 0, 128
    %1784 = vxpose.xlu0.c.b16.cont [7/8] 0, 128
    %1785 = vxpose.xlu0.c.b16.end [8/8] 0, 128
    %v1786 = vpop.trf.xlu0
    %v1787 = vpop.trf.xlu0
    %v1788 = vpop.trf.xlu0
    %v1789 = vpop.trf.xlu0
    %v1790 = vpop.trf.xlu0
    %v1791 = vpop.trf.xlu0
    %v1792 = vpop.trf.xlu0
    %v1793 = vpop.trf.xlu0
    %1794 = vxpose.xlu0.c.b16.start [1/8] %v1751, 128
    %1795 = vxpose.xlu0.c.b16.cont [2/8] 0, 128
    %1796 = vxpose.xlu0.c.b16.cont [3/8] 0, 128
    %1797 = vxpose.xlu0.c.b16.cont [4/8] 0, 128
    %1798 = vxpose.xlu0.c.b16.cont [5/8] 0, 128
    %1799 = vxpose.xlu0.c.b16.cont [6/8] 0, 128
    %1800 = vxpose.xlu0.c.b16.cont [7/8] 0, 128
    %1801 = vxpose.xlu0.c.b16.end [8/8] 0, 128
    %v1802 = vpop.trf.xlu0
    %v1803 = vpop.trf.xlu0
    %v1804 = vpop.trf.xlu0
    %v1805 = vpop.trf.xlu0
    %v1806 = vpop.trf.xlu0
    %v1807 = vpop.trf.xlu0
    %v1808 = vpop.trf.xlu0
    %v1809 = vpop.trf.xlu0
    %1810 = vxpose.xlu0.c.b16.start [1/8] %v1752, 128
    %1811 = vxpose.xlu0.c.b16.cont [2/8] 0, 128
    %1812 = vxpose.xlu0.c.b16.cont [3/8] 0, 128
    %1813 = vxpose.xlu0.c.b16.cont [4/8] 0, 128
    %1814 = vxpose.xlu0.c.b16.cont [5/8] 0, 128
    %1815 = vxpose.xlu0.c.b16.cont [6/8] 0, 128
    %1816 = vxpose.xlu0.c.b16.cont [7/8] 0, 128
    %1817 = vxpose.xlu0.c.b16.end [8/8] 0, 128
    %v1818 = vpop.trf.xlu0
    %v1819 = vpop.trf.xlu0
    %v1820 = vpop.trf.xlu0
    %v1821 = vpop.trf.xlu0
    %v1822 = vpop.trf.xlu0
    %v1823 = vpop.trf.xlu0
    %v1824 = vpop.trf.xlu0
    %v1825 = vpop.trf.xlu0
    %1826 = vxpose.xlu0.c.b16.start [1/8] %v1753, 128
    %1827 = vxpose.xlu0.c.b16.cont [2/8] 0, 128
    %1828 = vxpose.xlu0.c.b16.cont [3/8] 0, 128
    %1829 = vxpose.xlu0.c.b16.cont [4/8] 0, 128
    %1830 = vxpose.xlu0.c.b16.cont [5/8] 0, 128
    %1831 = vxpose.xlu0.c.b16.cont [6/8] 0, 128
    %1832 = vxpose.xlu0.c.b16.cont [7/8] 0, 128
    %1833 = vxpose.xlu0.c.b16.end [8/8] 0, 128
    %v1834 = vpop.trf.xlu0
    %v1835 = vpop.trf.xlu0
    %v1836 = vpop.trf.xlu0
    %v1837 = vpop.trf.xlu0
    %v1838 = vpop.trf.xlu0
    %v1839 = vpop.trf.xlu0
    %v1840 = vpop.trf.xlu0
    %v1841 = vpop.trf.xlu0
    %1842 = vxpose.xlu0.c.b16.start [1/8] %v1762, 128
    %1843 = vxpose.xlu0.c.b16.cont [2/8] 0, 128
    %1844 = vxpose.xlu0.c.b16.cont [3/8] 0, 128
    %1845 = vxpose.xlu0.c.b16.cont [4/8] 0, 128
    %1846 = vxpose.xlu0.c.b16.cont [5/8] 0, 128
    %1847 = vxpose.xlu0.c.b16.cont [6/8] 0, 128
    %1848 = vxpose.xlu0.c.b16.cont [7/8] 0, 128
    %1849 = vxpose.xlu0.c.b16.end [8/8] 0, 128
    %v1850 = vpop.trf.xlu0
    %v1851 = vpop.trf.xlu0
    %v1852 = vpop.trf.xlu0
    %v1853 = vpop.trf.xlu0
    %v1854 = vpop.trf.xlu0
    %v1855 = vpop.trf.xlu0
    %v1856 = vpop.trf.xlu0
    %v1857 = vpop.trf.xlu0
    %1858 = vxpose.xlu0.c.b16.start [1/8] %v1763, 128
    %1859 = vxpose.xlu0.c.b16.cont [2/8] 0, 128
    %1860 = vxpose.xlu0.c.b16.cont [3/8] 0, 128
    %1861 = vxpose.xlu0.c.b16.cont [4/8] 0, 128
    %1862 = vxpose.xlu0.c.b16.cont [5/8] 0, 128
    %1863 = vxpose.xlu0.c.b16.cont [6/8] 0, 128
    %1864 = vxpose.xlu0.c.b16.cont [7/8] 0, 128
    %1865 = vxpose.xlu0.c.b16.end [8/8] 0, 128
    %v1866 = vpop.trf.xlu0
    %v1867 = vpop.trf.xlu0
    %v1868 = vpop.trf.xlu0
    %v1869 = vpop.trf.xlu0
    %v1870 = vpop.trf.xlu0
    %v1871 = vpop.trf.xlu0
    %v1872 = vpop.trf.xlu0
    %v1873 = vpop.trf.xlu0
    %1874 = vxpose.xlu0.c.b16.start [1/8] %v1764, 128
    %1875 = vxpose.xlu0.c.b16.cont [2/8] 0, 128
    %1876 = vxpose.xlu0.c.b16.cont [3/8] 0, 128
    %1877 = vxpose.xlu0.c.b16.cont [4/8] 0, 128
    %1878 = vxpose.xlu0.c.b16.cont [5/8] 0, 128
    %1879 = vxpose.xlu0.c.b16.cont [6/8] 0, 128
    %1880 = vxpose.xlu0.c.b16.cont [7/8] 0, 128
    %1881 = vxpose.xlu0.c.b16.end [8/8] 0, 128
    %v1882 = vpop.trf.xlu0
    %v1883 = vpop.trf.xlu0
    %v1884 = vpop.trf.xlu0
    %v1885 = vpop.trf.xlu0
    %v1886 = vpop.trf.xlu0
    %v1887 = vpop.trf.xlu0
    %v1888 = vpop.trf.xlu0
    %v1889 = vpop.trf.xlu0
    %1890 = vxpose.xlu0.c.b16.start [1/8] %v1765, 128
    %1891 = vxpose.xlu0.c.b16.cont [2/8] 0, 128
    %1892 = vxpose.xlu0.c.b16.cont [3/8] 0, 128
    %1893 = vxpose.xlu0.c.b16.cont [4/8] 0, 128
    %1894 = vxpose.xlu0.c.b16.cont [5/8] 0, 128
    %1895 = vxpose.xlu0.c.b16.cont [6/8] 0, 128
    %1896 = vxpose.xlu0.c.b16.cont [7/8] 0, 128
    %1897 = vxpose.xlu0.c.b16.end [8/8] 0, 128
    %v1898 = vpop.trf.xlu0
    %v1899 = vpop.trf.xlu0
    %v1900 = vpop.trf.xlu0
    %v1901 = vpop.trf.xlu0
    %v1902 = vpop.trf.xlu0
    %v1903 = vpop.trf.xlu0
    %v1904 = vpop.trf.xlu0
    %v1905 = vpop.trf.xlu0
    %v1907 = vsel %vm378, %v1786, 0
    %v1910 = vsel %vm382, %v1746, 0
    %1912 = vmatprep.subr.bf16.mxu0 0
    %1913 = vmatpush1.bf16.msra.mxu0 0
    %1914 = vmatprep.subr.bf16.mxu0 0
    %1915 = vmatpush1.bf16.msra.mxu0 0
    %1916 = vmatprep.subr.bf16.mxu0 0
    %1917 = vmatpush1.bf16.msra.mxu0 0
    %1918 = vmatprep.subr.bf16.mxu0 0
    %1919 = vmatpush1.bf16.msra.mxu0 0
    %1920 = vmatprep.subr.bf16.mxu0 0
    %1921 = vmatpush1.bf16.msra.mxu0 0
    %1922 = vmatprep.subr.bf16.mxu0 0
    %1923 = vmatpush1.bf16.msra.mxu0 0
    %1924 = vmatprep.subr.bf16.mxu0 0
    %1925 = vmatpush1.bf16.msra.mxu0 0
    %1926 = vmatprep.subr.bf16.mxu0 0
    %1927 = vmatpush1.bf16.msra.mxu0 %v1910
    %1928 = vmatprep.subr.bf16.mxu0 0
    %1929 = vmatpush2.bf16.msra.mxu0 0
    %1930 = vmatprep.subr.bf16.mxu0 0
    %1931 = vmatpush2.bf16.msra.mxu0 0
    %1932 = vmatprep.subr.bf16.mxu0 0
    %1933 = vmatpush2.bf16.msra.mxu0 0
    %1934 = vmatprep.subr.bf16.mxu0 0
    %1935 = vmatpush2.bf16.msra.mxu0 0
    %1936 = vmatprep.subr.bf16.mxu0 0
    %1937 = vmatpush2.bf16.msra.mxu0 0
    %1938 = vmatprep.subr.bf16.mxu0 0
    %1939 = vmatpush2.bf16.msra.mxu0 0
    %1940 = vmatprep.subr.bf16.mxu0 0
    %1941 = vmatpush2.bf16.msra.mxu0 0
    %1942 = vmatprep.subr.bf16.mxu0 0
    %1943 = vmatpush2.bf16.msra.mxu0 0
    %1944 = vmatprep.mubr.bf16.mxu0 0
    %1945 = vmatmul.mubr.bf16.gmra.mxu0 %v1907
    %v1946 = vpop.f32.mrf.mxu0
    %v1947 = vadd.f32 0.0, %v1946
    %v1948 = vpop.f32.mrf.mxu0
    %v1949 = vpop.f32.mrf.mxu0
    %v1950 = vpop.f32.mrf.mxu0
    %1951 = vdwg.mxu0
    %v1953 = vsel %vm378, %v1802, 0
    %v1956 = vsel %vm382, %v1747, 0
    %1958 = vmatprep.subr.bf16.mxu0 0
    %1959 = vmatpush1.bf16.msra.mxu0 0
    %1960 = vmatprep.subr.bf16.mxu0 0
    %1961 = vmatpush1.bf16.msra.mxu0 0
    %1962 = vmatprep.subr.bf16.mxu0 0
    %1963 = vmatpush1.bf16.msra.mxu0 0
    %1964 = vmatprep.subr.bf16.mxu0 0
    %1965 = vmatpush1.bf16.msra.mxu0 0
    %1966 = vmatprep.subr.bf16.mxu0 0
    %1967 = vmatpush1.bf16.msra.mxu0 0
    %1968 = vmatprep.subr.bf16.mxu0 0
    %1969 = vmatpush1.bf16.msra.mxu0 0
    %1970 = vmatprep.subr.bf16.mxu0 0
    %1971 = vmatpush1.bf16.msra.mxu0 0
    %1972 = vmatprep.subr.bf16.mxu0 0
    %1973 = vmatpush1.bf16.msra.mxu0 %v1956
    %1974 = vmatprep.subr.bf16.mxu0 0
    %1975 = vmatpush2.bf16.msra.mxu0 0
    %1976 = vmatprep.subr.bf16.mxu0 0
    %1977 = vmatpush2.bf16.msra.mxu0 0
    %1978 = vmatprep.subr.bf16.mxu0 0
    %1979 = vmatpush2.bf16.msra.mxu0 0
    %1980 = vmatprep.subr.bf16.mxu0 0
    %1981 = vmatpush2.bf16.msra.mxu0 0
    %1982 = vmatprep.subr.bf16.mxu0 0
    %1983 = vmatpush2.bf16.msra.mxu0 0
    %1984 = vmatprep.subr.bf16.mxu0 0
    %1985 = vmatpush2.bf16.msra.mxu0 0
    %1986 = vmatprep.subr.bf16.mxu0 0
    %1987 = vmatpush2.bf16.msra.mxu0 0
    %1988 = vmatprep.subr.bf16.mxu0 0
    %1989 = vmatpush2.bf16.msra.mxu0 0
    %1990 = vmatprep.mubr.bf16.mxu0 0
    %1991 = vmatmul.mubr.bf16.gmra.mxu0 %v1953
    %v1992 = vpop.f32.mrf.mxu0
    %v1993 = vadd.f32 0.0, %v1992
    %v1994 = vpop.f32.mrf.mxu0
    %v1995 = vpop.f32.mrf.mxu0
    %v1996 = vpop.f32.mrf.mxu0
    %1997 = vdwg.mxu0
    %v1999 = vsel %vm378, %v1818, 0
    %v2002 = vsel %vm382, %v1748, 0
    %2004 = vmatprep.subr.bf16.mxu0 0
    %2005 = vmatpush1.bf16.msra.mxu0 0
    %2006 = vmatprep.subr.bf16.mxu0 0
    %2007 = vmatpush1.bf16.msra.mxu0 0
    %2008 = vmatprep.subr.bf16.mxu0 0
    %2009 = vmatpush1.bf16.msra.mxu0 0
    %2010 = vmatprep.subr.bf16.mxu0 0
    %2011 = vmatpush1.bf16.msra.mxu0 0
    %2012 = vmatprep.subr.bf16.mxu0 0
    %2013 = vmatpush1.bf16.msra.mxu0 0
    %2014 = vmatprep.subr.bf16.mxu0 0
    %2015 = vmatpush1.bf16.msra.mxu0 0
    %2016 = vmatprep.subr.bf16.mxu0 0
    %2017 = vmatpush1.bf16.msra.mxu0 0
    %2018 = vmatprep.subr.bf16.mxu0 0
    %2019 = vmatpush1.bf16.msra.mxu0 %v2002
    %2020 = vmatprep.subr.bf16.mxu0 0
    %2021 = vmatpush2.bf16.msra.mxu0 0
    %2022 = vmatprep.subr.bf16.mxu0 0
    %2023 = vmatpush2.bf16.msra.mxu0 0
    %2024 = vmatprep.subr.bf16.mxu0 0
    %2025 = vmatpush2.bf16.msra.mxu0 0
    %2026 = vmatprep.subr.bf16.mxu0 0
    %2027 = vmatpush2.bf16.msra.mxu0 0
    %2028 = vmatprep.subr.bf16.mxu0 0
    %2029 = vmatpush2.bf16.msra.mxu0 0
    %2030 = vmatprep.subr.bf16.mxu0 0
    %2031 = vmatpush2.bf16.msra.mxu0 0
    %2032 = vmatprep.subr.bf16.mxu0 0
    %2033 = vmatpush2.bf16.msra.mxu0 0
    %2034 = vmatprep.subr.bf16.mxu0 0
    %2035 = vmatpush2.bf16.msra.mxu0 0
    %2036 = vmatprep.mubr.bf16.mxu0 0
    %2037 = vmatmul.mubr.bf16.gmra.mxu0 %v1999
    %v2038 = vpop.f32.mrf.mxu0
    %v2039 = vadd.f32 0.0, %v2038
    %v2040 = vpop.f32.mrf.mxu0
    %v2041 = vpop.f32.mrf.mxu0
    %v2042 = vpop.f32.mrf.mxu0
    %2043 = vdwg.mxu0
    %v2045 = vsel %vm378, %v1834, 0
    %v2048 = vsel %vm382, %v1749, 0
    %2050 = vmatprep.subr.bf16.mxu0 0
    %2051 = vmatpush1.bf16.msra.mxu0 0
    %2052 = vmatprep.subr.bf16.mxu0 0
    %2053 = vmatpush1.bf16.msra.mxu0 0
    %2054 = vmatprep.subr.bf16.mxu0 0
    %2055 = vmatpush1.bf16.msra.mxu0 0
    %2056 = vmatprep.subr.bf16.mxu0 0
    %2057 = vmatpush1.bf16.msra.mxu0 0
    %2058 = vmatprep.subr.bf16.mxu0 0
    %2059 = vmatpush1.bf16.msra.mxu0 0
    %2060 = vmatprep.subr.bf16.mxu0 0
    %2061 = vmatpush1.bf16.msra.mxu0 0
    %2062 = vmatprep.subr.bf16.mxu0 0
    %2063 = vmatpush1.bf16.msra.mxu0 0
    %2064 = vmatprep.subr.bf16.mxu0 0
    %2065 = vmatpush1.bf16.msra.mxu0 %v2048
    %2066 = vmatprep.subr.bf16.mxu0 0
    %2067 = vmatpush2.bf16.msra.mxu0 0
    %2068 = vmatprep.subr.bf16.mxu0 0
    %2069 = vmatpush2.bf16.msra.mxu0 0
    %2070 = vmatprep.subr.bf16.mxu0 0
    %2071 = vmatpush2.bf16.msra.mxu0 0
    %2072 = vmatprep.subr.bf16.mxu0 0
    %2073 = vmatpush2.bf16.msra.mxu0 0
    %2074 = vmatprep.subr.bf16.mxu0 0
    %2075 = vmatpush2.bf16.msra.mxu0 0
    %2076 = vmatprep.subr.bf16.mxu0 0
    %2077 = vmatpush2.bf16.msra.mxu0 0
    %2078 = vmatprep.subr.bf16.mxu0 0
    %2079 = vmatpush2.bf16.msra.mxu0 0
    %2080 = vmatprep.subr.bf16.mxu0 0
    %2081 = vmatpush2.bf16.msra.mxu0 0
    %2082 = vmatprep.mubr.bf16.mxu0 0
    %2083 = vmatmul.mubr.bf16.gmra.mxu0 %v2045
    %v2084 = vpop.f32.mrf.mxu0
    %v2085 = vadd.f32 0.0, %v2084
    %v2086 = vpop.f32.mrf.mxu0
    %v2087 = vpop.f32.mrf.mxu0
    %v2088 = vpop.f32.mrf.mxu0
    %2089 = vdwg.mxu0
    %v2091 = vsel %vm378, %v1850, 0
    %v2094 = vsel %vm382, %v1758, 0
    %2096 = vmatprep.subr.bf16.mxu0 0
    %2097 = vmatpush1.bf16.msra.mxu0 0
    %2098 = vmatprep.subr.bf16.mxu0 0
    %2099 = vmatpush1.bf16.msra.mxu0 0
    %2100 = vmatprep.subr.bf16.mxu0 0
    %2101 = vmatpush1.bf16.msra.mxu0 0
    %2102 = vmatprep.subr.bf16.mxu0 0
    %2103 = vmatpush1.bf16.msra.mxu0 0
    %2104 = vmatprep.subr.bf16.mxu0 0
    %2105 = vmatpush1.bf16.msra.mxu0 0
    %2106 = vmatprep.subr.bf16.mxu0 0
    %2107 = vmatpush1.bf16.msra.mxu0 0
    %2108 = vmatprep.subr.bf16.mxu0 0
    %2109 = vmatpush1.bf16.msra.mxu0 0
    %2110 = vmatprep.subr.bf16.mxu0 0
    %2111 = vmatpush1.bf16.msra.mxu0 %v2094
    %2112 = vmatprep.subr.bf16.mxu0 0
    %2113 = vmatpush2.bf16.msra.mxu0 0
    %2114 = vmatprep.subr.bf16.mxu0 0
    %2115 = vmatpush2.bf16.msra.mxu0 0
    %2116 = vmatprep.subr.bf16.mxu0 0
    %2117 = vmatpush2.bf16.msra.mxu0 0
    %2118 = vmatprep.subr.bf16.mxu0 0
    %2119 = vmatpush2.bf16.msra.mxu0 0
    %2120 = vmatprep.subr.bf16.mxu0 0
    %2121 = vmatpush2.bf16.msra.mxu0 0
    %2122 = vmatprep.subr.bf16.mxu0 0
    %2123 = vmatpush2.bf16.msra.mxu0 0
    %2124 = vmatprep.subr.bf16.mxu0 0
    %2125 = vmatpush2.bf16.msra.mxu0 0
    %2126 = vmatprep.subr.bf16.mxu0 0
    %2127 = vmatpush2.bf16.msra.mxu0 0
    %2128 = vmatprep.mubr.bf16.mxu0 0
    %2129 = vmatmul.mubr.bf16.gmra.mxu0 %v2091
    %v2130 = vpop.f32.mrf.mxu0
    %v2131 = vadd.f32 0.0, %v2130
    %v2132 = vpop.f32.mrf.mxu0
    %v2133 = vpop.f32.mrf.mxu0
    %v2134 = vpop.f32.mrf.mxu0
    %2135 = vdwg.mxu0
    %v2137 = vsel %vm378, %v1866, 0
    %v2140 = vsel %vm382, %v1759, 0
    %2142 = vmatprep.subr.bf16.mxu0 0
    %2143 = vmatpush1.bf16.msra.mxu0 0
    %2144 = vmatprep.subr.bf16.mxu0 0
    %2145 = vmatpush1.bf16.msra.mxu0 0
    %2146 = vmatprep.subr.bf16.mxu0 0
    %2147 = vmatpush1.bf16.msra.mxu0 0
    %2148 = vmatprep.subr.bf16.mxu0 0
    %2149 = vmatpush1.bf16.msra.mxu0 0
    %2150 = vmatprep.subr.bf16.mxu0 0
    %2151 = vmatpush1.bf16.msra.mxu0 0
    %2152 = vmatprep.subr.bf16.mxu0 0
    %2153 = vmatpush1.bf16.msra.mxu0 0
    %2154 = vmatprep.subr.bf16.mxu0 0
    %2155 = vmatpush1.bf16.msra.mxu0 0
    %2156 = vmatprep.subr.bf16.mxu0 0
    %2157 = vmatpush1.bf16.msra.mxu0 %v2140
    %2158 = vmatprep.subr.bf16.mxu0 0
    %2159 = vmatpush2.bf16.msra.mxu0 0
    %2160 = vmatprep.subr.bf16.mxu0 0
    %2161 = vmatpush2.bf16.msra.mxu0 0
    %2162 = vmatprep.subr.bf16.mxu0 0
    %2163 = vmatpush2.bf16.msra.mxu0 0
    %2164 = vmatprep.subr.bf16.mxu0 0
    %2165 = vmatpush2.bf16.msra.mxu0 0
    %2166 = vmatprep.subr.bf16.mxu0 0
    %2167 = vmatpush2.bf16.msra.mxu0 0
    %2168 = vmatprep.subr.bf16.mxu0 0
    %2169 = vmatpush2.bf16.msra.mxu0 0
    %2170 = vmatprep.subr.bf16.mxu0 0
    %2171 = vmatpush2.bf16.msra.mxu0 0
    %2172 = vmatprep.subr.bf16.mxu0 0
    %2173 = vmatpush2.bf16.msra.mxu0 0
    %2174 = vmatprep.mubr.bf16.mxu0 0
    %2175 = vmatmul.mubr.bf16.gmra.mxu0 %v2137
    %v2176 = vpop.f32.mrf.mxu0
    %v2177 = vadd.f32 0.0, %v2176
    %v2178 = vpop.f32.mrf.mxu0
    %v2179 = vpop.f32.mrf.mxu0
    %v2180 = vpop.f32.mrf.mxu0
    %2181 = vdwg.mxu0
    %v2183 = vsel %vm378, %v1882, 0
    %v2186 = vsel %vm382, %v1760, 0
    %2188 = vmatprep.subr.bf16.mxu0 0
    %2189 = vmatpush1.bf16.msra.mxu0 0
    %2190 = vmatprep.subr.bf16.mxu0 0
    %2191 = vmatpush1.bf16.msra.mxu0 0
    %2192 = vmatprep.subr.bf16.mxu0 0
    %2193 = vmatpush1.bf16.msra.mxu0 0
    %2194 = vmatprep.subr.bf16.mxu0 0
    %2195 = vmatpush1.bf16.msra.mxu0 0
    %2196 = vmatprep.subr.bf16.mxu0 0
    %2197 = vmatpush1.bf16.msra.mxu0 0
    %2198 = vmatprep.subr.bf16.mxu0 0
    %2199 = vmatpush1.bf16.msra.mxu0 0
    %2200 = vmatprep.subr.bf16.mxu0 0
    %2201 = vmatpush1.bf16.msra.mxu0 0
    %2202 = vmatprep.subr.bf16.mxu0 0
    %2203 = vmatpush1.bf16.msra.mxu0 %v2186
    %2204 = vmatprep.subr.bf16.mxu0 0
    %2205 = vmatpush2.bf16.msra.mxu0 0
    %2206 = vmatprep.subr.bf16.mxu0 0
    %2207 = vmatpush2.bf16.msra.mxu0 0
    %2208 = vmatprep.subr.bf16.mxu0 0
    %2209 = vmatpush2.bf16.msra.mxu0 0
    %2210 = vmatprep.subr.bf16.mxu0 0
    %2211 = vmatpush2.bf16.msra.mxu0 0
    %2212 = vmatprep.subr.bf16.mxu0 0
    %2213 = vmatpush2.bf16.msra.mxu0 0
    %2214 = vmatprep.subr.bf16.mxu0 0
    %2215 = vmatpush2.bf16.msra.mxu0 0
    %2216 = vmatprep.subr.bf16.mxu0 0
    %2217 = vmatpush2.bf16.msra.mxu0 0
    %2218 = vmatprep.subr.bf16.mxu0 0
    %2219 = vmatpush2.bf16.msra.mxu0 0
    %2220 = vmatprep.mubr.bf16.mxu0 0
    %2221 = vmatmul.mubr.bf16.gmra.mxu0 %v2183
    %v2222 = vpop.f32.mrf.mxu0
    %v2223 = vadd.f32 0.0, %v2222
    %v2224 = vpop.f32.mrf.mxu0
    %v2225 = vpop.f32.mrf.mxu0
    %v2226 = vpop.f32.mrf.mxu0
    %2227 = vdwg.mxu0
    %v2229 = vsel %vm378, %v1898, 0
    %v2232 = vsel %vm382, %v1761, 0
    %2234 = vmatprep.subr.bf16.mxu0 0
    %2235 = vmatpush1.bf16.msra.mxu0 0
    %2236 = vmatprep.subr.bf16.mxu0 0
    %2237 = vmatpush1.bf16.msra.mxu0 0
    %2238 = vmatprep.subr.bf16.mxu0 0
    %2239 = vmatpush1.bf16.msra.mxu0 0
    %2240 = vmatprep.subr.bf16.mxu0 0
    %2241 = vmatpush1.bf16.msra.mxu0 0
    %2242 = vmatprep.subr.bf16.mxu0 0
    %2243 = vmatpush1.bf16.msra.mxu0 0
    %2244 = vmatprep.subr.bf16.mxu0 0
    %2245 = vmatpush1.bf16.msra.mxu0 0
    %2246 = vmatprep.subr.bf16.mxu0 0
    %2247 = vmatpush1.bf16.msra.mxu0 0
    %2248 = vmatprep.subr.bf16.mxu0 0
    %2249 = vmatpush1.bf16.msra.mxu0 %v2232
    %2250 = vmatprep.subr.bf16.mxu0 0
    %2251 = vmatpush2.bf16.msra.mxu0 0
    %2252 = vmatprep.subr.bf16.mxu0 0
    %2253 = vmatpush2.bf16.msra.mxu0 0
    %2254 = vmatprep.subr.bf16.mxu0 0
    %2255 = vmatpush2.bf16.msra.mxu0 0
    %2256 = vmatprep.subr.bf16.mxu0 0
    %2257 = vmatpush2.bf16.msra.mxu0 0
    %2258 = vmatprep.subr.bf16.mxu0 0
    %2259 = vmatpush2.bf16.msra.mxu0 0
    %2260 = vmatprep.subr.bf16.mxu0 0
    %2261 = vmatpush2.bf16.msra.mxu0 0
    %2262 = vmatprep.subr.bf16.mxu0 0
    %2263 = vmatpush2.bf16.msra.mxu0 0
    %2264 = vmatprep.subr.bf16.mxu0 0
    %2265 = vmatpush2.bf16.msra.mxu0 0
    %2266 = vmatprep.mubr.bf16.mxu0 0
    %2267 = vmatmul.mubr.bf16.gmra.mxu0 %v2229
    %v2268 = vpop.f32.mrf.mxu0
    %v2269 = vadd.f32 0.0, %v2268
    %v2270 = vpop.f32.mrf.mxu0
    %v2271 = vpop.f32.mrf.mxu0
    %v2272 = vpop.f32.mrf.mxu0
    %2273 = vdwg.mxu0
    %v2274 = vsel %vm378, %v1947, -inf
    %v2275 = vrot.slane %v2274, 4
    %v2276 = vmax.f32 %v2274, %v2275
    %v2277 = vrot.slane %v2276, 2
    %v2278 = vmax.f32 %v2276, %v2277
    %v2279 = vrot.slane %v2278, 1
    %v2280 = vmax.f32 %v2278, %v2279
    %v2281 = vsel %vm378, %v1993, -inf
    %v2282 = vrot.slane %v2281, 4
    %v2283 = vmax.f32 %v2281, %v2282
    %v2284 = vrot.slane %v2283, 2
    %v2285 = vmax.f32 %v2283, %v2284
    %v2286 = vrot.slane %v2285, 1
    %v2287 = vmax.f32 %v2285, %v2286
    %v2288 = vsel %vm378, %v2039, -inf
    %v2289 = vrot.slane %v2288, 4
    %v2290 = vmax.f32 %v2288, %v2289
    %v2291 = vrot.slane %v2290, 2
    %v2292 = vmax.f32 %v2290, %v2291
    %v2293 = vrot.slane %v2292, 1
    %v2294 = vmax.f32 %v2292, %v2293
    %v2295 = vsel %vm378, %v2085, -inf
    %v2296 = vrot.slane %v2295, 4
    %v2297 = vmax.f32 %v2295, %v2296
    %v2298 = vrot.slane %v2297, 2
    %v2299 = vmax.f32 %v2297, %v2298
    %v2300 = vrot.slane %v2299, 1
    %v2301 = vmax.f32 %v2299, %v2300
    %v2302 = vsel %vm378, %v2131, -inf
    %v2303 = vrot.slane %v2302, 4
    %v2304 = vmax.f32 %v2302, %v2303
    %v2305 = vrot.slane %v2304, 2
    %v2306 = vmax.f32 %v2304, %v2305
    %v2307 = vrot.slane %v2306, 1
    %v2308 = vmax.f32 %v2306, %v2307
    %v2309 = vsel %vm378, %v2177, -inf
    %v2310 = vrot.slane %v2309, 4
    %v2311 = vmax.f32 %v2309, %v2310
    %v2312 = vrot.slane %v2311, 2
    %v2313 = vmax.f32 %v2311, %v2312
    %v2314 = vrot.slane %v2313, 1
    %v2315 = vmax.f32 %v2313, %v2314
    %v2316 = vsel %vm378, %v2223, -inf
    %v2317 = vrot.slane %v2316, 4
    %v2318 = vmax.f32 %v2316, %v2317
    %v2319 = vrot.slane %v2318, 2
    %v2320 = vmax.f32 %v2318, %v2319
    %v2321 = vrot.slane %v2320, 1
    %v2322 = vmax.f32 %v2320, %v2321
    %v2323 = vsel %vm378, %v2269, -inf
    %v2324 = vrot.slane %v2323, 4
    %v2325 = vmax.f32 %v2323, %v2324
    %v2326 = vrot.slane %v2325, 2
    %v2327 = vmax.f32 %v2325, %v2326
    %v2328 = vrot.slane %v2327, 1
    %v2329 = vmax.f32 %v2327, %v2328
    %v2330 = vsub.f32 %v1947, %v2280
    %v2331 = vsub.f32 %v1993, %v2287
    %v2332 = vsub.f32 %v2039, %v2294
    %v2333 = vsub.f32 %v2085, %v2301
    %v2334 = vsub.f32 %v2131, %v2308
    %v2335 = vsub.f32 %v2177, %v2315
    %v2336 = vsub.f32 %v2223, %v2322
    %v2337 = vsub.f32 %v2269, %v2329
    %v2338 = vmul.f32 %v2330, 1.442695
    %v2339 = vpow.pop %v2338
    %v2340 = vmul.f32 %v2331, 1.442695
    %v2341 = vpow.pop %v2340
    %v2342 = vmul.f32 %v2332, 1.442695
    %v2343 = vpow.pop %v2342
    %v2344 = vmul.f32 %v2333, 1.442695
    %v2345 = vpow.pop %v2344
    %v2346 = vmul.f32 %v2334, 1.442695
    %v2347 = vpow.pop %v2346
    %v2348 = vmul.f32 %v2335, 1.442695
    %v2349 = vpow.pop %v2348
    %v2350 = vmul.f32 %v2336, 1.442695
    %v2351 = vpow.pop %v2350
    %v2352 = vmul.f32 %v2337, 1.442695
    %v2353 = vpow.pop %v2352
    %v2354 = vsel %vm378, %v2339, 0.0
    %v2355 = vrot.slane %v2354, 4
    %v2356 = vadd.f32 %v2354, %v2355
    %v2357 = vrot.slane %v2356, 2
    %v2358 = vadd.f32 %v2356, %v2357
    %v2359 = vrot.slane %v2358, 1
    %v2360 = vadd.f32 %v2358, %v2359
    %v2361 = vsel %vm378, %v2341, 0.0
    %v2362 = vrot.slane %v2361, 4
    %v2363 = vadd.f32 %v2361, %v2362
    %v2364 = vrot.slane %v2363, 2
    %v2365 = vadd.f32 %v2363, %v2364
    %v2366 = vrot.slane %v2365, 1
    %v2367 = vadd.f32 %v2365, %v2366
    %v2368 = vsel %vm378, %v2343, 0.0
    %v2369 = vrot.slane %v2368, 4
    %v2370 = vadd.f32 %v2368, %v2369
    %v2371 = vrot.slane %v2370, 2
    %v2372 = vadd.f32 %v2370, %v2371
    %v2373 = vrot.slane %v2372, 1
    %v2374 = vadd.f32 %v2372, %v2373
    %v2375 = vsel %vm378, %v2345, 0.0
    %v2376 = vrot.slane %v2375, 4
    %v2377 = vadd.f32 %v2375, %v2376
    %v2378 = vrot.slane %v2377, 2
    %v2379 = vadd.f32 %v2377, %v2378
    %v2380 = vrot.slane %v2379, 1
    %v2381 = vadd.f32 %v2379, %v2380
    %v2382 = vsel %vm378, %v2347, 0.0
    %v2383 = vrot.slane %v2382, 4
    %v2384 = vadd.f32 %v2382, %v2383
    %v2385 = vrot.slane %v2384, 2
    %v2386 = vadd.f32 %v2384, %v2385
    %v2387 = vrot.slane %v2386, 1
    %v2388 = vadd.f32 %v2386, %v2387
    %v2389 = vsel %vm378, %v2349, 0.0
    %v2390 = vrot.slane %v2389, 4
    %v2391 = vadd.f32 %v2389, %v2390
    %v2392 = vrot.slane %v2391, 2
    %v2393 = vadd.f32 %v2391, %v2392
    %v2394 = vrot.slane %v2393, 1
    %v2395 = vadd.f32 %v2393, %v2394
    %v2396 = vsel %vm378, %v2351, 0.0
    %v2397 = vrot.slane %v2396, 4
    %v2398 = vadd.f32 %v2396, %v2397
    %v2399 = vrot.slane %v2398, 2
    %v2400 = vadd.f32 %v2398, %v2399
    %v2401 = vrot.slane %v2400, 1
    %v2402 = vadd.f32 %v2400, %v2401
    %v2403 = vsel %vm378, %v2353, 0.0
    %v2404 = vrot.slane %v2403, 4
    %v2405 = vadd.f32 %v2403, %v2404
    %v2406 = vrot.slane %v2405, 2
    %v2407 = vadd.f32 %v2405, %v2406
    %v2408 = vrot.slane %v2407, 1
    %v2409 = vadd.f32 %v2407, %v2408
    %v2410 = vpack.c.bf16 %v2339, %v2339
    %v2411 = vpack.c.bf16 %v2341, %v2341
    %v2412 = vpack.c.bf16 %v2343, %v2343
    %v2413 = vpack.c.bf16 %v2345, %v2345
    %v2414 = vpack.c.bf16 %v2347, %v2347
    %v2415 = vpack.c.bf16 %v2349, %v2349
    %v2416 = vpack.c.bf16 %v2351, %v2351
    %v2417 = vpack.c.bf16 %v2353, %v2353
    %v2419 = vsel %vm378, %v1754, 0
    %v2422 = vsel %vm382, %v2410, 0
    %2424 = vmatprep.subr.bf16.mxu0 0
    %2425 = vmatpush1.bf16.msra.mxu0 0
    %2426 = vmatprep.subr.bf16.mxu0 0
    %2427 = vmatpush1.bf16.msra.mxu0 0
    %2428 = vmatprep.subr.bf16.mxu0 0
    %2429 = vmatpush1.bf16.msra.mxu0 0
    %2430 = vmatprep.subr.bf16.mxu0 0
    %2431 = vmatpush1.bf16.msra.mxu0 0
    %2432 = vmatprep.subr.bf16.mxu0 0
    %2433 = vmatpush1.bf16.msra.mxu0 0
    %2434 = vmatprep.subr.bf16.mxu0 0
    %2435 = vmatpush1.bf16.msra.mxu0 0
    %2436 = vmatprep.subr.bf16.mxu0 0
    %2437 = vmatpush1.bf16.msra.mxu0 0
    %2438 = vmatprep.subr.bf16.mxu0 0
    %2439 = vmatpush1.bf16.msra.mxu0 %v2422
    %2440 = vmatprep.subr.bf16.mxu0 0
    %2441 = vmatpush2.bf16.msra.mxu0 0
    %2442 = vmatprep.subr.bf16.mxu0 0
    %2443 = vmatpush2.bf16.msra.mxu0 0
    %2444 = vmatprep.subr.bf16.mxu0 0
    %2445 = vmatpush2.bf16.msra.mxu0 0
    %2446 = vmatprep.subr.bf16.mxu0 0
    %2447 = vmatpush2.bf16.msra.mxu0 0
    %2448 = vmatprep.subr.bf16.mxu0 0
    %2449 = vmatpush2.bf16.msra.mxu0 0
    %2450 = vmatprep.subr.bf16.mxu0 0
    %2451 = vmatpush2.bf16.msra.mxu0 0
    %2452 = vmatprep.subr.bf16.mxu0 0
    %2453 = vmatpush2.bf16.msra.mxu0 0
    %2454 = vmatprep.subr.bf16.mxu0 0
    %2455 = vmatpush2.bf16.msra.mxu0 0
    %2456 = vmatprep.mubr.bf16.mxu0 0
    %2457 = vmatmul.mubr.bf16.gmra.mxu0 %v2419
    %v2458 = vpop.f32.mrf.mxu0
    %v2459 = vadd.f32 0.0, %v2458
    %v2460 = vpop.f32.mrf.mxu0
    %v2461 = vpop.f32.mrf.mxu0
    %v2462 = vpop.f32.mrf.mxu0
    %2463 = vdwg.mxu0
    %v2465 = vsel %vm378, %v1755, 0
    %v2468 = vsel %vm382, %v2411, 0
    %2470 = vmatprep.subr.bf16.mxu0 0
    %2471 = vmatpush1.bf16.msra.mxu0 0
    %2472 = vmatprep.subr.bf16.mxu0 0
    %2473 = vmatpush1.bf16.msra.mxu0 0
    %2474 = vmatprep.subr.bf16.mxu0 0
    %2475 = vmatpush1.bf16.msra.mxu0 0
    %2476 = vmatprep.subr.bf16.mxu0 0
    %2477 = vmatpush1.bf16.msra.mxu0 0
    %2478 = vmatprep.subr.bf16.mxu0 0
    %2479 = vmatpush1.bf16.msra.mxu0 0
    %2480 = vmatprep.subr.bf16.mxu0 0
    %2481 = vmatpush1.bf16.msra.mxu0 0
    %2482 = vmatprep.subr.bf16.mxu0 0
    %2483 = vmatpush1.bf16.msra.mxu0 0
    %2484 = vmatprep.subr.bf16.mxu0 0
    %2485 = vmatpush1.bf16.msra.mxu0 %v2468
    %2486 = vmatprep.subr.bf16.mxu0 0
    %2487 = vmatpush2.bf16.msra.mxu0 0
    %2488 = vmatprep.subr.bf16.mxu0 0
    %2489 = vmatpush2.bf16.msra.mxu0 0
    %2490 = vmatprep.subr.bf16.mxu0 0
    %2491 = vmatpush2.bf16.msra.mxu0 0
    %2492 = vmatprep.subr.bf16.mxu0 0
    %2493 = vmatpush2.bf16.msra.mxu0 0
    %2494 = vmatprep.subr.bf16.mxu0 0
    %2495 = vmatpush2.bf16.msra.mxu0 0
    %2496 = vmatprep.subr.bf16.mxu0 0
    %2497 = vmatpush2.bf16.msra.mxu0 0
    %2498 = vmatprep.subr.bf16.mxu0 0
    %2499 = vmatpush2.bf16.msra.mxu0 0
    %2500 = vmatprep.subr.bf16.mxu0 0
    %2501 = vmatpush2.bf16.msra.mxu0 0
    %2502 = vmatprep.mubr.bf16.mxu0 0
    %2503 = vmatmul.mubr.bf16.gmra.mxu0 %v2465
    %v2504 = vpop.f32.mrf.mxu0
    %v2505 = vadd.f32 0.0, %v2504
    %v2506 = vpop.f32.mrf.mxu0
    %v2507 = vpop.f32.mrf.mxu0
    %v2508 = vpop.f32.mrf.mxu0
    %2509 = vdwg.mxu0
    %v2511 = vsel %vm378, %v1756, 0
    %v2514 = vsel %vm382, %v2412, 0
    %2516 = vmatprep.subr.bf16.mxu0 0
    %2517 = vmatpush1.bf16.msra.mxu0 0
    %2518 = vmatprep.subr.bf16.mxu0 0
    %2519 = vmatpush1.bf16.msra.mxu0 0
    %2520 = vmatprep.subr.bf16.mxu0 0
    %2521 = vmatpush1.bf16.msra.mxu0 0
    %2522 = vmatprep.subr.bf16.mxu0 0
    %2523 = vmatpush1.bf16.msra.mxu0 0
    %2524 = vmatprep.subr.bf16.mxu0 0
    %2525 = vmatpush1.bf16.msra.mxu0 0
    %2526 = vmatprep.subr.bf16.mxu0 0
    %2527 = vmatpush1.bf16.msra.mxu0 0
    %2528 = vmatprep.subr.bf16.mxu0 0
    %2529 = vmatpush1.bf16.msra.mxu0 0
    %2530 = vmatprep.subr.bf16.mxu0 0
    %2531 = vmatpush1.bf16.msra.mxu0 %v2514
    %2532 = vmatprep.subr.bf16.mxu0 0
    %2533 = vmatpush2.bf16.msra.mxu0 0
    %2534 = vmatprep.subr.bf16.mxu0 0
    %2535 = vmatpush2.bf16.msra.mxu0 0
    %2536 = vmatprep.subr.bf16.mxu0 0
    %2537 = vmatpush2.bf16.msra.mxu0 0
    %2538 = vmatprep.subr.bf16.mxu0 0
    %2539 = vmatpush2.bf16.msra.mxu0 0
    %2540 = vmatprep.subr.bf16.mxu0 0
    %2541 = vmatpush2.bf16.msra.mxu0 0
    %2542 = vmatprep.subr.bf16.mxu0 0
    %2543 = vmatpush2.bf16.msra.mxu0 0
    %2544 = vmatprep.subr.bf16.mxu0 0
    %2545 = vmatpush2.bf16.msra.mxu0 0
    %2546 = vmatprep.subr.bf16.mxu0 0
    %2547 = vmatpush2.bf16.msra.mxu0 0
    %2548 = vmatprep.mubr.bf16.mxu0 0
    %2549 = vmatmul.mubr.bf16.gmra.mxu0 %v2511
    %v2550 = vpop.f32.mrf.mxu0
    %v2551 = vadd.f32 0.0, %v2550
    %v2552 = vpop.f32.mrf.mxu0
    %v2553 = vpop.f32.mrf.mxu0
    %v2554 = vpop.f32.mrf.mxu0
    %2555 = vdwg.mxu0
    %v2557 = vsel %vm378, %v1757, 0
    %v2560 = vsel %vm382, %v2413, 0
    %2562 = vmatprep.subr.bf16.mxu0 0
    %2563 = vmatpush1.bf16.msra.mxu0 0
    %2564 = vmatprep.subr.bf16.mxu0 0
    %2565 = vmatpush1.bf16.msra.mxu0 0
    %2566 = vmatprep.subr.bf16.mxu0 0
    %2567 = vmatpush1.bf16.msra.mxu0 0
    %2568 = vmatprep.subr.bf16.mxu0 0
    %2569 = vmatpush1.bf16.msra.mxu0 0
    %2570 = vmatprep.subr.bf16.mxu0 0
    %2571 = vmatpush1.bf16.msra.mxu0 0
    %2572 = vmatprep.subr.bf16.mxu0 0
    %2573 = vmatpush1.bf16.msra.mxu0 0
    %2574 = vmatprep.subr.bf16.mxu0 0
    %2575 = vmatpush1.bf16.msra.mxu0 0
    %2576 = vmatprep.subr.bf16.mxu0 0
    %2577 = vmatpush1.bf16.msra.mxu0 %v2560
    %2578 = vmatprep.subr.bf16.mxu0 0
    %2579 = vmatpush2.bf16.msra.mxu0 0
    %2580 = vmatprep.subr.bf16.mxu0 0
    %2581 = vmatpush2.bf16.msra.mxu0 0
    %2582 = vmatprep.subr.bf16.mxu0 0
    %2583 = vmatpush2.bf16.msra.mxu0 0
    %2584 = vmatprep.subr.bf16.mxu0 0
    %2585 = vmatpush2.bf16.msra.mxu0 0
    %2586 = vmatprep.subr.bf16.mxu0 0
    %2587 = vmatpush2.bf16.msra.mxu0 0
    %2588 = vmatprep.subr.bf16.mxu0 0
    %2589 = vmatpush2.bf16.msra.mxu0 0
    %2590 = vmatprep.subr.bf16.mxu0 0
    %2591 = vmatpush2.bf16.msra.mxu0 0
    %2592 = vmatprep.subr.bf16.mxu0 0
    %2593 = vmatpush2.bf16.msra.mxu0 0
    %2594 = vmatprep.mubr.bf16.mxu0 0
    %2595 = vmatmul.mubr.bf16.gmra.mxu0 %v2557
    %v2596 = vpop.f32.mrf.mxu0
    %v2597 = vadd.f32 0.0, %v2596
    %v2598 = vpop.f32.mrf.mxu0
    %v2599 = vpop.f32.mrf.mxu0
    %v2600 = vpop.f32.mrf.mxu0
    %2601 = vdwg.mxu0
    %v2603 = vsel %vm378, %v1766, 0
    %v2606 = vsel %vm382, %v2414, 0
    %2608 = vmatprep.subr.bf16.mxu0 0
    %2609 = vmatpush1.bf16.msra.mxu0 0
    %2610 = vmatprep.subr.bf16.mxu0 0
    %2611 = vmatpush1.bf16.msra.mxu0 0
    %2612 = vmatprep.subr.bf16.mxu0 0
    %2613 = vmatpush1.bf16.msra.mxu0 0
    %2614 = vmatprep.subr.bf16.mxu0 0
    %2615 = vmatpush1.bf16.msra.mxu0 0
    %2616 = vmatprep.subr.bf16.mxu0 0
    %2617 = vmatpush1.bf16.msra.mxu0 0
    %2618 = vmatprep.subr.bf16.mxu0 0
    %2619 = vmatpush1.bf16.msra.mxu0 0
    %2620 = vmatprep.subr.bf16.mxu0 0
    %2621 = vmatpush1.bf16.msra.mxu0 0
    %2622 = vmatprep.subr.bf16.mxu0 0
    %2623 = vmatpush1.bf16.msra.mxu0 %v2606
    %2624 = vmatprep.subr.bf16.mxu0 0
    %2625 = vmatpush2.bf16.msra.mxu0 0
    %2626 = vmatprep.subr.bf16.mxu0 0
    %2627 = vmatpush2.bf16.msra.mxu0 0
    %2628 = vmatprep.subr.bf16.mxu0 0
    %2629 = vmatpush2.bf16.msra.mxu0 0
    %2630 = vmatprep.subr.bf16.mxu0 0
    %2631 = vmatpush2.bf16.msra.mxu0 0
    %2632 = vmatprep.subr.bf16.mxu0 0
    %2633 = vmatpush2.bf16.msra.mxu0 0
    %2634 = vmatprep.subr.bf16.mxu0 0
    %2635 = vmatpush2.bf16.msra.mxu0 0
    %2636 = vmatprep.subr.bf16.mxu0 0
    %2637 = vmatpush2.bf16.msra.mxu0 0
    %2638 = vmatprep.subr.bf16.mxu0 0
    %2639 = vmatpush2.bf16.msra.mxu0 0
    %2640 = vmatprep.mubr.bf16.mxu0 0
    %2641 = vmatmul.mubr.bf16.gmra.mxu0 %v2603
    %v2642 = vpop.f32.mrf.mxu0
    %v2643 = vadd.f32 0.0, %v2642
    %v2644 = vpop.f32.mrf.mxu0
    %v2645 = vpop.f32.mrf.mxu0
    %v2646 = vpop.f32.mrf.mxu0
    %2647 = vdwg.mxu0
    %v2649 = vsel %vm378, %v1767, 0
    %v2652 = vsel %vm382, %v2415, 0
    %2654 = vmatprep.subr.bf16.mxu0 0
    %2655 = vmatpush1.bf16.msra.mxu0 0
    %2656 = vmatprep.subr.bf16.mxu0 0
    %2657 = vmatpush1.bf16.msra.mxu0 0
    %2658 = vmatprep.subr.bf16.mxu0 0
    %2659 = vmatpush1.bf16.msra.mxu0 0
    %2660 = vmatprep.subr.bf16.mxu0 0
    %2661 = vmatpush1.bf16.msra.mxu0 0
    %2662 = vmatprep.subr.bf16.mxu0 0
    %2663 = vmatpush1.bf16.msra.mxu0 0
    %2664 = vmatprep.subr.bf16.mxu0 0
    %2665 = vmatpush1.bf16.msra.mxu0 0
    %2666 = vmatprep.subr.bf16.mxu0 0
    %2667 = vmatpush1.bf16.msra.mxu0 0
    %2668 = vmatprep.subr.bf16.mxu0 0
    %2669 = vmatpush1.bf16.msra.mxu0 %v2652
    %2670 = vmatprep.subr.bf16.mxu0 0
    %2671 = vmatpush2.bf16.msra.mxu0 0
    %2672 = vmatprep.subr.bf16.mxu0 0
    %2673 = vmatpush2.bf16.msra.mxu0 0
    %2674 = vmatprep.subr.bf16.mxu0 0
    %2675 = vmatpush2.bf16.msra.mxu0 0
    %2676 = vmatprep.subr.bf16.mxu0 0
    %2677 = vmatpush2.bf16.msra.mxu0 0
    %2678 = vmatprep.subr.bf16.mxu0 0
    %2679 = vmatpush2.bf16.msra.mxu0 0
    %2680 = vmatprep.subr.bf16.mxu0 0
    %2681 = vmatpush2.bf16.msra.mxu0 0
    %2682 = vmatprep.subr.bf16.mxu0 0
    %2683 = vmatpush2.bf16.msra.mxu0 0
    %2684 = vmatprep.subr.bf16.mxu0 0
    %2685 = vmatpush2.bf16.msra.mxu0 0
    %2686 = vmatprep.mubr.bf16.mxu0 0
    %2687 = vmatmul.mubr.bf16.gmra.mxu0 %v2649
    %v2688 = vpop.f32.mrf.mxu0
    %v2689 = vadd.f32 0.0, %v2688
    %v2690 = vpop.f32.mrf.mxu0
    %v2691 = vpop.f32.mrf.mxu0
    %v2692 = vpop.f32.mrf.mxu0
    %2693 = vdwg.mxu0
    %v2695 = vsel %vm378, %v1768, 0
    %v2698 = vsel %vm382, %v2416, 0
    %2700 = vmatprep.subr.bf16.mxu0 0
    %2701 = vmatpush1.bf16.msra.mxu0 0
    %2702 = vmatprep.subr.bf16.mxu0 0
    %2703 = vmatpush1.bf16.msra.mxu0 0
    %2704 = vmatprep.subr.bf16.mxu0 0
    %2705 = vmatpush1.bf16.msra.mxu0 0
    %2706 = vmatprep.subr.bf16.mxu0 0
    %2707 = vmatpush1.bf16.msra.mxu0 0
    %2708 = vmatprep.subr.bf16.mxu0 0
    %2709 = vmatpush1.bf16.msra.mxu0 0
    %2710 = vmatprep.subr.bf16.mxu0 0
    %2711 = vmatpush1.bf16.msra.mxu0 0
    %2712 = vmatprep.subr.bf16.mxu0 0
    %2713 = vmatpush1.bf16.msra.mxu0 0
    %2714 = vmatprep.subr.bf16.mxu0 0
    %2715 = vmatpush1.bf16.msra.mxu0 %v2698
    %2716 = vmatprep.subr.bf16.mxu0 0
    %2717 = vmatpush2.bf16.msra.mxu0 0
    %2718 = vmatprep.subr.bf16.mxu0 0
    %2719 = vmatpush2.bf16.msra.mxu0 0
    %2720 = vmatprep.subr.bf16.mxu0 0
    %2721 = vmatpush2.bf16.msra.mxu0 0
    %2722 = vmatprep.subr.bf16.mxu0 0
    %2723 = vmatpush2.bf16.msra.mxu0 0
    %2724 = vmatprep.subr.bf16.mxu0 0
    %2725 = vmatpush2.bf16.msra.mxu0 0
    %2726 = vmatprep.subr.bf16.mxu0 0
    %2727 = vmatpush2.bf16.msra.mxu0 0
    %2728 = vmatprep.subr.bf16.mxu0 0
    %2729 = vmatpush2.bf16.msra.mxu0 0
    %2730 = vmatprep.subr.bf16.mxu0 0
    %2731 = vmatpush2.bf16.msra.mxu0 0
    %2732 = vmatprep.mubr.bf16.mxu0 0
    %2733 = vmatmul.mubr.bf16.gmra.mxu0 %v2695
    %v2734 = vpop.f32.mrf.mxu0
    %v2735 = vadd.f32 0.0, %v2734
    %v2736 = vpop.f32.mrf.mxu0
    %v2737 = vpop.f32.mrf.mxu0
    %v2738 = vpop.f32.mrf.mxu0
    %2739 = vdwg.mxu0
    %v2741 = vsel %vm378, %v1769, 0
    %v2744 = vsel %vm382, %v2417, 0
    %2746 = vmatprep.subr.bf16.mxu0 0
    %2747 = vmatpush1.bf16.msra.mxu0 0
    %2748 = vmatprep.subr.bf16.mxu0 0
    %2749 = vmatpush1.bf16.msra.mxu0 0
    %2750 = vmatprep.subr.bf16.mxu0 0
    %2751 = vmatpush1.bf16.msra.mxu0 0
    %2752 = vmatprep.subr.bf16.mxu0 0
    %2753 = vmatpush1.bf16.msra.mxu0 0
    %2754 = vmatprep.subr.bf16.mxu0 0
    %2755 = vmatpush1.bf16.msra.mxu0 0
    %2756 = vmatprep.subr.bf16.mxu0 0
    %2757 = vmatpush1.bf16.msra.mxu0 0
    %2758 = vmatprep.subr.bf16.mxu0 0
    %2759 = vmatpush1.bf16.msra.mxu0 0
    %2760 = vmatprep.subr.bf16.mxu0 0
    %2761 = vmatpush1.bf16.msra.mxu0 %v2744
    %2762 = vmatprep.subr.bf16.mxu0 0
    %2763 = vmatpush2.bf16.msra.mxu0 0
    %2764 = vmatprep.subr.bf16.mxu0 0
    %2765 = vmatpush2.bf16.msra.mxu0 0
    %2766 = vmatprep.subr.bf16.mxu0 0
    %2767 = vmatpush2.bf16.msra.mxu0 0
    %2768 = vmatprep.subr.bf16.mxu0 0
    %2769 = vmatpush2.bf16.msra.mxu0 0
    %2770 = vmatprep.subr.bf16.mxu0 0
    %2771 = vmatpush2.bf16.msra.mxu0 0
    %2772 = vmatprep.subr.bf16.mxu0 0
    %2773 = vmatpush2.bf16.msra.mxu0 0
    %2774 = vmatprep.subr.bf16.mxu0 0
    %2775 = vmatpush2.bf16.msra.mxu0 0
    %2776 = vmatprep.subr.bf16.mxu0 0
    %2777 = vmatpush2.bf16.msra.mxu0 0
    %2778 = vmatprep.mubr.bf16.mxu0 0
    %2779 = vmatmul.mubr.bf16.gmra.mxu0 %v2741
    %v2780 = vpop.f32.mrf.mxu0
    %v2781 = vadd.f32 0.0, %v2780
    %v2782 = vpop.f32.mrf.mxu0
    %v2783 = vpop.f32.mrf.mxu0
    %v2784 = vpop.f32.mrf.mxu0
    %2785 = vdwg.mxu0
    %v2786 = vrcp.pop %v2360
    %v2787 = vrcp.pop %v2367
    %v2788 = vrcp.pop %v2374
    %v2789 = vrcp.pop %v2381
    %v2790 = vrcp.pop %v2388
    %v2791 = vrcp.pop %v2395
    %v2792 = vrcp.pop %v2402
    %v2793 = vrcp.pop %v2409
    %v2794 = vmul.f32 %v2459, %v2786
    %v2795 = vmul.f32 %v2505, %v2787
    %v2796 = vmul.f32 %v2551, %v2788
    %v2797 = vmul.f32 %v2597, %v2789
    %v2798 = vmul.f32 %v2643, %v2790
    %v2799 = vmul.f32 %v2689, %v2791
    %v2800 = vmul.f32 %v2735, %v2792
    %v2801 = vmul.f32 %v2781, %v2793
    %v2802 = vpack.c.bf16 %v2794, %v2794
    %v2803 = vpack.c.bf16 %v2795, %v2795
    %v2804 = vpack.c.bf16 %v2796, %v2796
    %v2805 = vpack.c.bf16 %v2797, %v2797
    %v2806 = vpack.c.bf16 %v2798, %v2798
    %v2807 = vpack.c.bf16 %v2799, %v2799
    %v2808 = vpack.c.bf16 %v2800, %v2800
    %v2809 = vpack.c.bf16 %v2801, %v2801
    %v2818 = vunpack.c.l.b16 %v2802
    %v2819 = vunpack.c.l.b16 %v2803
    %v2820 = vunpack.c.l.b16 %v2804
    %v2821 = vunpack.c.l.b16 %v2805
    %v2822 = vunpack.c.l.b16 %v2806
    %v2823 = vunpack.c.l.b16 %v2807
    %v2824 = vunpack.c.l.b16 %v2808
    %v2825 = vunpack.c.l.b16 %v2809
    %v2826 = vpack.c.b16 %v2819, %v2818
    %v2827 = vpack.c.b16 %v2821, %v2820
    %v2828 = vpack.c.b16 %v2823, %v2822
    %v2829 = vpack.c.b16 %v2825, %v2824
    %2834 = vxpose.xlu0.c.b16.start [1/8] %v2826, 128
    %2835 = vxpose.xlu0.c.b16.cont [2/8] %v2827, 128
    %2836 = vxpose.xlu0.c.b16.cont [3/8] 0, 128
    %2837 = vxpose.xlu0.c.b16.cont [4/8] 0, 128
    %2838 = vxpose.xlu0.c.b16.cont [5/8] 0, 128
    %2839 = vxpose.xlu0.c.b16.cont [6/8] 0, 128
    %2840 = vxpose.xlu0.c.b16.cont [7/8] 0, 128
    %2841 = vxpose.xlu0.c.b16.end [8/8] 0, 128
    %v2842 = vpop.trf.xlu0
    %v2843 = vpop.trf.xlu0
    %v2844 = vpop.trf.xlu0
    %v2845 = vpop.trf.xlu0
    %v2846 = vpop.trf.xlu0
    %v2847 = vpop.trf.xlu0
    %v2848 = vpop.trf.xlu0
    %v2849 = vpop.trf.xlu0
    %2850 = vxpose.xlu0.c.b16.start [1/8] %v2828, 128
    %2851 = vxpose.xlu0.c.b16.cont [2/8] %v2829, 128
    %2852 = vxpose.xlu0.c.b16.cont [3/8] 0, 128
    %2853 = vxpose.xlu0.c.b16.cont [4/8] 0, 128
    %2854 = vxpose.xlu0.c.b16.cont [5/8] 0, 128
    %2855 = vxpose.xlu0.c.b16.cont [6/8] 0, 128
    %2856 = vxpose.xlu0.c.b16.cont [7/8] 0, 128
    %2857 = vxpose.xlu0.c.b16.end [8/8] 0, 128
    %v2858 = vpop.trf.xlu0
    %v2859 = vpop.trf.xlu0
    %v2860 = vpop.trf.xlu0
    %v2861 = vpop.trf.xlu0
    %v2862 = vpop.trf.xlu0
    %v2863 = vpop.trf.xlu0
    %v2864 = vpop.trf.xlu0
    %v2865 = vpop.trf.xlu0
    %v2868 = vunpack.c.l.b16 %v2842
    %v2869 = vunpack.c.l.b16 %v2858
    %v2870 = vpack.c.b16 %v2869, %v2868
    %v2872 = vsel %vm97, %v2870, 0
    %2874 = vmatprep.subr.bf16.mxu0 0
    %2875 = vmatpush1.bf16.msra.mxu0 0
    %2876 = vmatprep.subr.bf16.mxu0 0
    %2877 = vmatpush1.bf16.msra.mxu0 0
    %2878 = vmatprep.subr.bf16.mxu0 0
    %2879 = vmatpush1.bf16.msra.mxu0 0
    %2880 = vmatprep.subr.bf16.mxu0 0
    %2881 = vmatpush1.bf16.msra.mxu0 0
    %2882 = vmatprep.subr.bf16.mxu0 0
    %2883 = vmatpush1.bf16.msra.mxu0 0
    %2884 = vmatprep.subr.bf16.mxu0 0
    %2885 = vmatpush1.bf16.msra.mxu0 0
    %2886 = vmatprep.subr.bf16.mxu0 0
    %2887 = vmatpush1.bf16.msra.mxu0 %v1358
    %2888 = vmatprep.subr.bf16.mxu0 0
    %2889 = vmatpush1.bf16.msra.mxu0 %v1357
    %2890 = vmatprep.subr.bf16.mxu0 0
    %2891 = vmatpush2.bf16.msra.mxu0 0
    %2892 = vmatprep.subr.bf16.mxu0 0
    %2893 = vmatpush2.bf16.msra.mxu0 0
    %2894 = vmatprep.subr.bf16.mxu0 0
    %2895 = vmatpush2.bf16.msra.mxu0 0
    %2896 = vmatprep.subr.bf16.mxu0 0
    %2897 = vmatpush2.bf16.msra.mxu0 0
    %2898 = vmatprep.subr.bf16.mxu0 0
    %2899 = vmatpush2.bf16.msra.mxu0 0
    %2900 = vmatprep.subr.bf16.mxu0 0
    %2901 = vmatpush2.bf16.msra.mxu0 0
    %2902 = vmatprep.subr.bf16.mxu0 0
    %2903 = vmatpush2.bf16.msra.mxu0 0
    %2904 = vmatprep.subr.bf16.mxu0 0
    %2905 = vmatpush2.bf16.msra.mxu0 0
    %2906 = vmatprep.mubr.bf16.mxu0 0
    %2907 = vmatmul.mubr.bf16.gmra.mxu0 %v2872
    %v2908 = vpop.f32.mrf.mxu0
    %v2909 = vadd.f32 %v1343, %v2908
    %v2910 = vpop.f32.mrf.mxu0
    %v2911 = vpop.f32.mrf.mxu0
    %v2912 = vadd.f32 %v1343, %v2911
    %v2913 = vpop.f32.mrf.mxu0
    %2914 = vdwg.mxu0
    %v2915 = vadd.f32 %v2909, %v1623
    %v2916 = vadd.f32 %v2912, %v1624
    %v2917 = vsel %vm97, %v2915, 0.0
    %2918 = vadd.xlane.f32.xlu0 %v2917
    %v2919 = vpop.xlane.xlu0 %2918
    %v2920 = vsel %vm97, %v2916, 0.0
    %2921 = vadd.xlane.f32.xlu0 %v2920
    %v2922 = vpop.xlane.xlu0 %2921
    %v2923 = vmul.f32 %v2919, %v1413
    %v2924 = vmul.f32 %v2922, %v1413
    %v2925 = vsub.f32 %v2915, %v2923
    %v2926 = vsub.f32 %v2916, %v2924
    %v2927 = vmul.f32 %v2925, %v2925
    %v2928 = vmul.f32 %v2926, %v2926
    %v2929 = vsel %vm97, %v2927, 0.0
    %2930 = vadd.xlane.f32.xlu0 %v2929
    %v2931 = vpop.xlane.xlu0 %2930
    %v2932 = vsel %vm97, %v2928, 0.0
    %2933 = vadd.xlane.f32.xlu0 %v2932
    %v2934 = vpop.xlane.xlu0 %2933
    %v2935 = vmul.f32 %v2931, %v1413
    %v2936 = vmul.f32 %v2934, %v1413
    %v2937 = vadd.f32 %v2935, 1e-05
    %v2938 = vadd.f32 %v2936, 1e-05
    %v2939 = vrsqrt.pop %v2937
    %v2940 = vrsqrt.pop %v2938
    %v2941 = vmul.f32 %v2925, %v2939
    %v2942 = vmul.f32 %v2926, %v2940
    %v2943 = vmul.f32 %v2941, %v1437
    %v2944 = vmul.f32 %v2942, %v1437
    %v2945 = vadd.f32 %v2943, %v1443
    %v2946 = vadd.f32 %v2944, %v1443
    %v2947 = vpack.c.bf16 %v2946, %v2945
    %v2949 = vsel %vm97, %v2947, 0
    %2951 = vmatprep.subr.bf16.mxu0 0
    %2952 = vmatpush1.bf16.msra.mxu0 0
    %2953 = vmatprep.subr.bf16.mxu0 0
    %2954 = vmatpush1.bf16.msra.mxu0 0
    %2955 = vmatprep.subr.bf16.mxu0 0
    %2956 = vmatpush1.bf16.msra.mxu0 0
    %2957 = vmatprep.subr.bf16.mxu0 0
    %2958 = vmatpush1.bf16.msra.mxu0 0
    %2959 = vmatprep.subr.bf16.mxu0 0
    %2960 = vmatpush1.bf16.msra.mxu0 0
    %2961 = vmatprep.subr.bf16.mxu0 0
    %2962 = vmatpush1.bf16.msra.mxu0 0
    %2963 = vmatprep.subr.bf16.mxu0 0
    %2964 = vmatpush1.bf16.msra.mxu0 %v1462
    %2965 = vmatprep.subr.bf16.mxu0 0
    %2966 = vmatpush1.bf16.msra.mxu0 %v1461
    %2967 = vmatprep.subr.bf16.mxu0 0
    %2968 = vmatpush2.bf16.msra.mxu0 0
    %2969 = vmatprep.subr.bf16.mxu0 0
    %2970 = vmatpush2.bf16.msra.mxu0 0
    %2971 = vmatprep.subr.bf16.mxu0 0
    %2972 = vmatpush2.bf16.msra.mxu0 0
    %2973 = vmatprep.subr.bf16.mxu0 0
    %2974 = vmatpush2.bf16.msra.mxu0 0
    %2975 = vmatprep.subr.bf16.mxu0 0
    %2976 = vmatpush2.bf16.msra.mxu0 0
    %2977 = vmatprep.subr.bf16.mxu0 0
    %2978 = vmatpush2.bf16.msra.mxu0 0
    %2979 = vmatprep.subr.bf16.mxu0 0
    %2980 = vmatpush2.bf16.msra.mxu0 0
    %2981 = vmatprep.subr.bf16.mxu0 0
    %2982 = vmatpush2.bf16.msra.mxu0 0
    %2983 = vmatprep.mubr.bf16.mxu0 0
    %2984 = vmatmul.mubr.bf16.gmra.mxu0 %v2949
    %v2985 = vpop.f32.mrf.mxu0
    %v2986 = vadd.f32 %v1451, %v2985
    %v2987 = vpop.f32.mrf.mxu0
    %v2988 = vpop.f32.mrf.mxu0
    %v2989 = vadd.f32 %v1451, %v2988
    %v2990 = vpop.f32.mrf.mxu0
    %2991 = vdwg.mxu0
    %v2992 = vmax.f32 %v2986, 0.0
    %v2993 = vmax.f32 %v2989, 0.0
    %v2994 = vpack.c.bf16 %v2993, %v2992
    %v2996 = vsel %vm1540, %v2994, 0
    %2998 = vmatprep.subr.bf16.mxu0 0
    %2999 = vmatpush1.bf16.msra.mxu0 0
    %3000 = vmatprep.subr.bf16.mxu0 0
    %3001 = vmatpush1.bf16.msra.mxu0 0
    %3002 = vmatprep.subr.bf16.mxu0 0
    %3003 = vmatpush1.bf16.msra.mxu0 0
    %3004 = vmatprep.subr.bf16.mxu0 0
    %3005 = vmatpush1.bf16.msra.mxu0 0
    %3006 = vmatprep.subr.bf16.mxu0 0
    %3007 = vmatpush1.bf16.msra.mxu0 %v1535
    %3008 = vmatprep.subr.bf16.mxu0 0
    %3009 = vmatpush1.bf16.msra.mxu0 %v1534
    %3010 = vmatprep.subr.bf16.mxu0 0
    %3011 = vmatpush1.bf16.msra.mxu0 %v1533
    %3012 = vmatprep.subr.bf16.mxu0 0
    %3013 = vmatpush1.bf16.msra.mxu0 %v1532
    %3014 = vmatprep.subr.bf16.mxu0 0
    %3015 = vmatpush2.bf16.msra.mxu0 0
    %3016 = vmatprep.subr.bf16.mxu0 0
    %3017 = vmatpush2.bf16.msra.mxu0 0
    %3018 = vmatprep.subr.bf16.mxu0 0
    %3019 = vmatpush2.bf16.msra.mxu0 0
    %3020 = vmatprep.subr.bf16.mxu0 0
    %3021 = vmatpush2.bf16.msra.mxu0 0
    %3022 = vmatprep.subr.bf16.mxu0 0
    %3023 = vmatpush2.bf16.msra.mxu0 0
    %3024 = vmatprep.subr.bf16.mxu0 0
    %3025 = vmatpush2.bf16.msra.mxu0 0
    %3026 = vmatprep.subr.bf16.mxu0 0
    %3027 = vmatpush2.bf16.msra.mxu0 0
    %3028 = vmatprep.subr.bf16.mxu0 0
    %3029 = vmatpush2.bf16.msra.mxu0 0
    %3030 = vmatprep.mubr.bf16.mxu0 0
    %3031 = vmatmul.mubr.bf16.gmra.mxu0 %v2996
    %v3032 = vpop.f32.mrf.mxu0
    %v3033 = vadd.f32 %v1515, %v3032
    %v3034 = vpop.f32.mrf.mxu0
    %v3035 = vpop.f32.mrf.mxu0
    %v3036 = vadd.f32 %v1515, %v3035
    %v3037 = vpop.f32.mrf.mxu0
    %3038 = vdwg.mxu0
    %v3039 = vadd.f32 %v3033, %v2945
    %v3040 = vadd.f32 %v3036, %v2946
    %v3041 = vsel %vm97, %v3039, 0.0
    %3042 = vadd.xlane.f32.xlu0 %v3041
    %v3043 = vpop.xlane.xlu0 %3042
    %v3044 = vsel %vm97, %v3040, 0.0
    %3045 = vadd.xlane.f32.xlu0 %v3044
    %v3046 = vpop.xlane.xlu0 %3045
    %v3047 = vmul.f32 %v3043, %v1413
    %v3048 = vmul.f32 %v3046, %v1413
    %v3049 = vsub.f32 %v3039, %v3047
    %v3050 = vsub.f32 %v3040, %v3048
    %v3051 = vmul.f32 %v3049, %v3049
    %v3052 = vmul.f32 %v3050, %v3050
    %v3053 = vsel %vm97, %v3051, 0.0
    %3054 = vadd.xlane.f32.xlu0 %v3053
    %v3055 = vpop.xlane.xlu0 %3054
    %v3056 = vsel %vm97, %v3052, 0.0
    %3057 = vadd.xlane.f32.xlu0 %v3056
    %v3058 = vpop.xlane.xlu0 %3057
    %v3059 = vmul.f32 %v3055, %v1413
    %v3060 = vmul.f32 %v3058, %v1413
    %v3061 = vadd.f32 %v3059, 1e-05
    %v3062 = vadd.f32 %v3060, 1e-05
    %v3063 = vrsqrt.pop %v3061
    %v3064 = vrsqrt.pop %v3062
    %v3065 = vmul.f32 %v3049, %v3063
    %v3066 = vmul.f32 %v3050, %v3064
    %v3067 = vmul.f32 %v3065, %v1616
    %v3068 = vmul.f32 %v3066, %v1616
    %v3069 = vadd.f32 %v3067, %v1622
    %v3070 = vadd.f32 %v3068, %v1622
    %v3071 = vpack.c.bf16 %v3070, %v3069
    %v3073 = vsel %vm97, %v3071, 0
    %3075 = vmatprep.subr.bf16.mxu0 0
    %3076 = vmatpush1.bf16.msra.mxu0 0
    %3077 = vmatprep.subr.bf16.mxu0 0
    %3078 = vmatpush1.bf16.msra.mxu0 0
    %3079 = vmatprep.subr.bf16.mxu0 0
    %3080 = vmatpush1.bf16.msra.mxu0 0
    %3081 = vmatprep.subr.bf16.mxu0 0
    %3082 = vmatpush1.bf16.msra.mxu0 0
    %3083 = vmatprep.subr.bf16.mxu0 0
    %3084 = vmatpush1.bf16.msra.mxu0 0
    %3085 = vmatprep.subr.bf16.mxu0 0
    %3086 = vmatpush1.bf16.msra.mxu0 0
    %3087 = vmatprep.subr.bf16.mxu0 0
    %3088 = vmatpush1.bf16.msra.mxu0 %v94
    %3089 = vmatprep.subr.bf16.mxu0 0
    %3090 = vmatpush1.bf16.msra.mxu0 %v93
    %3091 = vmatprep.subr.bf16.mxu0 0
    %3092 = vmatpush2.bf16.msra.mxu0 0
    %3093 = vmatprep.subr.bf16.mxu0 0
    %3094 = vmatpush2.bf16.msra.mxu0 0
    %3095 = vmatprep.subr.bf16.mxu0 0
    %3096 = vmatpush2.bf16.msra.mxu0 0
    %3097 = vmatprep.subr.bf16.mxu0 0
    %3098 = vmatpush2.bf16.msra.mxu0 0
    %3099 = vmatprep.subr.bf16.mxu0 0
    %3100 = vmatpush2.bf16.msra.mxu0 0
    %3101 = vmatprep.subr.bf16.mxu0 0
    %3102 = vmatpush2.bf16.msra.mxu0 0
    %3103 = vmatprep.subr.bf16.mxu0 0
    %3104 = vmatpush2.bf16.msra.mxu0 0
    %3105 = vmatprep.subr.bf16.mxu0 0
    %3106 = vmatpush2.bf16.msra.mxu0 0
    %3107 = vmatprep.mubr.bf16.mxu0 0
    %3108 = vmatmul.mubr.bf16.gmra.mxu0 %v3073
    %v3109 = vpop.f32.mrf.mxu0
    %v3110 = vadd.f32 0.0, %v3109
    %v3111 = vpop.f32.mrf.mxu0
    %v3112 = vpop.f32.mrf.mxu0
    %v3113 = vadd.f32 0.0, %v3112
    %v3114 = vpop.f32.mrf.mxu0
    %3115 = vdwg.mxu0
    %v3116 = vpack.c.bf16 %v3113, %v3110
    %v3118 = vunpack.c.l.b16 %v3116
    %v3119 = vunpack.c.h.b16 %v3116
    %v3120 = vpack.c.b16 %v3118, %v3118
    %v3121 = vpack.c.b16 %v3119, %v3119
    %3124 = vxpose.xlu0.c.b16.start [1/8] %v3120, 128
    %3125 = vxpose.xlu0.c.b16.cont [2/8] 0, 128
    %3126 = vxpose.xlu0.c.b16.cont [3/8] 0, 128
    %3127 = vxpose.xlu0.c.b16.cont [4/8] 0, 128
    %3128 = vxpose.xlu0.c.b16.cont [5/8] 0, 128
    %3129 = vxpose.xlu0.c.b16.cont [6/8] 0, 128
    %3130 = vxpose.xlu0.c.b16.cont [7/8] 0, 128
    %3131 = vxpose.xlu0.c.b16.end [8/8] 0, 128
    %v3132 = vpop.trf.xlu0
    %v3133 = vpop.trf.xlu0
    %v3134 = vpop.trf.xlu0
    %v3135 = vpop.trf.xlu0
    %v3136 = vpop.trf.xlu0
    %v3137 = vpop.trf.xlu0
    %v3138 = vpop.trf.xlu0
    %v3139 = vpop.trf.xlu0
    %3140 = vxpose.xlu0.c.b16.start [1/8] %v3121, 128
    %3141 = vxpose.xlu0.c.b16.cont [2/8] 0, 128
    %3142 = vxpose.xlu0.c.b16.cont [3/8] 0, 128
    %3143 = vxpose.xlu0.c.b16.cont [4/8] 0, 128
    %3144 = vxpose.xlu0.c.b16.cont [5/8] 0, 128
    %3145 = vxpose.xlu0.c.b16.cont [6/8] 0, 128
    %3146 = vxpose.xlu0.c.b16.cont [7/8] 0, 128
    %3147 = vxpose.xlu0.c.b16.end [8/8] 0, 128
    %v3148 = vpop.trf.xlu0
    %v3149 = vpop.trf.xlu0
    %v3150 = vpop.trf.xlu0
    %v3151 = vpop.trf.xlu0
    %v3152 = vpop.trf.xlu0
    %v3153 = vpop.trf.xlu0
    %v3154 = vpop.trf.xlu0
    %v3155 = vpop.trf.xlu0
    %v3168 = vunpack.c.l.b16 %v3132
    %v3169 = vunpack.c.h.b16 %v3132
    %v3170 = vunpack.c.l.b16 %v3133
    %v3171 = vunpack.c.h.b16 %v3133
    %v3172 = vunpack.c.l.b16 %v3134
    %v3173 = vunpack.c.h.b16 %v3134
    %v3174 = vunpack.c.l.b16 %v3135
    %v3175 = vunpack.c.h.b16 %v3135
    %v3176 = vunpack.c.l.b16 %v3136
    %v3177 = vunpack.c.h.b16 %v3136
    %v3178 = vunpack.c.l.b16 %v3137
    %v3179 = vunpack.c.h.b16 %v3137
    %v3180 = vunpack.c.l.b16 %v3148
    %v3181 = vunpack.c.h.b16 %v3148
    %v3182 = vunpack.c.l.b16 %v3149
    %v3183 = vunpack.c.h.b16 %v3149
    %v3184 = vunpack.c.l.b16 %v3150
    %v3185 = vunpack.c.h.b16 %v3150
    %v3186 = vunpack.c.l.b16 %v3151
    %v3187 = vunpack.c.h.b16 %v3151
    %v3188 = vunpack.c.l.b16 %v3152
    %v3189 = vunpack.c.h.b16 %v3152
    %v3190 = vunpack.c.l.b16 %v3153
    %v3191 = vunpack.c.h.b16 %v3153
    %v3192 = vpack.c.b16 %v3168, %v3168
    %v3193 = vpack.c.b16 %v3169, %v3169
    %v3194 = vpack.c.b16 %v3170, %v3170
    %v3195 = vpack.c.b16 %v3171, %v3171
    %v3196 = vpack.c.b16 %v3172, %v3172
    %v3197 = vpack.c.b16 %v3173, %v3173
    %v3198 = vpack.c.b16 %v3174, %v3174
    %v3199 = vpack.c.b16 %v3175, %v3175
    %v3200 = vpack.c.b16 %v3176, %v3176
    %v3201 = vpack.c.b16 %v3177, %v3177
    %v3202 = vpack.c.b16 %v3178, %v3178
    %v3203 = vpack.c.b16 %v3179, %v3179
    %v3204 = vpack.c.b16 %v3180, %v3180
    %v3205 = vpack.c.b16 %v3181, %v3181
    %v3206 = vpack.c.b16 %v3182, %v3182
    %v3207 = vpack.c.b16 %v3183, %v3183
    %v3208 = vpack.c.b16 %v3184, %v3184
    %v3209 = vpack.c.b16 %v3185, %v3185
    %v3210 = vpack.c.b16 %v3186, %v3186
    %v3211 = vpack.c.b16 %v3187, %v3187
    %v3212 = vpack.c.b16 %v3188, %v3188
    %v3213 = vpack.c.b16 %v3189, %v3189
    %v3214 = vpack.c.b16 %v3190, %v3190
    %v3215 = vpack.c.b16 %v3191, %v3191
    %3224 = vxpose.xlu0.c.b16.start [1/8] %v3196, 128
    %3225 = vxpose.xlu0.c.b16.cont [2/8] 0, 128
    %3226 = vxpose.xlu0.c.b16.cont [3/8] 0, 128
    %3227 = vxpose.xlu0.c.b16.cont [4/8] 0, 128
    %3228 = vxpose.xlu0.c.b16.cont [5/8] 0, 128
    %3229 = vxpose.xlu0.c.b16.cont [6/8] 0, 128
    %3230 = vxpose.xlu0.c.b16.cont [7/8] 0, 128
    %3231 = vxpose.xlu0.c.b16.end [8/8] 0, 128
    %v3232 = vpop.trf.xlu0
    %v3233 = vpop.trf.xlu0
    %v3234 = vpop.trf.xlu0
    %v3235 = vpop.trf.xlu0
    %v3236 = vpop.trf.xlu0
    %v3237 = vpop.trf.xlu0
    %v3238 = vpop.trf.xlu0
    %v3239 = vpop.trf.xlu0
    %3240 = vxpose.xlu0.c.b16.start [1/8] %v3197, 128
    %3241 = vxpose.xlu0.c.b16.cont [2/8] 0, 128
    %3242 = vxpose.xlu0.c.b16.cont [3/8] 0, 128
    %3243 = vxpose.xlu0.c.b16.cont [4/8] 0, 128
    %3244 = vxpose.xlu0.c.b16.cont [5/8] 0, 128
    %3245 = vxpose.xlu0.c.b16.cont [6/8] 0, 128
    %3246 = vxpose.xlu0.c.b16.cont [7/8] 0, 128
    %3247 = vxpose.xlu0.c.b16.end [8/8] 0, 128
    %v3248 = vpop.trf.xlu0
    %v3249 = vpop.trf.xlu0
    %v3250 = vpop.trf.xlu0
    %v3251 = vpop.trf.xlu0
    %v3252 = vpop.trf.xlu0
    %v3253 = vpop.trf.xlu0
    %v3254 = vpop.trf.xlu0
    %v3255 = vpop.trf.xlu0
    %3256 = vxpose.xlu0.c.b16.start [1/8] %v3198, 128
    %3257 = vxpose.xlu0.c.b16.cont [2/8] 0, 128
    %3258 = vxpose.xlu0.c.b16.cont [3/8] 0, 128
    %3259 = vxpose.xlu0.c.b16.cont [4/8] 0, 128
    %3260 = vxpose.xlu0.c.b16.cont [5/8] 0, 128
    %3261 = vxpose.xlu0.c.b16.cont [6/8] 0, 128
    %3262 = vxpose.xlu0.c.b16.cont [7/8] 0, 128
    %3263 = vxpose.xlu0.c.b16.end [8/8] 0, 128
    %v3264 = vpop.trf.xlu0
    %v3265 = vpop.trf.xlu0
    %v3266 = vpop.trf.xlu0
    %v3267 = vpop.trf.xlu0
    %v3268 = vpop.trf.xlu0
    %v3269 = vpop.trf.xlu0
    %v3270 = vpop.trf.xlu0
    %v3271 = vpop.trf.xlu0
    %3272 = vxpose.xlu0.c.b16.start [1/8] %v3199, 128
    %3273 = vxpose.xlu0.c.b16.cont [2/8] 0, 128
    %3274 = vxpose.xlu0.c.b16.cont [3/8] 0, 128
    %3275 = vxpose.xlu0.c.b16.cont [4/8] 0, 128
    %3276 = vxpose.xlu0.c.b16.cont [5/8] 0, 128
    %3277 = vxpose.xlu0.c.b16.cont [6/8] 0, 128
    %3278 = vxpose.xlu0.c.b16.cont [7/8] 0, 128
    %3279 = vxpose.xlu0.c.b16.end [8/8] 0, 128
    %v3280 = vpop.trf.xlu0
    %v3281 = vpop.trf.xlu0
    %v3282 = vpop.trf.xlu0
    %v3283 = vpop.trf.xlu0
    %v3284 = vpop.trf.xlu0
    %v3285 = vpop.trf.xlu0
    %v3286 = vpop.trf.xlu0
    %v3287 = vpop.trf.xlu0
    %3288 = vxpose.xlu0.c.b16.start [1/8] %v3208, 128
    %3289 = vxpose.xlu0.c.b16.cont [2/8] 0, 128
    %3290 = vxpose.xlu0.c.b16.cont [3/8] 0, 128
    %3291 = vxpose.xlu0.c.b16.cont [4/8] 0, 128
    %3292 = vxpose.xlu0.c.b16.cont [5/8] 0, 128
    %3293 = vxpose.xlu0.c.b16.cont [6/8] 0, 128
    %3294 = vxpose.xlu0.c.b16.cont [7/8] 0, 128
    %3295 = vxpose.xlu0.c.b16.end [8/8] 0, 128
    %v3296 = vpop.trf.xlu0
    %v3297 = vpop.trf.xlu0
    %v3298 = vpop.trf.xlu0
    %v3299 = vpop.trf.xlu0
    %v3300 = vpop.trf.xlu0
    %v3301 = vpop.trf.xlu0
    %v3302 = vpop.trf.xlu0
    %v3303 = vpop.trf.xlu0
    %3304 = vxpose.xlu0.c.b16.start [1/8] %v3209, 128
    %3305 = vxpose.xlu0.c.b16.cont [2/8] 0, 128
    %3306 = vxpose.xlu0.c.b16.cont [3/8] 0, 128
    %3307 = vxpose.xlu0.c.b16.cont [4/8] 0, 128
    %3308 = vxpose.xlu0.c.b16.cont [5/8] 0, 128
    %3309 = vxpose.xlu0.c.b16.cont [6/8] 0, 128
    %3310 = vxpose.xlu0.c.b16.cont [7/8] 0, 128
    %3311 = vxpose.xlu0.c.b16.end [8/8] 0, 128
    %v3312 = vpop.trf.xlu0
    %v3313 = vpop.trf.xlu0
    %v3314 = vpop.trf.xlu0
    %v3315 = vpop.trf.xlu0
    %v3316 = vpop.trf.xlu0
    %v3317 = vpop.trf.xlu0
    %v3318 = vpop.trf.xlu0
    %v3319 = vpop.trf.xlu0
    %3320 = vxpose.xlu0.c.b16.start [1/8] %v3210, 128
    %3321 = vxpose.xlu0.c.b16.cont [2/8] 0, 128
    %3322 = vxpose.xlu0.c.b16.cont [3/8] 0, 128
    %3323 = vxpose.xlu0.c.b16.cont [4/8] 0, 128
    %3324 = vxpose.xlu0.c.b16.cont [5/8] 0, 128
    %3325 = vxpose.xlu0.c.b16.cont [6/8] 0, 128
    %3326 = vxpose.xlu0.c.b16.cont [7/8] 0, 128
    %3327 = vxpose.xlu0.c.b16.end [8/8] 0, 128
    %v3328 = vpop.trf.xlu0
    %v3329 = vpop.trf.xlu0
    %v3330 = vpop.trf.xlu0
    %v3331 = vpop.trf.xlu0
    %v3332 = vpop.trf.xlu0
    %v3333 = vpop.trf.xlu0
    %v3334 = vpop.trf.xlu0
    %v3335 = vpop.trf.xlu0
    %3336 = vxpose.xlu0.c.b16.start [1/8] %v3211, 128
    %3337 = vxpose.xlu0.c.b16.cont [2/8] 0, 128
    %3338 = vxpose.xlu0.c.b16.cont [3/8] 0, 128
    %3339 = vxpose.xlu0.c.b16.cont [4/8] 0, 128
    %3340 = vxpose.xlu0.c.b16.cont [5/8] 0, 128
    %3341 = vxpose.xlu0.c.b16.cont [6/8] 0, 128
    %3342 = vxpose.xlu0.c.b16.cont [7/8] 0, 128
    %3343 = vxpose.xlu0.c.b16.end [8/8] 0, 128
    %v3344 = vpop.trf.xlu0
    %v3345 = vpop.trf.xlu0
    %v3346 = vpop.trf.xlu0
    %v3347 = vpop.trf.xlu0
    %v3348 = vpop.trf.xlu0
    %v3349 = vpop.trf.xlu0
    %v3350 = vpop.trf.xlu0
    %v3351 = vpop.trf.xlu0
    %v3353 = vsel %vm378, %v3232, 0
    %v3356 = vsel %vm382, %v3192, 0
    %3358 = vmatprep.subr.bf16.mxu0 0
    %3359 = vmatpush1.bf16.msra.mxu0 0
    %3360 = vmatprep.subr.bf16.mxu0 0
    %3361 = vmatpush1.bf16.msra.mxu0 0
    %3362 = vmatprep.subr.bf16.mxu0 0
    %3363 = vmatpush1.bf16.msra.mxu0 0
    %3364 = vmatprep.subr.bf16.mxu0 0
    %3365 = vmatpush1.bf16.msra.mxu0 0
    %3366 = vmatprep.subr.bf16.mxu0 0
    %3367 = vmatpush1.bf16.msra.mxu0 0
    %3368 = vmatprep.subr.bf16.mxu0 0
    %3369 = vmatpush1.bf16.msra.mxu0 0
    %3370 = vmatprep.subr.bf16.mxu0 0
    %3371 = vmatpush1.bf16.msra.mxu0 0
    %3372 = vmatprep.subr.bf16.mxu0 0
    %3373 = vmatpush1.bf16.msra.mxu0 %v3356
    %3374 = vmatprep.subr.bf16.mxu0 0
    %3375 = vmatpush2.bf16.msra.mxu0 0
    %3376 = vmatprep.subr.bf16.mxu0 0
    %3377 = vmatpush2.bf16.msra.mxu0 0
    %3378 = vmatprep.subr.bf16.mxu0 0
    %3379 = vmatpush2.bf16.msra.mxu0 0
    %3380 = vmatprep.subr.bf16.mxu0 0
    %3381 = vmatpush2.bf16.msra.mxu0 0
    %3382 = vmatprep.subr.bf16.mxu0 0
    %3383 = vmatpush2.bf16.msra.mxu0 0
    %3384 = vmatprep.subr.bf16.mxu0 0
    %3385 = vmatpush2.bf16.msra.mxu0 0
    %3386 = vmatprep.subr.bf16.mxu0 0
    %3387 = vmatpush2.bf16.msra.mxu0 0
    %3388 = vmatprep.subr.bf16.mxu0 0
    %3389 = vmatpush2.bf16.msra.mxu0 0
    %3390 = vmatprep.mubr.bf16.mxu0 0
    %3391 = vmatmul.mubr.bf16.gmra.mxu0 %v3353
    %v3392 = vpop.f32.mrf.mxu0
    %v3393 = vadd.f32 0.0, %v3392
    %v3394 = vpop.f32.mrf.mxu0
    %v3395 = vpop.f32.mrf.mxu0
    %v3396 = vpop.f32.mrf.mxu0
    %3397 = vdwg.mxu0
    %v3399 = vsel %vm378, %v3248, 0
    %v3402 = vsel %vm382, %v3193, 0
    %3404 = vmatprep.subr.bf16.mxu0 0
    %3405 = vmatpush1.bf16.msra.mxu0 0
    %3406 = vmatprep.subr.bf16.mxu0 0
    %3407 = vmatpush1.bf16.msra.mxu0 0
    %3408 = vmatprep.subr.bf16.mxu0 0
    %3409 = vmatpush1.bf16.msra.mxu0 0
    %3410 = vmatprep.subr.bf16.mxu0 0
    %3411 = vmatpush1.bf16.msra.mxu0 0
    %3412 = vmatprep.subr.bf16.mxu0 0
    %3413 = vmatpush1.bf16.msra.mxu0 0
    %3414 = vmatprep.subr.bf16.mxu0 0
    %3415 = vmatpush1.bf16.msra.mxu0 0
    %3416 = vmatprep.subr.bf16.mxu0 0
    %3417 = vmatpush1.bf16.msra.mxu0 0
    %3418 = vmatprep.subr.bf16.mxu0 0
    %3419 = vmatpush1.bf16.msra.mxu0 %v3402
    %3420 = vmatprep.subr.bf16.mxu0 0
    %3421 = vmatpush2.bf16.msra.mxu0 0
    %3422 = vmatprep.subr.bf16.mxu0 0
    %3423 = vmatpush2.bf16.msra.mxu0 0
    %3424 = vmatprep.subr.bf16.mxu0 0
    %3425 = vmatpush2.bf16.msra.mxu0 0
    %3426 = vmatprep.subr.bf16.mxu0 0
    %3427 = vmatpush2.bf16.msra.mxu0 0
    %3428 = vmatprep.subr.bf16.mxu0 0
    %3429 = vmatpush2.bf16.msra.mxu0 0
    %3430 = vmatprep.subr.bf16.mxu0 0
    %3431 = vmatpush2.bf16.msra.mxu0 0
    %3432 = vmatprep.subr.bf16.mxu0 0
    %3433 = vmatpush2.bf16.msra.mxu0 0
    %3434 = vmatprep.subr.bf16.mxu0 0
    %3435 = vmatpush2.bf16.msra.mxu0 0
    %3436 = vmatprep.mubr.bf16.mxu0 0
    %3437 = vmatmul.mubr.bf16.gmra.mxu0 %v3399
    %v3438 = vpop.f32.mrf.mxu0
    %v3439 = vadd.f32 0.0, %v3438
    %v3440 = vpop.f32.mrf.mxu0
    %v3441 = vpop.f32.mrf.mxu0
    %v3442 = vpop.f32.mrf.mxu0
    %3443 = vdwg.mxu0
    %v3445 = vsel %vm378, %v3264, 0
    %v3448 = vsel %vm382, %v3194, 0
    %3450 = vmatprep.subr.bf16.mxu0 0
    %3451 = vmatpush1.bf16.msra.mxu0 0
    %3452 = vmatprep.subr.bf16.mxu0 0
    %3453 = vmatpush1.bf16.msra.mxu0 0
    %3454 = vmatprep.subr.bf16.mxu0 0
    %3455 = vmatpush1.bf16.msra.mxu0 0
    %3456 = vmatprep.subr.bf16.mxu0 0
    %3457 = vmatpush1.bf16.msra.mxu0 0
    %3458 = vmatprep.subr.bf16.mxu0 0
    %3459 = vmatpush1.bf16.msra.mxu0 0
    %3460 = vmatprep.subr.bf16.mxu0 0
    %3461 = vmatpush1.bf16.msra.mxu0 0
    %3462 = vmatprep.subr.bf16.mxu0 0
    %3463 = vmatpush1.bf16.msra.mxu0 0
    %3464 = vmatprep.subr.bf16.mxu0 0
    %3465 = vmatpush1.bf16.msra.mxu0 %v3448
    %3466 = vmatprep.subr.bf16.mxu0 0
    %3467 = vmatpush2.bf16.msra.mxu0 0
    %3468 = vmatprep.subr.bf16.mxu0 0
    %3469 = vmatpush2.bf16.msra.mxu0 0
    %3470 = vmatprep.subr.bf16.mxu0 0
    %3471 = vmatpush2.bf16.msra.mxu0 0
    %3472 = vmatprep.subr.bf16.mxu0 0
    %3473 = vmatpush2.bf16.msra.mxu0 0
    %3474 = vmatprep.subr.bf16.mxu0 0
    %3475 = vmatpush2.bf16.msra.mxu0 0
    %3476 = vmatprep.subr.bf16.mxu0 0
    %3477 = vmatpush2.bf16.msra.mxu0 0
    %3478 = vmatprep.subr.bf16.mxu0 0
    %3479 = vmatpush2.bf16.msra.mxu0 0
    %3480 = vmatprep.subr.bf16.mxu0 0
    %3481 = vmatpush2.bf16.msra.mxu0 0
    %3482 = vmatprep.mubr.bf16.mxu0 0
    %3483 = vmatmul.mubr.bf16.gmra.mxu0 %v3445
    %v3484 = vpop.f32.mrf.mxu0
    %v3485 = vadd.f32 0.0, %v3484
    %v3486 = vpop.f32.mrf.mxu0
    %v3487 = vpop.f32.mrf.mxu0
    %v3488 = vpop.f32.mrf.mxu0
    %3489 = vdwg.mxu0
    %v3491 = vsel %vm378, %v3280, 0
    %v3494 = vsel %vm382, %v3195, 0
    %3496 = vmatprep.subr.bf16.mxu0 0
    %3497 = vmatpush1.bf16.msra.mxu0 0
    %3498 = vmatprep.subr.bf16.mxu0 0
    %3499 = vmatpush1.bf16.msra.mxu0 0
    %3500 = vmatprep.subr.bf16.mxu0 0
    %3501 = vmatpush1.bf16.msra.mxu0 0
    %3502 = vmatprep.subr.bf16.mxu0 0
    %3503 = vmatpush1.bf16.msra.mxu0 0
    %3504 = vmatprep.subr.bf16.mxu0 0
    %3505 = vmatpush1.bf16.msra.mxu0 0
    %3506 = vmatprep.subr.bf16.mxu0 0
    %3507 = vmatpush1.bf16.msra.mxu0 0
    %3508 = vmatprep.subr.bf16.mxu0 0
    %3509 = vmatpush1.bf16.msra.mxu0 0
    %3510 = vmatprep.subr.bf16.mxu0 0
    %3511 = vmatpush1.bf16.msra.mxu0 %v3494
    %3512 = vmatprep.subr.bf16.mxu0 0
    %3513 = vmatpush2.bf16.msra.mxu0 0
    %3514 = vmatprep.subr.bf16.mxu0 0
    %3515 = vmatpush2.bf16.msra.mxu0 0
    %3516 = vmatprep.subr.bf16.mxu0 0
    %3517 = vmatpush2.bf16.msra.mxu0 0
    %3518 = vmatprep.subr.bf16.mxu0 0
    %3519 = vmatpush2.bf16.msra.mxu0 0
    %3520 = vmatprep.subr.bf16.mxu0 0
    %3521 = vmatpush2.bf16.msra.mxu0 0
    %3522 = vmatprep.subr.bf16.mxu0 0
    %3523 = vmatpush2.bf16.msra.mxu0 0
    %3524 = vmatprep.subr.bf16.mxu0 0
    %3525 = vmatpush2.bf16.msra.mxu0 0
    %3526 = vmatprep.subr.bf16.mxu0 0
    %3527 = vmatpush2.bf16.msra.mxu0 0
    %3528 = vmatprep.mubr.bf16.mxu0 0
    %3529 = vmatmul.mubr.bf16.gmra.mxu0 %v3491
    %v3530 = vpop.f32.mrf.mxu0
    %v3531 = vadd.f32 0.0, %v3530
    %v3532 = vpop.f32.mrf.mxu0
    %v3533 = vpop.f32.mrf.mxu0
    %v3534 = vpop.f32.mrf.mxu0
    %3535 = vdwg.mxu0
    %v3537 = vsel %vm378, %v3296, 0
    %v3540 = vsel %vm382, %v3204, 0
    %3542 = vmatprep.subr.bf16.mxu0 0
    %3543 = vmatpush1.bf16.msra.mxu0 0
    %3544 = vmatprep.subr.bf16.mxu0 0
    %3545 = vmatpush1.bf16.msra.mxu0 0
    %3546 = vmatprep.subr.bf16.mxu0 0
    %3547 = vmatpush1.bf16.msra.mxu0 0
    %3548 = vmatprep.subr.bf16.mxu0 0
    %3549 = vmatpush1.bf16.msra.mxu0 0
    %3550 = vmatprep.subr.bf16.mxu0 0
    %3551 = vmatpush1.bf16.msra.mxu0 0
    %3552 = vmatprep.subr.bf16.mxu0 0
    %3553 = vmatpush1.bf16.msra.mxu0 0
    %3554 = vmatprep.subr.bf16.mxu0 0
    %3555 = vmatpush1.bf16.msra.mxu0 0
    %3556 = vmatprep.subr.bf16.mxu0 0
    %3557 = vmatpush1.bf16.msra.mxu0 %v3540
    %3558 = vmatprep.subr.bf16.mxu0 0
    %3559 = vmatpush2.bf16.msra.mxu0 0
    %3560 = vmatprep.subr.bf16.mxu0 0
    %3561 = vmatpush2.bf16.msra.mxu0 0
    %3562 = vmatprep.subr.bf16.mxu0 0
    %3563 = vmatpush2.bf16.msra.mxu0 0
    %3564 = vmatprep.subr.bf16.mxu0 0
    %3565 = vmatpush2.bf16.msra.mxu0 0
    %3566 = vmatprep.subr.bf16.mxu0 0
    %3567 = vmatpush2.bf16.msra.mxu0 0
    %3568 = vmatprep.subr.bf16.mxu0 0
    %3569 = vmatpush2.bf16.msra.mxu0 0
    %3570 = vmatprep.subr.bf16.mxu0 0
    %3571 = vmatpush2.bf16.msra.mxu0 0
    %3572 = vmatprep.subr.bf16.mxu0 0
    %3573 = vmatpush2.bf16.msra.mxu0 0
    %3574 = vmatprep.mubr.bf16.mxu0 0
    %3575 = vmatmul.mubr.bf16.gmra.mxu0 %v3537
    %v3576 = vpop.f32.mrf.mxu0
    %v3577 = vadd.f32 0.0, %v3576
    %v3578 = vpop.f32.mrf.mxu0
    %v3579 = vpop.f32.mrf.mxu0
    %v3580 = vpop.f32.mrf.mxu0
    %3581 = vdwg.mxu0
    %v3583 = vsel %vm378, %v3312, 0
    %v3586 = vsel %vm382, %v3205, 0
    %3588 = vmatprep.subr.bf16.mxu0 0
    %3589 = vmatpush1.bf16.msra.mxu0 0
    %3590 = vmatprep.subr.bf16.mxu0 0
    %3591 = vmatpush1.bf16.msra.mxu0 0
    %3592 = vmatprep.subr.bf16.mxu0 0
    %3593 = vmatpush1.bf16.msra.mxu0 0
    %3594 = vmatprep.subr.bf16.mxu0 0
    %3595 = vmatpush1.bf16.msra.mxu0 0
    %3596 = vmatprep.subr.bf16.mxu0 0
    %3597 = vmatpush1.bf16.msra.mxu0 0
    %3598 = vmatprep.subr.bf16.mxu0 0
    %3599 = vmatpush1.bf16.msra.mxu0 0
    %3600 = vmatprep.subr.bf16.mxu0 0
    %3601 = vmatpush1.bf16.msra.mxu0 0
    %3602 = vmatprep.subr.bf16.mxu0 0
    %3603 = vmatpush1.bf16.msra.mxu0 %v3586
    %3604 = vmatprep.subr.bf16.mxu0 0
    %3605 = vmatpush2.bf16.msra.mxu0 0
    %3606 = vmatprep.subr.bf16.mxu0 0
    %3607 = vmatpush2.bf16.msra.mxu0 0
    %3608 = vmatprep.subr.bf16.mxu0 0
    %3609 = vmatpush2.bf16.msra.mxu0 0
    %3610 = vmatprep.subr.bf16.mxu0 0
    %3611 = vmatpush2.bf16.msra.mxu0 0
    %3612 = vmatprep.subr.bf16.mxu0 0
    %3613 = vmatpush2.bf16.msra.mxu0 0
    %3614 = vmatprep.subr.bf16.mxu0 0
    %3615 = vmatpush2.bf16.msra.mxu0 0
    %3616 = vmatprep.subr.bf16.mxu0 0
    %3617 = vmatpush2.bf16.msra.mxu0 0
    %3618 = vmatprep.subr.bf16.mxu0 0
    %3619 = vmatpush2.bf16.msra.mxu0 0
    %3620 = vmatprep.mubr.bf16.mxu0 0
    %3621 = vmatmul.mubr.bf16.gmra.mxu0 %v3583
    %v3622 = vpop.f32.mrf.mxu0
    %v3623 = vadd.f32 0.0, %v3622
    %v3624 = vpop.f32.mrf.mxu0
    %v3625 = vpop.f32.mrf.mxu0
    %v3626 = vpop.f32.mrf.mxu0
    %3627 = vdwg.mxu0
    %v3629 = vsel %vm378, %v3328, 0
    %v3632 = vsel %vm382, %v3206, 0
    %3634 = vmatprep.subr.bf16.mxu0 0
    %3635 = vmatpush1.bf16.msra.mxu0 0
    %3636 = vmatprep.subr.bf16.mxu0 0
    %3637 = vmatpush1.bf16.msra.mxu0 0
    %3638 = vmatprep.subr.bf16.mxu0 0
    %3639 = vmatpush1.bf16.msra.mxu0 0
    %3640 = vmatprep.subr.bf16.mxu0 0
    %3641 = vmatpush1.bf16.msra.mxu0 0
    %3642 = vmatprep.subr.bf16.mxu0 0
    %3643 = vmatpush1.bf16.msra.mxu0 0
    %3644 = vmatprep.subr.bf16.mxu0 0
    %3645 = vmatpush1.bf16.msra.mxu0 0
    %3646 = vmatprep.subr.bf16.mxu0 0
    %3647 = vmatpush1.bf16.msra.mxu0 0
    %3648 = vmatprep.subr.bf16.mxu0 0
    %3649 = vmatpush1.bf16.msra.mxu0 %v3632
    %3650 = vmatprep.subr.bf16.mxu0 0
    %3651 = vmatpush2.bf16.msra.mxu0 0
    %3652 = vmatprep.subr.bf16.mxu0 0
    %3653 = vmatpush2.bf16.msra.mxu0 0
    %3654 = vmatprep.subr.bf16.mxu0 0
    %3655 = vmatpush2.bf16.msra.mxu0 0
    %3656 = vmatprep.subr.bf16.mxu0 0
    %3657 = vmatpush2.bf16.msra.mxu0 0
    %3658 = vmatprep.subr.bf16.mxu0 0
    %3659 = vmatpush2.bf16.msra.mxu0 0
    %3660 = vmatprep.subr.bf16.mxu0 0
    %3661 = vmatpush2.bf16.msra.mxu0 0
    %3662 = vmatprep.subr.bf16.mxu0 0
    %3663 = vmatpush2.bf16.msra.mxu0 0
    %3664 = vmatprep.subr.bf16.mxu0 0
    %3665 = vmatpush2.bf16.msra.mxu0 0
    %3666 = vmatprep.mubr.bf16.mxu0 0
    %3667 = vmatmul.mubr.bf16.gmra.mxu0 %v3629
    %v3668 = vpop.f32.mrf.mxu0
    %v3669 = vadd.f32 0.0, %v3668
    %v3670 = vpop.f32.mrf.mxu0
    %v3671 = vpop.f32.mrf.mxu0
    %v3672 = vpop.f32.mrf.mxu0
    %3673 = vdwg.mxu0
    %v3675 = vsel %vm378, %v3344, 0
    %v3678 = vsel %vm382, %v3207, 0
    %3680 = vmatprep.subr.bf16.mxu0 0
    %3681 = vmatpush1.bf16.msra.mxu0 0
    %3682 = vmatprep.subr.bf16.mxu0 0
    %3683 = vmatpush1.bf16.msra.mxu0 0
    %3684 = vmatprep.subr.bf16.mxu0 0
    %3685 = vmatpush1.bf16.msra.mxu0 0
    %3686 = vmatprep.subr.bf16.mxu0 0
    %3687 = vmatpush1.bf16.msra.mxu0 0
    %3688 = vmatprep.subr.bf16.mxu0 0
    %3689 = vmatpush1.bf16.msra.mxu0 0
    %3690 = vmatprep.subr.bf16.mxu0 0
    %3691 = vmatpush1.bf16.msra.mxu0 0
    %3692 = vmatprep.subr.bf16.mxu0 0
    %3693 = vmatpush1.bf16.msra.mxu0 0
    %3694 = vmatprep.subr.bf16.mxu0 0
    %3695 = vmatpush1.bf16.msra.mxu0 %v3678
    %3696 = vmatprep.subr.bf16.mxu0 0
    %3697 = vmatpush2.bf16.msra.mxu0 0
    %3698 = vmatprep.subr.bf16.mxu0 0
    %3699 = vmatpush2.bf16.msra.mxu0 0
    %3700 = vmatprep.subr.bf16.mxu0 0
    %3701 = vmatpush2.bf16.msra.mxu0 0
    %3702 = vmatprep.subr.bf16.mxu0 0
    %3703 = vmatpush2.bf16.msra.mxu0 0
    %3704 = vmatprep.subr.bf16.mxu0 0
    %3705 = vmatpush2.bf16.msra.mxu0 0
    %3706 = vmatprep.subr.bf16.mxu0 0
    %3707 = vmatpush2.bf16.msra.mxu0 0
    %3708 = vmatprep.subr.bf16.mxu0 0
    %3709 = vmatpush2.bf16.msra.mxu0 0
    %3710 = vmatprep.subr.bf16.mxu0 0
    %3711 = vmatpush2.bf16.msra.mxu0 0
    %3712 = vmatprep.mubr.bf16.mxu0 0
    %3713 = vmatmul.mubr.bf16.gmra.mxu0 %v3675
    %v3714 = vpop.f32.mrf.mxu0
    %v3715 = vadd.f32 0.0, %v3714
    %v3716 = vpop.f32.mrf.mxu0
    %v3717 = vpop.f32.mrf.mxu0
    %v3718 = vpop.f32.mrf.mxu0
    %3719 = vdwg.mxu0
    %v3720 = vsel %vm378, %v3393, -inf
    %v3721 = vrot.slane %v3720, 4
    %v3722 = vmax.f32 %v3720, %v3721
    %v3723 = vrot.slane %v3722, 2
    %v3724 = vmax.f32 %v3722, %v3723
    %v3725 = vrot.slane %v3724, 1
    %v3726 = vmax.f32 %v3724, %v3725
    %v3727 = vsel %vm378, %v3439, -inf
    %v3728 = vrot.slane %v3727, 4
    %v3729 = vmax.f32 %v3727, %v3728
    %v3730 = vrot.slane %v3729, 2
    %v3731 = vmax.f32 %v3729, %v3730
    %v3732 = vrot.slane %v3731, 1
    %v3733 = vmax.f32 %v3731, %v3732
    %v3734 = vsel %vm378, %v3485, -inf
    %v3735 = vrot.slane %v3734, 4
    %v3736 = vmax.f32 %v3734, %v3735
    %v3737 = vrot.slane %v3736, 2
    %v3738 = vmax.f32 %v3736, %v3737
    %v3739 = vrot.slane %v3738, 1
    %v3740 = vmax.f32 %v3738, %v3739
    %v3741 = vsel %vm378, %v3531, -inf
    %v3742 = vrot.slane %v3741, 4
    %v3743 = vmax.f32 %v3741, %v3742
    %v3744 = vrot.slane %v3743, 2
    %v3745 = vmax.f32 %v3743, %v3744
    %v3746 = vrot.slane %v3745, 1
    %v3747 = vmax.f32 %v3745, %v3746
    %v3748 = vsel %vm378, %v3577, -inf
    %v3749 = vrot.slane %v3748, 4
    %v3750 = vmax.f32 %v3748, %v3749
    %v3751 = vrot.slane %v3750, 2
    %v3752 = vmax.f32 %v3750, %v3751
    %v3753 = vrot.slane %v3752, 1
    %v3754 = vmax.f32 %v3752, %v3753
    %v3755 = vsel %vm378, %v3623, -inf
    %v3756 = vrot.slane %v3755, 4
    %v3757 = vmax.f32 %v3755, %v3756
    %v3758 = vrot.slane %v3757, 2
    %v3759 = vmax.f32 %v3757, %v3758
    %v3760 = vrot.slane %v3759, 1
    %v3761 = vmax.f32 %v3759, %v3760
    %v3762 = vsel %vm378, %v3669, -inf
    %v3763 = vrot.slane %v3762, 4
    %v3764 = vmax.f32 %v3762, %v3763
    %v3765 = vrot.slane %v3764, 2
    %v3766 = vmax.f32 %v3764, %v3765
    %v3767 = vrot.slane %v3766, 1
    %v3768 = vmax.f32 %v3766, %v3767
    %v3769 = vsel %vm378, %v3715, -inf
    %v3770 = vrot.slane %v3769, 4
    %v3771 = vmax.f32 %v3769, %v3770
    %v3772 = vrot.slane %v3771, 2
    %v3773 = vmax.f32 %v3771, %v3772
    %v3774 = vrot.slane %v3773, 1
    %v3775 = vmax.f32 %v3773, %v3774
    %v3776 = vsub.f32 %v3393, %v3726
    %v3777 = vsub.f32 %v3439, %v3733
    %v3778 = vsub.f32 %v3485, %v3740
    %v3779 = vsub.f32 %v3531, %v3747
    %v3780 = vsub.f32 %v3577, %v3754
    %v3781 = vsub.f32 %v3623, %v3761
    %v3782 = vsub.f32 %v3669, %v3768
    %v3783 = vsub.f32 %v3715, %v3775
    %v3784 = vmul.f32 %v3776, 1.442695
    %v3785 = vpow.pop %v3784
    %v3786 = vmul.f32 %v3777, 1.442695
    %v3787 = vpow.pop %v3786
    %v3788 = vmul.f32 %v3778, 1.442695
    %v3789 = vpow.pop %v3788
    %v3790 = vmul.f32 %v3779, 1.442695
    %v3791 = vpow.pop %v3790
    %v3792 = vmul.f32 %v3780, 1.442695
    %v3793 = vpow.pop %v3792
    %v3794 = vmul.f32 %v3781, 1.442695
    %v3795 = vpow.pop %v3794
    %v3796 = vmul.f32 %v3782, 1.442695
    %v3797 = vpow.pop %v3796
    %v3798 = vmul.f32 %v3783, 1.442695
    %v3799 = vpow.pop %v3798
    %v3800 = vsel %vm378, %v3785, 0.0
    %v3801 = vrot.slane %v3800, 4
    %v3802 = vadd.f32 %v3800, %v3801
    %v3803 = vrot.slane %v3802, 2
    %v3804 = vadd.f32 %v3802, %v3803
    %v3805 = vrot.slane %v3804, 1
    %v3806 = vadd.f32 %v3804, %v3805
    %v3807 = vsel %vm378, %v3787, 0.0
    %v3808 = vrot.slane %v3807, 4
    %v3809 = vadd.f32 %v3807, %v3808
    %v3810 = vrot.slane %v3809, 2
    %v3811 = vadd.f32 %v3809, %v3810
    %v3812 = vrot.slane %v3811, 1
    %v3813 = vadd.f32 %v3811, %v3812
    %v3814 = vsel %vm378, %v3789, 0.0
    %v3815 = vrot.slane %v3814, 4
    %v3816 = vadd.f32 %v3814, %v3815
    %v3817 = vrot.slane %v3816, 2
    %v3818 = vadd.f32 %v3816, %v3817
    %v3819 = vrot.slane %v3818, 1
    %v3820 = vadd.f32 %v3818, %v3819
    %v3821 = vsel %vm378, %v3791, 0.0
    %v3822 = vrot.slane %v3821, 4
    %v3823 = vadd.f32 %v3821, %v3822
    %v3824 = vrot.slane %v3823, 2
    %v3825 = vadd.f32 %v3823, %v3824
    %v3826 = vrot.slane %v3825, 1
    %v3827 = vadd.f32 %v3825, %v3826
    %v3828 = vsel %vm378, %v3793, 0.0
    %v3829 = vrot.slane %v3828, 4
    %v3830 = vadd.f32 %v3828, %v3829
    %v3831 = vrot.slane %v3830, 2
    %v3832 = vadd.f32 %v3830, %v3831
    %v3833 = vrot.slane %v3832, 1
    %v3834 = vadd.f32 %v3832, %v3833
    %v3835 = vsel %vm378, %v3795, 0.0
    %v3836 = vrot.slane %v3835, 4
    %v3837 = vadd.f32 %v3835, %v3836
    %v3838 = vrot.slane %v3837, 2
    %v3839 = vadd.f32 %v3837, %v3838
    %v3840 = vrot.slane %v3839, 1
    %v3841 = vadd.f32 %v3839, %v3840
    %v3842 = vsel %vm378, %v3797, 0.0
    %v3843 = vrot.slane %v3842, 4
    %v3844 = vadd.f32 %v3842, %v3843
    %v3845 = vrot.slane %v3844, 2
    %v3846 = vadd.f32 %v3844, %v3845
    %v3847 = vrot.slane %v3846, 1
    %v3848 = vadd.f32 %v3846, %v3847
    %v3849 = vsel %vm378, %v3799, 0.0
    %v3850 = vrot.slane %v3849, 4
    %v3851 = vadd.f32 %v3849, %v3850
    %v3852 = vrot.slane %v3851, 2
    %v3853 = vadd.f32 %v3851, %v3852
    %v3854 = vrot.slane %v3853, 1
    %v3855 = vadd.f32 %v3853, %v3854
    %v3856 = vpack.c.bf16 %v3785, %v3785
    %v3857 = vpack.c.bf16 %v3787, %v3787
    %v3858 = vpack.c.bf16 %v3789, %v3789
    %v3859 = vpack.c.bf16 %v3791, %v3791
    %v3860 = vpack.c.bf16 %v3793, %v3793
    %v3861 = vpack.c.bf16 %v3795, %v3795
    %v3862 = vpack.c.bf16 %v3797, %v3797
    %v3863 = vpack.c.bf16 %v3799, %v3799
    %v3865 = vsel %vm378, %v3200, 0
    %v3868 = vsel %vm382, %v3856, 0
    %3870 = vmatprep.subr.bf16.mxu0 0
    %3871 = vmatpush1.bf16.msra.mxu0 0
    %3872 = vmatprep.subr.bf16.mxu0 0
    %3873 = vmatpush1.bf16.msra.mxu0 0
    %3874 = vmatprep.subr.bf16.mxu0 0
    %3875 = vmatpush1.bf16.msra.mxu0 0
    %3876 = vmatprep.subr.bf16.mxu0 0
    %3877 = vmatpush1.bf16.msra.mxu0 0
    %3878 = vmatprep.subr.bf16.mxu0 0
    %3879 = vmatpush1.bf16.msra.mxu0 0
    %3880 = vmatprep.subr.bf16.mxu0 0
    %3881 = vmatpush1.bf16.msra.mxu0 0
    %3882 = vmatprep.subr.bf16.mxu0 0
    %3883 = vmatpush1.bf16.msra.mxu0 0
    %3884 = vmatprep.subr.bf16.mxu0 0
    %3885 = vmatpush1.bf16.msra.mxu0 %v3868
    %3886 = vmatprep.subr.bf16.mxu0 0
    %3887 = vmatpush2.bf16.msra.mxu0 0
    %3888 = vmatprep.subr.bf16.mxu0 0
    %3889 = vmatpush2.bf16.msra.mxu0 0
    %3890 = vmatprep.subr.bf16.mxu0 0
    %3891 = vmatpush2.bf16.msra.mxu0 0
    %3892 = vmatprep.subr.bf16.mxu0 0
    %3893 = vmatpush2.bf16.msra.mxu0 0
    %3894 = vmatprep.subr.bf16.mxu0 0
    %3895 = vmatpush2.bf16.msra.mxu0 0
    %3896 = vmatprep.subr.bf16.mxu0 0
    %3897 = vmatpush2.bf16.msra.mxu0 0
    %3898 = vmatprep.subr.bf16.mxu0 0
    %3899 = vmatpush2.bf16.msra.mxu0 0
    %3900 = vmatprep.subr.bf16.mxu0 0
    %3901 = vmatpush2.bf16.msra.mxu0 0
    %3902 = vmatprep.mubr.bf16.mxu0 0
    %3903 = vmatmul.mubr.bf16.gmra.mxu0 %v3865
    %v3904 = vpop.f32.mrf.mxu0
    %v3905 = vadd.f32 0.0, %v3904
    %v3906 = vpop.f32.mrf.mxu0
    %v3907 = vpop.f32.mrf.mxu0
    %v3908 = vpop.f32.mrf.mxu0
    %3909 = vdwg.mxu0
    %v3911 = vsel %vm378, %v3201, 0
    %v3914 = vsel %vm382, %v3857, 0
    %3916 = vmatprep.subr.bf16.mxu0 0
    %3917 = vmatpush1.bf16.msra.mxu0 0
    %3918 = vmatprep.subr.bf16.mxu0 0
    %3919 = vmatpush1.bf16.msra.mxu0 0
    %3920 = vmatprep.subr.bf16.mxu0 0
    %3921 = vmatpush1.bf16.msra.mxu0 0
    %3922 = vmatprep.subr.bf16.mxu0 0
    %3923 = vmatpush1.bf16.msra.mxu0 0
    %3924 = vmatprep.subr.bf16.mxu0 0
    %3925 = vmatpush1.bf16.msra.mxu0 0
    %3926 = vmatprep.subr.bf16.mxu0 0
    %3927 = vmatpush1.bf16.msra.mxu0 0
    %3928 = vmatprep.subr.bf16.mxu0 0
    %3929 = vmatpush1.bf16.msra.mxu0 0
    %3930 = vmatprep.subr.bf16.mxu0 0
    %3931 = vmatpush1.bf16.msra.mxu0 %v3914
    %3932 = vmatprep.subr.bf16.mxu0 0
    %3933 = vmatpush2.bf16.msra.mxu0 0
    %3934 = vmatprep.subr.bf16.mxu0 0
    %3935 = vmatpush2.bf16.msra.mxu0 0
    %3936 = vmatprep.subr.bf16.mxu0 0
    %3937 = vmatpush2.bf16.msra.mxu0 0
    %3938 = vmatprep.subr.bf16.mxu0 0
    %3939 = vmatpush2.bf16.msra.mxu0 0
    %3940 = vmatprep.subr.bf16.mxu0 0
    %3941 = vmatpush2.bf16.msra.mxu0 0
    %3942 = vmatprep.subr.bf16.mxu0 0
    %3943 = vmatpush2.bf16.msra.mxu0 0
    %3944 = vmatprep.subr.bf16.mxu0 0
    %3945 = vmatpush2.bf16.msra.mxu0 0
    %3946 = vmatprep.subr.bf16.mxu0 0
    %3947 = vmatpush2.bf16.msra.mxu0 0
    %3948 = vmatprep.mubr.bf16.mxu0 0
    %3949 = vmatmul.mubr.bf16.gmra.mxu0 %v3911
    %v3950 = vpop.f32.mrf.mxu0
    %v3951 = vadd.f32 0.0, %v3950
    %v3952 = vpop.f32.mrf.mxu0
    %v3953 = vpop.f32.mrf.mxu0
    %v3954 = vpop.f32.mrf.mxu0
    %3955 = vdwg.mxu0
    %v3957 = vsel %vm378, %v3202, 0
    %v3960 = vsel %vm382, %v3858, 0
    %3962 = vmatprep.subr.bf16.mxu0 0
    %3963 = vmatpush1.bf16.msra.mxu0 0
    %3964 = vmatprep.subr.bf16.mxu0 0
    %3965 = vmatpush1.bf16.msra.mxu0 0
    %3966 = vmatprep.subr.bf16.mxu0 0
    %3967 = vmatpush1.bf16.msra.mxu0 0
    %3968 = vmatprep.subr.bf16.mxu0 0
    %3969 = vmatpush1.bf16.msra.mxu0 0
    %3970 = vmatprep.subr.bf16.mxu0 0
    %3971 = vmatpush1.bf16.msra.mxu0 0
    %3972 = vmatprep.subr.bf16.mxu0 0
    %3973 = vmatpush1.bf16.msra.mxu0 0
    %3974 = vmatprep.subr.bf16.mxu0 0
    %3975 = vmatpush1.bf16.msra.mxu0 0
    %3976 = vmatprep.subr.bf16.mxu0 0
    %3977 = vmatpush1.bf16.msra.mxu0 %v3960
    %3978 = vmatprep.subr.bf16.mxu0 0
    %3979 = vmatpush2.bf16.msra.mxu0 0
    %3980 = vmatprep.subr.bf16.mxu0 0
    %3981 = vmatpush2.bf16.msra.mxu0 0
    %3982 = vmatprep.subr.bf16.mxu0 0
    %3983 = vmatpush2.bf16.msra.mxu0 0
    %3984 = vmatprep.subr.bf16.mxu0 0
    %3985 = vmatpush2.bf16.msra.mxu0 0
    %3986 = vmatprep.subr.bf16.mxu0 0
    %3987 = vmatpush2.bf16.msra.mxu0 0
    %3988 = vmatprep.subr.bf16.mxu0 0
    %3989 = vmatpush2.bf16.msra.mxu0 0
    %3990 = vmatprep.subr.bf16.mxu0 0
    %3991 = vmatpush2.bf16.msra.mxu0 0
    %3992 = vmatprep.subr.bf16.mxu0 0
    %3993 = vmatpush2.bf16.msra.mxu0 0
    %3994 = vmatprep.mubr.bf16.mxu0 0
    %3995 = vmatmul.mubr.bf16.gmra.mxu0 %v3957
    %v3996 = vpop.f32.mrf.mxu0
    %v3997 = vadd.f32 0.0, %v3996
    %v3998 = vpop.f32.mrf.mxu0
    %v3999 = vpop.f32.mrf.mxu0
    %v4000 = vpop.f32.mrf.mxu0
    %4001 = vdwg.mxu0
    %v4003 = vsel %vm378, %v3203, 0
    %v4006 = vsel %vm382, %v3859, 0
    %4008 = vmatprep.subr.bf16.mxu0 0
    %4009 = vmatpush1.bf16.msra.mxu0 0
    %4010 = vmatprep.subr.bf16.mxu0 0
    %4011 = vmatpush1.bf16.msra.mxu0 0
    %4012 = vmatprep.subr.bf16.mxu0 0
    %4013 = vmatpush1.bf16.msra.mxu0 0
    %4014 = vmatprep.subr.bf16.mxu0 0
    %4015 = vmatpush1.bf16.msra.mxu0 0
    %4016 = vmatprep.subr.bf16.mxu0 0
    %4017 = vmatpush1.bf16.msra.mxu0 0
    %4018 = vmatprep.subr.bf16.mxu0 0
    %4019 = vmatpush1.bf16.msra.mxu0 0
    %4020 = vmatprep.subr.bf16.mxu0 0
    %4021 = vmatpush1.bf16.msra.mxu0 0
    %4022 = vmatprep.subr.bf16.mxu0 0
    %4023 = vmatpush1.bf16.msra.mxu0 %v4006
    %4024 = vmatprep.subr.bf16.mxu0 0
    %4025 = vmatpush2.bf16.msra.mxu0 0
    %4026 = vmatprep.subr.bf16.mxu0 0
    %4027 = vmatpush2.bf16.msra.mxu0 0
    %4028 = vmatprep.subr.bf16.mxu0 0
    %4029 = vmatpush2.bf16.msra.mxu0 0
    %4030 = vmatprep.subr.bf16.mxu0 0
    %4031 = vmatpush2.bf16.msra.mxu0 0
    %4032 = vmatprep.subr.bf16.mxu0 0
    %4033 = vmatpush2.bf16.msra.mxu0 0
    %4034 = vmatprep.subr.bf16.mxu0 0
    %4035 = vmatpush2.bf16.msra.mxu0 0
    %4036 = vmatprep.subr.bf16.mxu0 0
    %4037 = vmatpush2.bf16.msra.mxu0 0
    %4038 = vmatprep.subr.bf16.mxu0 0
    %4039 = vmatpush2.bf16.msra.mxu0 0
    %4040 = vmatprep.mubr.bf16.mxu0 0
    %4041 = vmatmul.mubr.bf16.gmra.mxu0 %v4003
    %v4042 = vpop.f32.mrf.mxu0
    %v4043 = vadd.f32 0.0, %v4042
    %v4044 = vpop.f32.mrf.mxu0
    %v4045 = vpop.f32.mrf.mxu0
    %v4046 = vpop.f32.mrf.mxu0
    %4047 = vdwg.mxu0
    %v4049 = vsel %vm378, %v3212, 0
    %v4052 = vsel %vm382, %v3860, 0
    %4054 = vmatprep.subr.bf16.mxu0 0
    %4055 = vmatpush1.bf16.msra.mxu0 0
    %4056 = vmatprep.subr.bf16.mxu0 0
    %4057 = vmatpush1.bf16.msra.mxu0 0
    %4058 = vmatprep.subr.bf16.mxu0 0
    %4059 = vmatpush1.bf16.msra.mxu0 0
    %4060 = vmatprep.subr.bf16.mxu0 0
    %4061 = vmatpush1.bf16.msra.mxu0 0
    %4062 = vmatprep.subr.bf16.mxu0 0
    %4063 = vmatpush1.bf16.msra.mxu0 0
    %4064 = vmatprep.subr.bf16.mxu0 0
    %4065 = vmatpush1.bf16.msra.mxu0 0
    %4066 = vmatprep.subr.bf16.mxu0 0
    %4067 = vmatpush1.bf16.msra.mxu0 0
    %4068 = vmatprep.subr.bf16.mxu0 0
    %4069 = vmatpush1.bf16.msra.mxu0 %v4052
    %4070 = vmatprep.subr.bf16.mxu0 0
    %4071 = vmatpush2.bf16.msra.mxu0 0
    %4072 = vmatprep.subr.bf16.mxu0 0
    %4073 = vmatpush2.bf16.msra.mxu0 0
    %4074 = vmatprep.subr.bf16.mxu0 0
    %4075 = vmatpush2.bf16.msra.mxu0 0
    %4076 = vmatprep.subr.bf16.mxu0 0
    %4077 = vmatpush2.bf16.msra.mxu0 0
    %4078 = vmatprep.subr.bf16.mxu0 0
    %4079 = vmatpush2.bf16.msra.mxu0 0
    %4080 = vmatprep.subr.bf16.mxu0 0
    %4081 = vmatpush2.bf16.msra.mxu0 0
    %4082 = vmatprep.subr.bf16.mxu0 0
    %4083 = vmatpush2.bf16.msra.mxu0 0
    %4084 = vmatprep.subr.bf16.mxu0 0
    %4085 = vmatpush2.bf16.msra.mxu0 0
    %4086 = vmatprep.mubr.bf16.mxu0 0
    %4087 = vmatmul.mubr.bf16.gmra.mxu0 %v4049
    %v4088 = vpop.f32.mrf.mxu0
    %v4089 = vadd.f32 0.0, %v4088
    %v4090 = vpop.f32.mrf.mxu0
    %v4091 = vpop.f32.mrf.mxu0
    %v4092 = vpop.f32.mrf.mxu0
    %4093 = vdwg.mxu0
    %v4095 = vsel %vm378, %v3213, 0
    %v4098 = vsel %vm382, %v3861, 0
    %4100 = vmatprep.subr.bf16.mxu0 0
    %4101 = vmatpush1.bf16.msra.mxu0 0
    %4102 = vmatprep.subr.bf16.mxu0 0
    %4103 = vmatpush1.bf16.msra.mxu0 0
    %4104 = vmatprep.subr.bf16.mxu0 0
    %4105 = vmatpush1.bf16.msra.mxu0 0
    %4106 = vmatprep.subr.bf16.mxu0 0
    %4107 = vmatpush1.bf16.msra.mxu0 0
    %4108 = vmatprep.subr.bf16.mxu0 0
    %4109 = vmatpush1.bf16.msra.mxu0 0
    %4110 = vmatprep.subr.bf16.mxu0 0
    %4111 = vmatpush1.bf16.msra.mxu0 0
    %4112 = vmatprep.subr.bf16.mxu0 0
    %4113 = vmatpush1.bf16.msra.mxu0 0
    %4114 = vmatprep.subr.bf16.mxu0 0
    %4115 = vmatpush1.bf16.msra.mxu0 %v4098
    %4116 = vmatprep.subr.bf16.mxu0 0
    %4117 = vmatpush2.bf16.msra.mxu0 0
    %4118 = vmatprep.subr.bf16.mxu0 0
    %4119 = vmatpush2.bf16.msra.mxu0 0
    %4120 = vmatprep.subr.bf16.mxu0 0
    %4121 = vmatpush2.bf16.msra.mxu0 0
    %4122 = vmatprep.subr.bf16.mxu0 0
    %4123 = vmatpush2.bf16.msra.mxu0 0
    %4124 = vmatprep.subr.bf16.mxu0 0
    %4125 = vmatpush2.bf16.msra.mxu0 0
    %4126 = vmatprep.subr.bf16.mxu0 0
    %4127 = vmatpush2.bf16.msra.mxu0 0
    %4128 = vmatprep.subr.bf16.mxu0 0
    %4129 = vmatpush2.bf16.msra.mxu0 0
    %4130 = vmatprep.subr.bf16.mxu0 0
    %4131 = vmatpush2.bf16.msra.mxu0 0
    %4132 = vmatprep.mubr.bf16.mxu0 0
    %4133 = vmatmul.mubr.bf16.gmra.mxu0 %v4095
    %v4134 = vpop.f32.mrf.mxu0
    %v4135 = vadd.f32 0.0, %v4134
    %v4136 = vpop.f32.mrf.mxu0
    %v4137 = vpop.f32.mrf.mxu0
    %v4138 = vpop.f32.mrf.mxu0
    %4139 = vdwg.mxu0
    %v4141 = vsel %vm378, %v3214, 0
    %v4144 = vsel %vm382, %v3862, 0
    %4146 = vmatprep.subr.bf16.mxu0 0
    %4147 = vmatpush1.bf16.msra.mxu0 0
    %4148 = vmatprep.subr.bf16.mxu0 0
    %4149 = vmatpush1.bf16.msra.mxu0 0
    %4150 = vmatprep.subr.bf16.mxu0 0
    %4151 = vmatpush1.bf16.msra.mxu0 0
    %4152 = vmatprep.subr.bf16.mxu0 0
    %4153 = vmatpush1.bf16.msra.mxu0 0
    %4154 = vmatprep.subr.bf16.mxu0 0
    %4155 = vmatpush1.bf16.msra.mxu0 0
    %4156 = vmatprep.subr.bf16.mxu0 0
    %4157 = vmatpush1.bf16.msra.mxu0 0
    %4158 = vmatprep.subr.bf16.mxu0 0
    %4159 = vmatpush1.bf16.msra.mxu0 0
    %4160 = vmatprep.subr.bf16.mxu0 0
    %4161 = vmatpush1.bf16.msra.mxu0 %v4144
    %4162 = vmatprep.subr.bf16.mxu0 0
    %4163 = vmatpush2.bf16.msra.mxu0 0
    %4164 = vmatprep.subr.bf16.mxu0 0
    %4165 = vmatpush2.bf16.msra.mxu0 0
    %4166 = vmatprep.subr.bf16.mxu0 0
    %4167 = vmatpush2.bf16.msra.mxu0 0
    %4168 = vmatprep.subr.bf16.mxu0 0
    %4169 = vmatpush2.bf16.msra.mxu0 0
    %4170 = vmatprep.subr.bf16.mxu0 0
    %4171 = vmatpush2.bf16.msra.mxu0 0
    %4172 = vmatprep.subr.bf16.mxu0 0
    %4173 = vmatpush2.bf16.msra.mxu0 0
    %4174 = vmatprep.subr.bf16.mxu0 0
    %4175 = vmatpush2.bf16.msra.mxu0 0
    %4176 = vmatprep.subr.bf16.mxu0 0
    %4177 = vmatpush2.bf16.msra.mxu0 0
    %4178 = vmatprep.mubr.bf16.mxu0 0
    %4179 = vmatmul.mubr.bf16.gmra.mxu0 %v4141
    %v4180 = vpop.f32.mrf.mxu0
    %v4181 = vadd.f32 0.0, %v4180
    %v4182 = vpop.f32.mrf.mxu0
    %v4183 = vpop.f32.mrf.mxu0
    %v4184 = vpop.f32.mrf.mxu0
    %4185 = vdwg.mxu0
    %v4187 = vsel %vm378, %v3215, 0
    %v4190 = vsel %vm382, %v3863, 0
    %4192 = vmatprep.subr.bf16.mxu0 0
    %4193 = vmatpush1.bf16.msra.mxu0 0
    %4194 = vmatprep.subr.bf16.mxu0 0
    %4195 = vmatpush1.bf16.msra.mxu0 0
    %4196 = vmatprep.subr.bf16.mxu0 0
    %4197 = vmatpush1.bf16.msra.mxu0 0
    %4198 = vmatprep.subr.bf16.mxu0 0
    %4199 = vmatpush1.bf16.msra.mxu0 0
    %4200 = vmatprep.subr.bf16.mxu0 0
    %4201 = vmatpush1.bf16.msra.mxu0 0
    %4202 = vmatprep.subr.bf16.mxu0 0
    %4203 = vmatpush1.bf16.msra.mxu0 0
    %4204 = vmatprep.subr.bf16.mxu0 0
    %4205 = vmatpush1.bf16.msra.mxu0 0
    %4206 = vmatprep.subr.bf16.mxu0 0
    %4207 = vmatpush1.bf16.msra.mxu0 %v4190
    %4208 = vmatprep.subr.bf16.mxu0 0
    %4209 = vmatpush2.bf16.msra.mxu0 0
    %4210 = vmatprep.subr.bf16.mxu0 0
    %4211 = vmatpush2.bf16.msra.mxu0 0
    %4212 = vmatprep.subr.bf16.mxu0 0
    %4213 = vmatpush2.bf16.msra.mxu0 0
    %4214 = vmatprep.subr.bf16.mxu0 0
    %4215 = vmatpush2.bf16.msra.mxu0 0
    %4216 = vmatprep.subr.bf16.mxu0 0
    %4217 = vmatpush2.bf16.msra.mxu0 0
    %4218 = vmatprep.subr.bf16.mxu0 0
    %4219 = vmatpush2.bf16.msra.mxu0 0
    %4220 = vmatprep.subr.bf16.mxu0 0
    %4221 = vmatpush2.bf16.msra.mxu0 0
    %4222 = vmatprep.subr.bf16.mxu0 0
    %4223 = vmatpush2.bf16.msra.mxu0 0
    %4224 = vmatprep.mubr.bf16.mxu0 0
    %4225 = vmatmul.mubr.bf16.gmra.mxu0 %v4187
    %v4226 = vpop.f32.mrf.mxu0
    %v4227 = vadd.f32 0.0, %v4226
    %v4228 = vpop.f32.mrf.mxu0
    %v4229 = vpop.f32.mrf.mxu0
    %v4230 = vpop.f32.mrf.mxu0
    %4231 = vdwg.mxu0
    %v4232 = vrcp.pop %v3806
    %v4233 = vrcp.pop %v3813
    %v4234 = vrcp.pop %v3820
    %v4235 = vrcp.pop %v3827
    %v4236 = vrcp.pop %v3834
    %v4237 = vrcp.pop %v3841
    %v4238 = vrcp.pop %v3848
    %v4239 = vrcp.pop %v3855
    %v4240 = vmul.f32 %v3905, %v4232
    %v4241 = vmul.f32 %v3951, %v4233
    %v4242 = vmul.f32 %v3997, %v4234
    %v4243 = vmul.f32 %v4043, %v4235
    %v4244 = vmul.f32 %v4089, %v4236
    %v4245 = vmul.f32 %v4135, %v4237
    %v4246 = vmul.f32 %v4181, %v4238
    %v4247 = vmul.f32 %v4227, %v4239
    %v4248 = vpack.c.bf16 %v4240, %v4240
    %v4249 = vpack.c.bf16 %v4241, %v4241
    %v4250 = vpack.c.bf16 %v4242, %v4242
    %v4251 = vpack.c.bf16 %v4243, %v4243
    %v4252 = vpack.c.bf16 %v4244, %v4244
    %v4253 = vpack.c.bf16 %v4245, %v4245
    %v4254 = vpack.c.bf16 %v4246, %v4246
    %v4255 = vpack.c.bf16 %v4247, %v4247
    %v4264 = vunpack.c.l.b16 %v4248
    %v4265 = vunpack.c.l.b16 %v4249
    %v4266 = vunpack.c.l.b16 %v4250
    %v4267 = vunpack.c.l.b16 %v4251
    %v4268 = vunpack.c.l.b16 %v4252
    %v4269 = vunpack.c.l.b16 %v4253
    %v4270 = vunpack.c.l.b16 %v4254
    %v4271 = vunpack.c.l.b16 %v4255
    %v4272 = vpack.c.b16 %v4265, %v4264
    %v4273 = vpack.c.b16 %v4267, %v4266
    %v4274 = vpack.c.b16 %v4269, %v4268
    %v4275 = vpack.c.b16 %v4271, %v4270
    %4280 = vxpose.xlu0.c.b16.start [1/8] %v4272, 128
    %4281 = vxpose.xlu0.c.b16.cont [2/8] %v4273, 128
    %4282 = vxpose.xlu0.c.b16.cont [3/8] 0, 128
    %4283 = vxpose.xlu0.c.b16.cont [4/8] 0, 128
    %4284 = vxpose.xlu0.c.b16.cont [5/8] 0, 128
    %4285 = vxpose.xlu0.c.b16.cont [6/8] 0, 128
    %4286 = vxpose.xlu0.c.b16.cont [7/8] 0, 128
    %4287 = vxpose.xlu0.c.b16.end [8/8] 0, 128
    %v4288 = vpop.trf.xlu0
    %v4289 = vpop.trf.xlu0
    %v4290 = vpop.trf.xlu0
    %v4291 = vpop.trf.xlu0
    %v4292 = vpop.trf.xlu0
    %v4293 = vpop.trf.xlu0
    %v4294 = vpop.trf.xlu0
    %v4295 = vpop.trf.xlu0
    %4296 = vxpose.xlu0.c.b16.start [1/8] %v4274, 128
    %4297 = vxpose.xlu0.c.b16.cont [2/8] %v4275, 128
    %4298 = vxpose.xlu0.c.b16.cont [3/8] 0, 128
    %4299 = vxpose.xlu0.c.b16.cont [4/8] 0, 128
    %4300 = vxpose.xlu0.c.b16.cont [5/8] 0, 128
    %4301 = vxpose.xlu0.c.b16.cont [6/8] 0, 128
    %4302 = vxpose.xlu0.c.b16.cont [7/8] 0, 128
    %4303 = vxpose.xlu0.c.b16.end [8/8] 0, 128
    %v4304 = vpop.trf.xlu0
    %v4305 = vpop.trf.xlu0
    %v4306 = vpop.trf.xlu0
    %v4307 = vpop.trf.xlu0
    %v4308 = vpop.trf.xlu0
    %v4309 = vpop.trf.xlu0
    %v4310 = vpop.trf.xlu0
    %v4311 = vpop.trf.xlu0
    %v4314 = vunpack.c.l.b16 %v4288
    %v4315 = vunpack.c.l.b16 %v4304
    %v4316 = vpack.c.b16 %v4315, %v4314
    %v4318 = vsel %vm97, %v4316, 0
    %4320 = vmatprep.subr.bf16.mxu0 0
    %4321 = vmatpush1.bf16.msra.mxu0 0
    %4322 = vmatprep.subr.bf16.mxu0 0
    %4323 = vmatpush1.bf16.msra.mxu0 0
    %4324 = vmatprep.subr.bf16.mxu0 0
    %4325 = vmatpush1.bf16.msra.mxu0 0
    %4326 = vmatprep.subr.bf16.mxu0 0
    %4327 = vmatpush1.bf16.msra.mxu0 0
    %4328 = vmatprep.subr.bf16.mxu0 0
    %4329 = vmatpush1.bf16.msra.mxu0 0
    %4330 = vmatprep.subr.bf16.mxu0 0
    %4331 = vmatpush1.bf16.msra.mxu0 0
    %4332 = vmatprep.subr.bf16.mxu0 0
    %4333 = vmatpush1.bf16.msra.mxu0 %v1358
    %4334 = vmatprep.subr.bf16.mxu0 0
    %4335 = vmatpush1.bf16.msra.mxu0 %v1357
    %4336 = vmatprep.subr.bf16.mxu0 0
    %4337 = vmatpush2.bf16.msra.mxu0 0
    %4338 = vmatprep.subr.bf16.mxu0 0
    %4339 = vmatpush2.bf16.msra.mxu0 0
    %4340 = vmatprep.subr.bf16.mxu0 0
    %4341 = vmatpush2.bf16.msra.mxu0 0
    %4342 = vmatprep.subr.bf16.mxu0 0
    %4343 = vmatpush2.bf16.msra.mxu0 0
    %4344 = vmatprep.subr.bf16.mxu0 0
    %4345 = vmatpush2.bf16.msra.mxu0 0
    %4346 = vmatprep.subr.bf16.mxu0 0
    %4347 = vmatpush2.bf16.msra.mxu0 0
    %4348 = vmatprep.subr.bf16.mxu0 0
    %4349 = vmatpush2.bf16.msra.mxu0 0
    %4350 = vmatprep.subr.bf16.mxu0 0
    %4351 = vmatpush2.bf16.msra.mxu0 0
    %4352 = vmatprep.mubr.bf16.mxu0 0
    %4353 = vmatmul.mubr.bf16.gmra.mxu0 %v4318
    %v4354 = vpop.f32.mrf.mxu0
    %v4355 = vadd.f32 %v1343, %v4354
    %v4356 = vpop.f32.mrf.mxu0
    %v4357 = vpop.f32.mrf.mxu0
    %v4358 = vadd.f32 %v1343, %v4357
    %v4359 = vpop.f32.mrf.mxu0
    %4360 = vdwg.mxu0
    %v4361 = vadd.f32 %v4355, %v3069
    %v4362 = vadd.f32 %v4358, %v3070
    %v4363 = vsel %vm97, %v4361, 0.0
    %4364 = vadd.xlane.f32.xlu0 %v4363
    %v4365 = vpop.xlane.xlu0 %4364
    %v4366 = vsel %vm97, %v4362, 0.0
    %4367 = vadd.xlane.f32.xlu0 %v4366
    %v4368 = vpop.xlane.xlu0 %4367
    %v4369 = vmul.f32 %v4365, %v1413
    %v4370 = vmul.f32 %v4368, %v1413
    %v4371 = vsub.f32 %v4361, %v4369
    %v4372 = vsub.f32 %v4362, %v4370
    %v4373 = vmul.f32 %v4371, %v4371
    %v4374 = vmul.f32 %v4372, %v4372
    %v4375 = vsel %vm97, %v4373, 0.0
    %4376 = vadd.xlane.f32.xlu0 %v4375
    %v4377 = vpop.xlane.xlu0 %4376
    %v4378 = vsel %vm97, %v4374, 0.0
    %4379 = vadd.xlane.f32.xlu0 %v4378
    %v4380 = vpop.xlane.xlu0 %4379
    %v4381 = vmul.f32 %v4377, %v1413
    %v4382 = vmul.f32 %v4380, %v1413
    %v4383 = vadd.f32 %v4381, 1e-05
    %v4384 = vadd.f32 %v4382, 1e-05
    %v4385 = vrsqrt.pop %v4383
    %v4386 = vrsqrt.pop %v4384
    %v4387 = vmul.f32 %v4371, %v4385
    %v4388 = vmul.f32 %v4372, %v4386
    %v4389 = vmul.f32 %v4387, %v1437
    %v4390 = vmul.f32 %v4388, %v1437
    %v4391 = vadd.f32 %v4389, %v1443
    %v4392 = vadd.f32 %v4390, %v1443
    %v4393 = vpack.c.bf16 %v4392, %v4391
    %v4395 = vsel %vm97, %v4393, 0
    %4397 = vmatprep.subr.bf16.mxu0 0
    %4398 = vmatpush1.bf16.msra.mxu0 0
    %4399 = vmatprep.subr.bf16.mxu0 0
    %4400 = vmatpush1.bf16.msra.mxu0 0
    %4401 = vmatprep.subr.bf16.mxu0 0
    %4402 = vmatpush1.bf16.msra.mxu0 0
    %4403 = vmatprep.subr.bf16.mxu0 0
    %4404 = vmatpush1.bf16.msra.mxu0 0
    %4405 = vmatprep.subr.bf16.mxu0 0
    %4406 = vmatpush1.bf16.msra.mxu0 0
    %4407 = vmatprep.subr.bf16.mxu0 0
    %4408 = vmatpush1.bf16.msra.mxu0 0
    %4409 = vmatprep.subr.bf16.mxu0 0
    %4410 = vmatpush1.bf16.msra.mxu0 %v1462
    %4411 = vmatprep.subr.bf16.mxu0 0
    %4412 = vmatpush1.bf16.msra.mxu0 %v1461
    %4413 = vmatprep.subr.bf16.mxu0 0
    %4414 = vmatpush2.bf16.msra.mxu0 0
    %4415 = vmatprep.subr.bf16.mxu0 0
    %4416 = vmatpush2.bf16.msra.mxu0 0
    %4417 = vmatprep.subr.bf16.mxu0 0
    %4418 = vmatpush2.bf16.msra.mxu0 0
    %4419 = vmatprep.subr.bf16.mxu0 0
    %4420 = vmatpush2.bf16.msra.mxu0 0
    %4421 = vmatprep.subr.bf16.mxu0 0
    %4422 = vmatpush2.bf16.msra.mxu0 0
    %4423 = vmatprep.subr.bf16.mxu0 0
    %4424 = vmatpush2.bf16.msra.mxu0 0
    %4425 = vmatprep.subr.bf16.mxu0 0
    %4426 = vmatpush2.bf16.msra.mxu0 0
    %4427 = vmatprep.subr.bf16.mxu0 0
    %4428 = vmatpush2.bf16.msra.mxu0 0
    %4429 = vmatprep.mubr.bf16.mxu0 0
    %4430 = vmatmul.mubr.bf16.gmra.mxu0 %v4395
    %v4431 = vpop.f32.mrf.mxu0
    %v4432 = vadd.f32 %v1451, %v4431
    %v4433 = vpop.f32.mrf.mxu0
    %v4434 = vpop.f32.mrf.mxu0
    %v4435 = vadd.f32 %v1451, %v4434
    %v4436 = vpop.f32.mrf.mxu0
    %4437 = vdwg.mxu0
    %v4438 = vmax.f32 %v4432, 0.0
    %v4439 = vmax.f32 %v4435, 0.0
    %v4440 = vpack.c.bf16 %v4439, %v4438
    %v4442 = vsel %vm1540, %v4440, 0
    %4444 = vmatprep.subr.bf16.mxu0 0
    %4445 = vmatpush1.bf16.msra.mxu0 0
    %4446 = vmatprep.subr.bf16.mxu0 0
    %4447 = vmatpush1.bf16.msra.mxu0 0
    %4448 = vmatprep.subr.bf16.mxu0 0
    %4449 = vmatpush1.bf16.msra.mxu0 0
    %4450 = vmatprep.subr.bf16.mxu0 0
    %4451 = vmatpush1.bf16.msra.mxu0 0
    %4452 = vmatprep.subr.bf16.mxu0 0
    %4453 = vmatpush1.bf16.msra.mxu0 %v1535
    %4454 = vmatprep.subr.bf16.mxu0 0
    %4455 = vmatpush1.bf16.msra.mxu0 %v1534
    %4456 = vmatprep.subr.bf16.mxu0 0
    %4457 = vmatpush1.bf16.msra.mxu0 %v1533
    %4458 = vmatprep.subr.bf16.mxu0 0
    %4459 = vmatpush1.bf16.msra.mxu0 %v1532
    %4460 = vmatprep.subr.bf16.mxu0 0
    %4461 = vmatpush2.bf16.msra.mxu0 0
    %4462 = vmatprep.subr.bf16.mxu0 0
    %4463 = vmatpush2.bf16.msra.mxu0 0
    %4464 = vmatprep.subr.bf16.mxu0 0
    %4465 = vmatpush2.bf16.msra.mxu0 0
    %4466 = vmatprep.subr.bf16.mxu0 0
    %4467 = vmatpush2.bf16.msra.mxu0 0
    %4468 = vmatprep.subr.bf16.mxu0 0
    %4469 = vmatpush2.bf16.msra.mxu0 0
    %4470 = vmatprep.subr.bf16.mxu0 0
    %4471 = vmatpush2.bf16.msra.mxu0 0
    %4472 = vmatprep.subr.bf16.mxu0 0
    %4473 = vmatpush2.bf16.msra.mxu0 0
    %4474 = vmatprep.subr.bf16.mxu0 0
    %4475 = vmatpush2.bf16.msra.mxu0 0
    %4476 = vmatprep.mubr.bf16.mxu0 0
    %4477 = vmatmul.mubr.bf16.gmra.mxu0 %v4442
    %v4478 = vpop.f32.mrf.mxu0
    %v4479 = vadd.f32 %v1515, %v4478
    %v4480 = vpop.f32.mrf.mxu0
    %v4481 = vpop.f32.mrf.mxu0
    %v4482 = vadd.f32 %v1515, %v4481
    %v4483 = vpop.f32.mrf.mxu0
    %4484 = vdwg.mxu0
    %v4485 = vadd.f32 %v4479, %v4391
    %v4486 = vadd.f32 %v4482, %v4392
    %v4487 = vsel %vm97, %v4485, 0.0
    %4488 = vadd.xlane.f32.xlu0 %v4487
    %v4489 = vpop.xlane.xlu0 %4488
    %v4490 = vsel %vm97, %v4486, 0.0
    %4491 = vadd.xlane.f32.xlu0 %v4490
    %v4492 = vpop.xlane.xlu0 %4491
    %v4493 = vmul.f32 %v4489, %v1413
    %v4494 = vmul.f32 %v4492, %v1413
    %v4495 = vsub.f32 %v4485, %v4493
    %v4496 = vsub.f32 %v4486, %v4494
    %v4497 = vmul.f32 %v4495, %v4495
    %v4498 = vmul.f32 %v4496, %v4496
    %v4499 = vsel %vm97, %v4497, 0.0
    %4500 = vadd.xlane.f32.xlu0 %v4499
    %v4501 = vpop.xlane.xlu0 %4500
    %v4502 = vsel %vm97, %v4498, 0.0
    %4503 = vadd.xlane.f32.xlu0 %v4502
    %v4504 = vpop.xlane.xlu0 %4503
    %v4505 = vmul.f32 %v4501, %v1413
    %v4506 = vmul.f32 %v4504, %v1413
    %v4507 = vadd.f32 %v4505, 1e-05
    %v4508 = vadd.f32 %v4506, 1e-05
    %v4509 = vrsqrt.pop %v4507
    %v4510 = vrsqrt.pop %v4508
    %v4511 = vmul.f32 %v4495, %v4509
    %v4512 = vmul.f32 %v4496, %v4510
    %v4513 = vmul.f32 %v4511, %v1616
    %v4514 = vmul.f32 %v4512, %v1616
    %v4515 = vadd.f32 %v4513, %v1622
    %v4516 = vadd.f32 %v4514, %v1622
    %4517 = vst.msk [vmem:[#allocation7] sm:$0xff] %vm97, %v4515
    %4518 = vst.msk [vmem:[#allocation7 + $0x8] sm:$0xff] %vm97, %v4516
    // Predicated region
    $region42: #{tpu_custom_call.1} parent=1 // pred_check
      _
    $region43: #{tpu_custom_call.1} parent=1 // pred_check_branch
      %4520 = sbr.rel (0) target = $region45
    $region44: #{tpu_custom_call.1} parent=1 // pred_region
      %s4522 = ssub.s32 256, 256
      %4523 = vsyncadd [#allocation4], %s4522
      %s4524 = sshll.u32 [#allocation7], 4
      %s4525 = int_to_ptr.vmem [resolvable:$true] %s4524
      %4530 = dma.vmem_to_hbm [thread:$0]  %s4525, 256, %s8, [#allocation4], 128, 128, 8
    $region45: #{tpu_custom_call.1} parent=1 // pred_fallthru
      _
    // Predicated region
    $region46: #{tpu_custom_call.1} parent=1 // pred_check
      _
    $region47: #{tpu_custom_call.1} parent=1 // pred_check_branch
      %4532 = sbr.rel (0) target = $region49
    $region48: #{tpu_custom_call.1} parent=1 // pred_region
      %4533 = dma.done [#allocation4], 256
    $region49: #{tpu_custom_call.1} parent=1 // pred_fallthru
      _
    %4534 = vsyncpa [#allocation3], 1
    %4535 = vsyncpa [#allocation6], 1
    %4536 = vsyncpa [#allocation4], 1

// kernel: tpu_custom_call.1
$region0: #{tpu_custom_call.1}
  #allocation0 [shape = 'u32[]', space=smem, size = 0x4, offset = 0x4, fixed_abs, tag = 'smem constant byte address 0x4 - core index']
  #allocation1 [shape = 'u32[144,128]{1,0:T(1,128)}', space=vmem, size = 0x12000, scoped, tag = 'internal scratch']
  %s0 = inlined_call_operand.vmem [shape: f32[2,8,32], index: 0, kind: input, shape index: {}]
  %s1 = inlined_call_operand.hbm [shape: f32[8,32], index: 1, kind: input, shape index: {}]
  %s2 = inlined_call_operand.vmem [shape: bf16[32,96], index: 2, kind: input, shape index: {}]
  %s3 = inlined_call_operand.vmem [shape: bf16[32,32], index: 3, kind: input, shape index: {}]
  %s4 = inlined_call_operand.hbm [shape: bf16[32,64], index: 4, kind: input, shape index: {}]
  %s5 = inlined_call_operand.vmem [shape: bf16[64,32], index: 5, kind: input, shape index: {}]
  %s6 = inlined_call_operand.vmem [shape: f32[6,32], index: 6, kind: input, shape index: {}]
  %s7 = inlined_call_operand.vmem [shape: f32[1,64], index: 7, kind: input, shape index: {}]
  %s8 = inlined_call_operand.hbm [shape: f32[2,8,32], index: 8, kind: output, shape index: {}]
  %s9 = sld [smem:[#allocation0]]
  $region50: #{tpu_custom_call.1} parent=0
    _
  %s11 = ssub.s32 1, %s9
  %s12 = scalar_select 0, %s11, %s9
  $region1: #{tpu_custom_call.1} parent=0
    #allocation2 [shape = 'u8[4096]{0}', space=vmem, size = 0x1000, scoped, tag = 'input window, operand 1, single buffered']
    #allocation3 [shape = 's32[1]{0}', space=sflag, size = 0x4, scoped, tag = 'scoped memory for tpu_custom_call.1']
    #allocation4 [shape = 's32[1]{0}', space=sflag, size = 0x4, scoped, tag = 'scoped memory for tpu_custom_call.1']
    #allocation5 [shape = 'u8[8192]{0}', space=vmem, size = 0x2000, scoped, tag = 'input window, operand 4, single buffered']
    #allocation6 [shape = 's32[1]{0}', space=sflag, size = 0x4, scoped, tag = 'scoped memory for tpu_custom_call.1']
    #allocation7 [shape = 'u8[8192]{0}', space=vmem, size = 0x2000, scoped, tag = 'output window, operand 0, single buffered']
    %13 = vsyncpa [#allocation3], 0
    %14 = vsyncpa [#allocation6], 0
    %15 = vsyncpa [#allocation4], 0
    // Predicated region
    $region2: #{tpu_custom_call.1} parent=1 // pred_check
      _
    $region3: #{tpu_custom_call.1} parent=1 // pred_check_branch
      %17 = sbr.rel (0) target = $region5
    $region4: #{tpu_custom_call.1} parent=1 // pred_region
      _
    $region5: #{tpu_custom_call.1} parent=1 // pred_fallthru
      _
    // Predicated region
    $region6: #{tpu_custom_call.1} parent=1 // pred_check
      _
    $region7: #{tpu_custom_call.1} parent=1 // pred_check_branch
      %19 = sbr.rel (0) target = $region9
    $region8: #{tpu_custom_call.1} parent=1 // pred_region
      %s21 = ssub.s32 128, 128
      %22 = vsyncadd [#allocation3], %s21
      %s24 = sshll.u32 [#allocation2], 4
      %s25 = int_to_ptr.vmem [resolvable:$true] %s24
      %27 = dma.hbm_to_vmem [thread:$0]  %s1, 128, %s25, [#allocation3]
    $region9: #{tpu_custom_call.1} parent=1 // pred_fallthru
      _
    // Predicated region
    $region10: #{tpu_custom_call.1} parent=1 // pred_check
      _
    $region11: #{tpu_custom_call.1} parent=1 // pred_check_branch
      %29 = sbr.rel (0) target = $region13
    $region12: #{tpu_custom_call.1} parent=1 // pred_region
      _
    $region13: #{tpu_custom_call.1} parent=1 // pred_fallthru
      _
    // Predicated region
    $region14: #{tpu_custom_call.1} parent=1 // pred_check
      _
    $region15: #{tpu_custom_call.1} parent=1 // pred_check_branch
      %31 = sbr.rel (0) target = $region17
    $region16: #{tpu_custom_call.1} parent=1 // pred_region
      _
    $region17: #{tpu_custom_call.1} parent=1 // pred_fallthru
      _
    // Predicated region
    $region18: #{tpu_custom_call.1} parent=1 // pred_check
      _
    $region19: #{tpu_custom_call.1} parent=1 // pred_check_branch
      %33 = sbr.rel (0) target = $region21
    $region20: #{tpu_custom_call.1} parent=1 // pred_region
      %s35 = ssub.s32 256, 256
      %36 = vsyncadd [#allocation6], %s35
      %s37 = sshll.u32 [#allocation5], 4
      %s38 = int_to_ptr.vmem [resolvable:$true] %s37
      %43 = dma.hbm_to_vmem [thread:$0]  %s4, 256, %s38, [#allocation6], 64, 64, 4
    $region21: #{tpu_custom_call.1} parent=1 // pred_fallthru
      _
    // Predicated region
    $region22: #{tpu_custom_call.1} parent=1 // pred_check
      _
    $region23: #{tpu_custom_call.1} parent=1 // pred_check_branch
      %45 = sbr.rel (0) target = $region25
    $region24: #{tpu_custom_call.1} parent=1 // pred_region
      _
    $region25: #{tpu_custom_call.1} parent=1 // pred_fallthru
      _
    // Predicated region
    $region26: #{tpu_custom_call.1} parent=1 // pred_check
      _
    $region27: #{tpu_custom_call.1} parent=1 // pred_check_branch
      %47 = sbr.rel (0) target = $region29
    $region28: #{tpu_custom_call.1} parent=1 // pred_region
      _
    $region29: #{tpu_custom_call.1} parent=1 // pred_fallthru
      _
    // Predicated region
    $region30: #{tpu_custom_call.1} parent=1 // pred_check
      _
    $region31: #{tpu_custom_call.1} parent=1 // pred_check_branch
      %49 = sbr.rel (0) target = $region33
    $region32: #{tpu_custom_call.1} parent=1 // pred_region
      _
    $region33: #{tpu_custom_call.1} parent=1 // pred_fallthru
      _
    // Predicated region
    $region34: #{tpu_custom_call.1} parent=1 // pred_check
      _
    $region35: #{tpu_custom_call.1} parent=1 // pred_check_branch
      %51 = sbr.rel (0) target = $region37
    $region36: #{tpu_custom_call.1} parent=1 // pred_region
      %52 = dma.done [#allocation3], 128
    $region37: #{tpu_custom_call.1} parent=1 // pred_fallthru
      _
    // Predicated region
    $region38: #{tpu_custom_call.1} parent=1 // pred_check
      _
    $region39: #{tpu_custom_call.1} parent=1 // pred_check_branch
      %54 = sbr.rel (0) target = $region41
    $region40: #{tpu_custom_call.1} parent=1 // pred_region
      %55 = dma.done [#allocation6], 256
    $region41: #{tpu_custom_call.1} parent=1 // pred_fallthru
      _
    %v57 = vld [vmem:[%s0] sm:$0xff]
    %v58 = vld [vmem:[%s0 + $0x8] sm:$0xff]
    %v59 = vld [vmem:[#allocation2] sm:$0xff]
    %v60 = vadd.f32 %v57, %v59
    %v61 = vadd.f32 %v58, %v59
    %v62 = vld [vmem:[%s2] sm:$0xf]
    %v63 = vld [vmem:[%s2 + $0x4] sm:$0xf]
    %v64 = vld [vmem:[%s2 + $0x8] sm:$0xf]
    %v65 = vld [vmem:[%s2 + $0xc] sm:$0xf]
    %v66 = vld [vmem:[%s3] sm:$0xf]
    %v67 = vld [vmem:[%s3 + $0x4] sm:$0xf]
    %v68 = vld [vmem:[%s3 + $0x8] sm:$0xf]
    %v69 = vld [vmem:[%s3 + $0xc] sm:$0xf]
    %v70 = vld [vmem:[#allocation5] sm:$0xf]
    %v71 = vld [vmem:[#allocation5 + $0x4] sm:$0xf]
    %v72 = vld [vmem:[#allocation5 + $0x8] sm:$0xf]
    %v73 = vld [vmem:[#allocation5 + $0xc] sm:$0xf]
    %v74 = vld [vmem:[%s5] sm:$0xf]
    %v75 = vld [vmem:[%s5 + $0x4] sm:$0xf]
    %v76 = vld [vmem:[%s5 + $0x8] sm:$0xf]
    %v77 = vld [vmem:[%s5 + $0xc] sm:$0xf]
    %v78 = vld [vmem:[%s5 + $0x10] sm:$0xf]
    %v79 = vld [vmem:[%s5 + $0x14] sm:$0xf]
    %v80 = vld [vmem:[%s5 + $0x18] sm:$0xf]
    %v81 = vld [vmem:[%s5 + $0x1c] sm:$0xf]
    %v82 = vld [vmem:[%s7] sm:$0x1]
    %v83 = vld [vmem:[%s6] sm:$0x3f]
    %v84 = vpack.c.bf16 %v61, %v60
    %v89 = vunpack.c.l.b16 %v62
    %v90 = vunpack.c.l.b16 %v63
    %v91 = vunpack.c.l.b16 %v64
    %v92 = vunpack.c.l.b16 %v65
    %v93 = vpack.c.b16 %v90, %v89
    %v94 = vpack.c.b16 %v92, %v91
    %vm97 = vcmask 261120
    %v99 = vsel %vm97, %v84, 0
    %101 = vmatprep.subr.bf16.mxu0 0
    %102 = vmatpush1.bf16.msra.mxu0 0
    %103 = vmatprep.subr.bf16.mxu0 0
    %104 = vmatpush1.bf16.msra.mxu0 0
    %105 = vmatprep.subr.bf16.mxu0 0
    %106 = vmatpush1.bf16.msra.mxu0 0
    %107 = vmatprep.subr.bf16.mxu0 0
    %108 = vmatpush1.bf16.msra.mxu0 0
    %109 = vmatprep.subr.bf16.mxu0 0
    %110 = vmatpush1.bf16.msra.mxu0 0
    %111 = vmatprep.subr.bf16.mxu0 0
    %112 = vmatpush1.bf16.msra.mxu0 0
    %113 = vmatprep.subr.bf16.mxu0 0
    %114 = vmatpush1.bf16.msra.mxu0 %v94
    %115 = vmatprep.subr.bf16.mxu0 0
    %116 = vmatpush1.bf16.msra.mxu0 %v93
    %117 = vmatprep.subr.bf16.mxu0 0
    %118 = vmatpush2.bf16.msra.mxu0 0
    %119 = vmatprep.subr.bf16.mxu0 0
    %120 = vmatpush2.bf16.msra.mxu0 0
    %121 = vmatprep.subr.bf16.mxu0 0
    %122 = vmatpush2.bf16.msra.mxu0 0
    %123 = vmatprep.subr.bf16.mxu0 0
    %124 = vmatpush2.bf16.msra.mxu0 0
    %125 = vmatprep.subr.bf16.mxu0 0
    %126 = vmatpush2.bf16.msra.mxu0 0
    %127 = vmatprep.subr.bf16.mxu0 0
    %128 = vmatpush2.bf16.msra.mxu0 0
    %129 = vmatprep.subr.bf16.mxu0 0
    %130 = vmatpush2.bf16.msra.mxu0 0
    %131 = vmatprep.subr.bf16.mxu0 0
    %132 = vmatpush2.bf16.msra.mxu0 0
    %133 = vmatprep.mubr.bf16.mxu0 0
    %134 = vmatmul.mubr.bf16.gmra.mxu0 %v99
    %v135 = vpop.f32.mrf.mxu0
    %v136 = vadd.f32 0.0, %v135
    %v137 = vpop.f32.mrf.mxu0
    %v138 = vpop.f32.mrf.mxu0
    %v139 = vadd.f32 0.0, %v138
    %v140 = vpop.f32.mrf.mxu0
    %141 = vdwg.mxu0
    %v142 = vpack.c.bf16 %v139, %v136
    %v144 = vunpack.c.l.b16 %v142
    %v145 = vunpack.c.h.b16 %v142
    %v146 = vpack.c.b16 %v144, %v144
    %v147 = vpack.c.b16 %v145, %v145
    %150 = vxpose.xlu0.c.b16.start [1/8] %v146, 128
    %151 = vxpose.xlu0.c.b16.cont [2/8] 0, 128
    %152 = vxpose.xlu0.c.b16.cont [3/8] 0, 128
    %153 = vxpose.xlu0.c.b16.cont [4/8] 0, 128
    %154 = vxpose.xlu0.c.b16.cont [5/8] 0, 128
    %155 = vxpose.xlu0.c.b16.cont [6/8] 0, 128
    %156 = vxpose.xlu0.c.b16.cont [7/8] 0, 128
    %157 = vxpose.xlu0.c.b16.end [8/8] 0, 128
    %v158 = vpop.trf.xlu0
    %v159 = vpop.trf.xlu0
    %v160 = vpop.trf.xlu0
    %v161 = vpop.trf.xlu0
    %v162 = vpop.trf.xlu0
    %v163 = vpop.trf.xlu0
    %v164 = vpop.trf.xlu0
    %v165 = vpop.trf.xlu0
    %166 = vxpose.xlu0.c.b16.start [1/8] %v147, 128
    %167 = vxpose.xlu0.c.b16.cont [2/8] 0, 128
    %168 = vxpose.xlu0.c.b16.cont [3/8] 0, 128
    %169 = vxpose.xlu0.c.b16.cont [4/8] 0, 128
    %170 = vxpose.xlu0.c.b16.cont [5/8] 0, 128
    %171 = vxpose.xlu0.c.b16.cont [6/8] 0, 128
    %172 = vxpose.xlu0.c.b16.cont [7/8] 0, 128
    %173 = vxpose.xlu0.c.b16.end [8/8] 0, 128
    %v174 = vpop.trf.xlu0
    %v175 = vpop.trf.xlu0
    %v176 = vpop.trf.xlu0
    %v177 = vpop.trf.xlu0
    %v178 = vpop.trf.xlu0
    %v179 = vpop.trf.xlu0
    %v180 = vpop.trf.xlu0
    %v181 = vpop.trf.xlu0
    %v194 = vunpack.c.l.b16 %v158
    %v195 = vunpack.c.h.b16 %v158
    %v196 = vunpack.c.l.b16 %v159
    %v197 = vunpack.c.h.b16 %v159
    %v198 = vunpack.c.l.b16 %v160
    %v199 = vunpack.c.h.b16 %v160
    %v200 = vunpack.c.l.b16 %v161
    %v201 = vunpack.c.h.b16 %v161
    %v202 = vunpack.c.l.b16 %v162
    %v203 = vunpack.c.h.b16 %v162
    %v204 = vunpack.c.l.b16 %v163
    %v205 = vunpack.c.h.b16 %v163
    %v206 = vunpack.c.l.b16 %v174
    %v207 = vunpack.c.h.b16 %v174
    %v208 = vunpack.c.l.b16 %v175
    %v209 = vunpack.c.h.b16 %v175
    %v210 = vunpack.c.l.b16 %v176
    %v211 = vunpack.c.h.b16 %v176
    %v212 = vunpack.c.l.b16 %v177
    %v213 = vunpack.c.h.b16 %v177
    %v214 = vunpack.c.l.b16 %v178
    %v215 = vunpack.c.h.b16 %v178
    %v216 = vunpack.c.l.b16 %v179
    %v217 = vunpack.c.h.b16 %v179
    %v218 = vpack.c.b16 %v194, %v194
    %v219 = vpack.c.b16 %v195, %v195
    %v220 = vpack.c.b16 %v196, %v196
    %v221 = vpack.c.b16 %v197, %v197
    %v222 = vpack.c.b16 %v198, %v198
    %v223 = vpack.c.b16 %v199, %v199
    %v224 = vpack.c.b16 %v200, %v200
    %v225 = vpack.c.b16 %v201, %v201
    %v226 = vpack.c.b16 %v202, %v202
    %v227 = vpack.c.b16 %v203, %v203
    %v228 = vpack.c.b16 %v204, %v204
    %v229 = vpack.c.b16 %v205, %v205
    %v230 = vpack.c.b16 %v206, %v206
    %v231 = vpack.c.b16 %v207, %v207
    %v232 = vpack.c.b16 %v208, %v208
    %v233 = vpack.c.b16 %v209, %v209
    %v234 = vpack.c.b16 %v210, %v210
    %v235 = vpack.c.b16 %v211, %v211
    %v236 = vpack.c.b16 %v212, %v212
    %v237 = vpack.c.b16 %v213, %v213
    %v238 = vpack.c.b16 %v214, %v214
    %v239 = vpack.c.b16 %v215, %v215
    %v240 = vpack.c.b16 %v216, %v216
    %v241 = vpack.c.b16 %v217, %v217
    %250 = vxpose.xlu0.c.b16.start [1/8] %v222, 128
    %251 = vxpose.xlu0.c.b16.cont [2/8] 0, 128
    %252 = vxpose.xlu0.c.b16.cont [3/8] 0, 128
    %253 = vxpose.xlu0.c.b16.cont [4/8] 0, 128
    %254 = vxpose.xlu0.c.b16.cont [5/8] 0, 128
    %255 = vxpose.xlu0.c.b16.cont [6/8] 0, 128
    %256 = vxpose.xlu0.c.b16.cont [7/8] 0, 128
    %257 = vxpose.xlu0.c.b16.end [8/8] 0, 128
    %v258 = vpop.trf.xlu0
    %v259 = vpop.trf.xlu0
    %v260 = vpop.trf.xlu0
    %v261 = vpop.trf.xlu0
    %v262 = vpop.trf.xlu0
    %v263 = vpop.trf.xlu0
    %v264 = vpop.trf.xlu0
    %v265 = vpop.trf.xlu0
    %266 = vxpose.xlu0.c.b16.start [1/8] %v223, 128
    %267 = vxpose.xlu0.c.b16.cont [2/8] 0, 128
    %268 = vxpose.xlu0.c.b16.cont [3/8] 0, 128
    %269 = vxpose.xlu0.c.b16.cont [4/8] 0, 128
    %270 = vxpose.xlu0.c.b16.cont [5/8] 0, 128
    %271 = vxpose.xlu0.c.b16.cont [6/8] 0, 128
    %272 = vxpose.xlu0.c.b16.cont [7/8] 0, 128
    %273 = vxpose.xlu0.c.b16.end [8/8] 0, 128
    %v274 = vpop.trf.xlu0
    %v275 = vpop.trf.xlu0
    %v276 = vpop.trf.xlu0
    %v277 = vpop.trf.xlu0
    %v278 = vpop.trf.xlu0
    %v279 = vpop.trf.xlu0
    %v280 = vpop.trf.xlu0
    %v281 = vpop.trf.xlu0
    %282 = vxpose.xlu0.c.b16.start [1/8] %v224, 128
    %283 = vxpose.xlu0.c.b16.cont [2/8] 0, 128
    %284 = vxpose.xlu0.c.b16.cont [3/8] 0, 128
    %285 = vxpose.xlu0.c.b16.cont [4/8] 0, 128
    %286 = vxpose.xlu0.c.b16.cont [5/8] 0, 128
    %287 = vxpose.xlu0.c.b16.cont [6/8] 0, 128
    %288 = vxpose.xlu0.c.b16.cont [7/8] 0, 128
    %289 = vxpose.xlu0.c.b16.end [8/8] 0, 128
    %v290 = vpop.trf.xlu0
    %v291 = vpop.trf.xlu0
    %v292 = vpop.trf.xlu0
    %v293 = vpop.trf.xlu0
    %v294 = vpop.trf.xlu0
    %v295 = vpop.trf.xlu0
    %v296 = vpop.trf.xlu0
    %v297 = vpop.trf.xlu0
    %298 = vxpose.xlu0.c.b16.start [1/8] %v225, 128
    %299 = vxpose.xlu0.c.b16.cont [2/8] 0, 128
    %300 = vxpose.xlu0.c.b16.cont [3/8] 0, 128
    %301 = vxpose.xlu0.c.b16.cont [4/8] 0, 128
    %302 = vxpose.xlu0.c.b16.cont [5/8] 0, 128
    %303 = vxpose.xlu0.c.b16.cont [6/8] 0, 128
    %304 = vxpose.xlu0.c.b16.cont [7/8] 0, 128
    %305 = vxpose.xlu0.c.b16.end [8/8] 0, 128
    %v306 = vpop.trf.xlu0
    %v307 = vpop.trf.xlu0
    %v308 = vpop.trf.xlu0
    %v309 = vpop.trf.xlu0
    %v310 = vpop.trf.xlu0
    %v311 = vpop.trf.xlu0
    %v312 = vpop.trf.xlu0
    %v313 = vpop.trf.xlu0
    %314 = vxpose.xlu0.c.b16.start [1/8] %v234, 128
    %315 = vxpose.xlu0.c.b16.cont [2/8] 0, 128
    %316 = vxpose.xlu0.c.b16.cont [3/8] 0, 128
    %317 = vxpose.xlu0.c.b16.cont [4/8] 0, 128
    %318 = vxpose.xlu0.c.b16.cont [5/8] 0, 128
    %319 = vxpose.xlu0.c.b16.cont [6/8] 0, 128
    %320 = vxpose.xlu0.c.b16.cont [7/8] 0, 128
    %321 = vxpose.xlu0.c.b16.end [8/8] 0, 128
    %v322 = vpop.trf.xlu0
    %v323 = vpop.trf.xlu0
    %v324 = vpop.trf.xlu0
    %v325 = vpop.trf.xlu0
    %v326 = vpop.trf.xlu0
    %v327 = vpop.trf.xlu0
    %v328 = vpop.trf.xlu0
    %v329 = vpop.trf.xlu0
    %330 = vxpose.xlu0.c.b16.start [1/8] %v235, 128
    %331 = vxpose.xlu0.c.b16.cont [2/8] 0, 128
    %332 = vxpose.xlu0.c.b16.cont [3/8] 0, 128
    %333 = vxpose.xlu0.c.b16.cont [4/8] 0, 128
    %334 = vxpose.xlu0.c.b16.cont [5/8] 0, 128
    %335 = vxpose.xlu0.c.b16.cont [6/8] 0, 128
    %336 = vxpose.xlu0.c.b16.cont [7/8] 0, 128
    %337 = vxpose.xlu0.c.b16.end [8/8] 0, 128
    %v338 = vpop.trf.xlu0
    %v339 = vpop.trf.xlu0
    %v340 = vpop.trf.xlu0
    %v341 = vpop.trf.xlu0
    %v342 = vpop.trf.xlu0
    %v343 = vpop.trf.xlu0
    %v344 = vpop.trf.xlu0
    %v345 = vpop.trf.xlu0
    %346 = vxpose.xlu0.c.b16.start [1/8] %v236, 128
    %347 = vxpose.xlu0.c.b16.cont [2/8] 0, 128
    %348 = vxpose.xlu0.c.b16.cont [3/8] 0, 128
    %349 = vxpose.xlu0.c.b16.cont [4/8] 0, 128
    %350 = vxpose.xlu0.c.b16.cont [5/8] 0, 128
    %351 = vxpose.xlu0.c.b16.cont [6/8] 0, 128
    %352 = vxpose.xlu0.c.b16.cont [7/8] 0, 128
    %353 = vxpose.xlu0.c.b16.end [8/8] 0, 128
    %v354 = vpop.trf.xlu0
    %v355 = vpop.trf.xlu0
    %v356 = vpop.trf.xlu0
    %v357 = vpop.trf.xlu0
    %v358 = vpop.trf.xlu0
    %v359 = vpop.trf.xlu0
    %v360 = vpop.trf.xlu0
    %v361 = vpop.trf.xlu0
    %362 = vxpose.xlu0.c.b16.start [1/8] %v237, 128
    %363 = vxpose.xlu0.c.b16.cont [2/8] 0, 128
    %364 = vxpose.xlu0.c.b16.cont [3/8] 0, 128
    %365 = vxpose.xlu0.c.b16.cont [4/8] 0, 128
    %366 = vxpose.xlu0.c.b16.cont [5/8] 0, 128
    %367 = vxpose.xlu0.c.b16.cont [6/8] 0, 128
    %368 = vxpose.xlu0.c.b16.cont [7/8] 0, 128
    %369 = vxpose.xlu0.c.b16.end [8/8] 0, 128
    %v370 = vpop.trf.xlu0
    %v371 = vpop.trf.xlu0
    %v372 = vpop.trf.xlu0
    %v373 = vpop.trf.xlu0
    %v374 = vpop.trf.xlu0
    %v375 = vpop.trf.xlu0
    %v376 = vpop.trf.xlu0
    %v377 = vpop.trf.xlu0
    %vm378 = vcmask 64512
    %v380 = vsel %vm378, %v258, 0
    %vm382 = vcmask 1043456
    %v384 = vsel %vm382, %v218, 0
    %386 = vmatprep.subr.bf16.mxu0 0
    %387 = vmatpush1.bf16.msra.mxu0 0
    %388 = vmatprep.subr.bf16.mxu0 0
    %389 = vmatpush1.bf16.msra.mxu0 0
    %390 = vmatprep.subr.bf16.mxu0 0
    %391 = vmatpush1.bf16.msra.mxu0 0
    %392 = vmatprep.subr.bf16.mxu0 0
    %393 = vmatpush1.bf16.msra.mxu0 0
    %394 = vmatprep.subr.bf16.mxu0 0
    %395 = vmatpush1.bf16.msra.mxu0 0
    %396 = vmatprep.subr.bf16.mxu0 0
    %397 = vmatpush1.bf16.msra.mxu0 0
    %398 = vmatprep.subr.bf16.mxu0 0
    %399 = vmatpush1.bf16.msra.mxu0 0
    %400 = vmatprep.subr.bf16.mxu0 0
    %401 = vmatpush1.bf16.msra.mxu0 %v384
    %402 = vmatprep.subr.bf16.mxu0 0
    %403 = vmatpush2.bf16.msra.mxu0 0
    %404 = vmatprep.subr.bf16.mxu0 0
    %405 = vmatpush2.bf16.msra.mxu0 0
    %406 = vmatprep.subr.bf16.mxu0 0
    %407 = vmatpush2.bf16.msra.mxu0 0
    %408 = vmatprep.subr.bf16.mxu0 0
    %409 = vmatpush2.bf16.msra.mxu0 0
    %410 = vmatprep.subr.bf16.mxu0 0
    %411 = vmatpush2.bf16.msra.mxu0 0
    %412 = vmatprep.subr.bf16.mxu0 0
    %413 = vmatpush2.bf16.msra.mxu0 0
    %414 = vmatprep.subr.bf16.mxu0 0
    %415 = vmatpush2.bf16.msra.mxu0 0
    %416 = vmatprep.subr.bf16.mxu0 0
    %417 = vmatpush2.bf16.msra.mxu0 0
    %418 = vmatprep.mubr.bf16.mxu0 0
    %419 = vmatmul.mubr.bf16.gmra.mxu0 %v380
    %v420 = vpop.f32.mrf.mxu0
    %v421 = vadd.f32 0.0, %v420
    %v422 = vpop.f32.mrf.mxu0
    %v423 = vpop.f32.mrf.mxu0
    %v424 = vpop.f32.mrf.mxu0
    %425 = vdwg.mxu0
    %v427 = vsel %vm378, %v274, 0
    %v430 = vsel %vm382, %v219, 0
    %432 = vmatprep.subr.bf16.mxu0 0
    %433 = vmatpush1.bf16.msra.mxu0 0
    %434 = vmatprep.subr.bf16.mxu0 0
    %435 = vmatpush1.bf16.msra.mxu0 0
    %436 = vmatprep.subr.bf16.mxu0 0
    %437 = vmatpush1.bf16.msra.mxu0 0
    %438 = vmatprep.subr.bf16.mxu0 0
    %439 = vmatpush1.bf16.msra.mxu0 0
    %440 = vmatprep.subr.bf16.mxu0 0
    %441 = vmatpush1.bf16.msra.mxu0 0
    %442 = vmatprep.subr.bf16.mxu0 0
    %443 = vmatpush1.bf16.msra.mxu0 0
    %444 = vmatprep.subr.bf16.mxu0 0
    %445 = vmatpush1.bf16.msra.mxu0 0
    %446 = vmatprep.subr.bf16.mxu0 0
    %447 = vmatpush1.bf16.msra.mxu0 %v430
    %448 = vmatprep.subr.bf16.mxu0 0
    %449 = vmatpush2.bf16.msra.mxu0 0
    %450 = vmatprep.subr.bf16.mxu0 0
    %451 = vmatpush2.bf16.msra.mxu0 0
    %452 = vmatprep.subr.bf16.mxu0 0
    %453 = vmatpush2.bf16.msra.mxu0 0
    %454 = vmatprep.subr.bf16.mxu0 0
    %455 = vmatpush2.bf16.msra.mxu0 0
    %456 = vmatprep.subr.bf16.mxu0 0
    %457 = vmatpush2.bf16.msra.mxu0 0
    %458 = vmatprep.subr.bf16.mxu0 0
    %459 = vmatpush2.bf16.msra.mxu0 0
    %460 = vmatprep.subr.bf16.mxu0 0
    %461 = vmatpush2.bf16.msra.mxu0 0
    %462 = vmatprep.subr.bf16.mxu0 0
    %463 = vmatpush2.bf16.msra.mxu0 0
    %464 = vmatprep.mubr.bf16.mxu0 0
    %465 = vmatmul.mubr.bf16.gmra.mxu0 %v427
    %v466 = vpop.f32.mrf.mxu0
    %v467 = vadd.f32 0.0, %v466
    %v468 = vpop.f32.mrf.mxu0
    %v469 = vpop.f32.mrf.mxu0
    %v470 = vpop.f32.mrf.mxu0
    %471 = vdwg.mxu0
    %v473 = vsel %vm378, %v290, 0
    %v476 = vsel %vm382, %v220, 0
    %478 = vmatprep.subr.bf16.mxu0 0
    %479 = vmatpush1.bf16.msra.mxu0 0
    %480 = vmatprep.subr.bf16.mxu0 0
    %481 = vmatpush1.bf16.msra.mxu0 0
    %482 = vmatprep.subr.bf16.mxu0 0
    %483 = vmatpush1.bf16.msra.mxu0 0
    %484 = vmatprep.subr.bf16.mxu0 0
    %485 = vmatpush1.bf16.msra.mxu0 0
    %486 = vmatprep.subr.bf16.mxu0 0
    %487 = vmatpush1.bf16.msra.mxu0 0
    %488 = vmatprep.subr.bf16.mxu0 0
    %489 = vmatpush1.bf16.msra.mxu0 0
    %490 = vmatprep.subr.bf16.mxu0 0
    %491 = vmatpush1.bf16.msra.mxu0 0
    %492 = vmatprep.subr.bf16.mxu0 0
    %493 = vmatpush1.bf16.msra.mxu0 %v476
    %494 = vmatprep.subr.bf16.mxu0 0
    %495 = vmatpush2.bf16.msra.mxu0 0
    %496 = vmatprep.subr.bf16.mxu0 0
    %497 = vmatpush2.bf16.msra.mxu0 0
    %498 = vmatprep.subr.bf16.mxu0 0
    %499 = vmatpush2.bf16.msra.mxu0 0
    %500 = vmatprep.subr.bf16.mxu0 0
    %501 = vmatpush2.bf16.msra.mxu0 0
    %502 = vmatprep.subr.bf16.mxu0 0
    %503 = vmatpush2.bf16.msra.mxu0 0
    %504 = vmatprep.subr.bf16.mxu0 0
    %505 = vmatpush2.bf16.msra.mxu0 0
    %506 = vmatprep.subr.bf16.mxu0 0
    %507 = vmatpush2.bf16.msra.mxu0 0
    %508 = vmatprep.subr.bf16.mxu0 0
    %509 = vmatpush2.bf16.msra.mxu0 0
    %510 = vmatprep.mubr.bf16.mxu0 0
    %511 = vmatmul.mubr.bf16.gmra.mxu0 %v473
    %v512 = vpop.f32.mrf.mxu0
    %v513 = vadd.f32 0.0, %v512
    %v514 = vpop.f32.mrf.mxu0
    %v515 = vpop.f32.mrf.mxu0
    %v516 = vpop.f32.mrf.mxu0
    %517 = vdwg.mxu0
    %v519 = vsel %vm378, %v306, 0
    %v522 = vsel %vm382, %v221, 0
    %524 = vmatprep.subr.bf16.mxu0 0
    %525 = vmatpush1.bf16.msra.mxu0 0
    %526 = vmatprep.subr.bf16.mxu0 0
    %527 = vmatpush1.bf16.msra.mxu0 0
    %528 = vmatprep.subr.bf16.mxu0 0
    %529 = vmatpush1.bf16.msra.mxu0 0
    %530 = vmatprep.subr.bf16.mxu0 0
    %531 = vmatpush1.bf16.msra.mxu0 0
    %532 = vmatprep.subr.bf16.mxu0 0
    %533 = vmatpush1.bf16.msra.mxu0 0
    %534 = vmatprep.subr.bf16.mxu0 0
    %535 = vmatpush1.bf16.msra.mxu0 0
    %536 = vmatprep.subr.bf16.mxu0 0
    %537 = vmatpush1.bf16.msra.mxu0 0
    %538 = vmatprep.subr.bf16.mxu0 0
    %539 = vmatpush1.bf16.msra.mxu0 %v522
    %540 = vmatprep.subr.bf16.mxu0 0
    %541 = vmatpush2.bf16.msra.mxu0 0
    %542 = vmatprep.subr.bf16.mxu0 0
    %543 = vmatpush2.bf16.msra.mxu0 0
    %544 = vmatprep.subr.bf16.mxu0 0
    %545 = vmatpush2.bf16.msra.mxu0 0
    %546 = vmatprep.subr.bf16.mxu0 0
    %547 = vmatpush2.bf16.msra.mxu0 0
    %548 = vmatprep.subr.bf16.mxu0 0
    %549 = vmatpush2.bf16.msra.mxu0 0
    %550 = vmatprep.subr.bf16.mxu0 0
    %551 = vmatpush2.bf16.msra.mxu0 0
    %552 = vmatprep.subr.bf16.mxu0 0
    %553 = vmatpush2.bf16.msra.mxu0 0
    %554 = vmatprep.subr.bf16.mxu0 0
    %555 = vmatpush2.bf16.msra.mxu0 0
    %556 = vmatprep.mubr.bf16.mxu0 0
    %557 = vmatmul.mubr.bf16.gmra.mxu0 %v519
    %v558 = vpop.f32.mrf.mxu0
    %v559 = vadd.f32 0.0, %v558
    %v560 = vpop.f32.mrf.mxu0
    %v561 = vpop.f32.mrf.mxu0
    %v562 = vpop.f32.mrf.mxu0
    %563 = vdwg.mxu0
    %v565 = vsel %vm378, %v322, 0
    %v568 = vsel %vm382, %v230, 0
    %570 = vmatprep.subr.bf16.mxu0 0
    %571 = vmatpush1.bf16.msra.mxu0 0
    %572 = vmatprep.subr.bf16.mxu0 0
    %573 = vmatpush1.bf16.msra.mxu0 0
    %574 = vmatprep.subr.bf16.mxu0 0
    %575 = vmatpush1.bf16.msra.mxu0 0
    %576 = vmatprep.subr.bf16.mxu0 0
    %577 = vmatpush1.bf16.msra.mxu0 0
    %578 = vmatprep.subr.bf16.mxu0 0
    %579 = vmatpush1.bf16.msra.mxu0 0
    %580 = vmatprep.subr.bf16.mxu0 0
    %581 = vmatpush1.bf16.msra.mxu0 0
    %582 = vmatprep.subr.bf16.mxu0 0
    %583 = vmatpush1.bf16.msra.mxu0 0
    %584 = vmatprep.subr.bf16.mxu0 0
    %585 = vmatpush1.bf16.msra.mxu0 %v568
    %586 = vmatprep.subr.bf16.mxu0 0
    %587 = vmatpush2.bf16.msra.mxu0 0
    %588 = vmatprep.subr.bf16.mxu0 0
    %589 = vmatpush2.bf16.msra.mxu0 0
    %590 = vmatprep.subr.bf16.mxu0 0
    %591 = vmatpush2.bf16.msra.mxu0 0
    %592 = vmatprep.subr.bf16.mxu0 0
    %593 = vmatpush2.bf16.msra.mxu0 0
    %594 = vmatprep.subr.bf16.mxu0 0
    %595 = vmatpush2.bf16.msra.mxu0 0
    %596 = vmatprep.subr.bf16.mxu0 0
    %597 = vmatpush2.bf16.msra.mxu0 0
    %598 = vmatprep.subr.bf16.mxu0 0
    %599 = vmatpush2.bf16.msra.mxu0 0
    %600 = vmatprep.subr.bf16.mxu0 0
    %601 = vmatpush2.bf16.msra.mxu0 0
    %602 = vmatprep.mubr.bf16.mxu0 0
    %603 = vmatmul.mubr.bf16.gmra.mxu0 %v565
    %v604 = vpop.f32.mrf.mxu0
    %v605 = vadd.f32 0.0, %v604
    %v606 = vpop.f32.mrf.mxu0
    %v607 = vpop.f32.mrf.mxu0
    %v608 = vpop.f32.mrf.mxu0
    %609 = vdwg.mxu0
    %v611 = vsel %vm378, %v338, 0
    %v614 = vsel %vm382, %v231, 0
    %616 = vmatprep.subr.bf16.mxu0 0
    %617 = vmatpush1.bf16.msra.mxu0 0
    %618 = vmatprep.subr.bf16.mxu0 0
    %619 = vmatpush1.bf16.msra.mxu0 0
    %620 = vmatprep.subr.bf16.mxu0 0
    %621 = vmatpush1.bf16.msra.mxu0 0
    %622 = vmatprep.subr.bf16.mxu0 0
    %623 = vmatpush1.bf16.msra.mxu0 0
    %624 = vmatprep.subr.bf16.mxu0 0
    %625 = vmatpush1.bf16.msra.mxu0 0
    %626 = vmatprep.subr.bf16.mxu0 0
    %627 = vmatpush1.bf16.msra.mxu0 0
    %628 = vmatprep.subr.bf16.mxu0 0
    %629 = vmatpush1.bf16.msra.mxu0 0
    %630 = vmatprep.subr.bf16.mxu0 0
    %631 = vmatpush1.bf16.msra.mxu0 %v614
    %632 = vmatprep.subr.bf16.mxu0 0
    %633 = vmatpush2.bf16.msra.mxu0 0
    %634 = vmatprep.subr.bf16.mxu0 0
    %635 = vmatpush2.bf16.msra.mxu0 0
    %636 = vmatprep.subr.bf16.mxu0 0
    %637 = vmatpush2.bf16.msra.mxu0 0
    %638 = vmatprep.subr.bf16.mxu0 0
    %639 = vmatpush2.bf16.msra.mxu0 0
    %640 = vmatprep.subr.bf16.mxu0 0
    %641 = vmatpush2.bf16.msra.mxu0 0
    %642 = vmatprep.subr.bf16.mxu0 0
    %643 = vmatpush2.bf16.msra.mxu0 0
    %644 = vmatprep.subr.bf16.mxu0 0
    %645 = vmatpush2.bf16.msra.mxu0 0
    %646 = vmatprep.subr.bf16.mxu0 0
    %647 = vmatpush2.bf16.msra.mxu0 0
    %648 = vmatprep.mubr.bf16.mxu0 0
    %649 = vmatmul.mubr.bf16.gmra.mxu0 %v611
    %v650 = vpop.f32.mrf.mxu0
    %v651 = vadd.f32 0.0, %v650
    %v652 = vpop.f32.mrf.mxu0
    %v653 = vpop.f32.mrf.mxu0
    %v654 = vpop.f32.mrf.mxu0
    %655 = vdwg.mxu0
    %v657 = vsel %vm378, %v354, 0
    %v660 = vsel %vm382, %v232, 0
    %662 = vmatprep.subr.bf16.mxu0 0
    %663 = vmatpush1.bf16.msra.mxu0 0
    %664 = vmatprep.subr.bf16.mxu0 0
    %665 = vmatpush1.bf16.msra.mxu0 0
    %666 = vmatprep.subr.bf16.mxu0 0
    %667 = vmatpush1.bf16.msra.mxu0 0
    %668 = vmatprep.subr.bf16.mxu0 0
    %669 = vmatpush1.bf16.msra.mxu0 0
    %670 = vmatprep.subr.bf16.mxu0 0
    %671 = vmatpush1.bf16.msra.mxu0 0
    %672 = vmatprep.subr.bf16.mxu0 0
    %673 = vmatpush1.bf16.msra.mxu0 0
    %674 = vmatprep.subr.bf16.mxu0 0
    %675 = vmatpush1.bf16.msra.mxu0 0
    %676 = vmatprep.subr.bf16.mxu0 0
    %677 = vmatpush1.bf16.msra.mxu0 %v660
    %678 = vmatprep.subr.bf16.mxu0 0
    %679 = vmatpush2.bf16.msra.mxu0 0
    %680 = vmatprep.subr.bf16.mxu0 0
    %681 = vmatpush2.bf16.msra.mxu0 0
    %682 = vmatprep.subr.bf16.mxu0 0
    %683 = vmatpush2.bf16.msra.mxu0 0
    %684 = vmatprep.subr.bf16.mxu0 0
    %685 = vmatpush2.bf16.msra.mxu0 0
    %686 = vmatprep.subr.bf16.mxu0 0
    %687 = vmatpush2.bf16.msra.mxu0 0
    %688 = vmatprep.subr.bf16.mxu0 0
    %689 = vmatpush2.bf16.msra.mxu0 0
    %690 = vmatprep.subr.bf16.mxu0 0
    %691 = vmatpush2.bf16.msra.mxu0 0
    %692 = vmatprep.subr.bf16.mxu0 0
    %693 = vmatpush2.bf16.msra.mxu0 0
    %694 = vmatprep.mubr.bf16.mxu0 0
    %695 = vmatmul.mubr.bf16.gmra.mxu0 %v657
    %v696 = vpop.f32.mrf.mxu0
    %v697 = vadd.f32 0.0, %v696
    %v698 = vpop.f32.mrf.mxu0
    %v699 = vpop.f32.mrf.mxu0
    %v700 = vpop.f32.mrf.mxu0
    %701 = vdwg.mxu0
    %v703 = vsel %vm378, %v370, 0
    %v706 = vsel %vm382, %v233, 0
    %708 = vmatprep.subr.bf16.mxu0 0
    %709 = vmatpush1.bf16.msra.mxu0 0
    %710 = vmatprep.subr.bf16.mxu0 0
    %711 = vmatpush1.bf16.msra.mxu0 0
    %712 = vmatprep.subr.bf16.mxu0 0
    %713 = vmatpush1.bf16.msra.mxu0 0
    %714 = vmatprep.subr.bf16.mxu0 0
    %715 = vmatpush1.bf16.msra.mxu0 0
    %716 = vmatprep.subr.bf16.mxu0 0
    %717 = vmatpush1.bf16.msra.mxu0 0
    %718 = vmatprep.subr.bf16.mxu0 0
    %719 = vmatpush1.bf16.msra.mxu0 0
    %720 = vmatprep.subr.bf16.mxu0 0
    %721 = vmatpush1.bf16.msra.mxu0 0
    %722 = vmatprep.subr.bf16.mxu0 0
    %723 = vmatpush1.bf16.msra.mxu0 %v706
    %724 = vmatprep.subr.bf16.mxu0 0
    %725 = vmatpush2.bf16.msra.mxu0 0
    %726 = vmatprep.subr.bf16.mxu0 0
    %727 = vmatpush2.bf16.msra.mxu0 0
    %728 = vmatprep.subr.bf16.mxu0 0
    %729 = vmatpush2.bf16.msra.mxu0 0
    %730 = vmatprep.subr.bf16.mxu0 0
    %731 = vmatpush2.bf16.msra.mxu0 0
    %732 = vmatprep.subr.bf16.mxu0 0
    %733 = vmatpush2.bf16.msra.mxu0 0
    %734 = vmatprep.subr.bf16.mxu0 0
    %735 = vmatpush2.bf16.msra.mxu0 0
    %736 = vmatprep.subr.bf16.mxu0 0
    %737 = vmatpush2.bf16.msra.mxu0 0
    %738 = vmatprep.subr.bf16.mxu0 0
    %739 = vmatpush2.bf16.msra.mxu0 0
    %740 = vmatprep.mubr.bf16.mxu0 0
    %741 = vmatmul.mubr.bf16.gmra.mxu0 %v703
    %v742 = vpop.f32.mrf.mxu0
    %v743 = vadd.f32 0.0, %v742
    %v744 = vpop.f32.mrf.mxu0
    %v745 = vpop.f32.mrf.mxu0
    %v746 = vpop.f32.mrf.mxu0
    %747 = vdwg.mxu0
    %v748 = vsel %vm378, %v421, -inf
    %v749 = vrot.slane %v748, 4
    %v750 = vmax.f32 %v748, %v749
    %v751 = vrot.slane %v750, 2
    %v752 = vmax.f32 %v750, %v751
    %v753 = vrot.slane %v752, 1
    %v754 = vmax.f32 %v752, %v753
    %v755 = vsel %vm378, %v467, -inf
    %v756 = vrot.slane %v755, 4
    %v757 = vmax.f32 %v755, %v756
    %v758 = vrot.slane %v757, 2
    %v759 = vmax.f32 %v757, %v758
    %v760 = vrot.slane %v759, 1
    %v761 = vmax.f32 %v759, %v760
    %v762 = vsel %vm378, %v513, -inf
    %v763 = vrot.slane %v762, 4
    %v764 = vmax.f32 %v762, %v763
    %v765 = vrot.slane %v764, 2
    %v766 = vmax.f32 %v764, %v765
    %v767 = vrot.slane %v766, 1
    %v768 = vmax.f32 %v766, %v767
    %v769 = vsel %vm378, %v559, -inf
    %v770 = vrot.slane %v769, 4
    %v771 = vmax.f32 %v769, %v770
    %v772 = vrot.slane %v771, 2
    %v773 = vmax.f32 %v771, %v772
    %v774 = vrot.slane %v773, 1
    %v775 = vmax.f32 %v773, %v774
    %v776 = vsel %vm378, %v605, -inf
    %v777 = vrot.slane %v776, 4
    %v778 = vmax.f32 %v776, %v777
    %v779 = vrot.slane %v778, 2
    %v780 = vmax.f32 %v778, %v779
    %v781 = vrot.slane %v780, 1
    %v782 = vmax.f32 %v780, %v781
    %v783 = vsel %vm378, %v651, -inf
    %v784 = vrot.slane %v783, 4
    %v785 = vmax.f32 %v783, %v784
    %v786 = vrot.slane %v785, 2
    %v787 = vmax.f32 %v785, %v786
    %v788 = vrot.slane %v787, 1
    %v789 = vmax.f32 %v787, %v788
    %v790 = vsel %vm378, %v697, -inf
    %v791 = vrot.slane %v790, 4
    %v792 = vmax.f32 %v790, %v791
    %v793 = vrot.slane %v792, 2
    %v794 = vmax.f32 %v792, %v793
    %v795 = vrot.slane %v794, 1
    %v796 = vmax.f32 %v794, %v795
    %v797 = vsel %vm378, %v743, -inf
    %v798 = vrot.slane %v797, 4
    %v799 = vmax.f32 %v797, %v798
    %v800 = vrot.slane %v799, 2
    %v801 = vmax.f32 %v799, %v800
    %v802 = vrot.slane %v801, 1
    %v803 = vmax.f32 %v801, %v802
    %v804 = vsub.f32 %v421, %v754
    %v805 = vsub.f32 %v467, %v761
    %v806 = vsub.f32 %v513, %v768
    %v807 = vsub.f32 %v559, %v775
    %v808 = vsub.f32 %v605, %v782
    %v809 = vsub.f32 %v651, %v789
    %v810 = vsub.f32 %v697, %v796
    %v811 = vsub.f32 %v743, %v803
    %v812 = vmul.f32 %v804, 1.442695
    %v813 = vpow.pop %v812
    %v814 = vmul.f32 %v805, 1.442695
    %v815 = vpow.pop %v814
    %v816 = vmul.f32 %v806, 1.442695
    %v817 = vpow.pop %v816
    %v818 = vmul.f32 %v807, 1.442695
    %v819 = vpow.pop %v818
    %v820 = vmul.f32 %v808, 1.442695
    %v821 = vpow.pop %v820
    %v822 = vmul.f32 %v809, 1.442695
    %v823 = vpow.pop %v822
    %v824 = vmul.f32 %v810, 1.442695
    %v825 = vpow.pop %v824
    %v826 = vmul.f32 %v811, 1.442695
    %v827 = vpow.pop %v826
    %v828 = vsel %vm378, %v813, 0.0
    %v829 = vrot.slane %v828, 4
    %v830 = vadd.f32 %v828, %v829
    %v831 = vrot.slane %v830, 2
    %v832 = vadd.f32 %v830, %v831
    %v833 = vrot.slane %v832, 1
    %v834 = vadd.f32 %v832, %v833
    %v835 = vsel %vm378, %v815, 0.0
    %v836 = vrot.slane %v835, 4
    %v837 = vadd.f32 %v835, %v836
    %v838 = vrot.slane %v837, 2
    %v839 = vadd.f32 %v837, %v838
    %v840 = vrot.slane %v839, 1
    %v841 = vadd.f32 %v839, %v840
    %v842 = vsel %vm378, %v817, 0.0
    %v843 = vrot.slane %v842, 4
    %v844 = vadd.f32 %v842, %v843
    %v845 = vrot.slane %v844, 2
    %v846 = vadd.f32 %v844, %v845
    %v847 = vrot.slane %v846, 1
    %v848 = vadd.f32 %v846, %v847
    %v849 = vsel %vm378, %v819, 0.0
    %v850 = vrot.slane %v849, 4
    %v851 = vadd.f32 %v849, %v850
    %v852 = vrot.slane %v851, 2
    %v853 = vadd.f32 %v851, %v852
    %v854 = vrot.slane %v853, 1
    %v855 = vadd.f32 %v853, %v854
    %v856 = vsel %vm378, %v821, 0.0
    %v857 = vrot.slane %v856, 4
    %v858 = vadd.f32 %v856, %v857
    %v859 = vrot.slane %v858, 2
    %v860 = vadd.f32 %v858, %v859
    %v861 = vrot.slane %v860, 1
    %v862 = vadd.f32 %v860, %v861
    %v863 = vsel %vm378, %v823, 0.0
    %v864 = vrot.slane %v863, 4
    %v865 = vadd.f32 %v863, %v864
    %v866 = vrot.slane %v865, 2
    %v867 = vadd.f32 %v865, %v866
    %v868 = vrot.slane %v867, 1
    %v869 = vadd.f32 %v867, %v868
    %v870 = vsel %vm378, %v825, 0.0
    %v871 = vrot.slane %v870, 4
    %v872 = vadd.f32 %v870, %v871
    %v873 = vrot.slane %v872, 2
    %v874 = vadd.f32 %v872, %v873
    %v875 = vrot.slane %v874, 1
    %v876 = vadd.f32 %v874, %v875
    %v877 = vsel %vm378, %v827, 0.0
    %v878 = vrot.slane %v877, 4
    %v879 = vadd.f32 %v877, %v878
    %v880 = vrot.slane %v879, 2
    %v881 = vadd.f32 %v879, %v880
    %v882 = vrot.slane %v881, 1
    %v883 = vadd.f32 %v881, %v882
    %v884 = vpack.c.bf16 %v813, %v813
    %v885 = vpack.c.bf16 %v815, %v815
    %v886 = vpack.c.bf16 %v817, %v817
    %v887 = vpack.c.bf16 %v819, %v819
    %v888 = vpack.c.bf16 %v821, %v821
    %v889 = vpack.c.bf16 %v823, %v823
    %v890 = vpack.c.bf16 %v825, %v825
    %v891 = vpack.c.bf16 %v827, %v827
    %v893 = vsel %vm378, %v226, 0
    %v896 = vsel %vm382, %v884, 0
    %898 = vmatprep.subr.bf16.mxu0 0
    %899 = vmatpush1.bf16.msra.mxu0 0
    %900 = vmatprep.subr.bf16.mxu0 0
    %901 = vmatpush1.bf16.msra.mxu0 0
    %902 = vmatprep.subr.bf16.mxu0 0
    %903 = vmatpush1.bf16.msra.mxu0 0
    %904 = vmatprep.subr.bf16.mxu0 0
    %905 = vmatpush1.bf16.msra.mxu0 0
    %906 = vmatprep.subr.bf16.mxu0 0
    %907 = vmatpush1.bf16.msra.mxu0 0
    %908 = vmatprep.subr.bf16.mxu0 0
    %909 = vmatpush1.bf16.msra.mxu0 0
    %910 = vmatprep.subr.bf16.mxu0 0
    %911 = vmatpush1.bf16.msra.mxu0 0
    %912 = vmatprep.subr.bf16.mxu0 0
    %913 = vmatpush1.bf16.msra.mxu0 %v896
    %914 = vmatprep.subr.bf16.mxu0 0
    %915 = vmatpush2.bf16.msra.mxu0 0
    %916 = vmatprep.subr.bf16.mxu0 0
    %917 = vmatpush2.bf16.msra.mxu0 0
    %918 = vmatprep.subr.bf16.mxu0 0
    %919 = vmatpush2.bf16.msra.mxu0 0
    %920 = vmatprep.subr.bf16.mxu0 0
    %921 = vmatpush2.bf16.msra.mxu0 0
    %922 = vmatprep.subr.bf16.mxu0 0
    %923 = vmatpush2.bf16.msra.mxu0 0
    %924 = vmatprep.subr.bf16.mxu0 0
    %925 = vmatpush2.bf16.msra.mxu0 0
    %926 = vmatprep.subr.bf16.mxu0 0
    %927 = vmatpush2.bf16.msra.mxu0 0
    %928 = vmatprep.subr.bf16.mxu0 0
    %929 = vmatpush2.bf16.msra.mxu0 0
    %930 = vmatprep.mubr.bf16.mxu0 0
    %931 = vmatmul.mubr.bf16.gmra.mxu0 %v893
    %v932 = vpop.f32.mrf.mxu0
    %v933 = vadd.f32 0.0, %v932
    %v934 = vpop.f32.mrf.mxu0
    %v935 = vpop.f32.mrf.mxu0
    %v936 = vpop.f32.mrf.mxu0
    %937 = vdwg.mxu0
    %v939 = vsel %vm378, %v227, 0
    %v942 = vsel %vm382, %v885, 0
    %944 = vmatprep.subr.bf16.mxu0 0
    %945 = vmatpush1.bf16.msra.mxu0 0
    %946 = vmatprep.subr.bf16.mxu0 0
    %947 = vmatpush1.bf16.msra.mxu0 0
    %948 = vmatprep.subr.bf16.mxu0 0
    %949 = vmatpush1.bf16.msra.mxu0 0
    %950 = vmatprep.subr.bf16.mxu0 0
    %951 = vmatpush1.bf16.msra.mxu0 0
    %952 = vmatprep.subr.bf16.mxu0 0
    %953 = vmatpush1.bf16.msra.mxu0 0
    %954 = vmatprep.subr.bf16.mxu0 0
    %955 = vmatpush1.bf16.msra.mxu0 0
    %956 = vmatprep.subr.bf16.mxu0 0
    %957 = vmatpush1.bf16.msra.mxu0 0
    %958 = vmatprep.subr.bf16.mxu0 0
    %959 = vmatpush1.bf16.msra.mxu0 %v942
    %960 = vmatprep.subr.bf16.mxu0 0
    %961 = vmatpush2.bf16.msra.mxu0 0
    %962 = vmatprep.subr.bf16.mxu0 0
    %963 = vmatpush2.bf16.msra.mxu0 0
    %964 = vmatprep.subr.bf16.mxu0 0
    %965 = vmatpush2.bf16.msra.mxu0 0
    %966 = vmatprep.subr.bf16.mxu0 0
    %967 = vmatpush2.bf16.msra.mxu0 0
    %968 = vmatprep.subr.bf16.mxu0 0
    %969 = vmatpush2.bf16.msra.mxu0 0
    %970 = vmatprep.subr.bf16.mxu0 0
    %971 = vmatpush2.bf16.msra.mxu0 0
    %972 = vmatprep.subr.bf16.mxu0 0
    %973 = vmatpush2.bf16.msra.mxu0 0
    %974 = vmatprep.subr.bf16.mxu0 0
    %975 = vmatpush2.bf16.msra.mxu0 0
    %976 = vmatprep.mubr.bf16.mxu0 0
    %977 = vmatmul.mubr.bf16.gmra.mxu0 %v939
    %v978 = vpop.f32.mrf.mxu0
    %v979 = vadd.f32 0.0, %v978
    %v980 = vpop.f32.mrf.mxu0
    %v981 = vpop.f32.mrf.mxu0
    %v982 = vpop.f32.mrf.mxu0
    %983 = vdwg.mxu0
    %v985 = vsel %vm378, %v228, 0
    %v988 = vsel %vm382, %v886, 0
    %990 = vmatprep.subr.bf16.mxu0 0
    %991 = vmatpush1.bf16.msra.mxu0 0
    %992 = vmatprep.subr.bf16.mxu0 0
    %993 = vmatpush1.bf16.msra.mxu0 0
    %994 = vmatprep.subr.bf16.mxu0 0
    %995 = vmatpush1.bf16.msra.mxu0 0
    %996 = vmatprep.subr.bf16.mxu0 0
    %997 = vmatpush1.bf16.msra.mxu0 0
    %998 = vmatprep.subr.bf16.mxu0 0
    %999 = vmatpush1.bf16.msra.mxu0 0
    %1000 = vmatprep.subr.bf16.mxu0 0
    %1001 = vmatpush1.bf16.msra.mxu0 0
    %1002 = vmatprep.subr.bf16.mxu0 0
    %1003 = vmatpush1.bf16.msra.mxu0 0
    %1004 = vmatprep.subr.bf16.mxu0 0
    %1005 = vmatpush1.bf16.msra.mxu0 %v988
    %1006 = vmatprep.subr.bf16.mxu0 0
    %1007 = vmatpush2.bf16.msra.mxu0 0
    %1008 = vmatprep.subr.bf16.mxu0 0
    %1009 = vmatpush2.bf16.msra.mxu0 0
    %1010 = vmatprep.subr.bf16.mxu0 0
    %1011 = vmatpush2.bf16.msra.mxu0 0
    %1012 = vmatprep.subr.bf16.mxu0 0
    %1013 = vmatpush2.bf16.msra.mxu0 0
    %1014 = vmatprep.subr.bf16.mxu0 0
    %1015 = vmatpush2.bf16.msra.mxu0 0
    %1016 = vmatprep.subr.bf16.mxu0 0
    %1017 = vmatpush2.bf16.msra.mxu0 0
    %1018 = vmatprep.subr.bf16.mxu0 0
    %1019 = vmatpush2.bf16.msra.mxu0 0
    %1020 = vmatprep.subr.bf16.mxu0 0
    %1021 = vmatpush2.bf16.msra.mxu0 0
    %1022 = vmatprep.mubr.bf16.mxu0 0
    %1023 = vmatmul.mubr.bf16.gmra.mxu0 %v985
    %v1024 = vpop.f32.mrf.mxu0
    %v1025 = vadd.f32 0.0, %v1024
    %v1026 = vpop.f32.mrf.mxu0
    %v1027 = vpop.f32.mrf.mxu0
    %v1028 = vpop.f32.mrf.mxu0
    %1029 = vdwg.mxu0
    %v1031 = vsel %vm378, %v229, 0
    %v1034 = vsel %vm382, %v887, 0
    %1036 = vmatprep.subr.bf16.mxu0 0
    %1037 = vmatpush1.bf16.msra.mxu0 0
    %1038 = vmatprep.subr.bf16.mxu0 0
    %1039 = vmatpush1.bf16.msra.mxu0 0
    %1040 = vmatprep.subr.bf16.mxu0 0
    %1041 = vmatpush1.bf16.msra.mxu0 0
    %1042 = vmatprep.subr.bf16.mxu0 0
    %1043 = vmatpush1.bf16.msra.mxu0 0
    %1044 = vmatprep.subr.bf16.mxu0 0
    %1045 = vmatpush1.bf16.msra.mxu0 0
    %1046 = vmatprep.subr.bf16.mxu0 0
    %1047 = vmatpush1.bf16.msra.mxu0 0
    %1048 = vmatprep.subr.bf16.mxu0 0
    %1049 = vmatpush1.bf16.msra.mxu0 0
    %1050 = vmatprep.subr.bf16.mxu0 0
    %1051 = vmatpush1.bf16.msra.mxu0 %v1034
    %1052 = vmatprep.subr.bf16.mxu0 0
    %1053 = vmatpush2.bf16.msra.mxu0 0
    %1054 = vmatprep.subr.bf16.mxu0 0
    %1055 = vmatpush2.bf16.msra.mxu0 0
    %1056 = vmatprep.subr.bf16.mxu0 0
    %1057 = vmatpush2.bf16.msra.mxu0 0
    %1058 = vmatprep.subr.bf16.mxu0 0
    %1059 = vmatpush2.bf16.msra.mxu0 0
    %1060 = vmatprep.subr.bf16.mxu0 0
    %1061 = vmatpush2.bf16.msra.mxu0 0
    %1062 = vmatprep.subr.bf16.mxu0 0
    %1063 = vmatpush2.bf16.msra.mxu0 0
    %1064 = vmatprep.subr.bf16.mxu0 0
    %1065 = vmatpush2.bf16.msra.mxu0 0
    %1066 = vmatprep.subr.bf16.mxu0 0
    %1067 = vmatpush2.bf16.msra.mxu0 0
    %1068 = vmatprep.mubr.bf16.mxu0 0
    %1069 = vmatmul.mubr.bf16.gmra.mxu0 %v1031
    %v1070 = vpop.f32.mrf.mxu0
    %v1071 = vadd.f32 0.0, %v1070
    %v1072 = vpop.f32.mrf.mxu0
    %v1073 = vpop.f32.mrf.mxu0
    %v1074 = vpop.f32.mrf.mxu0
    %1075 = vdwg.mxu0
    %v1077 = vsel %vm378, %v238, 0
    %v1080 = vsel %vm382, %v888, 0
    %1082 = vmatprep.subr.bf16.mxu0 0
    %1083 = vmatpush1.bf16.msra.mxu0 0
    %1084 = vmatprep.subr.bf16.mxu0 0
    %1085 = vmatpush1.bf16.msra.mxu0 0
    %1086 = vmatprep.subr.bf16.mxu0 0
    %1087 = vmatpush1.bf16.msra.mxu0 0
    %1088 = vmatprep.subr.bf16.mxu0 0
    %1089 = vmatpush1.bf16.msra.mxu0 0
    %1090 = vmatprep.subr.bf16.mxu0 0
    %1091 = vmatpush1.bf16.msra.mxu0 0
    %1092 = vmatprep.subr.bf16.mxu0 0
    %1093 = vmatpush1.bf16.msra.mxu0 0
    %1094 = vmatprep.subr.bf16.mxu0 0
    %1095 = vmatpush1.bf16.msra.mxu0 0
    %1096 = vmatprep.subr.bf16.mxu0 0
    %1097 = vmatpush1.bf16.msra.mxu0 %v1080
    %1098 = vmatprep.subr.bf16.mxu0 0
    %1099 = vmatpush2.bf16.msra.mxu0 0
    %1100 = vmatprep.subr.bf16.mxu0 0
    %1101 = vmatpush2.bf16.msra.mxu0 0
    %1102 = vmatprep.subr.bf16.mxu0 0
    %1103 = vmatpush2.bf16.msra.mxu0 0
    %1104 = vmatprep.subr.bf16.mxu0 0
    %1105 = vmatpush2.bf16.msra.mxu0 0
    %1106 = vmatprep.subr.bf16.mxu0 0
    %1107 = vmatpush2.bf16.msra.mxu0 0
    %1108 = vmatprep.subr.bf16.mxu0 0
    %1109 = vmatpush2.bf16.msra.mxu0 0
    %1110 = vmatprep.subr.bf16.mxu0 0
    %1111 = vmatpush2.bf16.msra.mxu0 0
    %1112 = vmatprep.subr.bf16.mxu0 0
    %1113 = vmatpush2.bf16.msra.mxu0 0
    %1114 = vmatprep.mubr.bf16.mxu0 0
    %1115 = vmatmul.mubr.bf16.gmra.mxu0 %v1077
    %v1116 = vpop.f32.mrf.mxu0
    %v1117 = vadd.f32 0.0, %v1116
    %v1118 = vpop.f32.mrf.mxu0
    %v1119 = vpop.f32.mrf.mxu0
    %v1120 = vpop.f32.mrf.mxu0
    %1121 = vdwg.mxu0
    %v1123 = vsel %vm378, %v239, 0
    %v1126 = vsel %vm382, %v889, 0
    %1128 = vmatprep.subr.bf16.mxu0 0
    %1129 = vmatpush1.bf16.msra.mxu0 0
    %1130 = vmatprep.subr.bf16.mxu0 0
    %1131 = vmatpush1.bf16.msra.mxu0 0
    %1132 = vmatprep.subr.bf16.mxu0 0
    %1133 = vmatpush1.bf16.msra.mxu0 0
    %1134 = vmatprep.subr.bf16.mxu0 0
    %1135 = vmatpush1.bf16.msra.mxu0 0
    %1136 = vmatprep.subr.bf16.mxu0 0
    %1137 = vmatpush1.bf16.msra.mxu0 0
    %1138 = vmatprep.subr.bf16.mxu0 0
    %1139 = vmatpush1.bf16.msra.mxu0 0
    %1140 = vmatprep.subr.bf16.mxu0 0
    %1141 = vmatpush1.bf16.msra.mxu0 0
    %1142 = vmatprep.subr.bf16.mxu0 0
    %1143 = vmatpush1.bf16.msra.mxu0 %v1126
    %1144 = vmatprep.subr.bf16.mxu0 0
    %1145 = vmatpush2.bf16.msra.mxu0 0
    %1146 = vmatprep.subr.bf16.mxu0 0
    %1147 = vmatpush2.bf16.msra.mxu0 0
    %1148 = vmatprep.subr.bf16.mxu0 0
    %1149 = vmatpush2.bf16.msra.mxu0 0
    %1150 = vmatprep.subr.bf16.mxu0 0
    %1151 = vmatpush2.bf16.msra.mxu0 0
    %1152 = vmatprep.subr.bf16.mxu0 0
    %1153 = vmatpush2.bf16.msra.mxu0 0
    %1154 = vmatprep.subr.bf16.mxu0 0
    %1155 = vmatpush2.bf16.msra.mxu0 0
    %1156 = vmatprep.subr.bf16.mxu0 0
    %1157 = vmatpush2.bf16.msra.mxu0 0
    %1158 = vmatprep.subr.bf16.mxu0 0
    %1159 = vmatpush2.bf16.msra.mxu0 0
    %1160 = vmatprep.mubr.bf16.mxu0 0
    %1161 = vmatmul.mubr.bf16.gmra.mxu0 %v1123
    %v1162 = vpop.f32.mrf.mxu0
    %v1163 = vadd.f32 0.0, %v1162
    %v1164 = vpop.f32.mrf.mxu0
    %v1165 = vpop.f32.mrf.mxu0
    %v1166 = vpop.f32.mrf.mxu0
    %1167 = vdwg.mxu0
    %v1169 = vsel %vm378, %v240, 0
    %v1172 = vsel %vm382, %v890, 0
    %1174 = vmatprep.subr.bf16.mxu0 0
    %1175 = vmatpush1.bf16.msra.mxu0 0
    %1176 = vmatprep.subr.bf16.mxu0 0
    %1177 = vmatpush1.bf16.msra.mxu0 0
    %1178 = vmatprep.subr.bf16.mxu0 0
    %1179 = vmatpush1.bf16.msra.mxu0 0
    %1180 = vmatprep.subr.bf16.mxu0 0
    %1181 = vmatpush1.bf16.msra.mxu0 0
    %1182 = vmatprep.subr.bf16.mxu0 0
    %1183 = vmatpush1.bf16.msra.mxu0 0
    %1184 = vmatprep.subr.bf16.mxu0 0
    %1185 = vmatpush1.bf16.msra.mxu0 0
    %1186 = vmatprep.subr.bf16.mxu0 0
    %1187 = vmatpush1.bf16.msra.mxu0 0
    %1188 = vmatprep.subr.bf16.mxu0 0
    %1189 = vmatpush1.bf16.msra.mxu0 %v1172
    %1190 = vmatprep.subr.bf16.mxu0 0
    %1191 = vmatpush2.bf16.msra.mxu0 0
    %1192 = vmatprep.subr.bf16.mxu0 0
    %1193 = vmatpush2.bf16.msra.mxu0 0
    %1194 = vmatprep.subr.bf16.mxu0 0
    %1195 = vmatpush2.bf16.msra.mxu0 0
    %1196 = vmatprep.subr.bf16.mxu0 0
    %1197 = vmatpush2.bf16.msra.mxu0 0
    %1198 = vmatprep.subr.bf16.mxu0 0
    %1199 = vmatpush2.bf16.msra.mxu0 0
    %1200 = vmatprep.subr.bf16.mxu0 0
    %1201 = vmatpush2.bf16.msra.mxu0 0
    %1202 = vmatprep.subr.bf16.mxu0 0
    %1203 = vmatpush2.bf16.msra.mxu0 0
    %1204 = vmatprep.subr.bf16.mxu0 0
    %1205 = vmatpush2.bf16.msra.mxu0 0
    %1206 = vmatprep.mubr.bf16.mxu0 0
    %1207 = vmatmul.mubr.bf16.gmra.mxu0 %v1169
    %v1208 = vpop.f32.mrf.mxu0
    %v1209 = vadd.f32 0.0, %v1208
    %v1210 = vpop.f32.mrf.mxu0
    %v1211 = vpop.f32.mrf.mxu0
    %v1212 = vpop.f32.mrf.mxu0
    %1213 = vdwg.mxu0
    %v1215 = vsel %vm378, %v241, 0
    %v1218 = vsel %vm382, %v891, 0
    %1220 = vmatprep.subr.bf16.mxu0 0
    %1221 = vmatpush1.bf16.msra.mxu0 0
    %1222 = vmatprep.subr.bf16.mxu0 0
    %1223 = vmatpush1.bf16.msra.mxu0 0
    %1224 = vmatprep.subr.bf16.mxu0 0
    %1225 = vmatpush1.bf16.msra.mxu0 0
    %1226 = vmatprep.subr.bf16.mxu0 0
    %1227 = vmatpush1.bf16.msra.mxu0 0
    %1228 = vmatprep.subr.bf16.mxu0 0
    %1229 = vmatpush1.bf16.msra.mxu0 0
    %1230 = vmatprep.subr.bf16.mxu0 0
    %1231 = vmatpush1.bf16.msra.mxu0 0
    %1232 = vmatprep.subr.bf16.mxu0 0
    %1233 = vmatpush1.bf16.msra.mxu0 0
    %1234 = vmatprep.subr.bf16.mxu0 0
    %1235 = vmatpush1.bf16.msra.mxu0 %v1218
    %1236 = vmatprep.subr.bf16.mxu0 0
    %1237 = vmatpush2.bf16.msra.mxu0 0
    %1238 = vmatprep.subr.bf16.mxu0 0
    %1239 = vmatpush2.bf16.msra.mxu0 0
    %1240 = vmatprep.subr.bf16.mxu0 0
    %1241 = vmatpush2.bf16.msra.mxu0 0
    %1242 = vmatprep.subr.bf16.mxu0 0
    %1243 = vmatpush2.bf16.msra.mxu0 0
    %1244 = vmatprep.subr.bf16.mxu0 0
    %1245 = vmatpush2.bf16.msra.mxu0 0
    %1246 = vmatprep.subr.bf16.mxu0 0
    %1247 = vmatpush2.bf16.msra.mxu0 0
    %1248 = vmatprep.subr.bf16.mxu0 0
    %1249 = vmatpush2.bf16.msra.mxu0 0
    %1250 = vmatprep.subr.bf16.mxu0 0
    %1251 = vmatpush2.bf16.msra.mxu0 0
    %1252 = vmatprep.mubr.bf16.mxu0 0
    %1253 = vmatmul.mubr.bf16.gmra.mxu0 %v1215
    %v1254 = vpop.f32.mrf.mxu0
    %v1255 = vadd.f32 0.0, %v1254
    %v1256 = vpop.f32.mrf.mxu0
    %v1257 = vpop.f32.mrf.mxu0
    %v1258 = vpop.f32.mrf.mxu0
    %1259 = vdwg.mxu0
    %v1260 = vrcp.pop %v834
    %v1261 = vrcp.pop %v841
    %v1262 = vrcp.pop %v848
    %v1263 = vrcp.pop %v855
    %v1264 = vrcp.pop %v862
    %v1265 = vrcp.pop %v869
    %v1266 = vrcp.pop %v876
    %v1267 = vrcp.pop %v883
    %v1268 = vmul.f32 %v933, %v1260
    %v1269 = vmul.f32 %v979, %v1261
    %v1270 = vmul.f32 %v1025, %v1262
    %v1271 = vmul.f32 %v1071, %v1263
    %v1272 = vmul.f32 %v1117, %v1264
    %v1273 = vmul.f32 %v1163, %v1265
    %v1274 = vmul.f32 %v1209, %v1266
    %v1275 = vmul.f32 %v1255, %v1267
    %v1276 = vpack.c.bf16 %v1268, %v1268
    %v1277 = vpack.c.bf16 %v1269, %v1269
    %v1278 = vpack.c.bf16 %v1270, %v1270
    %v1279 = vpack.c.bf16 %v1271, %v1271
    %v1280 = vpack.c.bf16 %v1272, %v1272
    %v1281 = vpack.c.bf16 %v1273, %v1273
    %v1282 = vpack.c.bf16 %v1274, %v1274
    %v1283 = vpack.c.bf16 %v1275, %v1275
    %v1292 = vunpack.c.l.b16 %v1276
    %v1293 = vunpack.c.l.b16 %v1277
    %v1294 = vunpack.c.l.b16 %v1278
    %v1295 = vunpack.c.l.b16 %v1279
    %v1296 = vunpack.c.l.b16 %v1280
    %v1297 = vunpack.c.l.b16 %v1281
    %v1298 = vunpack.c.l.b16 %v1282
    %v1299 = vunpack.c.l.b16 %v1283
    %v1300 = vpack.c.b16 %v1293, %v1292
    %v1301 = vpack.c.b16 %v1295, %v1294
    %v1302 = vpack.c.b16 %v1297, %v1296
    %v1303 = vpack.c.b16 %v1299, %v1298
    %1308 = vxpose.xlu0.c.b16.start [1/8] %v1300, 128
    %1309 = vxpose.xlu0.c.b16.cont [2/8] %v1301, 128
    %1310 = vxpose.xlu0.c.b16.cont [3/8] 0, 128
    %1311 = vxpose.xlu0.c.b16.cont [4/8] 0, 128
    %1312 = vxpose.xlu0.c.b16.cont [5/8] 0, 128
    %1313 = vxpose.xlu0.c.b16.cont [6/8] 0, 128
    %1314 = vxpose.xlu0.c.b16.cont [7/8] 0, 128
    %1315 = vxpose.xlu0.c.b16.end [8/8] 0, 128
    %v1316 = vpop.trf.xlu0
    %v1317 = vpop.trf.xlu0
    %v1318 = vpop.trf.xlu0
    %v1319 = vpop.trf.xlu0
    %v1320 = vpop.trf.xlu0
    %v1321 = vpop.trf.xlu0
    %v1322 = vpop.trf.xlu0
    %v1323 = vpop.trf.xlu0
    %1324 = vxpose.xlu0.c.b16.start [1/8] %v1302, 128
    %1325 = vxpose.xlu0.c.b16.cont [2/8] %v1303, 128
    %1326 = vxpose.xlu0.c.b16.cont [3/8] 0, 128
    %1327 = vxpose.xlu0.c.b16.cont [4/8] 0, 128
    %1328 = vxpose.xlu0.c.b16.cont [5/8] 0, 128
    %1329 = vxpose.xlu0.c.b16.cont [6/8] 0, 128
    %1330 = vxpose.xlu0.c.b16.cont [7/8] 0, 128
    %1331 = vxpose.xlu0.c.b16.end [8/8] 0, 128
    %v1332 = vpop.trf.xlu0
    %v1333 = vpop.trf.xlu0
    %v1334 = vpop.trf.xlu0
    %v1335 = vpop.trf.xlu0
    %v1336 = vpop.trf.xlu0
    %v1337 = vpop.trf.xlu0
    %v1338 = vpop.trf.xlu0
    %v1339 = vpop.trf.xlu0
    %v1340 = vlaneseq
    %v1341 = vshrl.u32 %v1340, 7
    %v1342 = vsub.s32 0, %v1341
    %v1343 = vrot.slane %v83, %v1342
    %v1346 = vunpack.c.l.b16 %v1316
    %v1347 = vunpack.c.l.b16 %v1332
    %v1348 = vpack.c.b16 %v1347, %v1346
    %v1353 = vunpack.c.l.b16 %v66
    %v1354 = vunpack.c.l.b16 %v67
    %v1355 = vunpack.c.l.b16 %v68
    %v1356 = vunpack.c.l.b16 %v69
    %v1357 = vpack.c.b16 %v1354, %v1353
    %v1358 = vpack.c.b16 %v1356, %v1355
    %v1362 = vsel %vm97, %v1348, 0
    %1364 = vmatprep.subr.bf16.mxu0 0
    %1365 = vmatpush1.bf16.msra.mxu0 0
    %1366 = vmatprep.subr.bf16.mxu0 0
    %1367 = vmatpush1.bf16.msra.mxu0 0
    %1368 = vmatprep.subr.bf16.mxu0 0
    %1369 = vmatpush1.bf16.msra.mxu0 0
    %1370 = vmatprep.subr.bf16.mxu0 0
    %1371 = vmatpush1.bf16.msra.mxu0 0
    %1372 = vmatprep.subr.bf16.mxu0 0
    %1373 = vmatpush1.bf16.msra.mxu0 0
    %1374 = vmatprep.subr.bf16.mxu0 0
    %1375 = vmatpush1.bf16.msra.mxu0 0
    %1376 = vmatprep.subr.bf16.mxu0 0
    %1377 = vmatpush1.bf16.msra.mxu0 %v1358
    %1378 = vmatprep.subr.bf16.mxu0 0
    %1379 = vmatpush1.bf16.msra.mxu0 %v1357
    %1380 = vmatprep.subr.bf16.mxu0 0
    %1381 = vmatpush2.bf16.msra.mxu0 0
    %1382 = vmatprep.subr.bf16.mxu0 0
    %1383 = vmatpush2.bf16.msra.mxu0 0
    %1384 = vmatprep.subr.bf16.mxu0 0
    %1385 = vmatpush2.bf16.msra.mxu0 0
    %1386 = vmatprep.subr.bf16.mxu0 0
    %1387 = vmatpush2.bf16.msra.mxu0 0
    %1388 = vmatprep.subr.bf16.mxu0 0
    %1389 = vmatpush2.bf16.msra.mxu0 0
    %1390 = vmatprep.subr.bf16.mxu0 0
    %1391 = vmatpush2.bf16.msra.mxu0 0
    %1392 = vmatprep.subr.bf16.mxu0 0
    %1393 = vmatpush2.bf16.msra.mxu0 0
    %1394 = vmatprep.subr.bf16.mxu0 0
    %1395 = vmatpush2.bf16.msra.mxu0 0
    %1396 = vmatprep.mubr.bf16.mxu0 0
    %1397 = vmatmul.mubr.bf16.gmra.mxu0 %v1362
    %v1398 = vpop.f32.mrf.mxu0
    %v1399 = vadd.f32 %v1343, %v1398
    %v1400 = vpop.f32.mrf.mxu0
    %v1401 = vpop.f32.mrf.mxu0
    %v1402 = vadd.f32 %v1343, %v1401
    %v1403 = vpop.f32.mrf.mxu0
    %1404 = vdwg.mxu0
    %v1405 = vadd.f32 %v1399, %v60
    %v1406 = vadd.f32 %v1402, %v61
    %v1407 = vsel %vm97, %v1405, 0.0
    %1408 = vadd.xlane.f32.xlu0 %v1407
    %v1409 = vpop.xlane.xlu0 %1408
    %v1410 = vsel %vm97, %v1406, 0.0
    %1411 = vadd.xlane.f32.xlu0 %v1410
    %v1412 = vpop.xlane.xlu0 %1411
    %v1413 = vrcp.pop 32.0
    %v1414 = vmul.f32 %v1409, %v1413
    %v1415 = vmul.f32 %v1412, %v1413
    %v1416 = vsub.f32 %v1405, %v1414
    %v1417 = vsub.f32 %v1406, %v1415
    %v1418 = vmul.f32 %v1416, %v1416
    %v1419 = vmul.f32 %v1417, %v1417
    %v1420 = vsel %vm97, %v1418, 0.0
    %1421 = vadd.xlane.f32.xlu0 %v1420
    %v1422 = vpop.xlane.xlu0 %1421
    %v1423 = vsel %vm97, %v1419, 0.0
    %1424 = vadd.xlane.f32.xlu0 %v1423
    %v1425 = vpop.xlane.xlu0 %1424
    %v1426 = vmul.f32 %v1422, %v1413
    %v1427 = vmul.f32 %v1425, %v1413
    %v1428 = vadd.f32 %v1426, 1e-05
    %v1429 = vadd.f32 %v1427, 1e-05
    %v1430 = vrsqrt.pop %v1428
    %v1431 = vrsqrt.pop %v1429
    %v1432 = vmul.f32 %v1416, %v1430
    %v1433 = vmul.f32 %v1417, %v1431
    %v1434 = vlaneseq
    %v1435 = vshrl.u32 %v1434, 7
    %v1436 = vsub.s32 1, %v1435
    %v1437 = vrot.slane %v83, %v1436
    %v1438 = vmul.f32 %v1432, %v1437
    %v1439 = vmul.f32 %v1433, %v1437
    %v1440 = vlaneseq
    %v1441 = vshrl.u32 %v1440, 7
    %v1442 = vsub.s32 2, %v1441
    %v1443 = vrot.slane %v83, %v1442
    %v1444 = vadd.f32 %v1438, %v1443
    %v1445 = vadd.f32 %v1439, %v1443
    %v1446 = vpack.c.bf16 %v1445, %v1444
    %v1448 = vlaneseq
    %v1449 = vshrl.u32 %v1448, 7
    %v1450 = vsub.s32 0, %v1449
    %v1451 = vrot.slane %v82, %v1450
    %v1457 = vunpack.c.l.b16 %v70
    %v1458 = vunpack.c.l.b16 %v71
    %v1459 = vunpack.c.l.b16 %v72
    %v1460 = vunpack.c.l.b16 %v73
    %v1461 = vpack.c.b16 %v1458, %v1457
    %v1462 = vpack.c.b16 %v1460, %v1459
    %v1466 = vsel %vm97, %v1446, 0
    %1468 = vmatprep.subr.bf16.mxu0 0
    %1469 = vmatpush1.bf16.msra.mxu0 0
    %1470 = vmatprep.subr.bf16.mxu0 0
    %1471 = vmatpush1.bf16.msra.mxu0 0
    %1472 = vmatprep.subr.bf16.mxu0 0
    %1473 = vmatpush1.bf16.msra.mxu0 0
    %1474 = vmatprep.subr.bf16.mxu0 0
    %1475 = vmatpush1.bf16.msra.mxu0 0
    %1476 = vmatprep.subr.bf16.mxu0 0
    %1477 = vmatpush1.bf16.msra.mxu0 0
    %1478 = vmatprep.subr.bf16.mxu0 0
    %1479 = vmatpush1.bf16.msra.mxu0 0
    %1480 = vmatprep.subr.bf16.mxu0 0
    %1481 = vmatpush1.bf16.msra.mxu0 %v1462
    %1482 = vmatprep.subr.bf16.mxu0 0
    %1483 = vmatpush1.bf16.msra.mxu0 %v1461
    %1484 = vmatprep.subr.bf16.mxu0 0
    %1485 = vmatpush2.bf16.msra.mxu0 0
    %1486 = vmatprep.subr.bf16.mxu0 0
    %1487 = vmatpush2.bf16.msra.mxu0 0
    %1488 = vmatprep.subr.bf16.mxu0 0
    %1489 = vmatpush2.bf16.msra.mxu0 0
    %1490 = vmatprep.subr.bf16.mxu0 0
    %1491 = vmatpush2.bf16.msra.mxu0 0
    %1492 = vmatprep.subr.bf16.mxu0 0
    %1493 = vmatpush2.bf16.msra.mxu0 0
    %1494 = vmatprep.subr.bf16.mxu0 0
    %1495 = vmatpush2.bf16.msra.mxu0 0
    %1496 = vmatprep.subr.bf16.mxu0 0
    %1497 = vmatpush2.bf16.msra.mxu0 0
    %1498 = vmatprep.subr.bf16.mxu0 0
    %1499 = vmatpush2.bf16.msra.mxu0 0
    %1500 = vmatprep.mubr.bf16.mxu0 0
    %1501 = vmatmul.mubr.bf16.gmra.mxu0 %v1466
    %v1502 = vpop.f32.mrf.mxu0
    %v1503 = vadd.f32 %v1451, %v1502
    %v1504 = vpop.f32.mrf.mxu0
    %v1505 = vpop.f32.mrf.mxu0
    %v1506 = vadd.f32 %v1451, %v1505
    %v1507 = vpop.f32.mrf.mxu0
    %1508 = vdwg.mxu0
    %v1509 = vmax.f32 %v1503, 0.0
    %v1510 = vmax.f32 %v1506, 0.0
    %v1511 = vpack.c.bf16 %v1510, %v1509
    %v1512 = vlaneseq
    %v1513 = vshrl.u32 %v1512, 7
    %v1514 = vsub.s32 3, %v1513
    %v1515 = vrot.slane %v83, %v1514
    %v1524 = vunpack.c.l.b16 %v74
    %v1525 = vunpack.c.l.b16 %v75
    %v1526 = vunpack.c.l.b16 %v76
    %v1527 = vunpack.c.l.b16 %v77
    %v1528 = vunpack.c.l.b16 %v78
    %v1529 = vunpack.c.l.b16 %v79
    %v1530 = vunpack.c.l.b16 %v80
    %v1531 = vunpack.c.l.b16 %v81
    %v1532 = vpack.c.b16 %v1525, %v1524
    %v1533 = vpack.c.b16 %v1527, %v1526
    %v1534 = vpack.c.b16 %v1529, %v1528
    %v1535 = vpack.c.b16 %v1531, %v1530
    %vm1540 = vcmask 523264
    %v1542 = vsel %vm1540, %v1511, 0
    %1544 = vmatprep.subr.bf16.mxu0 0
    %1545 = vmatpush1.bf16.msra.mxu0 0
    %1546 = vmatprep.subr.bf16.mxu0 0
    %1547 = vmatpush1.bf16.msra.mxu0 0
    %1548 = vmatprep.subr.bf16.mxu0 0
    %1549 = vmatpush1.bf16.msra.mxu0 0
    %1550 = vmatprep.subr.bf16.mxu0 0
    %1551 = vmatpush1.bf16.msra.mxu0 0
    %1552 = vmatprep.subr.bf16.mxu0 0
    %1553 = vmatpush1.bf16.msra.mxu0 %v1535
    %1554 = vmatprep.subr.bf16.mxu0 0
    %1555 = vmatpush1.bf16.msra.mxu0 %v1534
    %1556 = vmatprep.subr.bf16.mxu0 0
    %1557 = vmatpush1.bf16.msra.mxu0 %v1533
    %1558 = vmatprep.subr.bf16.mxu0 0
    %1559 = vmatpush1.bf16.msra.mxu0 %v1532
    %1560 = vmatprep.subr.bf16.mxu0 0
    %1561 = vmatpush2.bf16.msra.mxu0 0
    %1562 = vmatprep.subr.bf16.mxu0 0
    %1563 = vmatpush2.bf16.msra.mxu0 0
    %1564 = vmatprep.subr.bf16.mxu0 0
    %1565 = vmatpush2.bf16.msra.mxu0 0
    %1566 = vmatprep.subr.bf16.mxu0 0
    %1567 = vmatpush2.bf16.msra.mxu0 0
    %1568 = vmatprep.subr.bf16.mxu0 0
    %1569 = vmatpush2.bf16.msra.mxu0 0
    %1570 = vmatprep.subr.bf16.mxu0 0
    %1571 = vmatpush2.bf16.msra.mxu0 0
    %1572 = vmatprep.subr.bf16.mxu0 0
    %1573 = vmatpush2.bf16.msra.mxu0 0
    %1574 = vmatprep.subr.bf16.mxu0 0
    %1575 = vmatpush2.bf16.msra.mxu0 0
    %1576 = vmatprep.mubr.bf16.mxu0 0
    %1577 = vmatmul.mubr.bf16.gmra.mxu0 %v1542
    %v1578 = vpop.f32.mrf.mxu0
    %v1579 = vadd.f32 %v1515, %v1578
    %v1580 = vpop.f32.mrf.mxu0
    %v1581 = vpop.f32.mrf.mxu0
    %v1582 = vadd.f32 %v1515, %v1581
    %v1583 = vpop.f32.mrf.mxu0
    %1584 = vdwg.mxu0
    %v1585 = vadd.f32 %v1579, %v1444
    %v1586 = vadd.f32 %v1582, %v1445
    %v1587 = vsel %vm97, %v1585, 0.0
    %1588 = vadd.xlane.f32.xlu0 %v1587
    %v1589 = vpop.xlane.xlu0 %1588
    %v1590 = vsel %vm97, %v1586, 0.0
    %1591 = vadd.xlane.f32.xlu0 %v1590
    %v1592 = vpop.xlane.xlu0 %1591
    %v1593 = vmul.f32 %v1589, %v1413
    %v1594 = vmul.f32 %v1592, %v1413
    %v1595 = vsub.f32 %v1585, %v1593
    %v1596 = vsub.f32 %v1586, %v1594
    %v1597 = vmul.f32 %v1595, %v1595
    %v1598 = vmul.f32 %v1596, %v1596
    %v1599 = vsel %vm97, %v1597, 0.0
    %1600 = vadd.xlane.f32.xlu0 %v1599
    %v1601 = vpop.xlane.xlu0 %1600
    %v1602 = vsel %vm97, %v1598, 0.0
    %1603 = vadd.xlane.f32.xlu0 %v1602
    %v1604 = vpop.xlane.xlu0 %1603
    %v1605 = vmul.f32 %v1601, %v1413
    %v1606 = vmul.f32 %v1604, %v1413
    %v1607 = vadd.f32 %v1605, 1e-05
    %v1608 = vadd.f32 %v1606, 1e-05
    %v1609 = vrsqrt.pop %v1607
    %v1610 = vrsqrt.pop %v1608
    %v1611 = vmul.f32 %v1595, %v1609
    %v1612 = vmul.f32 %v1596, %v1610
    %v1613 = vlaneseq
    %v1614 = vshrl.u32 %v1613, 7
    %v1615 = vsub.s32 4, %v1614
    %v1616 = vrot.slane %v83, %v1615
    %v1617 = vmul.f32 %v1611, %v1616
    %v1618 = vmul.f32 %v1612, %v1616
    %v1619 = vlaneseq
    %v1620 = vshrl.u32 %v1619, 7
    %v1621 = vsub.s32 5, %v1620
    %v1622 = vrot.slane %v83, %v1621
    %v1623 = vadd.f32 %v1617, %v1622
    %v1624 = vadd.f32 %v1618, %v1622
    %v1625 = vpack.c.bf16 %v1624, %v1623
    %v1627 = vsel %vm97, %v1625, 0
    %1629 = vmatprep.subr.bf16.mxu0 0
    %1630 = vmatpush1.bf16.msra.mxu0 0
    %1631 = vmatprep.subr.bf16.mxu0 0
    %1632 = vmatpush1.bf16.msra.mxu0 0
    %1633 = vmatprep.subr.bf16.mxu0 0
    %1634 = vmatpush1.bf16.msra.mxu0 0
    %1635 = vmatprep.subr.bf16.mxu0 0
    %1636 = vmatpush1.bf16.msra.mxu0 0
    %1637 = vmatprep.subr.bf16.mxu0 0
    %1638 = vmatpush1.bf16.msra.mxu0 0
    %1639 = vmatprep.subr.bf16.mxu0 0
    %1640 = vmatpush1.bf16.msra.mxu0 0
    %1641 = vmatprep.subr.bf16.mxu0 0
    %1642 = vmatpush1.bf16.msra.mxu0 %v94
    %1643 = vmatprep.subr.bf16.mxu0 0
    %1644 = vmatpush1.bf16.msra.mxu0 %v93
    %1645 = vmatprep.subr.bf16.mxu0 0
    %1646 = vmatpush2.bf16.msra.mxu0 0
    %1647 = vmatprep.subr.bf16.mxu0 0
    %1648 = vmatpush2.bf16.msra.mxu0 0
    %1649 = vmatprep.subr.bf16.mxu0 0
    %1650 = vmatpush2.bf16.msra.mxu0 0
    %1651 = vmatprep.subr.bf16.mxu0 0
    %1652 = vmatpush2.bf16.msra.mxu0 0
    %1653 = vmatprep.subr.bf16.mxu0 0
    %1654 = vmatpush2.bf16.msra.mxu0 0
    %1655 = vmatprep.subr.bf16.mxu0 0
    %1656 = vmatpush2.bf16.msra.mxu0 0
    %1657 = vmatprep.subr.bf16.mxu0 0
    %1658 = vmatpush2.bf16.msra.mxu0 0
    %1659 = vmatprep.subr.bf16.mxu0 0
    %1660 = vmatpush2.bf16.msra.mxu0 0
    %1661 = vmatprep.mubr.bf16.mxu0 0
    %1662 = vmatmul.mubr.bf16.gmra.mxu0 %v1627
    %v1663 = vpop.f32.mrf.mxu0
    %v1664 = vadd.f32 0.0, %v1663
    %v1665 = vpop.f32.mrf.mxu0
    %v1666 = vpop.f32.mrf.mxu0
    %v1667 = vadd.f32 0.0, %v1666
    %v1668 = vpop.f32.mrf.mxu0
    %1669 = vdwg.mxu0
    %v1670 = vpack.c.bf16 %v1667, %v1664
    %v1672 = vunpack.c.l.b16 %v1670
    %v1673 = vunpack.c.h.b16 %v1670
    %v1674 = vpack.c.b16 %v1672, %v1672
    %v1675 = vpack.c.b16 %v1673, %v1673
    %1678 = vxpose.xlu0.c.b16.start [1/8] %v1674, 128
    %1679 = vxpose.xlu0.c.b16.cont [2/8] 0, 128
    %1680 = vxpose.xlu0.c.b16.cont [3/8] 0, 128
    %1681 = vxpose.xlu0.c.b16.cont [4/8] 0, 128
    %1682 = vxpose.xlu0.c.b16.cont [5/8] 0, 128
    %1683 = vxpose.xlu0.c.b16.cont [6/8] 0, 128
    %1684 = vxpose.xlu0.c.b16.cont [7/8] 0, 128
    %1685 = vxpose.xlu0.c.b16.end [8/8] 0, 128
    %v1686 = vpop.trf.xlu0
    %v1687 = vpop.trf.xlu0
    %v1688 = vpop.trf.xlu0
    %v1689 = vpop.trf.xlu0
    %v1690 = vpop.trf.xlu0
    %v1691 = vpop.trf.xlu0
    %v1692 = vpop.trf.xlu0
    %v1693 = vpop.trf.xlu0
    %1694 = vxpose.xlu0.c.b16.start [1/8] %v1675, 128
    %1695 = vxpose.xlu0.c.b16.cont [2/8] 0, 128
    %1696 = vxpose.xlu0.c.b16.cont [3/8] 0, 128
    %1697 = vxpose.xlu0.c.b16.cont [4/8] 0, 128
    %1698 = vxpose.xlu0.c.b16.cont [5/8] 0, 128
    %1699 = vxpose.xlu0.c.b16.cont [6/8] 0, 128
    %1700 = vxpose.xlu0.c.b16.cont [7/8] 0, 128
    %1701 = vxpose.xlu0.c.b16.end [8/8] 0, 128
    %v1702 = vpop.trf.xlu0
    %v1703 = vpop.trf.xlu0
    %v1704 = vpop.trf.xlu0
    %v1705 = vpop.trf.xlu0
    %v1706 = vpop.trf.xlu0
    %v1707 = vpop.trf.xlu0
    %v1708 = vpop.trf.xlu0
    %v1709 = vpop.trf.xlu0
    %v1722 = vunpack.c.l.b16 %v1686
    %v1723 = vunpack.c.h.b16 %v1686
    %v1724 = vunpack.c.l.b16 %v1687
    %v1725 = vunpack.c.h.b16 %v1687
    %v1726 = vunpack.c.l.b16 %v1688
    %v1727 = vunpack.c.h.b16 %v1688
    %v1728 = vunpack.c.l.b16 %v1689
    %v1729 = vunpack.c.h.b16 %v1689
    %v1730 = vunpack.c.l.b16 %v1690
    %v1731 = vunpack.c.h.b16 %v1690
    %v1732 = vunpack.c.l.b16 %v1691
    %v1733 = vunpack.c.h.b16 %v1691
    %v1734 = vunpack.c.l.b16 %v1702
    %v1735 = vunpack.c.h.b16 %v1702
    %v1736 = vunpack.c.l.b16 %v1703
    %v1737 = vunpack.c.h.b16 %v1703
    %v1738 = vunpack.c.l.b16 %v1704
    %v1739 = vunpack.c.h.b16 %v1704
    %v1740 = vunpack.c.l.b16 %v1705
    %v1741 = vunpack.c.h.b16 %v1705
    %v1742 = vunpack.c.l.b16 %v1706
    %v1743 = vunpack.c.h.b16 %v1706
    %v1744 = vunpack.c.l.b16 %v1707
    %v1745 = vunpack.c.h.b16 %v1707
    %v1746 = vpack.c.b16 %v1722, %v1722
    %v1747 = vpack.c.b16 %v1723, %v1723
    %v1748 = vpack.c.b16 %v1724, %v1724
    %v1749 = vpack.c.b16 %v1725, %v1725
    %v1750 = vpack.c.b16 %v1726, %v1726
    %v1751 = vpack.c.b16 %v1727, %v1727
    %v1752 = vpack.c.b16 %v1728, %v1728
    %v1753 = vpack.c.b16 %v1729, %v1729
    %v1754 = vpack.c.b16 %v1730, %v1730
    %v1755 = vpack.c.b16 %v1731, %v1731
    %v1756 = vpack.c.b16 %v1732, %v1732
    %v1757 = vpack.c.b16 %v1733, %v1733
    %v1758 = vpack.c.b16 %v1734, %v1734
    %v1759 = vpack.c.b16 %v1735, %v1735
    %v1760 = vpack.c.b16 %v1736, %v1736
    %v1761 = vpack.c.b16 %v1737, %v1737
    %v1762 = vpack.c.b16 %v1738, %v1738
    %v1763 = vpack.c.b16 %v1739, %v1739
    %v1764 = vpack.c.b16 %v1740, %v1740
    %v1765 = vpack.c.b16 %v1741, %v1741
    %v1766 = vpack.c.b16 %v1742, %v1742
    %v1767 = vpack.c.b16 %v1743, %v1743
    %v1768 = vpack.c.b16 %v1744, %v1744
    %v1769 = vpack.c.b16 %v1745, %v1745
    %1778 = vxpose.xlu0.c.b16.start [1/8] %v1750, 128
    %1779 = vxpose.xlu0.c.b16.cont [2/8] 0, 128
    %1780 = vxpose.xlu0.c.b16.cont [3/8] 0, 128
    %1781 = vxpose.xlu0.c.b16.cont [4/8] 0, 128
    %1782 = vxpose.xlu0.c.b16.cont [5/8] 0, 128
    %1783 = vxpose.xlu0.c.b16.cont [6/8] 0, 128
    %1784 = vxpose.xlu0.c.b16.cont [7/8] 0, 128
    %1785 = vxpose.xlu0.c.b16.end [8/8] 0, 128
    %v1786 = vpop.trf.xlu0
    %v1787 = vpop.trf.xlu0
    %v1788 = vpop.trf.xlu0
    %v1789 = vpop.trf.xlu0
    %v1790 = vpop.trf.xlu0
    %v1791 = vpop.trf.xlu0
    %v1792 = vpop.trf.xlu0
    %v1793 = vpop.trf.xlu0
    %1794 = vxpose.xlu0.c.b16.start [1/8] %v1751, 128
    %1795 = vxpose.xlu0.c.b16.cont [2/8] 0, 128
    %1796 = vxpose.xlu0.c.b16.cont [3/8] 0, 128
    %1797 = vxpose.xlu0.c.b16.cont [4/8] 0, 128
    %1798 = vxpose.xlu0.c.b16.cont [5/8] 0, 128
    %1799 = vxpose.xlu0.c.b16.cont [6/8] 0, 128
    %1800 = vxpose.xlu0.c.b16.cont [7/8] 0, 128
    %1801 = vxpose.xlu0.c.b16.end [8/8] 0, 128
    %v1802 = vpop.trf.xlu0
    %v1803 = vpop.trf.xlu0
    %v1804 = vpop.trf.xlu0
    %v1805 = vpop.trf.xlu0
    %v1806 = vpop.trf.xlu0
    %v1807 = vpop.trf.xlu0
    %v1808 = vpop.trf.xlu0
    %v1809 = vpop.trf.xlu0
    %1810 = vxpose.xlu0.c.b16.start [1/8] %v1752, 128
    %1811 = vxpose.xlu0.c.b16.cont [2/8] 0, 128
    %1812 = vxpose.xlu0.c.b16.cont [3/8] 0, 128
    %1813 = vxpose.xlu0.c.b16.cont [4/8] 0, 128
    %1814 = vxpose.xlu0.c.b16.cont [5/8] 0, 128
    %1815 = vxpose.xlu0.c.b16.cont [6/8] 0, 128
    %1816 = vxpose.xlu0.c.b16.cont [7/8] 0, 128
    %1817 = vxpose.xlu0.c.b16.end [8/8] 0, 128
    %v1818 = vpop.trf.xlu0
    %v1819 = vpop.trf.xlu0
    %v1820 = vpop.trf.xlu0
    %v1821 = vpop.trf.xlu0
    %v1822 = vpop.trf.xlu0
    %v1823 = vpop.trf.xlu0
    %v1824 = vpop.trf.xlu0
    %v1825 = vpop.trf.xlu0
    %1826 = vxpose.xlu0.c.b16.start [1/8] %v1753, 128
    %1827 = vxpose.xlu0.c.b16.cont [2/8] 0, 128
    %1828 = vxpose.xlu0.c.b16.cont [3/8] 0, 128
    %1829 = vxpose.xlu0.c.b16.cont [4/8] 0, 128
    %1830 = vxpose.xlu0.c.b16.cont [5/8] 0, 128
    %1831 = vxpose.xlu0.c.b16.cont [6/8] 0, 128
    %1832 = vxpose.xlu0.c.b16.cont [7/8] 0, 128
    %1833 = vxpose.xlu0.c.b16.end [8/8] 0, 128
    %v1834 = vpop.trf.xlu0
    %v1835 = vpop.trf.xlu0
    %v1836 = vpop.trf.xlu0
    %v1837 = vpop.trf.xlu0
    %v1838 = vpop.trf.xlu0
    %v1839 = vpop.trf.xlu0
    %v1840 = vpop.trf.xlu0
    %v1841 = vpop.trf.xlu0
    %1842 = vxpose.xlu0.c.b16.start [1/8] %v1762, 128
    %1843 = vxpose.xlu0.c.b16.cont [2/8] 0, 128
    %1844 = vxpose.xlu0.c.b16.cont [3/8] 0, 128
    %1845 = vxpose.xlu0.c.b16.cont [4/8] 0, 128
    %1846 = vxpose.xlu0.c.b16.cont [5/8] 0, 128
    %1847 = vxpose.xlu0.c.b16.cont [6/8] 0, 128
    %1848 = vxpose.xlu0.c.b16.cont [7/8] 0, 128
    %1849 = vxpose.xlu0.c.b16.end [8/8] 0, 128
    %v1850 = vpop.trf.xlu0
    %v1851 = vpop.trf.xlu0
    %v1852 = vpop.trf.xlu0
    %v1853 = vpop.trf.xlu0
    %v1854 = vpop.trf.xlu0
    %v1855 = vpop.trf.xlu0
    %v1856 = vpop.trf.xlu0
    %v1857 = vpop.trf.xlu0
    %1858 = vxpose.xlu0.c.b16.start [1/8] %v1763, 128
    %1859 = vxpose.xlu0.c.b16.cont [2/8] 0, 128
    %1860 = vxpose.xlu0.c.b16.cont [3/8] 0, 128
    %1861 = vxpose.xlu0.c.b16.cont [4/8] 0, 128
    %1862 = vxpose.xlu0.c.b16.cont [5/8] 0, 128
    %1863 = vxpose.xlu0.c.b16.cont [6/8] 0, 128
    %1864 = vxpose.xlu0.c.b16.cont [7/8] 0, 128
    %1865 = vxpose.xlu0.c.b16.end [8/8] 0, 128
    %v1866 = vpop.trf.xlu0
    %v1867 = vpop.trf.xlu0
    %v1868 = vpop.trf.xlu0
    %v1869 = vpop.trf.xlu0
    %v1870 = vpop.trf.xlu0
    %v1871 = vpop.trf.xlu0
    %v1872 = vpop.trf.xlu0
    %v1873 = vpop.trf.xlu0
    %1874 = vxpose.xlu0.c.b16.start [1/8] %v1764, 128
    %1875 = vxpose.xlu0.c.b16.cont [2/8] 0, 128
    %1876 = vxpose.xlu0.c.b16.cont [3/8] 0, 128
    %1877 = vxpose.xlu0.c.b16.cont [4/8] 0, 128
    %1878 = vxpose.xlu0.c.b16.cont [5/8] 0, 128
    %1879 = vxpose.xlu0.c.b16.cont [6/8] 0, 128
    %1880 = vxpose.xlu0.c.b16.cont [7/8] 0, 128
    %1881 = vxpose.xlu0.c.b16.end [8/8] 0, 128
    %v1882 = vpop.trf.xlu0
    %v1883 = vpop.trf.xlu0
    %v1884 = vpop.trf.xlu0
    %v1885 = vpop.trf.xlu0
    %v1886 = vpop.trf.xlu0
    %v1887 = vpop.trf.xlu0
    %v1888 = vpop.trf.xlu0
    %v1889 = vpop.trf.xlu0
    %1890 = vxpose.xlu0.c.b16.start [1/8] %v1765, 128
    %1891 = vxpose.xlu0.c.b16.cont [2/8] 0, 128
    %1892 = vxpose.xlu0.c.b16.cont [3/8] 0, 128
    %1893 = vxpose.xlu0.c.b16.cont [4/8] 0, 128
    %1894 = vxpose.xlu0.c.b16.cont [5/8] 0, 128
    %1895 = vxpose.xlu0.c.b16.cont [6/8] 0, 128
    %1896 = vxpose.xlu0.c.b16.cont [7/8] 0, 128
    %1897 = vxpose.xlu0.c.b16.end [8/8] 0, 128
    %v1898 = vpop.trf.xlu0
    %v1899 = vpop.trf.xlu0
    %v1900 = vpop.trf.xlu0
    %v1901 = vpop.trf.xlu0
    %v1902 = vpop.trf.xlu0
    %v1903 = vpop.trf.xlu0
    %v1904 = vpop.trf.xlu0
    %v1905 = vpop.trf.xlu0
    %v1907 = vsel %vm378, %v1786, 0
    %v1910 = vsel %vm382, %v1746, 0
    %1912 = vmatprep.subr.bf16.mxu0 0
    %1913 = vmatpush1.bf16.msra.mxu0 0
    %1914 = vmatprep.subr.bf16.mxu0 0
    %1915 = vmatpush1.bf16.msra.mxu0 0
    %1916 = vmatprep.subr.bf16.mxu0 0
    %1917 = vmatpush1.bf16.msra.mxu0 0
    %1918 = vmatprep.subr.bf16.mxu0 0
    %1919 = vmatpush1.bf16.msra.mxu0 0
    %1920 = vmatprep.subr.bf16.mxu0 0
    %1921 = vmatpush1.bf16.msra.mxu0 0
    %1922 = vmatprep.subr.bf16.mxu0 0
    %1923 = vmatpush1.bf16.msra.mxu0 0
    %1924 = vmatprep.subr.bf16.mxu0 0
    %1925 = vmatpush1.bf16.msra.mxu0 0
    %1926 = vmatprep.subr.bf16.mxu0 0
    %1927 = vmatpush1.bf16.msra.mxu0 %v1910
    %1928 = vmatprep.subr.bf16.mxu0 0
    %1929 = vmatpush2.bf16.msra.mxu0 0
    %1930 = vmatprep.subr.bf16.mxu0 0
    %1931 = vmatpush2.bf16.msra.mxu0 0
    %1932 = vmatprep.subr.bf16.mxu0 0
    %1933 = vmatpush2.bf16.msra.mxu0 0
    %1934 = vmatprep.subr.bf16.mxu0 0
    %1935 = vmatpush2.bf16.msra.mxu0 0
    %1936 = vmatprep.subr.bf16.mxu0 0
    %1937 = vmatpush2.bf16.msra.mxu0 0
    %1938 = vmatprep.subr.bf16.mxu0 0
    %1939 = vmatpush2.bf16.msra.mxu0 0
    %1940 = vmatprep.subr.bf16.mxu0 0
    %1941 = vmatpush2.bf16.msra.mxu0 0
    %1942 = vmatprep.subr.bf16.mxu0 0
    %1943 = vmatpush2.bf16.msra.mxu0 0
    %1944 = vmatprep.mubr.bf16.mxu0 0
    %1945 = vmatmul.mubr.bf16.gmra.mxu0 %v1907
    %v1946 = vpop.f32.mrf.mxu0
    %v1947 = vadd.f32 0.0, %v1946
    %v1948 = vpop.f32.mrf.mxu0
    %v1949 = vpop.f32.mrf.mxu0
    %v1950 = vpop.f32.mrf.mxu0
    %1951 = vdwg.mxu0
    %v1953 = vsel %vm378, %v1802, 0
    %v1956 = vsel %vm382, %v1747, 0
    %1958 = vmatprep.subr.bf16.mxu0 0
    %1959 = vmatpush1.bf16.msra.mxu0 0
    %1960 = vmatprep.subr.bf16.mxu0 0
    %1961 = vmatpush1.bf16.msra.mxu0 0
    %1962 = vmatprep.subr.bf16.mxu0 0
    %1963 = vmatpush1.bf16.msra.mxu0 0
    %1964 = vmatprep.subr.bf16.mxu0 0
    %1965 = vmatpush1.bf16.msra.mxu0 0
    %1966 = vmatprep.subr.bf16.mxu0 0
    %1967 = vmatpush1.bf16.msra.mxu0 0
    %1968 = vmatprep.subr.bf16.mxu0 0
    %1969 = vmatpush1.bf16.msra.mxu0 0
    %1970 = vmatprep.subr.bf16.mxu0 0
    %1971 = vmatpush1.bf16.msra.mxu0 0
    %1972 = vmatprep.subr.bf16.mxu0 0
    %1973 = vmatpush1.bf16.msra.mxu0 %v1956
    %1974 = vmatprep.subr.bf16.mxu0 0
    %1975 = vmatpush2.bf16.msra.mxu0 0
    %1976 = vmatprep.subr.bf16.mxu0 0
    %1977 = vmatpush2.bf16.msra.mxu0 0
    %1978 = vmatprep.subr.bf16.mxu0 0
    %1979 = vmatpush2.bf16.msra.mxu0 0
    %1980 = vmatprep.subr.bf16.mxu0 0
    %1981 = vmatpush2.bf16.msra.mxu0 0
    %1982 = vmatprep.subr.bf16.mxu0 0
    %1983 = vmatpush2.bf16.msra.mxu0 0
    %1984 = vmatprep.subr.bf16.mxu0 0
    %1985 = vmatpush2.bf16.msra.mxu0 0
    %1986 = vmatprep.subr.bf16.mxu0 0
    %1987 = vmatpush2.bf16.msra.mxu0 0
    %1988 = vmatprep.subr.bf16.mxu0 0
    %1989 = vmatpush2.bf16.msra.mxu0 0
    %1990 = vmatprep.mubr.bf16.mxu0 0
    %1991 = vmatmul.mubr.bf16.gmra.mxu0 %v1953
    %v1992 = vpop.f32.mrf.mxu0
    %v1993 = vadd.f32 0.0, %v1992
    %v1994 = vpop.f32.mrf.mxu0
    %v1995 = vpop.f32.mrf.mxu0
    %v1996 = vpop.f32.mrf.mxu0
    %1997 = vdwg.mxu0
    %v1999 = vsel %vm378, %v1818, 0
    %v2002 = vsel %vm382, %v1748, 0
    %2004 = vmatprep.subr.bf16.mxu0 0
    %2005 = vmatpush1.bf16.msra.mxu0 0
    %2006 = vmatprep.subr.bf16.mxu0 0
    %2007 = vmatpush1.bf16.msra.mxu0 0
    %2008 = vmatprep.subr.bf16.mxu0 0
    %2009 = vmatpush1.bf16.msra.mxu0 0
    %2010 = vmatprep.subr.bf16.mxu0 0
    %2011 = vmatpush1.bf16.msra.mxu0 0
    %2012 = vmatprep.subr.bf16.mxu0 0
    %2013 = vmatpush1.bf16.msra.mxu0 0
    %2014 = vmatprep.subr.bf16.mxu0 0
    %2015 = vmatpush1.bf16.msra.mxu0 0
    %2016 = vmatprep.subr.bf16.mxu0 0
    %2017 = vmatpush1.bf16.msra.mxu0 0
    %2018 = vmatprep.subr.bf16.mxu0 0
    %2019 = vmatpush1.bf16.msra.mxu0 %v2002
    %2020 = vmatprep.subr.bf16.mxu0 0
    %2021 = vmatpush2.bf16.msra.mxu0 0
    %2022 = vmatprep.subr.bf16.mxu0 0
    %2023 = vmatpush2.bf16.msra.mxu0 0
    %2024 = vmatprep.subr.bf16.mxu0 0
    %2025 = vmatpush2.bf16.msra.mxu0 0
    %2026 = vmatprep.subr.bf16.mxu0 0
    %2027 = vmatpush2.bf16.msra.mxu0 0
    %2028 = vmatprep.subr.bf16.mxu0 0
    %2029 = vmatpush2.bf16.msra.mxu0 0
    %2030 = vmatprep.subr.bf16.mxu0 0
    %2031 = vmatpush2.bf16.msra.mxu0 0
    %2032 = vmatprep.subr.bf16.mxu0 0
    %2033 = vmatpush2.bf16.msra.mxu0 0
    %2034 = vmatprep.subr.bf16.mxu0 0
    %2035 = vmatpush2.bf16.msra.mxu0 0
    %2036 = vmatprep.mubr.bf16.mxu0 0
    %2037 = vmatmul.mubr.bf16.gmra.mxu0 %v1999
    %v2038 = vpop.f32.mrf.mxu0
    %v2039 = vadd.f32 0.0, %v2038
    %v2040 = vpop.f32.mrf.mxu0
    %v2041 = vpop.f32.mrf.mxu0
    %v2042 = vpop.f32.mrf.mxu0
    %2043 = vdwg.mxu0
    %v2045 = vsel %vm378, %v1834, 0
    %v2048 = vsel %vm382, %v1749, 0
    %2050 = vmatprep.subr.bf16.mxu0 0
    %2051 = vmatpush1.bf16.msra.mxu0 0
    %2052 = vmatprep.subr.bf16.mxu0 0
    %2053 = vmatpush1.bf16.msra.mxu0 0
    %2054 = vmatprep.subr.bf16.mxu0 0
    %2055 = vmatpush1.bf16.msra.mxu0 0
    %2056 = vmatprep.subr.bf16.mxu0 0
    %2057 = vmatpush1.bf16.msra.mxu0 0
    %2058 = vmatprep.subr.bf16.mxu0 0
    %2059 = vmatpush1.bf16.msra.mxu0 0
    %2060 = vmatprep.subr.bf16.mxu0 0
    %2061 = vmatpush1.bf16.msra.mxu0 0
    %2062 = vmatprep.subr.bf16.mxu0 0
    %2063 = vmatpush1.bf16.msra.mxu0 0
    %2064 = vmatprep.subr.bf16.mxu0 0
    %2065 = vmatpush1.bf16.msra.mxu0 %v2048
    %2066 = vmatprep.subr.bf16.mxu0 0
    %2067 = vmatpush2.bf16.msra.mxu0 0
    %2068 = vmatprep.subr.bf16.mxu0 0
    %2069 = vmatpush2.bf16.msra.mxu0 0
    %2070 = vmatprep.subr.bf16.mxu0 0
    %2071 = vmatpush2.bf16.msra.mxu0 0
    %2072 = vmatprep.subr.bf16.mxu0 0
    %2073 = vmatpush2.bf16.msra.mxu0 0
    %2074 = vmatprep.subr.bf16.mxu0 0
    %2075 = vmatpush2.bf16.msra.mxu0 0
    %2076 = vmatprep.subr.bf16.mxu0 0
    %2077 = vmatpush2.bf16.msra.mxu0 0
    %2078 = vmatprep.subr.bf16.mxu0 0
    %2079 = vmatpush2.bf16.msra.mxu0 0
    %2080 = vmatprep.subr.bf16.mxu0 0
    %2081 = vmatpush2.bf16.msra.mxu0 0
    %2082 = vmatprep.mubr.bf16.mxu0 0
    %2083 = vmatmul.mubr.bf16.gmra.mxu0 %v2045
    %v2084 = vpop.f32.mrf.mxu0
    %v2085 = vadd.f32 0.0, %v2084
    %v2086 = vpop.f32.mrf.mxu0
    %v2087 = vpop.f32.mrf.mxu0
    %v2088 = vpop.f32.mrf.mxu0
    %2089 = vdwg.mxu0
    %v2091 = vsel %vm378, %v1850, 0
    %v2094 = vsel %vm382, %v1758, 0
    %2096 = vmatprep.subr.bf16.mxu0 0
    %2097 = vmatpush1.bf16.msra.mxu0 0
    %2098 = vmatprep.subr.bf16.mxu0 0
    %2099 = vmatpush1.bf16.msra.mxu0 0
    %2100 = vmatprep.subr.bf16.mxu0 0
    %2101 = vmatpush1.bf16.msra.mxu0 0
    %2102 = vmatprep.subr.bf16.mxu0 0
    %2103 = vmatpush1.bf16.msra.mxu0 0
    %2104 = vmatprep.subr.bf16.mxu0 0
    %2105 = vmatpush1.bf16.msra.mxu0 0
    %2106 = vmatprep.subr.bf16.mxu0 0
    %2107 = vmatpush1.bf16.msra.mxu0 0
    %2108 = vmatprep.subr.bf16.mxu0 0
    %2109 = vmatpush1.bf16.msra.mxu0 0
    %2110 = vmatprep.subr.bf16.mxu0 0
    %2111 = vmatpush1.bf16.msra.mxu0 %v2094
    %2112 = vmatprep.subr.bf16.mxu0 0
    %2113 = vmatpush2.bf16.msra.mxu0 0
    %2114 = vmatprep.subr.bf16.mxu0 0
    %2115 = vmatpush2.bf16.msra.mxu0 0
    %2116 = vmatprep.subr.bf16.mxu0 0
    %2117 = vmatpush2.bf16.msra.mxu0 0
    %2118 = vmatprep.subr.bf16.mxu0 0
    %2119 = vmatpush2.bf16.msra.mxu0 0
    %2120 = vmatprep.subr.bf16.mxu0 0
    %2121 = vmatpush2.bf16.msra.mxu0 0
    %2122 = vmatprep.subr.bf16.mxu0 0
    %2123 = vmatpush2.bf16.msra.mxu0 0
    %2124 = vmatprep.subr.bf16.mxu0 0
    %2125 = vmatpush2.bf16.msra.mxu0 0
    %2126 = vmatprep.subr.bf16.mxu0 0
    %2127 = vmatpush2.bf16.msra.mxu0 0
    %2128 = vmatprep.mubr.bf16.mxu0 0
    %2129 = vmatmul.mubr.bf16.gmra.mxu0 %v2091
    %v2130 = vpop.f32.mrf.mxu0
    %v2131 = vadd.f32 0.0, %v2130
    %v2132 = vpop.f32.mrf.mxu0
    %v2133 = vpop.f32.mrf.mxu0
    %v2134 = vpop.f32.mrf.mxu0
    %2135 = vdwg.mxu0
    %v2137 = vsel %vm378, %v1866, 0
    %v2140 = vsel %vm382, %v1759, 0
    %2142 = vmatprep.subr.bf16.mxu0 0
    %2143 = vmatpush1.bf16.msra.mxu0 0
    %2144 = vmatprep.subr.bf16.mxu0 0
    %2145 = vmatpush1.bf16.msra.mxu0 0
    %2146 = vmatprep.subr.bf16.mxu0 0
    %2147 = vmatpush1.bf16.msra.mxu0 0
    %2148 = vmatprep.subr.bf16.mxu0 0
    %2149 = vmatpush1.bf16.msra.mxu0 0
    %2150 = vmatprep.subr.bf16.mxu0 0
    %2151 = vmatpush1.bf16.msra.mxu0 0
    %2152 = vmatprep.subr.bf16.mxu0 0
    %2153 = vmatpush1.bf16.msra.mxu0 0
    %2154 = vmatprep.subr.bf16.mxu0 0
    %2155 = vmatpush1.bf16.msra.mxu0 0
    %2156 = vmatprep.subr.bf16.mxu0 0
    %2157 = vmatpush1.bf16.msra.mxu0 %v2140
    %2158 = vmatprep.subr.bf16.mxu0 0
    %2159 = vmatpush2.bf16.msra.mxu0 0
    %2160 = vmatprep.subr.bf16.mxu0 0
    %2161 = vmatpush2.bf16.msra.mxu0 0
    %2162 = vmatprep.subr.bf16.mxu0 0
    %2163 = vmatpush2.bf16.msra.mxu0 0
    %2164 = vmatprep.subr.bf16.mxu0 0
    %2165 = vmatpush2.bf16.msra.mxu0 0
    %2166 = vmatprep.subr.bf16.mxu0 0
    %2167 = vmatpush2.bf16.msra.mxu0 0
    %2168 = vmatprep.subr.bf16.mxu0 0
    %2169 = vmatpush2.bf16.msra.mxu0 0
    %2170 = vmatprep.subr.bf16.mxu0 0
    %2171 = vmatpush2.bf16.msra.mxu0 0
    %2172 = vmatprep.subr.bf16.mxu0 0
    %2173 = vmatpush2.bf16.msra.mxu0 0
    %2174 = vmatprep.mubr.bf16.mxu0 0
    %2175 = vmatmul.mubr.bf16.gmra.mxu0 %v2137
    %v2176 = vpop.f32.mrf.mxu0
    %v2177 = vadd.f32 0.0, %v2176
    %v2178 = vpop.f32.mrf.mxu0
    %v2179 = vpop.f32.mrf.mxu0
    %v2180 = vpop.f32.mrf.mxu0
    %2181 = vdwg.mxu0
    %v2183 = vsel %vm378, %v1882, 0
    %v2186 = vsel %vm382, %v1760, 0
    %2188 = vmatprep.subr.bf16.mxu0 0
    %2189 = vmatpush1.bf16.msra.mxu0 0
    %2190 = vmatprep.subr.bf16.mxu0 0
    %2191 = vmatpush1.bf16.msra.mxu0 0
    %2192 = vmatprep.subr.bf16.mxu0 0
    %2193 = vmatpush1.bf16.msra.mxu0 0
    %2194 = vmatprep.subr.bf16.mxu0 0
    %2195 = vmatpush1.bf16.msra.mxu0 0
    %2196 = vmatprep.subr.bf16.mxu0 0
    %2197 = vmatpush1.bf16.msra.mxu0 0
    %2198 = vmatprep.subr.bf16.mxu0 0
    %2199 = vmatpush1.bf16.msra.mxu0 0
    %2200 = vmatprep.subr.bf16.mxu0 0
    %2201 = vmatpush1.bf16.msra.mxu0 0
    %2202 = vmatprep.subr.bf16.mxu0 0
    %2203 = vmatpush1.bf16.msra.mxu0 %v2186
    %2204 = vmatprep.subr.bf16.mxu0 0
    %2205 = vmatpush2.bf16.msra.mxu0 0
    %2206 = vmatprep.subr.bf16.mxu0 0
    %2207 = vmatpush2.bf16.msra.mxu0 0
    %2208 = vmatprep.subr.bf16.mxu0 0
    %2209 = vmatpush2.bf16.msra.mxu0 0
    %2210 = vmatprep.subr.bf16.mxu0 0
    %2211 = vmatpush2.bf16.msra.mxu0 0
    %2212 = vmatprep.subr.bf16.mxu0 0
    %2213 = vmatpush2.bf16.msra.mxu0 0
    %2214 = vmatprep.subr.bf16.mxu0 0
    %2215 = vmatpush2.bf16.msra.mxu0 0
    %2216 = vmatprep.subr.bf16.mxu0 0
    %2217 = vmatpush2.bf16.msra.mxu0 0
    %2218 = vmatprep.subr.bf16.mxu0 0
    %2219 = vmatpush2.bf16.msra.mxu0 0
    %2220 = vmatprep.mubr.bf16.mxu0 0
    %2221 = vmatmul.mubr.bf16.gmra.mxu0 %v2183
    %v2222 = vpop.f32.mrf.mxu0
    %v2223 = vadd.f32 0.0, %v2222
    %v2224 = vpop.f32.mrf.mxu0
    %v2225 = vpop.f32.mrf.mxu0
    %v2226 = vpop.f32.mrf.mxu0
    %2227 = vdwg.mxu0
    %v2229 = vsel %vm378, %v1898, 0
    %v2232 = vsel %vm382, %v1761, 0
    %2234 = vmatprep.subr.bf16.mxu0 0
    %2235 = vmatpush1.bf16.msra.mxu0 0
    %2236 = vmatprep.subr.bf16.mxu0 0
    %2237 = vmatpush1.bf16.msra.mxu0 0
    %2238 = vmatprep.subr.bf16.mxu0 0
    %2239 = vmatpush1.bf16.msra.mxu0 0
    %2240 = vmatprep.subr.bf16.mxu0 0
    %2241 = vmatpush1.bf16.msra.mxu0 0
    %2242 = vmatprep.subr.bf16.mxu0 0
    %2243 = vmatpush1.bf16.msra.mxu0 0
    %2244 = vmatprep.subr.bf16.mxu0 0
    %2245 = vmatpush1.bf16.msra.mxu0 0
    %2246 = vmatprep.subr.bf16.mxu0 0
    %2247 = vmatpush1.bf16.msra.mxu0 0
    %2248 = vmatprep.subr.bf16.mxu0 0
    %2249 = vmatpush1.bf16.msra.mxu0 %v2232
    %2250 = vmatprep.subr.bf16.mxu0 0
    %2251 = vmatpush2.bf16.msra.mxu0 0
    %2252 = vmatprep.subr.bf16.mxu0 0
    %2253 = vmatpush2.bf16.msra.mxu0 0
    %2254 = vmatprep.subr.bf16.mxu0 0
    %2255 = vmatpush2.bf16.msra.mxu0 0
    %2256 = vmatprep.subr.bf16.mxu0 0
    %2257 = vmatpush2.bf16.msra.mxu0 0
    %2258 = vmatprep.subr.bf16.mxu0 0
    %2259 = vmatpush2.bf16.msra.mxu0 0
    %2260 = vmatprep.subr.bf16.mxu0 0
    %2261 = vmatpush2.bf16.msra.mxu0 0
    %2262 = vmatprep.subr.bf16.mxu0 0
    %2263 = vmatpush2.bf16.msra.mxu0 0
    %2264 = vmatprep.subr.bf16.mxu0 0
    %2265 = vmatpush2.bf16.msra.mxu0 0
    %2266 = vmatprep.mubr.bf16.mxu0 0
    %2267 = vmatmul.mubr.bf16.gmra.mxu0 %v2229
    %v2268 = vpop.f32.mrf.mxu0
    %v2269 = vadd.f32 0.0, %v2268
    %v2270 = vpop.f32.mrf.mxu0
    %v2271 = vpop.f32.mrf.mxu0
    %v2272 = vpop.f32.mrf.mxu0
    %2273 = vdwg.mxu0
    %v2274 = vsel %vm378, %v1947, -inf
    %v2275 = vrot.slane %v2274, 4
    %v2276 = vmax.f32 %v2274, %v2275
    %v2277 = vrot.slane %v2276, 2
    %v2278 = vmax.f32 %v2276, %v2277
    %v2279 = vrot.slane %v2278, 1
    %v2280 = vmax.f32 %v2278, %v2279
    %v2281 = vsel %vm378, %v1993, -inf
    %v2282 = vrot.slane %v2281, 4
    %v2283 = vmax.f32 %v2281, %v2282
    %v2284 = vrot.slane %v2283, 2
    %v2285 = vmax.f32 %v2283, %v2284
    %v2286 = vrot.slane %v2285, 1
    %v2287 = vmax.f32 %v2285, %v2286
    %v2288 = vsel %vm378, %v2039, -inf
    %v2289 = vrot.slane %v2288, 4
    %v2290 = vmax.f32 %v2288, %v2289
    %v2291 = vrot.slane %v2290, 2
    %v2292 = vmax.f32 %v2290, %v2291
    %v2293 = vrot.slane %v2292, 1
    %v2294 = vmax.f32 %v2292, %v2293
    %v2295 = vsel %vm378, %v2085, -inf
    %v2296 = vrot.slane %v2295, 4
    %v2297 = vmax.f32 %v2295, %v2296
    %v2298 = vrot.slane %v2297, 2
    %v2299 = vmax.f32 %v2297, %v2298
    %v2300 = vrot.slane %v2299, 1
    %v2301 = vmax.f32 %v2299, %v2300
    %v2302 = vsel %vm378, %v2131, -inf
    %v2303 = vrot.slane %v2302, 4
    %v2304 = vmax.f32 %v2302, %v2303
    %v2305 = vrot.slane %v2304, 2
    %v2306 = vmax.f32 %v2304, %v2305
    %v2307 = vrot.slane %v2306, 1
    %v2308 = vmax.f32 %v2306, %v2307
    %v2309 = vsel %vm378, %v2177, -inf
    %v2310 = vrot.slane %v2309, 4
    %v2311 = vmax.f32 %v2309, %v2310
    %v2312 = vrot.slane %v2311, 2
    %v2313 = vmax.f32 %v2311, %v2312
    %v2314 = vrot.slane %v2313, 1
    %v2315 = vmax.f32 %v2313, %v2314
    %v2316 = vsel %vm378, %v2223, -inf
    %v2317 = vrot.slane %v2316, 4
    %v2318 = vmax.f32 %v2316, %v2317
    %v2319 = vrot.slane %v2318, 2
    %v2320 = vmax.f32 %v2318, %v2319
    %v2321 = vrot.slane %v2320, 1
    %v2322 = vmax.f32 %v2320, %v2321
    %v2323 = vsel %vm378, %v2269, -inf
    %v2324 = vrot.slane %v2323, 4
    %v2325 = vmax.f32 %v2323, %v2324
    %v2326 = vrot.slane %v2325, 2
    %v2327 = vmax.f32 %v2325, %v2326
    %v2328 = vrot.slane %v2327, 1
    %v2329 = vmax.f32 %v2327, %v2328
    %v2330 = vsub.f32 %v1947, %v2280
    %v2331 = vsub.f32 %v1993, %v2287
    %v2332 = vsub.f32 %v2039, %v2294
    %v2333 = vsub.f32 %v2085, %v2301
    %v2334 = vsub.f32 %v2131, %v2308
    %v2335 = vsub.f32 %v2177, %v2315
    %v2336 = vsub.f32 %v2223, %v2322
    %v2337 = vsub.f32 %v2269, %v2329
    %v2338 = vmul.f32 %v2330, 1.442695
    %v2339 = vpow.pop %v2338
    %v2340 = vmul.f32 %v2331, 1.442695
    %v2341 = vpow.pop %v2340
    %v2342 = vmul.f32 %v2332, 1.442695
    %v2343 = vpow.pop %v2342
    %v2344 = vmul.f32 %v2333, 1.442695
    %v2345 = vpow.pop %v2344
    %v2346 = vmul.f32 %v2334, 1.442695
    %v2347 = vpow.pop %v2346
    %v2348 = vmul.f32 %v2335, 1.442695
    %v2349 = vpow.pop %v2348
    %v2350 = vmul.f32 %v2336, 1.442695
    %v2351 = vpow.pop %v2350
    %v2352 = vmul.f32 %v2337, 1.442695
    %v2353 = vpow.pop %v2352
    %v2354 = vsel %vm378, %v2339, 0.0
    %v2355 = vrot.slane %v2354, 4
    %v2356 = vadd.f32 %v2354, %v2355
    %v2357 = vrot.slane %v2356, 2
    %v2358 = vadd.f32 %v2356, %v2357
    %v2359 = vrot.slane %v2358, 1
    %v2360 = vadd.f32 %v2358, %v2359
    %v2361 = vsel %vm378, %v2341, 0.0
    %v2362 = vrot.slane %v2361, 4
    %v2363 = vadd.f32 %v2361, %v2362
    %v2364 = vrot.slane %v2363, 2
    %v2365 = vadd.f32 %v2363, %v2364
    %v2366 = vrot.slane %v2365, 1
    %v2367 = vadd.f32 %v2365, %v2366
    %v2368 = vsel %vm378, %v2343, 0.0
    %v2369 = vrot.slane %v2368, 4
    %v2370 = vadd.f32 %v2368, %v2369
    %v2371 = vrot.slane %v2370, 2
    %v2372 = vadd.f32 %v2370, %v2371
    %v2373 = vrot.slane %v2372, 1
    %v2374 = vadd.f32 %v2372, %v2373
    %v2375 = vsel %vm378, %v2345, 0.0
    %v2376 = vrot.slane %v2375, 4
    %v2377 = vadd.f32 %v2375, %v2376
    %v2378 = vrot.slane %v2377, 2
    %v2379 = vadd.f32 %v2377, %v2378
    %v2380 = vrot.slane %v2379, 1
    %v2381 = vadd.f32 %v2379, %v2380
    %v2382 = vsel %vm378, %v2347, 0.0
    %v2383 = vrot.slane %v2382, 4
    %v2384 = vadd.f32 %v2382, %v2383
    %v2385 = vrot.slane %v2384, 2
    %v2386 = vadd.f32 %v2384, %v2385
    %v2387 = vrot.slane %v2386, 1
    %v2388 = vadd.f32 %v2386, %v2387
    %v2389 = vsel %vm378, %v2349, 0.0
    %v2390 = vrot.slane %v2389, 4
    %v2391 = vadd.f32 %v2389, %v2390
    %v2392 = vrot.slane %v2391, 2
    %v2393 = vadd.f32 %v2391, %v2392
    %v2394 = vrot.slane %v2393, 1
    %v2395 = vadd.f32 %v2393, %v2394
    %v2396 = vsel %vm378, %v2351, 0.0
    %v2397 = vrot.slane %v2396, 4
    %v2398 = vadd.f32 %v2396, %v2397
    %v2399 = vrot.slane %v2398, 2
    %v2400 = vadd.f32 %v2398, %v2399
    %v2401 = vrot.slane %v2400, 1
    %v2402 = vadd.f32 %v2400, %v2401
    %v2403 = vsel %vm378, %v2353, 0.0
    %v2404 = vrot.slane %v2403, 4
    %v2405 = vadd.f32 %v2403, %v2404
    %v2406 = vrot.slane %v2405, 2
    %v2407 = vadd.f32 %v2405, %v2406
    %v2408 = vrot.slane %v2407, 1
    %v2409 = vadd.f32 %v2407, %v2408
    %v2410 = vpack.c.bf16 %v2339, %v2339
    %v2411 = vpack.c.bf16 %v2341, %v2341
    %v2412 = vpack.c.bf16 %v2343, %v2343
    %v2413 = vpack.c.bf16 %v2345, %v2345
    %v2414 = vpack.c.bf16 %v2347, %v2347
    %v2415 = vpack.c.bf16 %v2349, %v2349
    %v2416 = vpack.c.bf16 %v2351, %v2351
    %v2417 = vpack.c.bf16 %v2353, %v2353
    %v2419 = vsel %vm378, %v1754, 0
    %v2422 = vsel %vm382, %v2410, 0
    %2424 = vmatprep.subr.bf16.mxu0 0
    %2425 = vmatpush1.bf16.msra.mxu0 0
    %2426 = vmatprep.subr.bf16.mxu0 0
    %2427 = vmatpush1.bf16.msra.mxu0 0
    %2428 = vmatprep.subr.bf16.mxu0 0
    %2429 = vmatpush1.bf16.msra.mxu0 0
    %2430 = vmatprep.subr.bf16.mxu0 0
    %2431 = vmatpush1.bf16.msra.mxu0 0
    %2432 = vmatprep.subr.bf16.mxu0 0
    %2433 = vmatpush1.bf16.msra.mxu0 0
    %2434 = vmatprep.subr.bf16.mxu0 0
    %2435 = vmatpush1.bf16.msra.mxu0 0
    %2436 = vmatprep.subr.bf16.mxu0 0
    %2437 = vmatpush1.bf16.msra.mxu0 0
    %2438 = vmatprep.subr.bf16.mxu0 0
    %2439 = vmatpush1.bf16.msra.mxu0 %v2422
    %2440 = vmatprep.subr.bf16.mxu0 0
    %2441 = vmatpush2.bf16.msra.mxu0 0
    %2442 = vmatprep.subr.bf16.mxu0 0
    %2443 = vmatpush2.bf16.msra.mxu0 0
    %2444 = vmatprep.subr.bf16.mxu0 0
    %2445 = vmatpush2.bf16.msra.mxu0 0
    %2446 = vmatprep.subr.bf16.mxu0 0
    %2447 = vmatpush2.bf16.msra.mxu0 0
    %2448 = vmatprep.subr.bf16.mxu0 0
    %2449 = vmatpush2.bf16.msra.mxu0 0
    %2450 = vmatprep.subr.bf16.mxu0 0
    %2451 = vmatpush2.bf16.msra.mxu0 0
    %2452 = vmatprep.subr.bf16.mxu0 0
    %2453 = vmatpush2.bf16.msra.mxu0 0
    %2454 = vmatprep.subr.bf16.mxu0 0
    %2455 = vmatpush2.bf16.msra.mxu0 0
    %2456 = vmatprep.mubr.bf16.mxu0 0
    %2457 = vmatmul.mubr.bf16.gmra.mxu0 %v2419
    %v2458 = vpop.f32.mrf.mxu0
    %v2459 = vadd.f32 0.0, %v2458
    %v2460 = vpop.f32.mrf.mxu0
    %v2461 = vpop.f32.mrf.mxu0
    %v2462 = vpop.f32.mrf.mxu0
    %2463 = vdwg.mxu0
    %v2465 = vsel %vm378, %v1755, 0
    %v2468 = vsel %vm382, %v2411, 0
    %2470 = vmatprep.subr.bf16.mxu0 0
    %2471 = vmatpush1.bf16.msra.mxu0 0
    %2472 = vmatprep.subr.bf16.mxu0 0
    %2473 = vmatpush1.bf16.msra.mxu0 0
    %2474 = vmatprep.subr.bf16.mxu0 0
    %2475 = vmatpush1.bf16.msra.mxu0 0
    %2476 = vmatprep.subr.bf16.mxu0 0
    %2477 = vmatpush1.bf16.msra.mxu0 0
    %2478 = vmatprep.subr.bf16.mxu0 0
    %2479 = vmatpush1.bf16.msra.mxu0 0
    %2480 = vmatprep.subr.bf16.mxu0 0
    %2481 = vmatpush1.bf16.msra.mxu0 0
    %2482 = vmatprep.subr.bf16.mxu0 0
    %2483 = vmatpush1.bf16.msra.mxu0 0
    %2484 = vmatprep.subr.bf16.mxu0 0
    %2485 = vmatpush1.bf16.msra.mxu0 %v2468
    %2486 = vmatprep.subr.bf16.mxu0 0
    %2487 = vmatpush2.bf16.msra.mxu0 0
    %2488 = vmatprep.subr.bf16.mxu0 0
    %2489 = vmatpush2.bf16.msra.mxu0 0
    %2490 = vmatprep.subr.bf16.mxu0 0
    %2491 = vmatpush2.bf16.msra.mxu0 0
    %2492 = vmatprep.subr.bf16.mxu0 0
    %2493 = vmatpush2.bf16.msra.mxu0 0
    %2494 = vmatprep.subr.bf16.mxu0 0
    %2495 = vmatpush2.bf16.msra.mxu0 0
    %2496 = vmatprep.subr.bf16.mxu0 0
    %2497 = vmatpush2.bf16.msra.mxu0 0
    %2498 = vmatprep.subr.bf16.mxu0 0
    %2499 = vmatpush2.bf16.msra.mxu0 0
    %2500 = vmatprep.subr.bf16.mxu0 0
    %2501 = vmatpush2.bf16.msra.mxu0 0
    %2502 = vmatprep.mubr.bf16.mxu0 0
    %2503 = vmatmul.mubr.bf16.gmra.mxu0 %v2465
    %v2504 = vpop.f32.mrf.mxu0
    %v2505 = vadd.f32 0.0, %v2504
    %v2506 = vpop.f32.mrf.mxu0
    %v2507 = vpop.f32.mrf.mxu0
    %v2508 = vpop.f32.mrf.mxu0
    %2509 = vdwg.mxu0
    %v2511 = vsel %vm378, %v1756, 0
    %v2514 = vsel %vm382, %v2412, 0
    %2516 = vmatprep.subr.bf16.mxu0 0
    %2517 = vmatpush1.bf16.msra.mxu0 0
    %2518 = vmatprep.subr.bf16.mxu0 0
    %2519 = vmatpush1.bf16.msra.mxu0 0
    %2520 = vmatprep.subr.bf16.mxu0 0
    %2521 = vmatpush1.bf16.msra.mxu0 0
    %2522 = vmatprep.subr.bf16.mxu0 0
    %2523 = vmatpush1.bf16.msra.mxu0 0
    %2524 = vmatprep.subr.bf16.mxu0 0
    %2525 = vmatpush1.bf16.msra.mxu0 0
    %2526 = vmatprep.subr.bf16.mxu0 0
    %2527 = vmatpush1.bf16.msra.mxu0 0
    %2528 = vmatprep.subr.bf16.mxu0 0
    %2529 = vmatpush1.bf16.msra.mxu0 0
    %2530 = vmatprep.subr.bf16.mxu0 0
    %2531 = vmatpush1.bf16.msra.mxu0 %v2514
    %2532 = vmatprep.subr.bf16.mxu0 0
    %2533 = vmatpush2.bf16.msra.mxu0 0
    %2534 = vmatprep.subr.bf16.mxu0 0
    %2535 = vmatpush2.bf16.msra.mxu0 0
    %2536 = vmatprep.subr.bf16.mxu0 0
    %2537 = vmatpush2.bf16.msra.mxu0 0
    %2538 = vmatprep.subr.bf16.mxu0 0
    %2539 = vmatpush2.bf16.msra.mxu0 0
    %2540 = vmatprep.subr.bf16.mxu0 0
    %2541 = vmatpush2.bf16.msra.mxu0 0
    %2542 = vmatprep.subr.bf16.mxu0 0
    %2543 = vmatpush2.bf16.msra.mxu0 0
    %2544 = vmatprep.subr.bf16.mxu0 0
    %2545 = vmatpush2.bf16.msra.mxu0 0
    %2546 = vmatprep.subr.bf16.mxu0 0
    %2547 = vmatpush2.bf16.msra.mxu0 0
    %2548 = vmatprep.mubr.bf16.mxu0 0
    %2549 = vmatmul.mubr.bf16.gmra.mxu0 %v2511
    %v2550 = vpop.f32.mrf.mxu0
    %v2551 = vadd.f32 0.0, %v2550
    %v2552 = vpop.f32.mrf.mxu0
    %v2553 = vpop.f32.mrf.mxu0
    %v2554 = vpop.f32.mrf.mxu0
    %2555 = vdwg.mxu0
    %v2557 = vsel %vm378, %v1757, 0
    %v2560 = vsel %vm382, %v2413, 0
    %2562 = vmatprep.subr.bf16.mxu0 0
    %2563 = vmatpush1.bf16.msra.mxu0 0
    %2564 = vmatprep.subr.bf16.mxu0 0
    %2565 = vmatpush1.bf16.msra.mxu0 0
    %2566 = vmatprep.subr.bf16.mxu0 0
    %2567 = vmatpush1.bf16.msra.mxu0 0
    %2568 = vmatprep.subr.bf16.mxu0 0
    %2569 = vmatpush1.bf16.msra.mxu0 0
    %2570 = vmatprep.subr.bf16.mxu0 0
    %2571 = vmatpush1.bf16.msra.mxu0 0
    %2572 = vmatprep.subr.bf16.mxu0 0
    %2573 = vmatpush1.bf16.msra.mxu0 0
    %2574 = vmatprep.subr.bf16.mxu0 0
    %2575 = vmatpush1.bf16.msra.mxu0 0
    %2576 = vmatprep.subr.bf16.mxu0 0
    %2577 = vmatpush1.bf16.msra.mxu0 %v2560
    %2578 = vmatprep.subr.bf16.mxu0 0
    %2579 = vmatpush2.bf16.msra.mxu0 0
    %2580 = vmatprep.subr.bf16.mxu0 0
    %2581 = vmatpush2.bf16.msra.mxu0 0
    %2582 = vmatprep.subr.bf16.mxu0 0
    %2583 = vmatpush2.bf16.msra.mxu0 0
    %2584 = vmatprep.subr.bf16.mxu0 0
    %2585 = vmatpush2.bf16.msra.mxu0 0
    %2586 = vmatprep.subr.bf16.mxu0 0
    %2587 = vmatpush2.bf16.msra.mxu0 0
    %2588 = vmatprep.subr.bf16.mxu0 0
    %2589 = vmatpush2.bf16.msra.mxu0 0
    %2590 = vmatprep.subr.bf16.mxu0 0
    %2591 = vmatpush2.bf16.msra.mxu0 0
    %2592 = vmatprep.subr.bf16.mxu0 0
    %2593 = vmatpush2.bf16.msra.mxu0 0
    %2594 = vmatprep.mubr.bf16.mxu0 0
    %2595 = vmatmul.mubr.bf16.gmra.mxu0 %v2557
    %v2596 = vpop.f32.mrf.mxu0
    %v2597 = vadd.f32 0.0, %v2596
    %v2598 = vpop.f32.mrf.mxu0
    %v2599 = vpop.f32.mrf.mxu0
    %v2600 = vpop.f32.mrf.mxu0
    %2601 = vdwg.mxu0
    %v2603 = vsel %vm378, %v1766, 0
    %v2606 = vsel %vm382, %v2414, 0
    %2608 = vmatprep.subr.bf16.mxu0 0
    %2609 = vmatpush1.bf16.msra.mxu0 0
    %2610 = vmatprep.subr.bf16.mxu0 0
    %2611 = vmatpush1.bf16.msra.mxu0 0
    %2612 = vmatprep.subr.bf16.mxu0 0
    %2613 = vmatpush1.bf16.msra.mxu0 0
    %2614 = vmatprep.subr.bf16.mxu0 0
    %2615 = vmatpush1.bf16.msra.mxu0 0
    %2616 = vmatprep.subr.bf16.mxu0 0
    %2617 = vmatpush1.bf16.msra.mxu0 0
    %2618 = vmatprep.subr.bf16.mxu0 0
    %2619 = vmatpush1.bf16.msra.mxu0 0
    %2620 = vmatprep.subr.bf16.mxu0 0
    %2621 = vmatpush1.bf16.msra.mxu0 0
    %2622 = vmatprep.subr.bf16.mxu0 0
    %2623 = vmatpush1.bf16.msra.mxu0 %v2606
    %2624 = vmatprep.subr.bf16.mxu0 0
    %2625 = vmatpush2.bf16.msra.mxu0 0
    %2626 = vmatprep.subr.bf16.mxu0 0
    %2627 = vmatpush2.bf16.msra.mxu0 0
    %2628 = vmatprep.subr.bf16.mxu0 0
    %2629 = vmatpush2.bf16.msra.mxu0 0
    %2630 = vmatprep.subr.bf16.mxu0 0
    %2631 = vmatpush2.bf16.msra.mxu0 0
    %2632 = vmatprep.subr.bf16.mxu0 0
    %2633 = vmatpush2.bf16.msra.mxu0 0
    %2634 = vmatprep.subr.bf16.mxu0 0
    %2635 = vmatpush2.bf16.msra.mxu0 0
    %2636 = vmatprep.subr.bf16.mxu0 0
    %2637 = vmatpush2.bf16.msra.mxu0 0
    %2638 = vmatprep.subr.bf16.mxu0 0
    %2639 = vmatpush2.bf16.msra.mxu0 0
    %2640 = vmatprep.mubr.bf16.mxu0 0
    %2641 = vmatmul.mubr.bf16.gmra.mxu0 %v2603
    %v2642 = vpop.f32.mrf.mxu0
    %v2643 = vadd.f32 0.0, %v2642
    %v2644 = vpop.f32.mrf.mxu0
    %v2645 = vpop.f32.mrf.mxu0
    %v2646 = vpop.f32.mrf.mxu0
    %2647 = vdwg.mxu0
    %v2649 = vsel %vm378, %v1767, 0
    %v2652 = vsel %vm382, %v2415, 0
    %2654 = vmatprep.subr.bf16.mxu0 0
    %2655 = vmatpush1.bf16.msra.mxu0 0
    %2656 = vmatprep.subr.bf16.mxu0 0
    %2657 = vmatpush1.bf16.msra.mxu0 0
    %2658 = vmatprep.subr.bf16.mxu0 0
    %2659 = vmatpush1.bf16.msra.mxu0 0
    %2660 = vmatprep.subr.bf16.mxu0 0
    %2661 = vmatpush1.bf16.msra.mxu0 0
    %2662 = vmatprep.subr.bf16.mxu0 0
    %2663 = vmatpush1.bf16.msra.mxu0 0
    %2664 = vmatprep.subr.bf16.mxu0 0
    %2665 = vmatpush1.bf16.msra.mxu0 0
    %2666 = vmatprep.subr.bf16.mxu0 0
    %2667 = vmatpush1.bf16.msra.mxu0 0
    %2668 = vmatprep.subr.bf16.mxu0 0
    %2669 = vmatpush1.bf16.msra.mxu0 %v2652
    %2670 = vmatprep.subr.bf16.mxu0 0
    %2671 = vmatpush2.bf16.msra.mxu0 0
    %2672 = vmatprep.subr.bf16.mxu0 0
    %2673 = vmatpush2.bf16.msra.mxu0 0
    %2674 = vmatprep.subr.bf16.mxu0 0
    %2675 = vmatpush2.bf16.msra.mxu0 0
    %2676 = vmatprep.subr.bf16.mxu0 0
    %2677 = vmatpush2.bf16.msra.mxu0 0
    %2678 = vmatprep.subr.bf16.mxu0 0
    %2679 = vmatpush2.bf16.msra.mxu0 0
    %2680 = vmatprep.subr.bf16.mxu0 0
    %2681 = vmatpush2.bf16.msra.mxu0 0
    %2682 = vmatprep.subr.bf16.mxu0 0
    %2683 = vmatpush2.bf16.msra.mxu0 0
    %2684 = vmatprep.subr.bf16.mxu0 0
    %2685 = vmatpush2.bf16.msra.mxu0 0
    %2686 = vmatprep.mubr.bf16.mxu0 0
    %2687 = vmatmul.mubr.bf16.gmra.mxu0 %v2649
    %v2688 = vpop.f32.mrf.mxu0
    %v2689 = vadd.f32 0.0, %v2688
    %v2690 = vpop.f32.mrf.mxu0
    %v2691 = vpop.f32.mrf.mxu0
    %v2692 = vpop.f32.mrf.mxu0
    %2693 = vdwg.mxu0
    %v2695 = vsel %vm378, %v1768, 0
    %v2698 = vsel %vm382, %v2416, 0
    %2700 = vmatprep.subr.bf16.mxu0 0
    %2701 = vmatpush1.bf16.msra.mxu0 0
    %2702 = vmatprep.subr.bf16.mxu0 0
    %2703 = vmatpush1.bf16.msra.mxu0 0
    %2704 = vmatprep.subr.bf16.mxu0 0
    %2705 = vmatpush1.bf16.msra.mxu0 0
    %2706 = vmatprep.subr.bf16.mxu0 0
    %2707 = vmatpush1.bf16.msra.mxu0 0
    %2708 = vmatprep.subr.bf16.mxu0 0
    %2709 = vmatpush1.bf16.msra.mxu0 0
    %2710 = vmatprep.subr.bf16.mxu0 0
    %2711 = vmatpush1.bf16.msra.mxu0 0
    %2712 = vmatprep.subr.bf16.mxu0 0
    %2713 = vmatpush1.bf16.msra.mxu0 0
    %2714 = vmatprep.subr.bf16.mxu0 0
    %2715 = vmatpush1.bf16.msra.mxu0 %v2698
    %2716 = vmatprep.subr.bf16.mxu0 0
    %2717 = vmatpush2.bf16.msra.mxu0 0
    %2718 = vmatprep.subr.bf16.mxu0 0
    %2719 = vmatpush2.bf16.msra.mxu0 0
    %2720 = vmatprep.subr.bf16.mxu0 0
    %2721 = vmatpush2.bf16.msra.mxu0 0
    %2722 = vmatprep.subr.bf16.mxu0 0
    %2723 = vmatpush2.bf16.msra.mxu0 0
    %2724 = vmatprep.subr.bf16.mxu0 0
    %2725 = vmatpush2.bf16.msra.mxu0 0
    %2726 = vmatprep.subr.bf16.mxu0 0
    %2727 = vmatpush2.bf16.msra.mxu0 0
    %2728 = vmatprep.subr.bf16.mxu0 0
    %2729 = vmatpush2.bf16.msra.mxu0 0
    %2730 = vmatprep.subr.bf16.mxu0 0
    %2731 = vmatpush2.bf16.msra.mxu0 0
    %2732 = vmatprep.mubr.bf16.mxu0 0
    %2733 = vmatmul.mubr.bf16.gmra.mxu0 %v2695
    %v2734 = vpop.f32.mrf.mxu0
    %v2735 = vadd.f32 0.0, %v2734
    %v2736 = vpop.f32.mrf.mxu0
    %v2737 = vpop.f32.mrf.mxu0
    %v2738 = vpop.f32.mrf.mxu0
    %2739 = vdwg.mxu0
    %v2741 = vsel %vm378, %v1769, 0
    %v2744 = vsel %vm382, %v2417, 0
    %2746 = vmatprep.subr.bf16.mxu0 0
    %2747 = vmatpush1.bf16.msra.mxu0 0
    %2748 = vmatprep.subr.bf16.mxu0 0
    %2749 = vmatpush1.bf16.msra.mxu0 0
    %2750 = vmatprep.subr.bf16.mxu0 0
    %2751 = vmatpush1.bf16.msra.mxu0 0
    %2752 = vmatprep.subr.bf16.mxu0 0
    %2753 = vmatpush1.bf16.msra.mxu0 0
    %2754 = vmatprep.subr.bf16.mxu0 0
    %2755 = vmatpush1.bf16.msra.mxu0 0
    %2756 = vmatprep.subr.bf16.mxu0 0
    %2757 = vmatpush1.bf16.msra.mxu0 0
    %2758 = vmatprep.subr.bf16.mxu0 0
    %2759 = vmatpush1.bf16.msra.mxu0 0
    %2760 = vmatprep.subr.bf16.mxu0 0
    %2761 = vmatpush1.bf16.msra.mxu0 %v2744
    %2762 = vmatprep.subr.bf16.mxu0 0
    %2763 = vmatpush2.bf16.msra.mxu0 0
    %2764 = vmatprep.subr.bf16.mxu0 0
    %2765 = vmatpush2.bf16.msra.mxu0 0
    %2766 = vmatprep.subr.bf16.mxu0 0
    %2767 = vmatpush2.bf16.msra.mxu0 0
    %2768 = vmatprep.subr.bf16.mxu0 0
    %2769 = vmatpush2.bf16.msra.mxu0 0
    %2770 = vmatprep.subr.bf16.mxu0 0
    %2771 = vmatpush2.bf16.msra.mxu0 0
    %2772 = vmatprep.subr.bf16.mxu0 0
    %2773 = vmatpush2.bf16.msra.mxu0 0
    %2774 = vmatprep.subr.bf16.mxu0 0
    %2775 = vmatpush2.bf16.msra.mxu0 0
    %2776 = vmatprep.subr.bf16.mxu0 0
    %2777 = vmatpush2.bf16.msra.mxu0 0
    %2778 = vmatprep.mubr.bf16.mxu0 0
    %2779 = vmatmul.mubr.bf16.gmra.mxu0 %v2741
    %v2780 = vpop.f32.mrf.mxu0
    %v2781 = vadd.f32 0.0, %v2780
    %v2782 = vpop.f32.mrf.mxu0
    %v2783 = vpop.f32.mrf.mxu0
    %v2784 = vpop.f32.mrf.mxu0
    %2785 = vdwg.mxu0
    %v2786 = vrcp.pop %v2360
    %v2787 = vrcp.pop %v2367
    %v2788 = vrcp.pop %v2374
    %v2789 = vrcp.pop %v2381
    %v2790 = vrcp.pop %v2388
    %v2791 = vrcp.pop %v2395
    %v2792 = vrcp.pop %v2402
    %v2793 = vrcp.pop %v2409
    %v2794 = vmul.f32 %v2459, %v2786
    %v2795 = vmul.f32 %v2505, %v2787
    %v2796 = vmul.f32 %v2551, %v2788
    %v2797 = vmul.f32 %v2597, %v2789
    %v2798 = vmul.f32 %v2643, %v2790
    %v2799 = vmul.f32 %v2689, %v2791
    %v2800 = vmul.f32 %v2735, %v2792
    %v2801 = vmul.f32 %v2781, %v2793
    %v2802 = vpack.c.bf16 %v2794, %v2794
    %v2803 = vpack.c.bf16 %v2795, %v2795
    %v2804 = vpack.c.bf16 %v2796, %v2796
    %v2805 = vpack.c.bf16 %v2797, %v2797
    %v2806 = vpack.c.bf16 %v2798, %v2798
    %v2807 = vpack.c.bf16 %v2799, %v2799
    %v2808 = vpack.c.bf16 %v2800, %v2800
    %v2809 = vpack.c.bf16 %v2801, %v2801
    %v2818 = vunpack.c.l.b16 %v2802
    %v2819 = vunpack.c.l.b16 %v2803
    %v2820 = vunpack.c.l.b16 %v2804
    %v2821 = vunpack.c.l.b16 %v2805
    %v2822 = vunpack.c.l.b16 %v2806
    %v2823 = vunpack.c.l.b16 %v2807
    %v2824 = vunpack.c.l.b16 %v2808
    %v2825 = vunpack.c.l.b16 %v2809
    %v2826 = vpack.c.b16 %v2819, %v2818
    %v2827 = vpack.c.b16 %v2821, %v2820
    %v2828 = vpack.c.b16 %v2823, %v2822
    %v2829 = vpack.c.b16 %v2825, %v2824
    %2834 = vxpose.xlu0.c.b16.start [1/8] %v2826, 128
    %2835 = vxpose.xlu0.c.b16.cont [2/8] %v2827, 128
    %2836 = vxpose.xlu0.c.b16.cont [3/8] 0, 128
    %2837 = vxpose.xlu0.c.b16.cont [4/8] 0, 128
    %2838 = vxpose.xlu0.c.b16.cont [5/8] 0, 128
    %2839 = vxpose.xlu0.c.b16.cont [6/8] 0, 128
    %2840 = vxpose.xlu0.c.b16.cont [7/8] 0, 128
    %2841 = vxpose.xlu0.c.b16.end [8/8] 0, 128
    %v2842 = vpop.trf.xlu0
    %v2843 = vpop.trf.xlu0
    %v2844 = vpop.trf.xlu0
    %v2845 = vpop.trf.xlu0
    %v2846 = vpop.trf.xlu0
    %v2847 = vpop.trf.xlu0
    %v2848 = vpop.trf.xlu0
    %v2849 = vpop.trf.xlu0
    %2850 = vxpose.xlu0.c.b16.start [1/8] %v2828, 128
    %2851 = vxpose.xlu0.c.b16.cont [2/8] %v2829, 128
    %2852 = vxpose.xlu0.c.b16.cont [3/8] 0, 128
    %2853 = vxpose.xlu0.c.b16.cont [4/8] 0, 128
    %2854 = vxpose.xlu0.c.b16.cont [5/8] 0, 128
    %2855 = vxpose.xlu0.c.b16.cont [6/8] 0, 128
    %2856 = vxpose.xlu0.c.b16.cont [7/8] 0, 128
    %2857 = vxpose.xlu0.c.b16.end [8/8] 0, 128
    %v2858 = vpop.trf.xlu0
    %v2859 = vpop.trf.xlu0
    %v2860 = vpop.trf.xlu0
    %v2861 = vpop.trf.xlu0
    %v2862 = vpop.trf.xlu0
    %v2863 = vpop.trf.xlu0
    %v2864 = vpop.trf.xlu0
    %v2865 = vpop.trf.xlu0
    %v2868 = vunpack.c.l.b16 %v2842
    %v2869 = vunpack.c.l.b16 %v2858
    %v2870 = vpack.c.b16 %v2869, %v2868
    %v2872 = vsel %vm97, %v2870, 0
    %2874 = vmatprep.subr.bf16.mxu0 0
    %2875 = vmatpush1.bf16.msra.mxu0 0
    %2876 = vmatprep.subr.bf16.mxu0 0
    %2877 = vmatpush1.bf16.msra.mxu0 0
    %2878 = vmatprep.subr.bf16.mxu0 0
    %2879 = vmatpush1.bf16.msra.mxu0 0
    %2880 = vmatprep.subr.bf16.mxu0 0
    %2881 = vmatpush1.bf16.msra.mxu0 0
    %2882 = vmatprep.subr.bf16.mxu0 0
    %2883 = vmatpush1.bf16.msra.mxu0 0
    %2884 = vmatprep.subr.bf16.mxu0 0
    %2885 = vmatpush1.bf16.msra.mxu0 0
    %2886 = vmatprep.subr.bf16.mxu0 0
    %2887 = vmatpush1.bf16.msra.mxu0 %v1358
    %2888 = vmatprep.subr.bf16.mxu0 0
    %2889 = vmatpush1.bf16.msra.mxu0 %v1357
    %2890 = vmatprep.subr.bf16.mxu0 0
    %2891 = vmatpush2.bf16.msra.mxu0 0
    %2892 = vmatprep.subr.bf16.mxu0 0
    %2893 = vmatpush2.bf16.msra.mxu0 0
    %2894 = vmatprep.subr.bf16.mxu0 0
    %2895 = vmatpush2.bf16.msra.mxu0 0
    %2896 = vmatprep.subr.bf16.mxu0 0
    %2897 = vmatpush2.bf16.msra.mxu0 0
    %2898 = vmatprep.subr.bf16.mxu0 0
    %2899 = vmatpush2.bf16.msra.mxu0 0
    %2900 = vmatprep.subr.bf16.mxu0 0
    %2901 = vmatpush2.bf16.msra.mxu0 0
    %2902 = vmatprep.subr.bf16.mxu0 0
    %2903 = vmatpush2.bf16.msra.mxu0 0
    %2904 = vmatprep.subr.bf16.mxu0 0
    %2905 = vmatpush2.bf16.msra.mxu0 0
    %2906 = vmatprep.mubr.bf16.mxu0 0
    %2907 = vmatmul.mubr.bf16.gmra.mxu0 %v2872
    %v2908 = vpop.f32.mrf.mxu0
    %v2909 = vadd.f32 %v1343, %v2908
    %v2910 = vpop.f32.mrf.mxu0
    %v2911 = vpop.f32.mrf.mxu0
    %v2912 = vadd.f32 %v1343, %v2911
    %v2913 = vpop.f32.mrf.mxu0
    %2914 = vdwg.mxu0
    %v2915 = vadd.f32 %v2909, %v1623
    %v2916 = vadd.f32 %v2912, %v1624
    %v2917 = vsel %vm97, %v2915, 0.0
    %2918 = vadd.xlane.f32.xlu0 %v2917
    %v2919 = vpop.xlane.xlu0 %2918
    %v2920 = vsel %vm97, %v2916, 0.0
    %2921 = vadd.xlane.f32.xlu0 %v2920
    %v2922 = vpop.xlane.xlu0 %2921
    %v2923 = vmul.f32 %v2919, %v1413
    %v2924 = vmul.f32 %v2922, %v1413
    %v2925 = vsub.f32 %v2915, %v2923
    %v2926 = vsub.f32 %v2916, %v2924
    %v2927 = vmul.f32 %v2925, %v2925
    %v2928 = vmul.f32 %v2926, %v2926
    %v2929 = vsel %vm97, %v2927, 0.0
    %2930 = vadd.xlane.f32.xlu0 %v2929
    %v2931 = vpop.xlane.xlu0 %2930
    %v2932 = vsel %vm97, %v2928, 0.0
    %2933 = vadd.xlane.f32.xlu0 %v2932
    %v2934 = vpop.xlane.xlu0 %2933
    %v2935 = vmul.f32 %v2931, %v1413
    %v2936 = vmul.f32 %v2934, %v1413
    %v2937 = vadd.f32 %v2935, 1e-05
    %v2938 = vadd.f32 %v2936, 1e-05
    %v2939 = vrsqrt.pop %v2937
    %v2940 = vrsqrt.pop %v2938
    %v2941 = vmul.f32 %v2925, %v2939
    %v2942 = vmul.f32 %v2926, %v2940
    %v2943 = vmul.f32 %v2941, %v1437
    %v2944 = vmul.f32 %v2942, %v1437
    %v2945 = vadd.f32 %v2943, %v1443
    %v2946 = vadd.f32 %v2944, %v1443
    %v2947 = vpack.c.bf16 %v2946, %v2945
    %v2949 = vsel %vm97, %v2947, 0
    %2951 = vmatprep.subr.bf16.mxu0 0
    %2952 = vmatpush1.bf16.msra.mxu0 0
    %2953 = vmatprep.subr.bf16.mxu0 0
    %2954 = vmatpush1.bf16.msra.mxu0 0
    %2955 = vmatprep.subr.bf16.mxu0 0
    %2956 = vmatpush1.bf16.msra.mxu0 0
    %2957 = vmatprep.subr.bf16.mxu0 0
    %2958 = vmatpush1.bf16.msra.mxu0 0
    %2959 = vmatprep.subr.bf16.mxu0 0
    %2960 = vmatpush1.bf16.msra.mxu0 0
    %2961 = vmatprep.subr.bf16.mxu0 0
    %2962 = vmatpush1.bf16.msra.mxu0 0
    %2963 = vmatprep.subr.bf16.mxu0 0
    %2964 = vmatpush1.bf16.msra.mxu0 %v1462
    %2965 = vmatprep.subr.bf16.mxu0 0
    %2966 = vmatpush1.bf16.msra.mxu0 %v1461
    %2967 = vmatprep.subr.bf16.mxu0 0
    %2968 = vmatpush2.bf16.msra.mxu0 0
    %2969 = vmatprep.subr.bf16.mxu0 0
    %2970 = vmatpush2.bf16.msra.mxu0 0
    %2971 = vmatprep.subr.bf16.mxu0 0
    %2972 = vmatpush2.bf16.msra.mxu0 0
    %2973 = vmatprep.subr.bf16.mxu0 0
    %2974 = vmatpush2.bf16.msra.mxu0 0
    %2975 = vmatprep.subr.bf16.mxu0 0
    %2976 = vmatpush2.bf16.msra.mxu0 0
    %2977 = vmatprep.subr.bf16.mxu0 0
    %2978 = vmatpush2.bf16.msra.mxu0 0
    %2979 = vmatprep.subr.bf16.mxu0 0
    %2980 = vmatpush2.bf16.msra.mxu0 0
    %2981 = vmatprep.subr.bf16.mxu0 0
    %2982 = vmatpush2.bf16.msra.mxu0 0
    %2983 = vmatprep.mubr.bf16.mxu0 0
    %2984 = vmatmul.mubr.bf16.gmra.mxu0 %v2949
    %v2985 = vpop.f32.mrf.mxu0
    %v2986 = vadd.f32 %v1451, %v2985
    %v2987 = vpop.f32.mrf.mxu0
    %v2988 = vpop.f32.mrf.mxu0
    %v2989 = vadd.f32 %v1451, %v2988
    %v2990 = vpop.f32.mrf.mxu0
    %2991 = vdwg.mxu0
    %v2992 = vmax.f32 %v2986, 0.0
    %v2993 = vmax.f32 %v2989, 0.0
    %v2994 = vpack.c.bf16 %v2993, %v2992
    %v2996 = vsel %vm1540, %v2994, 0
    %2998 = vmatprep.subr.bf16.mxu0 0
    %2999 = vmatpush1.bf16.msra.mxu0 0
    %3000 = vmatprep.subr.bf16.mxu0 0
    %3001 = vmatpush1.bf16.msra.mxu0 0
    %3002 = vmatprep.subr.bf16.mxu0 0
    %3003 = vmatpush1.bf16.msra.mxu0 0
    %3004 = vmatprep.subr.bf16.mxu0 0
    %3005 = vmatpush1.bf16.msra.mxu0 0
    %3006 = vmatprep.subr.bf16.mxu0 0
    %3007 = vmatpush1.bf16.msra.mxu0 %v1535
    %3008 = vmatprep.subr.bf16.mxu0 0
    %3009 = vmatpush1.bf16.msra.mxu0 %v1534
    %3010 = vmatprep.subr.bf16.mxu0 0
    %3011 = vmatpush1.bf16.msra.mxu0 %v1533
    %3012 = vmatprep.subr.bf16.mxu0 0
    %3013 = vmatpush1.bf16.msra.mxu0 %v1532
    %3014 = vmatprep.subr.bf16.mxu0 0
    %3015 = vmatpush2.bf16.msra.mxu0 0
    %3016 = vmatprep.subr.bf16.mxu0 0
    %3017 = vmatpush2.bf16.msra.mxu0 0
    %3018 = vmatprep.subr.bf16.mxu0 0
    %3019 = vmatpush2.bf16.msra.mxu0 0
    %3020 = vmatprep.subr.bf16.mxu0 0
    %3021 = vmatpush2.bf16.msra.mxu0 0
    %3022 = vmatprep.subr.bf16.mxu0 0
    %3023 = vmatpush2.bf16.msra.mxu0 0
    %3024 = vmatprep.subr.bf16.mxu0 0
    %3025 = vmatpush2.bf16.msra.mxu0 0
    %3026 = vmatprep.subr.bf16.mxu0 0
    %3027 = vmatpush2.bf16.msra.mxu0 0
    %3028 = vmatprep.subr.bf16.mxu0 0
    %3029 = vmatpush2.bf16.msra.mxu0 0
    %3030 = vmatprep.mubr.bf16.mxu0 0
    %3031 = vmatmul.mubr.bf16.gmra.mxu0 %v2996
    %v3032 = vpop.f32.mrf.mxu0
    %v3033 = vadd.f32 %v1515, %v3032
    %v3034 = vpop.f32.mrf.mxu0
    %v3035 = vpop.f32.mrf.mxu0
    %v3036 = vadd.f32 %v1515, %v3035
    %v3037 = vpop.f32.mrf.mxu0
    %3038 = vdwg.mxu0
    %v3039 = vadd.f32 %v3033, %v2945
    %v3040 = vadd.f32 %v3036, %v2946
    %v3041 = vsel %vm97, %v3039, 0.0
    %3042 = vadd.xlane.f32.xlu0 %v3041
    %v3043 = vpop.xlane.xlu0 %3042
    %v3044 = vsel %vm97, %v3040, 0.0
    %3045 = vadd.xlane.f32.xlu0 %v3044
    %v3046 = vpop.xlane.xlu0 %3045
    %v3047 = vmul.f32 %v3043, %v1413
    %v3048 = vmul.f32 %v3046, %v1413
    %v3049 = vsub.f32 %v3039, %v3047
    %v3050 = vsub.f32 %v3040, %v3048
    %v3051 = vmul.f32 %v3049, %v3049
    %v3052 = vmul.f32 %v3050, %v3050
    %v3053 = vsel %vm97, %v3051, 0.0
    %3054 = vadd.xlane.f32.xlu0 %v3053
    %v3055 = vpop.xlane.xlu0 %3054
    %v3056 = vsel %vm97, %v3052, 0.0
    %3057 = vadd.xlane.f32.xlu0 %v3056
    %v3058 = vpop.xlane.xlu0 %3057
    %v3059 = vmul.f32 %v3055, %v1413
    %v3060 = vmul.f32 %v3058, %v1413
    %v3061 = vadd.f32 %v3059, 1e-05
    %v3062 = vadd.f32 %v3060, 1e-05
    %v3063 = vrsqrt.pop %v3061
    %v3064 = vrsqrt.pop %v3062
    %v3065 = vmul.f32 %v3049, %v3063
    %v3066 = vmul.f32 %v3050, %v3064
    %v3067 = vmul.f32 %v3065, %v1616
    %v3068 = vmul.f32 %v3066, %v1616
    %v3069 = vadd.f32 %v3067, %v1622
    %v3070 = vadd.f32 %v3068, %v1622
    %v3071 = vpack.c.bf16 %v3070, %v3069
    %v3073 = vsel %vm97, %v3071, 0
    %3075 = vmatprep.subr.bf16.mxu0 0
    %3076 = vmatpush1.bf16.msra.mxu0 0
    %3077 = vmatprep.subr.bf16.mxu0 0
    %3078 = vmatpush1.bf16.msra.mxu0 0
    %3079 = vmatprep.subr.bf16.mxu0 0
    %3080 = vmatpush1.bf16.msra.mxu0 0
    %3081 = vmatprep.subr.bf16.mxu0 0
    %3082 = vmatpush1.bf16.msra.mxu0 0
    %3083 = vmatprep.subr.bf16.mxu0 0
    %3084 = vmatpush1.bf16.msra.mxu0 0
    %3085 = vmatprep.subr.bf16.mxu0 0
    %3086 = vmatpush1.bf16.msra.mxu0 0
    %3087 = vmatprep.subr.bf16.mxu0 0
    %3088 = vmatpush1.bf16.msra.mxu0 %v94
    %3089 = vmatprep.subr.bf16.mxu0 0
    %3090 = vmatpush1.bf16.msra.mxu0 %v93
    %3091 = vmatprep.subr.bf16.mxu0 0
    %3092 = vmatpush2.bf16.msra.mxu0 0
    %3093 = vmatprep.subr.bf16.mxu0 0
    %3094 = vmatpush2.bf16.msra.mxu0 0
    %3095 = vmatprep.subr.bf16.mxu0 0
    %3096 = vmatpush2.bf16.msra.mxu0 0
    %3097 = vmatprep.subr.bf16.mxu0 0
    %3098 = vmatpush2.bf16.msra.mxu0 0
    %3099 = vmatprep.subr.bf16.mxu0 0
    %3100 = vmatpush2.bf16.msra.mxu0 0
    %3101 = vmatprep.subr.bf16.mxu0 0
    %3102 = vmatpush2.bf16.msra.mxu0 0
    %3103 = vmatprep.subr.bf16.mxu0 0
    %3104 = vmatpush2.bf16.msra.mxu0 0
    %3105 = vmatprep.subr.bf16.mxu0 0
    %3106 = vmatpush2.bf16.msra.mxu0 0
    %3107 = vmatprep.mubr.bf16.mxu0 0
    %3108 = vmatmul.mubr.bf16.gmra.mxu0 %v3073
    %v3109 = vpop.f32.mrf.mxu0
    %v3110 = vadd.f32 0.0, %v3109
    %v3111 = vpop.f32.mrf.mxu0
    %v3112 = vpop.f32.mrf.mxu0
    %v3113 = vadd.f32 0.0, %v3112
    %v3114 = vpop.f32.mrf.mxu0
    %3115 = vdwg.mxu0
    %v3116 = vpack.c.bf16 %v3113, %v3110
    %v3118 = vunpack.c.l.b16 %v3116
    %v3119 = vunpack.c.h.b16 %v3116
    %v3120 = vpack.c.b16 %v3118, %v3118
    %v3121 = vpack.c.b16 %v3119, %v3119
    %3124 = vxpose.xlu0.c.b16.start [1/8] %v3120, 128
    %3125 = vxpose.xlu0.c.b16.cont [2/8] 0, 128
    %3126 = vxpose.xlu0.c.b16.cont [3/8] 0, 128
    %3127 = vxpose.xlu0.c.b16.cont [4/8] 0, 128
    %3128 = vxpose.xlu0.c.b16.cont [5/8] 0, 128
    %3129 = vxpose.xlu0.c.b16.cont [6/8] 0, 128
    %3130 = vxpose.xlu0.c.b16.cont [7/8] 0, 128
    %3131 = vxpose.xlu0.c.b16.end [8/8] 0, 128
    %v3132 = vpop.trf.xlu0
    %v3133 = vpop.trf.xlu0
    %v3134 = vpop.trf.xlu0
    %v3135 = vpop.trf.xlu0
    %v3136 = vpop.trf.xlu0
    %v3137 = vpop.trf.xlu0
    %v3138 = vpop.trf.xlu0
    %v3139 = vpop.trf.xlu0
    %3140 = vxpose.xlu0.c.b16.start [1/8] %v3121, 128
    %3141 = vxpose.xlu0.c.b16.cont [2/8] 0, 128
    %3142 = vxpose.xlu0.c.b16.cont [3/8] 0, 128
    %3143 = vxpose.xlu0.c.b16.cont [4/8] 0, 128
    %3144 = vxpose.xlu0.c.b16.cont [5/8] 0, 128
    %3145 = vxpose.xlu0.c.b16.cont [6/8] 0, 128
    %3146 = vxpose.xlu0.c.b16.cont [7/8] 0, 128
    %3147 = vxpose.xlu0.c.b16.end [8/8] 0, 128
    %v3148 = vpop.trf.xlu0
    %v3149 = vpop.trf.xlu0
    %v3150 = vpop.trf.xlu0
    %v3151 = vpop.trf.xlu0
    %v3152 = vpop.trf.xlu0
    %v3153 = vpop.trf.xlu0
    %v3154 = vpop.trf.xlu0
    %v3155 = vpop.trf.xlu0
    %v3168 = vunpack.c.l.b16 %v3132
    %v3169 = vunpack.c.h.b16 %v3132
    %v3170 = vunpack.c.l.b16 %v3133
    %v3171 = vunpack.c.h.b16 %v3133
    %v3172 = vunpack.c.l.b16 %v3134
    %v3173 = vunpack.c.h.b16 %v3134
    %v3174 = vunpack.c.l.b16 %v3135
    %v3175 = vunpack.c.h.b16 %v3135
    %v3176 = vunpack.c.l.b16 %v3136
    %v3177 = vunpack.c.h.b16 %v3136
    %v3178 = vunpack.c.l.b16 %v3137
    %v3179 = vunpack.c.h.b16 %v3137
    %v3180 = vunpack.c.l.b16 %v3148
    %v3181 = vunpack.c.h.b16 %v3148
    %v3182 = vunpack.c.l.b16 %v3149
    %v3183 = vunpack.c.h.b16 %v3149
    %v3184 = vunpack.c.l.b16 %v3150
    %v3185 = vunpack.c.h.b16 %v3150
    %v3186 = vunpack.c.l.b16 %v3151
    %v3187 = vunpack.c.h.b16 %v3151
    %v3188 = vunpack.c.l.b16 %v3152
    %v3189 = vunpack.c.h.b16 %v3152
    %v3190 = vunpack.c.l.b16 %v3153
    %v3191 = vunpack.c.h.b16 %v3153
    %v3192 = vpack.c.b16 %v3168, %v3168
    %v3193 = vpack.c.b16 %v3169, %v3169
    %v3194 = vpack.c.b16 %v3170, %v3170
    %v3195 = vpack.c.b16 %v3171, %v3171
    %v3196 = vpack.c.b16 %v3172, %v3172
    %v3197 = vpack.c.b16 %v3173, %v3173
    %v3198 = vpack.c.b16 %v3174, %v3174
    %v3199 = vpack.c.b16 %v3175, %v3175
    %v3200 = vpack.c.b16 %v3176, %v3176
    %v3201 = vpack.c.b16 %v3177, %v3177
    %v3202 = vpack.c.b16 %v3178, %v3178
    %v3203 = vpack.c.b16 %v3179, %v3179
    %v3204 = vpack.c.b16 %v3180, %v3180
    %v3205 = vpack.c.b16 %v3181, %v3181
    %v3206 = vpack.c.b16 %v3182, %v3182
    %v3207 = vpack.c.b16 %v3183, %v3183
    %v3208 = vpack.c.b16 %v3184, %v3184
    %v3209 = vpack.c.b16 %v3185, %v3185
    %v3210 = vpack.c.b16 %v3186, %v3186
    %v3211 = vpack.c.b16 %v3187, %v3187
    %v3212 = vpack.c.b16 %v3188, %v3188
    %v3213 = vpack.c.b16 %v3189, %v3189
    %v3214 = vpack.c.b16 %v3190, %v3190
    %v3215 = vpack.c.b16 %v3191, %v3191
    %3224 = vxpose.xlu0.c.b16.start [1/8] %v3196, 128
    %3225 = vxpose.xlu0.c.b16.cont [2/8] 0, 128
    %3226 = vxpose.xlu0.c.b16.cont [3/8] 0, 128
    %3227 = vxpose.xlu0.c.b16.cont [4/8] 0, 128
    %3228 = vxpose.xlu0.c.b16.cont [5/8] 0, 128
    %3229 = vxpose.xlu0.c.b16.cont [6/8] 0, 128
    %3230 = vxpose.xlu0.c.b16.cont [7/8] 0, 128
    %3231 = vxpose.xlu0.c.b16.end [8/8] 0, 128
    %v3232 = vpop.trf.xlu0
    %v3233 = vpop.trf.xlu0
    %v3234 = vpop.trf.xlu0
    %v3235 = vpop.trf.xlu0
    %v3236 = vpop.trf.xlu0
    %v3237 = vpop.trf.xlu0
    %v3238 = vpop.trf.xlu0
    %v3239 = vpop.trf.xlu0
    %3240 = vxpose.xlu0.c.b16.start [1/8] %v3197, 128
    %3241 = vxpose.xlu0.c.b16.cont [2/8] 0, 128
    %3242 = vxpose.xlu0.c.b16.cont [3/8] 0, 128
    %3243 = vxpose.xlu0.c.b16.cont [4/8] 0, 128
    %3244 = vxpose.xlu0.c.b16.cont [5/8] 0, 128
    %3245 = vxpose.xlu0.c.b16.cont [6/8] 0, 128
    %3246 = vxpose.xlu0.c.b16.cont [7/8] 0, 128
    %3247 = vxpose.xlu0.c.b16.end [8/8] 0, 128
    %v3248 = vpop.trf.xlu0
    %v3249 = vpop.trf.xlu0
    %v3250 = vpop.trf.xlu0
    %v3251 = vpop.trf.xlu0
    %v3252 = vpop.trf.xlu0
    %v3253 = vpop.trf.xlu0
    %v3254 = vpop.trf.xlu0
    %v3255 = vpop.trf.xlu0
    %3256 = vxpose.xlu0.c.b16.start [1/8] %v3198, 128
    %3257 = vxpose.xlu0.c.b16.cont [2/8] 0, 128
    %3258 = vxpose.xlu0.c.b16.cont [3/8] 0, 128
    %3259 = vxpose.xlu0.c.b16.cont [4/8] 0, 128
    %3260 = vxpose.xlu0.c.b16.cont [5/8] 0, 128
    %3261 = vxpose.xlu0.c.b16.cont [6/8] 0, 128
    %3262 = vxpose.xlu0.c.b16.cont [7/8] 0, 128
    %3263 = vxpose.xlu0.c.b16.end [8/8] 0, 128
    %v3264 = vpop.trf.xlu0
    %v3265 = vpop.trf.xlu0
    %v3266 = vpop.trf.xlu0
    %v3267 = vpop.trf.xlu0
    %v3268 = vpop.trf.xlu0
    %v3269 = vpop.trf.xlu0
    %v3270 = vpop.trf.xlu0
    %v3271 = vpop.trf.xlu0
    %3272 = vxpose.xlu0.c.b16.start [1/8] %v3199, 128
    %3273 = vxpose.xlu0.c.b16.cont [2/8] 0, 128
    %3274 = vxpose.xlu0.c.b16.cont [3/8] 0, 128
    %3275 = vxpose.xlu0.c.b16.cont [4/8] 0, 128
    %3276 = vxpose.xlu0.c.b16.cont [5/8] 0, 128
    %3277 = vxpose.xlu0.c.b16.cont [6/8] 0, 128
    %3278 = vxpose.xlu0.c.b16.cont [7/8] 0, 128
    %3279 = vxpose.xlu0.c.b16.end [8/8] 0, 128
    %v3280 = vpop.trf.xlu0
    %v3281 = vpop.trf.xlu0
    %v3282 = vpop.trf.xlu0
    %v3283 = vpop.trf.xlu0
    %v3284 = vpop.trf.xlu0
    %v3285 = vpop.trf.xlu0
    %v3286 = vpop.trf.xlu0
    %v3287 = vpop.trf.xlu0
    %3288 = vxpose.xlu0.c.b16.start [1/8] %v3208, 128
    %3289 = vxpose.xlu0.c.b16.cont [2/8] 0, 128
    %3290 = vxpose.xlu0.c.b16.cont [3/8] 0, 128
    %3291 = vxpose.xlu0.c.b16.cont [4/8] 0, 128
    %3292 = vxpose.xlu0.c.b16.cont [5/8] 0, 128
    %3293 = vxpose.xlu0.c.b16.cont [6/8] 0, 128
    %3294 = vxpose.xlu0.c.b16.cont [7/8] 0, 128
    %3295 = vxpose.xlu0.c.b16.end [8/8] 0, 128
    %v3296 = vpop.trf.xlu0
    %v3297 = vpop.trf.xlu0
    %v3298 = vpop.trf.xlu0
    %v3299 = vpop.trf.xlu0
    %v3300 = vpop.trf.xlu0
    %v3301 = vpop.trf.xlu0
    %v3302 = vpop.trf.xlu0
    %v3303 = vpop.trf.xlu0
    %3304 = vxpose.xlu0.c.b16.start [1/8] %v3209, 128
    %3305 = vxpose.xlu0.c.b16.cont [2/8] 0, 128
    %3306 = vxpose.xlu0.c.b16.cont [3/8] 0, 128
    %3307 = vxpose.xlu0.c.b16.cont [4/8] 0, 128
    %3308 = vxpose.xlu0.c.b16.cont [5/8] 0, 128
    %3309 = vxpose.xlu0.c.b16.cont [6/8] 0, 128
    %3310 = vxpose.xlu0.c.b16.cont [7/8] 0, 128
    %3311 = vxpose.xlu0.c.b16.end [8/8] 0, 128
    %v3312 = vpop.trf.xlu0
    %v3313 = vpop.trf.xlu0
    %v3314 = vpop.trf.xlu0
    %v3315 = vpop.trf.xlu0
    %v3316 = vpop.trf.xlu0
    %v3317 = vpop.trf.xlu0
    %v3318 = vpop.trf.xlu0
    %v3319 = vpop.trf.xlu0
    %3320 = vxpose.xlu0.c.b16.start [1/8] %v3210, 128
    %3321 = vxpose.xlu0.c.b16.cont [2/8] 0, 128
    %3322 = vxpose.xlu0.c.b16.cont [3/8] 0, 128
    %3323 = vxpose.xlu0.c.b16.cont [4/8] 0, 128
    %3324 = vxpose.xlu0.c.b16.cont [5/8] 0, 128
    %3325 = vxpose.xlu0.c.b16.cont [6/8] 0, 128
    %3326 = vxpose.xlu0.c.b16.cont [7/8] 0, 128
    %3327 = vxpose.xlu0.c.b16.end [8/8] 0, 128
    %v3328 = vpop.trf.xlu0
    %v3329 = vpop.trf.xlu0
    %v3330 = vpop.trf.xlu0
    %v3331 = vpop.trf.xlu0
    %v3332 = vpop.trf.xlu0
    %v3333 = vpop.trf.xlu0
    %v3334 = vpop.trf.xlu0
    %v3335 = vpop.trf.xlu0
    %3336 = vxpose.xlu0.c.b16.start [1/8] %v3211, 128
    %3337 = vxpose.xlu0.c.b16.cont [2/8] 0, 128
    %3338 = vxpose.xlu0.c.b16.cont [3/8] 0, 128
    %3339 = vxpose.xlu0.c.b16.cont [4/8] 0, 128
    %3340 = vxpose.xlu0.c.b16.cont [5/8] 0, 128
    %3341 = vxpose.xlu0.c.b16.cont [6/8] 0, 128
    %3342 = vxpose.xlu0.c.b16.cont [7/8] 0, 128
    %3343 = vxpose.xlu0.c.b16.end [8/8] 0, 128
    %v3344 = vpop.trf.xlu0
    %v3345 = vpop.trf.xlu0
    %v3346 = vpop.trf.xlu0
    %v3347 = vpop.trf.xlu0
    %v3348 = vpop.trf.xlu0
    %v3349 = vpop.trf.xlu0
    %v3350 = vpop.trf.xlu0
    %v3351 = vpop.trf.xlu0
    %v3353 = vsel %vm378, %v3232, 0
    %v3356 = vsel %vm382, %v3192, 0
    %3358 = vmatprep.subr.bf16.mxu0 0
    %3359 = vmatpush1.bf16.msra.mxu0 0
    %3360 = vmatprep.subr.bf16.mxu0 0
    %3361 = vmatpush1.bf16.msra.mxu0 0
    %3362 = vmatprep.subr.bf16.mxu0 0
    %3363 = vmatpush1.bf16.msra.mxu0 0
    %3364 = vmatprep.subr.bf16.mxu0 0
    %3365 = vmatpush1.bf16.msra.mxu0 0
    %3366 = vmatprep.subr.bf16.mxu0 0
    %3367 = vmatpush1.bf16.msra.mxu0 0
    %3368 = vmatprep.subr.bf16.mxu0 0
    %3369 = vmatpush1.bf16.msra.mxu0 0
    %3370 = vmatprep.subr.bf16.mxu0 0
    %3371 = vmatpush1.bf16.msra.mxu0 0
    %3372 = vmatprep.subr.bf16.mxu0 0
    %3373 = vmatpush1.bf16.msra.mxu0 %v3356
    %3374 = vmatprep.subr.bf16.mxu0 0
    %3375 = vmatpush2.bf16.msra.mxu0 0
    %3376 = vmatprep.subr.bf16.mxu0 0
    %3377 = vmatpush2.bf16.msra.mxu0 0
    %3378 = vmatprep.subr.bf16.mxu0 0
    %3379 = vmatpush2.bf16.msra.mxu0 0
    %3380 = vmatprep.subr.bf16.mxu0 0
    %3381 = vmatpush2.bf16.msra.mxu0 0
    %3382 = vmatprep.subr.bf16.mxu0 0
    %3383 = vmatpush2.bf16.msra.mxu0 0
    %3384 = vmatprep.subr.bf16.mxu0 0
    %3385 = vmatpush2.bf16.msra.mxu0 0
    %3386 = vmatprep.subr.bf16.mxu0 0
    %3387 = vmatpush2.bf16.msra.mxu0 0
    %3388 = vmatprep.subr.bf16.mxu0 0
    %3389 = vmatpush2.bf16.msra.mxu0 0
    %3390 = vmatprep.mubr.bf16.mxu0 0
    %3391 = vmatmul.mubr.bf16.gmra.mxu0 %v3353
    %v3392 = vpop.f32.mrf.mxu0
    %v3393 = vadd.f32 0.0, %v3392
    %v3394 = vpop.f32.mrf.mxu0
    %v3395 = vpop.f32.mrf.mxu0
    %v3396 = vpop.f32.mrf.mxu0
    %3397 = vdwg.mxu0
    %v3399 = vsel %vm378, %v3248, 0
    %v3402 = vsel %vm382, %v3193, 0
    %3404 = vmatprep.subr.bf16.mxu0 0
    %3405 = vmatpush1.bf16.msra.mxu0 0
    %3406 = vmatprep.subr.bf16.mxu0 0
    %3407 = vmatpush1.bf16.msra.mxu0 0
    %3408 = vmatprep.subr.bf16.mxu0 0
    %3409 = vmatpush1.bf16.msra.mxu0 0
    %3410 = vmatprep.subr.bf16.mxu0 0
    %3411 = vmatpush1.bf16.msra.mxu0 0
    %3412 = vmatprep.subr.bf16.mxu0 0
    %3413 = vmatpush1.bf16.msra.mxu0 0
    %3414 = vmatprep.subr.bf16.mxu0 0
    %3415 = vmatpush1.bf16.msra.mxu0 0
    %3416 = vmatprep.subr.bf16.mxu0 0
    %3417 = vmatpush1.bf16.msra.mxu0 0
    %3418 = vmatprep.subr.bf16.mxu0 0
    %3419 = vmatpush1.bf16.msra.mxu0 %v3402
    %3420 = vmatprep.subr.bf16.mxu0 0
    %3421 = vmatpush2.bf16.msra.mxu0 0
    %3422 = vmatprep.subr.bf16.mxu0 0
    %3423 = vmatpush2.bf16.msra.mxu0 0
    %3424 = vmatprep.subr.bf16.mxu0 0
    %3425 = vmatpush2.bf16.msra.mxu0 0
    %3426 = vmatprep.subr.bf16.mxu0 0
    %3427 = vmatpush2.bf16.msra.mxu0 0
    %3428 = vmatprep.subr.bf16.mxu0 0
    %3429 = vmatpush2.bf16.msra.mxu0 0
    %3430 = vmatprep.subr.bf16.mxu0 0
    %3431 = vmatpush2.bf16.msra.mxu0 0
    %3432 = vmatprep.subr.bf16.mxu0 0
    %3433 = vmatpush2.bf16.msra.mxu0 0
    %3434 = vmatprep.subr.bf16.mxu0 0
    %3435 = vmatpush2.bf16.msra.mxu0 0
    %3436 = vmatprep.mubr.bf16.mxu0 0
    %3437 = vmatmul.mubr.bf16.gmra.mxu0 %v3399
    %v3438 = vpop.f32.mrf.mxu0
    %v3439 = vadd.f32 0.0, %v3438
    %v3440 = vpop.f32.mrf.mxu0
    %v3441 = vpop.f32.mrf.mxu0
    %v3442 = vpop.f32.mrf.mxu0
    %3443 = vdwg.mxu0
    %v3445 = vsel %vm378, %v3264, 0
    %v3448 = vsel %vm382, %v3194, 0
    %3450 = vmatprep.subr.bf16.mxu0 0
    %3451 = vmatpush1.bf16.msra.mxu0 0
    %3452 = vmatprep.subr.bf16.mxu0 0
    %3453 = vmatpush1.bf16.msra.mxu0 0
    %3454 = vmatprep.subr.bf16.mxu0 0
    %3455 = vmatpush1.bf16.msra.mxu0 0
    %3456 = vmatprep.subr.bf16.mxu0 0
    %3457 = vmatpush1.bf16.msra.mxu0 0
    %3458 = vmatprep.subr.bf16.mxu0 0
    %3459 = vmatpush1.bf16.msra.mxu0 0
    %3460 = vmatprep.subr.bf16.mxu0 0
    %3461 = vmatpush1.bf16.msra.mxu0 0
    %3462 = vmatprep.subr.bf16.mxu0 0
    %3463 = vmatpush1.bf16.msra.mxu0 0
    %3464 = vmatprep.subr.bf16.mxu0 0
    %3465 = vmatpush1.bf16.msra.mxu0 %v3448
    %3466 = vmatprep.subr.bf16.mxu0 0
    %3467 = vmatpush2.bf16.msra.mxu0 0
    %3468 = vmatprep.subr.bf16.mxu0 0
    %3469 = vmatpush2.bf16.msra.mxu0 0
    %3470 = vmatprep.subr.bf16.mxu0 0
    %3471 = vmatpush2.bf16.msra.mxu0 0
    %3472 = vmatprep.subr.bf16.mxu0 0
    %3473 = vmatpush2.bf16.msra.mxu0 0
    %3474 = vmatprep.subr.bf16.mxu0 0
    %3475 = vmatpush2.bf16.msra.mxu0 0
    %3476 = vmatprep.subr.bf16.mxu0 0
    %3477 = vmatpush2.bf16.msra.mxu0 0
    %3478 = vmatprep.subr.bf16.mxu0 0
    %3479 = vmatpush2.bf16.msra.mxu0 0
    %3480 = vmatprep.subr.bf16.mxu0 0
    %3481 = vmatpush2.bf16.msra.mxu0 0
    %3482 = vmatprep.mubr.bf16.mxu0 0
    %3483 = vmatmul.mubr.bf16.gmra.mxu0 %v3445
    %v3484 = vpop.f32.mrf.mxu0
    %v3485 = vadd.f32 0.0, %v3484
    %v3486 = vpop.f32.mrf.mxu0
    %v3487 = vpop.f32.mrf.mxu0
    %v3488 = vpop.f32.mrf.mxu0
    %3489 = vdwg.mxu0
    %v3491 = vsel %vm378, %v3280, 0
    %v3494 = vsel %vm382, %v3195, 0
    %3496 = vmatprep.subr.bf16.mxu0 0
    %3497 = vmatpush1.bf16.msra.mxu0 0
    %3498 = vmatprep.subr.bf16.mxu0 0
    %3499 = vmatpush1.bf16.msra.mxu0 0
    %3500 = vmatprep.subr.bf16.mxu0 0
    %3501 = vmatpush1.bf16.msra.mxu0 0
    %3502 = vmatprep.subr.bf16.mxu0 0
    %3503 = vmatpush1.bf16.msra.mxu0 0
    %3504 = vmatprep.subr.bf16.mxu0 0
    %3505 = vmatpush1.bf16.msra.mxu0 0
    %3506 = vmatprep.subr.bf16.mxu0 0
    %3507 = vmatpush1.bf16.msra.mxu0 0
    %3508 = vmatprep.subr.bf16.mxu0 0
    %3509 = vmatpush1.bf16.msra.mxu0 0
    %3510 = vmatprep.subr.bf16.mxu0 0
    %3511 = vmatpush1.bf16.msra.mxu0 %v3494
    %3512 = vmatprep.subr.bf16.mxu0 0
    %3513 = vmatpush2.bf16.msra.mxu0 0
    %3514 = vmatprep.subr.bf16.mxu0 0
    %3515 = vmatpush2.bf16.msra.mxu0 0
    %3516 = vmatprep.subr.bf16.mxu0 0
    %3517 = vmatpush2.bf16.msra.mxu0 0
    %3518 = vmatprep.subr.bf16.mxu0 0
    %3519 = vmatpush2.bf16.msra.mxu0 0
    %3520 = vmatprep.subr.bf16.mxu0 0
    %3521 = vmatpush2.bf16.msra.mxu0 0
    %3522 = vmatprep.subr.bf16.mxu0 0
    %3523 = vmatpush2.bf16.msra.mxu0 0
    %3524 = vmatprep.subr.bf16.mxu0 0
    %3525 = vmatpush2.bf16.msra.mxu0 0
    %3526 = vmatprep.subr.bf16.mxu0 0
    %3527 = vmatpush2.bf16.msra.mxu0 0
    %3528 = vmatprep.mubr.bf16.mxu0 0
    %3529 = vmatmul.mubr.bf16.gmra.mxu0 %v3491
    %v3530 = vpop.f32.mrf.mxu0
    %v3531 = vadd.f32 0.0, %v3530
    %v3532 = vpop.f32.mrf.mxu0
    %v3533 = vpop.f32.mrf.mxu0
    %v3534 = vpop.f32.mrf.mxu0
    %3535 = vdwg.mxu0
    %v3537 = vsel %vm378, %v3296, 0
    %v3540 = vsel %vm382, %v3204, 0
    %3542 = vmatprep.subr.bf16.mxu0 0
    %3543 = vmatpush1.bf16.msra.mxu0 0
    %3544 = vmatprep.subr.bf16.mxu0 0
    %3545 = vmatpush1.bf16.msra.mxu0 0
    %3546 = vmatprep.subr.bf16.mxu0 0
    %3547 = vmatpush1.bf16.msra.mxu0 0
    %3548 = vmatprep.subr.bf16.mxu0 0
    %3549 = vmatpush1.bf16.msra.mxu0 0
    %3550 = vmatprep.subr.bf16.mxu0 0
    %3551 = vmatpush1.bf16.msra.mxu0 0
    %3552 = vmatprep.subr.bf16.mxu0 0
    %3553 = vmatpush1.bf16.msra.mxu0 0
    %3554 = vmatprep.subr.bf16.mxu0 0
    %3555 = vmatpush1.bf16.msra.mxu0 0
    %3556 = vmatprep.subr.bf16.mxu0 0
    %3557 = vmatpush1.bf16.msra.mxu0 %v3540
    %3558 = vmatprep.subr.bf16.mxu0 0
    %3559 = vmatpush2.bf16.msra.mxu0 0
    %3560 = vmatprep.subr.bf16.mxu0 0
    %3561 = vmatpush2.bf16.msra.mxu0 0
    %3562 = vmatprep.subr.bf16.mxu0 0
    %3563 = vmatpush2.bf16.msra.mxu0 0
    %3564 = vmatprep.subr.bf16.mxu0 0
    %3565 = vmatpush2.bf16.msra.mxu0 0
    %3566 = vmatprep.subr.bf16.mxu0 0
    %3567 = vmatpush2.bf16.msra.mxu0 0
    %3568 = vmatprep.subr.bf16.mxu0 0
    %3569 = vmatpush2.bf16.msra.mxu0 0
    %3570 = vmatprep.subr.bf16.mxu0 0
    %3571 = vmatpush2.bf16.msra.mxu0 0
    %3572 = vmatprep.subr.bf16.mxu0 0
    %3573 = vmatpush2.bf16.msra.mxu0 0
    %3574 = vmatprep.mubr.bf16.mxu0 0
    %3575 = vmatmul.mubr.bf16.gmra.mxu0 %v3537
    %v3576 = vpop.f32.mrf.mxu0
    %v3577 = vadd.f32 0.0, %v3576
    %v3578 = vpop.f32.mrf.mxu0
    %v3579 = vpop.f32.mrf.mxu0
    %v3580 = vpop.f32.mrf.mxu0
    %3581 = vdwg.mxu0
    %v3583 = vsel %vm378, %v3312, 0
    %v3586 = vsel %vm382, %v3205, 0
    %3588 = vmatprep.subr.bf16.mxu0 0
    %3589 = vmatpush1.bf16.msra.mxu0 0
    %3590 = vmatprep.subr.bf16.mxu0 0
    %3591 = vmatpush1.bf16.msra.mxu0 0
    %3592 = vmatprep.subr.bf16.mxu0 0
    %3593 = vmatpush1.bf16.msra.mxu0 0
    %3594 = vmatprep.subr.bf16.mxu0 0
    %3595 = vmatpush1.bf16.msra.mxu0 0
    %3596 = vmatprep.subr.bf16.mxu0 0
    %3597 = vmatpush1.bf16.msra.mxu0 0
    %3598 = vmatprep.subr.bf16.mxu0 0
    %3599 = vmatpush1.bf16.msra.mxu0 0
    %3600 = vmatprep.subr.bf16.mxu0 0
    %3601 = vmatpush1.bf16.msra.mxu0 0
    %3602 = vmatprep.subr.bf16.mxu0 0
    %3603 = vmatpush1.bf16.msra.mxu0 %v3586
    %3604 = vmatprep.subr.bf16.mxu0 0
    %3605 = vmatpush2.bf16.msra.mxu0 0
    %3606 = vmatprep.subr.bf16.mxu0 0
    %3607 = vmatpush2.bf16.msra.mxu0 0
    %3608 = vmatprep.subr.bf16.mxu0 0
    %3609 = vmatpush2.bf16.msra.mxu0 0
    %3610 = vmatprep.subr.bf16.mxu0 0
    %3611 = vmatpush2.bf16.msra.mxu0 0
    %3612 = vmatprep.subr.bf16.mxu0 0
    %3613 = vmatpush2.bf16.msra.mxu0 0
    %3614 = vmatprep.subr.bf16.mxu0 0
    %3615 = vmatpush2.bf16.msra.mxu0 0
    %3616 = vmatprep.subr.bf16.mxu0 0
    %3617 = vmatpush2.bf16.msra.mxu0 0
    %3618 = vmatprep.subr.bf16.mxu0 0
    %3619 = vmatpush2.bf16.msra.mxu0 0
    %3620 = vmatprep.mubr.bf16.mxu0 0
    %3621 = vmatmul.mubr.bf16.gmra.mxu0 %v3583
    %v3622 = vpop.f32.mrf.mxu0
    %v3623 = vadd.f32 0.0, %v3622
    %v3624 = vpop.f32.mrf.mxu0
    %v3625 = vpop.f32.mrf.mxu0
    %v3626 = vpop.f32.mrf.mxu0
    %3627 = vdwg.mxu0
    %v3629 = vsel %vm378, %v3328, 0
    %v3632 = vsel %vm382, %v3206, 0
    %3634 = vmatprep.subr.bf16.mxu0 0
    %3635 = vmatpush1.bf16.msra.mxu0 0
    %3636 = vmatprep.subr.bf16.mxu0 0
    %3637 = vmatpush1.bf16.msra.mxu0 0
    %3638 = vmatprep.subr.bf16.mxu0 0
    %3639 = vmatpush1.bf16.msra.mxu0 0
    %3640 = vmatprep.subr.bf16.mxu0 0
    %3641 = vmatpush1.bf16.msra.mxu0 0
    %3642 = vmatprep.subr.bf16.mxu0 0
    %3643 = vmatpush1.bf16.msra.mxu0 0
    %3644 = vmatprep.subr.bf16.mxu0 0
    %3645 = vmatpush1.bf16.msra.mxu0 0
    %3646 = vmatprep.subr.bf16.mxu0 0
    %3647 = vmatpush1.bf16.msra.mxu0 0
    %3648 = vmatprep.subr.bf16.mxu0 0
    %3649 = vmatpush1.bf16.msra.mxu0 %v3632
    %3650 = vmatprep.subr.bf16.mxu0 0
    %3651 = vmatpush2.bf16.msra.mxu0 0
    %3652 = vmatprep.subr.bf16.mxu0 0
    %3653 = vmatpush2.bf16.msra.mxu0 0
    %3654 = vmatprep.subr.bf16.mxu0 0
    %3655 = vmatpush2.bf16.msra.mxu0 0
    %3656 = vmatprep.subr.bf16.mxu0 0
    %3657 = vmatpush2.bf16.msra.mxu0 0
    %3658 = vmatprep.subr.bf16.mxu0 0
    %3659 = vmatpush2.bf16.msra.mxu0 0
    %3660 = vmatprep.subr.bf16.mxu0 0
    %3661 = vmatpush2.bf16.msra.mxu0 0
    %3662 = vmatprep.subr.bf16.mxu0 0
    %3663 = vmatpush2.bf16.msra.mxu0 0
    %3664 = vmatprep.subr.bf16.mxu0 0
    %3665 = vmatpush2.bf16.msra.mxu0 0
    %3666 = vmatprep.mubr.bf16.mxu0 0
    %3667 = vmatmul.mubr.bf16.gmra.mxu0 %v3629
    %v3668 = vpop.f32.mrf.mxu0
    %v3669 = vadd.f32 0.0, %v3668
    %v3670 = vpop.f32.mrf.mxu0
    %v3671 = vpop.f32.mrf.mxu0
    %v3672 = vpop.f32.mrf.mxu0
    %3673 = vdwg.mxu0
    %v3675 = vsel %vm378, %v3344, 0
    %v3678 = vsel %vm382, %v3207, 0
    %3680 = vmatprep.subr.bf16.mxu0 0
    %3681 = vmatpush1.bf16.msra.mxu0 0
    %3682 = vmatprep.subr.bf16.mxu0 0
    %3683 = vmatpush1.bf16.msra.mxu0 0
    %3684 = vmatprep.subr.bf16.mxu0 0
    %3685 = vmatpush1.bf16.msra.mxu0 0
    %3686 = vmatprep.subr.bf16.mxu0 0
    %3687 = vmatpush1.bf16.msra.mxu0 0
    %3688 = vmatprep.subr.bf16.mxu0 0
    %3689 = vmatpush1.bf16.msra.mxu0 0
    %3690 = vmatprep.subr.bf16.mxu0 0
    %3691 = vmatpush1.bf16.msra.mxu0 0
    %3692 = vmatprep.subr.bf16.mxu0 0
    %3693 = vmatpush1.bf16.msra.mxu0 0
    %3694 = vmatprep.subr.bf16.mxu0 0
    %3695 = vmatpush1.bf16.msra.mxu0 %v3678
    %3696 = vmatprep.subr.bf16.mxu0 0
    %3697 = vmatpush2.bf16.msra.mxu0 0
    %3698 = vmatprep.subr.bf16.mxu0 0
    %3699 = vmatpush2.bf16.msra.mxu0 0
    %3700 = vmatprep.subr.bf16.mxu0 0
    %3701 = vmatpush2.bf16.msra.mxu0 0
    %3702 = vmatprep.subr.bf16.mxu0 0
    %3703 = vmatpush2.bf16.msra.mxu0 0
    %3704 = vmatprep.subr.bf16.mxu0 0
    %3705 = vmatpush2.bf16.msra.mxu0 0
    %3706 = vmatprep.subr.bf16.mxu0 0
    %3707 = vmatpush2.bf16.msra.mxu0 0
    %3708 = vmatprep.subr.bf16.mxu0 0
    %3709 = vmatpush2.bf16.msra.mxu0 0
    %3710 = vmatprep.subr.bf16.mxu0 0
    %3711 = vmatpush2.bf16.msra.mxu0 0
    %3712 = vmatprep.mubr.bf16.mxu0 0
    %3713 = vmatmul.mubr.bf16.gmra.mxu0 %v3675
    %v3714 = vpop.f32.mrf.mxu0
    %v3715 = vadd.f32 0.0, %v3714
    %v3716 = vpop.f32.mrf.mxu0
    %v3717 = vpop.f32.mrf.mxu0
    %v3718 = vpop.f32.mrf.mxu0
    %3719 = vdwg.mxu0
    %v3720 = vsel %vm378, %v3393, -inf
    %v3721 = vrot.slane %v3720, 4
    %v3722 = vmax.f32 %v3720, %v3721
    %v3723 = vrot.slane %v3722, 2
    %v3724 = vmax.f32 %v3722, %v3723
    %v3725 = vrot.slane %v3724, 1
    %v3726 = vmax.f32 %v3724, %v3725
    %v3727 = vsel %vm378, %v3439, -inf
    %v3728 = vrot.slane %v3727, 4
    %v3729 = vmax.f32 %v3727, %v3728
    %v3730 = vrot.slane %v3729, 2
    %v3731 = vmax.f32 %v3729, %v3730
    %v3732 = vrot.slane %v3731, 1
    %v3733 = vmax.f32 %v3731, %v3732
    %v3734 = vsel %vm378, %v3485, -inf
    %v3735 = vrot.slane %v3734, 4
    %v3736 = vmax.f32 %v3734, %v3735
    %v3737 = vrot.slane %v3736, 2
    %v3738 = vmax.f32 %v3736, %v3737
    %v3739 = vrot.slane %v3738, 1
    %v3740 = vmax.f32 %v3738, %v3739
    %v3741 = vsel %vm378, %v3531, -inf
    %v3742 = vrot.slane %v3741, 4
    %v3743 = vmax.f32 %v3741, %v3742
    %v3744 = vrot.slane %v3743, 2
    %v3745 = vmax.f32 %v3743, %v3744
    %v3746 = vrot.slane %v3745, 1
    %v3747 = vmax.f32 %v3745, %v3746
    %v3748 = vsel %vm378, %v3577, -inf
    %v3749 = vrot.slane %v3748, 4
    %v3750 = vmax.f32 %v3748, %v3749
    %v3751 = vrot.slane %v3750, 2
    %v3752 = vmax.f32 %v3750, %v3751
    %v3753 = vrot.slane %v3752, 1
    %v3754 = vmax.f32 %v3752, %v3753
    %v3755 = vsel %vm378, %v3623, -inf
    %v3756 = vrot.slane %v3755, 4
    %v3757 = vmax.f32 %v3755, %v3756
    %v3758 = vrot.slane %v3757, 2
    %v3759 = vmax.f32 %v3757, %v3758
    %v3760 = vrot.slane %v3759, 1
    %v3761 = vmax.f32 %v3759, %v3760
    %v3762 = vsel %vm378, %v3669, -inf
    %v3763 = vrot.slane %v3762, 4
    %v3764 = vmax.f32 %v3762, %v3763
    %v3765 = vrot.slane %v3764, 2
    %v3766 = vmax.f32 %v3764, %v3765
    %v3767 = vrot.slane %v3766, 1
    %v3768 = vmax.f32 %v3766, %v3767
    %v3769 = vsel %vm378, %v3715, -inf
    %v3770 = vrot.slane %v3769, 4
    %v3771 = vmax.f32 %v3769, %v3770
    %v3772 = vrot.slane %v3771, 2
    %v3773 = vmax.f32 %v3771, %v3772
    %v3774 = vrot.slane %v3773, 1
    %v3775 = vmax.f32 %v3773, %v3774
    %v3776 = vsub.f32 %v3393, %v3726
    %v3777 = vsub.f32 %v3439, %v3733
    %v3778 = vsub.f32 %v3485, %v3740
    %v3779 = vsub.f32 %v3531, %v3747
    %v3780 = vsub.f32 %v3577, %v3754
    %v3781 = vsub.f32 %v3623, %v3761
    %v3782 = vsub.f32 %v3669, %v3768
    %v3783 = vsub.f32 %v3715, %v3775
    %v3784 = vmul.f32 %v3776, 1.442695
    %v3785 = vpow.pop %v3784
    %v3786 = vmul.f32 %v3777, 1.442695
    %v3787 = vpow.pop %v3786
    %v3788 = vmul.f32 %v3778, 1.442695
    %v3789 = vpow.pop %v3788
    %v3790 = vmul.f32 %v3779, 1.442695
    %v3791 = vpow.pop %v3790
    %v3792 = vmul.f32 %v3780, 1.442695
    %v3793 = vpow.pop %v3792
    %v3794 = vmul.f32 %v3781, 1.442695
    %v3795 = vpow.pop %v3794
    %v3796 = vmul.f32 %v3782, 1.442695
    %v3797 = vpow.pop %v3796
    %v3798 = vmul.f32 %v3783, 1.442695
    %v3799 = vpow.pop %v3798
    %v3800 = vsel %vm378, %v3785, 0.0
    %v3801 = vrot.slane %v3800, 4
    %v3802 = vadd.f32 %v3800, %v3801
    %v3803 = vrot.slane %v3802, 2
    %v3804 = vadd.f32 %v3802, %v3803
    %v3805 = vrot.slane %v3804, 1
    %v3806 = vadd.f32 %v3804, %v3805
    %v3807 = vsel %vm378, %v3787, 0.0
    %v3808 = vrot.slane %v3807, 4
    %v3809 = vadd.f32 %v3807, %v3808
    %v3810 = vrot.slane %v3809, 2
    %v3811 = vadd.f32 %v3809, %v3810
    %v3812 = vrot.slane %v3811, 1
    %v3813 = vadd.f32 %v3811, %v3812
    %v3814 = vsel %vm378, %v3789, 0.0
    %v3815 = vrot.slane %v3814, 4
    %v3816 = vadd.f32 %v3814, %v3815
    %v3817 = vrot.slane %v3816, 2
    %v3818 = vadd.f32 %v3816, %v3817
    %v3819 = vrot.slane %v3818, 1
    %v3820 = vadd.f32 %v3818, %v3819
    %v3821 = vsel %vm378, %v3791, 0.0
    %v3822 = vrot.slane %v3821, 4
    %v3823 = vadd.f32 %v3821, %v3822
    %v3824 = vrot.slane %v3823, 2
    %v3825 = vadd.f32 %v3823, %v3824
    %v3826 = vrot.slane %v3825, 1
    %v3827 = vadd.f32 %v3825, %v3826
    %v3828 = vsel %vm378, %v3793, 0.0
    %v3829 = vrot.slane %v3828, 4
    %v3830 = vadd.f32 %v3828, %v3829
    %v3831 = vrot.slane %v3830, 2
    %v3832 = vadd.f32 %v3830, %v3831
    %v3833 = vrot.slane %v3832, 1
    %v3834 = vadd.f32 %v3832, %v3833
    %v3835 = vsel %vm378, %v3795, 0.0
    %v3836 = vrot.slane %v3835, 4
    %v3837 = vadd.f32 %v3835, %v3836
    %v3838 = vrot.slane %v3837, 2
    %v3839 = vadd.f32 %v3837, %v3838
    %v3840 = vrot.slane %v3839, 1
    %v3841 = vadd.f32 %v3839, %v3840
    %v3842 = vsel %vm378, %v3797, 0.0
    %v3843 = vrot.slane %v3842, 4
    %v3844 = vadd.f32 %v3842, %v3843
    %v3845 = vrot.slane %v3844, 2
    %v3846 = vadd.f32 %v3844, %v3845
    %v3847 = vrot.slane %v3846, 1
    %v3848 = vadd.f32 %v3846, %v3847
    %v3849 = vsel %vm378, %v3799, 0.0
    %v3850 = vrot.slane %v3849, 4
    %v3851 = vadd.f32 %v3849, %v3850
    %v3852 = vrot.slane %v3851, 2
    %v3853 = vadd.f32 %v3851, %v3852
    %v3854 = vrot.slane %v3853, 1
    %v3855 = vadd.f32 %v3853, %v3854
    %v3856 = vpack.c.bf16 %v3785, %v3785
    %v3857 = vpack.c.bf16 %v3787, %v3787
    %v3858 = vpack.c.bf16 %v3789, %v3789
    %v3859 = vpack.c.bf16 %v3791, %v3791
    %v3860 = vpack.c.bf16 %v3793, %v3793
    %v3861 = vpack.c.bf16 %v3795, %v3795
    %v3862 = vpack.c.bf16 %v3797, %v3797
    %v3863 = vpack.c.bf16 %v3799, %v3799
    %v3865 = vsel %vm378, %v3200, 0
    %v3868 = vsel %vm382, %v3856, 0
    %3870 = vmatprep.subr.bf16.mxu0 0
    %3871 = vmatpush1.bf16.msra.mxu0 0
    %3872 = vmatprep.subr.bf16.mxu0 0
    %3873 = vmatpush1.bf16.msra.mxu0 0
    %3874 = vmatprep.subr.bf16.mxu0 0
    %3875 = vmatpush1.bf16.msra.mxu0 0
    %3876 = vmatprep.subr.bf16.mxu0 0
    %3877 = vmatpush1.bf16.msra.mxu0 0
    %3878 = vmatprep.subr.bf16.mxu0 0
    %3879 = vmatpush1.bf16.msra.mxu0 0
    %3880 = vmatprep.subr.bf16.mxu0 0
    %3881 = vmatpush1.bf16.msra.mxu0 0
    %3882 = vmatprep.subr.bf16.mxu0 0
    %3883 = vmatpush1.bf16.msra.mxu0 0
    %3884 = vmatprep.subr.bf16.mxu0 0
    %3885 = vmatpush1.bf16.msra.mxu0 %v3868
    %3886 = vmatprep.subr.bf16.mxu0 0
    %3887 = vmatpush2.bf16.msra.mxu0 0
    %3888 = vmatprep.subr.bf16.mxu0 0
    %3889 = vmatpush2.bf16.msra.mxu0 0
    %3890 = vmatprep.subr.bf16.mxu0 0
    %3891 = vmatpush2.bf16.msra.mxu0 0
    %3892 = vmatprep.subr.bf16.mxu0 0
    %3893 = vmatpush2.bf16.msra.mxu0 0
    %3894 = vmatprep.subr.bf16.mxu0 0
    %3895 = vmatpush2.bf16.msra.mxu0 0
    %3896 = vmatprep.subr.bf16.mxu0 0
    %3897 = vmatpush2.bf16.msra.mxu0 0
    %3898 = vmatprep.subr.bf16.mxu0 0
    %3899 = vmatpush2.bf16.msra.mxu0 0
    %3900 = vmatprep.subr.bf16.mxu0 0
    %3901 = vmatpush2.bf16.msra.mxu0 0
    %3902 = vmatprep.mubr.bf16.mxu0 0
    %3903 = vmatmul.mubr.bf16.gmra.mxu0 %v3865
    %v3904 = vpop.f32.mrf.mxu0
    %v3905 = vadd.f32 0.0, %v3904
    %v3906 = vpop.f32.mrf.mxu0
    %v3907 = vpop.f32.mrf.mxu0
    %v3908 = vpop.f32.mrf.mxu0
    %3909 = vdwg.mxu0
    %v3911 = vsel %vm378, %v3201, 0
    %v3914 = vsel %vm382, %v3857, 0
    %3916 = vmatprep.subr.bf16.mxu0 0
    %3917 = vmatpush1.bf16.msra.mxu0 0
    %3918 = vmatprep.subr.bf16.mxu0 0
    %3919 = vmatpush1.bf16.msra.mxu0 0
    %3920 = vmatprep.subr.bf16.mxu0 0
    %3921 = vmatpush1.bf16.msra.mxu0 0
    %3922 = vmatprep.subr.bf16.mxu0 0
    %3923 = vmatpush1.bf16.msra.mxu0 0
    %3924 = vmatprep.subr.bf16.mxu0 0
    %3925 = vmatpush1.bf16.msra.mxu0 0
    %3926 = vmatprep.subr.bf16.mxu0 0
    %3927 = vmatpush1.bf16.msra.mxu0 0
    %3928 = vmatprep.subr.bf16.mxu0 0
    %3929 = vmatpush1.bf16.msra.mxu0 0
    %3930 = vmatprep.subr.bf16.mxu0 0
    %3931 = vmatpush1.bf16.msra.mxu0 %v3914
    %3932 = vmatprep.subr.bf16.mxu0 0
    %3933 = vmatpush2.bf16.msra.mxu0 0
    %3934 = vmatprep.subr.bf16.mxu0 0
    %3935 = vmatpush2.bf16.msra.mxu0 0
    %3936 = vmatprep.subr.bf16.mxu0 0
    %3937 = vmatpush2.bf16.msra.mxu0 0
    %3938 = vmatprep.subr.bf16.mxu0 0
    %3939 = vmatpush2.bf16.msra.mxu0 0
    %3940 = vmatprep.subr.bf16.mxu0 0
    %3941 = vmatpush2.bf16.msra.mxu0 0
    %3942 = vmatprep.subr.bf16.mxu0 0
    %3943 = vmatpush2.bf16.msra.mxu0 0
    %3944 = vmatprep.subr.bf16.mxu0 0
    %3945 = vmatpush2.bf16.msra.mxu0 0
    %3946 = vmatprep.subr.bf16.mxu0 0
    %3947 = vmatpush2.bf16.msra.mxu0 0
    %3948 = vmatprep.mubr.bf16.mxu0 0
    %3949 = vmatmul.mubr.bf16.gmra.mxu0 %v3911
    %v3950 = vpop.f32.mrf.mxu0
    %v3951 = vadd.f32 0.0, %v3950
    %v3952 = vpop.f32.mrf.mxu0
    %v3953 = vpop.f32.mrf.mxu0
    %v3954 = vpop.f32.mrf.mxu0
    %3955 = vdwg.mxu0
    %v3957 = vsel %vm378, %v3202, 0
    %v3960 = vsel %vm382, %v3858, 0
    %3962 = vmatprep.subr.bf16.mxu0 0
    %3963 = vmatpush1.bf16.msra.mxu0 0
    %3964 = vmatprep.subr.bf16.mxu0 0
    %3965 = vmatpush1.bf16.msra.mxu0 0
    %3966 = vmatprep.subr.bf16.mxu0 0
    %3967 = vmatpush1.bf16.msra.mxu0 0
    %3968 = vmatprep.subr.bf16.mxu0 0
    %3969 = vmatpush1.bf16.msra.mxu0 0
    %3970 = vmatprep.subr.bf16.mxu0 0
    %3971 = vmatpush1.bf16.msra.mxu0 0
    %3972 = vmatprep.subr.bf16.mxu0 0
    %3973 = vmatpush1.bf16.msra.mxu0 0
    %3974 = vmatprep.subr.bf16.mxu0 0
    %3975 = vmatpush1.bf16.msra.mxu0 0
    %3976 = vmatprep.subr.bf16.mxu0 0
    %3977 = vmatpush1.bf16.msra.mxu0 %v3960
    %3978 = vmatprep.subr.bf16.mxu0 0
    %3979 = vmatpush2.bf16.msra.mxu0 0
    %3980 = vmatprep.subr.bf16.mxu0 0
    %3981 = vmatpush2.bf16.msra.mxu0 0
    %3982 = vmatprep.subr.bf16.mxu0 0
    %3983 = vmatpush2.bf16.msra.mxu0 0
    %3984 = vmatprep.subr.bf16.mxu0 0
    %3985 = vmatpush2.bf16.msra.mxu0 0
    %3986 = vmatprep.subr.bf16.mxu0 0
    %3987 = vmatpush2.bf16.msra.mxu0 0
    %3988 = vmatprep.subr.bf16.mxu0 0
    %3989 = vmatpush2.bf16.msra.mxu0 0
    %3990 = vmatprep.subr.bf16.mxu0 0
    %3991 = vmatpush2.bf16.msra.mxu0 0
    %3992 = vmatprep.subr.bf16.mxu0 0
    %3993 = vmatpush2.bf16.msra.mxu0 0
    %3994 = vmatprep.mubr.bf16.mxu0 0
    %3995 = vmatmul.mubr.bf16.gmra.mxu0 %v3957
    %v3996 = vpop.f32.mrf.mxu0
    %v3997 = vadd.f32 0.0, %v3996
    %v3998 = vpop.f32.mrf.mxu0
    %v3999 = vpop.f32.mrf.mxu0
    %v4000 = vpop.f32.mrf.mxu0
    %4001 = vdwg.mxu0
    %v4003 = vsel %vm378, %v3203, 0
    %v4006 = vsel %vm382, %v3859, 0
    %4008 = vmatprep.subr.bf16.mxu0 0
    %4009 = vmatpush1.bf16.msra.mxu0 0
    %4010 = vmatprep.subr.bf16.mxu0 0
    %4011 = vmatpush1.bf16.msra.mxu0 0
    %4012 = vmatprep.subr.bf16.mxu0 0
    %4013 = vmatpush1.bf16.msra.mxu0 0
    %4014 = vmatprep.subr.bf16.mxu0 0
    %4015 = vmatpush1.bf16.msra.mxu0 0
    %4016 = vmatprep.subr.bf16.mxu0 0
    %4017 = vmatpush1.bf16.msra.mxu0 0
    %4018 = vmatprep.subr.bf16.mxu0 0
    %4019 = vmatpush1.bf16.msra.mxu0 0
    %4020 = vmatprep.subr.bf16.mxu0 0
    %4021 = vmatpush1.bf16.msra.mxu0 0
    %4022 = vmatprep.subr.bf16.mxu0 0
    %4023 = vmatpush1.bf16.msra.mxu0 %v4006
    %4024 = vmatprep.subr.bf16.mxu0 0
    %4025 = vmatpush2.bf16.msra.mxu0 0
    %4026 = vmatprep.subr.bf16.mxu0 0
    %4027 = vmatpush2.bf16.msra.mxu0 0
    %4028 = vmatprep.subr.bf16.mxu0 0
    %4029 = vmatpush2.bf16.msra.mxu0 0
    %4030 = vmatprep.subr.bf16.mxu0 0
    %4031 = vmatpush2.bf16.msra.mxu0 0
    %4032 = vmatprep.subr.bf16.mxu0 0
    %4033 = vmatpush2.bf16.msra.mxu0 0
    %4034 = vmatprep.subr.bf16.mxu0 0
    %4035 = vmatpush2.bf16.msra.mxu0 0
    %4036 = vmatprep.subr.bf16.mxu0 0
    %4037 = vmatpush2.bf16.msra.mxu0 0
    %4038 = vmatprep.subr.bf16.mxu0 0
    %4039 = vmatpush2.bf16.msra.mxu0 0
    %4040 = vmatprep.mubr.bf16.mxu0 0
    %4041 = vmatmul.mubr.bf16.gmra.mxu0 %v4003
    %v4042 = vpop.f32.mrf.mxu0
    %v4043 = vadd.f32 0.0, %v4042
    %v4044 = vpop.f32.mrf.mxu0
    %v4045 = vpop.f32.mrf.mxu0
    %v4046 = vpop.f32.mrf.mxu0
    %4047 = vdwg.mxu0
    %v4049 = vsel %vm378, %v3212, 0
    %v4052 = vsel %vm382, %v3860, 0
    %4054 = vmatprep.subr.bf16.mxu0 0
    %4055 = vmatpush1.bf16.msra.mxu0 0
    %4056 = vmatprep.subr.bf16.mxu0 0
    %4057 = vmatpush1.bf16.msra.mxu0 0
    %4058 = vmatprep.subr.bf16.mxu0 0
    %4059 = vmatpush1.bf16.msra.mxu0 0
    %4060 = vmatprep.subr.bf16.mxu0 0
    %4061 = vmatpush1.bf16.msra.mxu0 0
    %4062 = vmatprep.subr.bf16.mxu0 0
    %4063 = vmatpush1.bf16.msra.mxu0 0
    %4064 = vmatprep.subr.bf16.mxu0 0
    %4065 = vmatpush1.bf16.msra.mxu0 0
    %4066 = vmatprep.subr.bf16.mxu0 0
    %4067 = vmatpush1.bf16.msra.mxu0 0
    %4068 = vmatprep.subr.bf16.mxu0 0
    %4069 = vmatpush1.bf16.msra.mxu0 %v4052
    %4070 = vmatprep.subr.bf16.mxu0 0
    %4071 = vmatpush2.bf16.msra.mxu0 0
    %4072 = vmatprep.subr.bf16.mxu0 0
    %4073 = vmatpush2.bf16.msra.mxu0 0
    %4074 = vmatprep.subr.bf16.mxu0 0
    %4075 = vmatpush2.bf16.msra.mxu0 0
    %4076 = vmatprep.subr.bf16.mxu0 0
    %4077 = vmatpush2.bf16.msra.mxu0 0
    %4078 = vmatprep.subr.bf16.mxu0 0
    %4079 = vmatpush2.bf16.msra.mxu0 0
    %4080 = vmatprep.subr.bf16.mxu0 0
    %4081 = vmatpush2.bf16.msra.mxu0 0
    %4082 = vmatprep.subr.bf16.mxu0 0
    %4083 = vmatpush2.bf16.msra.mxu0 0
    %4084 = vmatprep.subr.bf16.mxu0 0
    %4085 = vmatpush2.bf16.msra.mxu0 0
    %4086 = vmatprep.mubr.bf16.mxu0 0
    %4087 = vmatmul.mubr.bf16.gmra.mxu0 %v4049
    %v4088 = vpop.f32.mrf.mxu0
    %v4089 = vadd.f32 0.0, %v4088
    %v4090 = vpop.f32.mrf.mxu0
    %v4091 = vpop.f32.mrf.mxu0
    %v4092 = vpop.f32.mrf.mxu0
    %4093 = vdwg.mxu0
    %v4095 = vsel %vm378, %v3213, 0
    %v4098 = vsel %vm382, %v3861, 0
    %4100 = vmatprep.subr.bf16.mxu0 0
    %4101 = vmatpush1.bf16.msra.mxu0 0
    %4102 = vmatprep.subr.bf16.mxu0 0
    %4103 = vmatpush1.bf16.msra.mxu0 0
    %4104 = vmatprep.subr.bf16.mxu0 0
    %4105 = vmatpush1.bf16.msra.mxu0 0
    %4106 = vmatprep.subr.bf16.mxu0 0
    %4107 = vmatpush1.bf16.msra.mxu0 0
    %4108 = vmatprep.subr.bf16.mxu0 0
    %4109 = vmatpush1.bf16.msra.mxu0 0
    %4110 = vmatprep.subr.bf16.mxu0 0
    %4111 = vmatpush1.bf16.msra.mxu0 0
    %4112 = vmatprep.subr.bf16.mxu0 0
    %4113 = vmatpush1.bf16.msra.mxu0 0
    %4114 = vmatprep.subr.bf16.mxu0 0
    %4115 = vmatpush1.bf16.msra.mxu0 %v4098
    %4116 = vmatprep.subr.bf16.mxu0 0
    %4117 = vmatpush2.bf16.msra.mxu0 0
    %4118 = vmatprep.subr.bf16.mxu0 0
    %4119 = vmatpush2.bf16.msra.mxu0 0
    %4120 = vmatprep.subr.bf16.mxu0 0
    %4121 = vmatpush2.bf16.msra.mxu0 0
    %4122 = vmatprep.subr.bf16.mxu0 0
    %4123 = vmatpush2.bf16.msra.mxu0 0
    %4124 = vmatprep.subr.bf16.mxu0 0
    %4125 = vmatpush2.bf16.msra.mxu0 0
    %4126 = vmatprep.subr.bf16.mxu0 0
    %4127 = vmatpush2.bf16.msra.mxu0 0
    %4128 = vmatprep.subr.bf16.mxu0 0
    %4129 = vmatpush2.bf16.msra.mxu0 0
    %4130 = vmatprep.subr.bf16.mxu0 0
    %4131 = vmatpush2.bf16.msra.mxu0 0
    %4132 = vmatprep.mubr.bf16.mxu0 0
    %4133 = vmatmul.mubr.bf16.gmra.mxu0 %v4095
    %v4134 = vpop.f32.mrf.mxu0
    %v4135 = vadd.f32 0.0, %v4134
    %v4136 = vpop.f32.mrf.mxu0
    %v4137 = vpop.f32.mrf.mxu0
    %v4138 = vpop.f32.mrf.mxu0
    %4139 = vdwg.mxu0
    %v4141 = vsel %vm378, %v3214, 0
    %v4144 = vsel %vm382, %v3862, 0
    %4146 = vmatprep.subr.bf16.mxu0 0
    %4147 = vmatpush1.bf16.msra.mxu0 0
    %4148 = vmatprep.subr.bf16.mxu0 0
    %4149 = vmatpush1.bf16.msra.mxu0 0
    %4150 = vmatprep.subr.bf16.mxu0 0
    %4151 = vmatpush1.bf16.msra.mxu0 0
    %4152 = vmatprep.subr.bf16.mxu0 0
    %4153 = vmatpush1.bf16.msra.mxu0 0
    %4154 = vmatprep.subr.bf16.mxu0 0
    %4155 = vmatpush1.bf16.msra.mxu0 0
    %4156 = vmatprep.subr.bf16.mxu0 0
    %4157 = vmatpush1.bf16.msra.mxu0 0
    %4158 = vmatprep.subr.bf16.mxu0 0
    %4159 = vmatpush1.bf16.msra.mxu0 0
    %4160 = vmatprep.subr.bf16.mxu0 0
    %4161 = vmatpush1.bf16.msra.mxu0 %v4144
    %4162 = vmatprep.subr.bf16.mxu0 0
    %4163 = vmatpush2.bf16.msra.mxu0 0
    %4164 = vmatprep.subr.bf16.mxu0 0
    %4165 = vmatpush2.bf16.msra.mxu0 0
    %4166 = vmatprep.subr.bf16.mxu0 0
    %4167 = vmatpush2.bf16.msra.mxu0 0
    %4168 = vmatprep.subr.bf16.mxu0 0
    %4169 = vmatpush2.bf16.msra.mxu0 0
    %4170 = vmatprep.subr.bf16.mxu0 0
    %4171 = vmatpush2.bf16.msra.mxu0 0
    %4172 = vmatprep.subr.bf16.mxu0 0
    %4173 = vmatpush2.bf16.msra.mxu0 0
    %4174 = vmatprep.subr.bf16.mxu0 0
    %4175 = vmatpush2.bf16.msra.mxu0 0
    %4176 = vmatprep.subr.bf16.mxu0 0
    %4177 = vmatpush2.bf16.msra.mxu0 0
    %4178 = vmatprep.mubr.bf16.mxu0 0
    %4179 = vmatmul.mubr.bf16.gmra.mxu0 %v4141
    %v4180 = vpop.f32.mrf.mxu0
    %v4181 = vadd.f32 0.0, %v4180
    %v4182 = vpop.f32.mrf.mxu0
    %v4183 = vpop.f32.mrf.mxu0
    %v4184 = vpop.f32.mrf.mxu0
    %4185 = vdwg.mxu0
    %v4187 = vsel %vm378, %v3215, 0
    %v4190 = vsel %vm382, %v3863, 0
    %4192 = vmatprep.subr.bf16.mxu0 0
    %4193 = vmatpush1.bf16.msra.mxu0 0
    %4194 = vmatprep.subr.bf16.mxu0 0
    %4195 = vmatpush1.bf16.msra.mxu0 0
    %4196 = vmatprep.subr.bf16.mxu0 0
    %4197 = vmatpush1.bf16.msra.mxu0 0
    %4198 = vmatprep.subr.bf16.mxu0 0
    %4199 = vmatpush1.bf16.msra.mxu0 0
    %4200 = vmatprep.subr.bf16.mxu0 0
    %4201 = vmatpush1.bf16.msra.mxu0 0
    %4202 = vmatprep.subr.bf16.mxu0 0
    %4203 = vmatpush1.bf16.msra.mxu0 0
    %4204 = vmatprep.subr.bf16.mxu0 0
    %4205 = vmatpush1.bf16.msra.mxu0 0
    %4206 = vmatprep.subr.bf16.mxu0 0
    %4207 = vmatpush1.bf16.msra.mxu0 %v4190
    %4208 = vmatprep.subr.bf16.mxu0 0
    %4209 = vmatpush2.bf16.msra.mxu0 0
    %4210 = vmatprep.subr.bf16.mxu0 0
    %4211 = vmatpush2.bf16.msra.mxu0 0
    %4212 = vmatprep.subr.bf16.mxu0 0
    %4213 = vmatpush2.bf16.msra.mxu0 0
    %4214 = vmatprep.subr.bf16.mxu0 0
    %4215 = vmatpush2.bf16.msra.mxu0 0
    %4216 = vmatprep.subr.bf16.mxu0 0
    %4217 = vmatpush2.bf16.msra.mxu0 0
    %4218 = vmatprep.subr.bf16.mxu0 0
    %4219 = vmatpush2.bf16.msra.mxu0 0
    %4220 = vmatprep.subr.bf16.mxu0 0
    %4221 = vmatpush2.bf16.msra.mxu0 0
    %4222 = vmatprep.subr.bf16.mxu0 0
    %4223 = vmatpush2.bf16.msra.mxu0 0
    %4224 = vmatprep.mubr.bf16.mxu0 0
    %4225 = vmatmul.mubr.bf16.gmra.mxu0 %v4187
    %v4226 = vpop.f32.mrf.mxu0
    %v4227 = vadd.f32 0.0, %v4226
    %v4228 = vpop.f32.mrf.mxu0
    %v4229 = vpop.f32.mrf.mxu0
    %v4230 = vpop.f32.mrf.mxu0
    %4231 = vdwg.mxu0
    %v4232 = vrcp.pop %v3806
    %v4233 = vrcp.pop %v3813
    %v4234 = vrcp.pop %v3820
    %v4235 = vrcp.pop %v3827
    %v4236 = vrcp.pop %v3834
    %v4237 = vrcp.pop %v3841
    %v4238 = vrcp.pop %v3848
    %v4239 = vrcp.pop %v3855
    %v4240 = vmul.f32 %v3905, %v4232
    %v4241 = vmul.f32 %v3951, %v4233
    %v4242 = vmul.f32 %v3997, %v4234
    %v4243 = vmul.f32 %v4043, %v4235
    %v4244 = vmul.f32 %v4089, %v4236
    %v4245 = vmul.f32 %v4135, %v4237
    %v4246 = vmul.f32 %v4181, %v4238
    %v4247 = vmul.f32 %v4227, %v4239
    %v4248 = vpack.c.bf16 %v4240, %v4240
    %v4249 = vpack.c.bf16 %v4241, %v4241
    %v4250 = vpack.c.bf16 %v4242, %v4242
    %v4251 = vpack.c.bf16 %v4243, %v4243
    %v4252 = vpack.c.bf16 %v4244, %v4244
    %v4253 = vpack.c.bf16 %v4245, %v4245
    %v4254 = vpack.c.bf16 %v4246, %v4246
    %v4255 = vpack.c.bf16 %v4247, %v4247
    %v4264 = vunpack.c.l.b16 %v4248
    %v4265 = vunpack.c.l.b16 %v4249
    %v4266 = vunpack.c.l.b16 %v4250
    %v4267 = vunpack.c.l.b16 %v4251
    %v4268 = vunpack.c.l.b16 %v4252
    %v4269 = vunpack.c.l.b16 %v4253
    %v4270 = vunpack.c.l.b16 %v4254
    %v4271 = vunpack.c.l.b16 %v4255
    %v4272 = vpack.c.b16 %v4265, %v4264
    %v4273 = vpack.c.b16 %v4267, %v4266
    %v4274 = vpack.c.b16 %v4269, %v4268
    %v4275 = vpack.c.b16 %v4271, %v4270
    %4280 = vxpose.xlu0.c.b16.start [1/8] %v4272, 128
    %4281 = vxpose.xlu0.c.b16.cont [2/8] %v4273, 128
    %4282 = vxpose.xlu0.c.b16.cont [3/8] 0, 128
    %4283 = vxpose.xlu0.c.b16.cont [4/8] 0, 128
    %4284 = vxpose.xlu0.c.b16.cont [5/8] 0, 128
    %4285 = vxpose.xlu0.c.b16.cont [6/8] 0, 128
    %4286 = vxpose.xlu0.c.b16.cont [7/8] 0, 128
    %4287 = vxpose.xlu0.c.b16.end [8/8] 0, 128
    %v4288 = vpop.trf.xlu0
    %v4289 = vpop.trf.xlu0
    %v4290 = vpop.trf.xlu0
    %v4291 = vpop.trf.xlu0
    %v4292 = vpop.trf.xlu0
    %v4293 = vpop.trf.xlu0
    %v4294 = vpop.trf.xlu0
    %v4295 = vpop.trf.xlu0
    %4296 = vxpose.xlu0.c.b16.start [1/8] %v4274, 128
    %4297 = vxpose.xlu0.c.b16.cont [2/8] %v4275, 128
    %4298 = vxpose.xlu0.c.b16.cont [3/8] 0, 128
    %4299 = vxpose.xlu0.c.b16.cont [4/8] 0, 128
    %4300 = vxpose.xlu0.c.b16.cont [5/8] 0, 128
    %4301 = vxpose.xlu0.c.b16.cont [6/8] 0, 128
    %4302 = vxpose.xlu0.c.b16.cont [7/8] 0, 128
    %4303 = vxpose.xlu0.c.b16.end [8/8] 0, 128
    %v4304 = vpop.trf.xlu0
    %v4305 = vpop.trf.xlu0
    %v4306 = vpop.trf.xlu0
    %v4307 = vpop.trf.xlu0
    %v4308 = vpop.trf.xlu0
    %v4309 = vpop.trf.xlu0
    %v4310 = vpop.trf.xlu0
    %v4311 = vpop.trf.xlu0
    %v4314 = vunpack.c.l.b16 %v4288
    %v4315 = vunpack.c.l.b16 %v4304
    %v4316 = vpack.c.b16 %v4315, %v4314
    %v4318 = vsel %vm97, %v4316, 0
    %4320 = vmatprep.subr.bf16.mxu0 0
    %4321 = vmatpush1.bf16.msra.mxu0 0
    %4322 = vmatprep.subr.bf16.mxu0 0
    %4323 = vmatpush1.bf16.msra.mxu0 0
    %4324 = vmatprep.subr.bf16.mxu0 0
    %4325 = vmatpush1.bf16.msra.mxu0 0
    %4326 = vmatprep.subr.bf16.mxu0 0
    %4327 = vmatpush1.bf16.msra.mxu0 0
    %4328 = vmatprep.subr.bf16.mxu0 0
    %4329 = vmatpush1.bf16.msra.mxu0 0
    %4330 = vmatprep.subr.bf16.mxu0 0
    %4331 = vmatpush1.bf16.msra.mxu0 0
    %4332 = vmatprep.subr.bf16.mxu0 0
    %4333 = vmatpush1.bf16.msra.mxu0 %v1358
    %4334 = vmatprep.subr.bf16.mxu0 0
    %4335 = vmatpush1.bf16.msra.mxu0 %v1357
    %4336 = vmatprep.subr.bf16.mxu0 0
    %4337 = vmatpush2.bf16.msra.mxu0 0
    %4338 = vmatprep.subr.bf16.mxu0 0
    %4339 = vmatpush2.bf16.msra.mxu0 0
    %4340 = vmatprep.subr.bf16.mxu0 0
    %4341 = vmatpush2.bf16.msra.mxu0 0
    %4342 = vmatprep.subr.bf16.mxu0 0
    %4343 = vmatpush2.bf16.msra.mxu0 0
    %4344 = vmatprep.subr.bf16.mxu0 0
    %4345 = vmatpush2.bf16.msra.mxu0 0
    %4346 = vmatprep.subr.bf16.mxu0 0
    %4347 = vmatpush2.bf16.msra.mxu0 0
    %4348 = vmatprep.subr.bf16.mxu0 0
    %4349 = vmatpush2.bf16.msra.mxu0 0
    %4350 = vmatprep.subr.bf16.mxu0 0
    %4351 = vmatpush2.bf16.msra.mxu0 0
    %4352 = vmatprep.mubr.bf16.mxu0 0
    %4353 = vmatmul.mubr.bf16.gmra.mxu0 %v4318
    %v4354 = vpop.f32.mrf.mxu0
    %v4355 = vadd.f32 %v1343, %v4354
    %v4356 = vpop.f32.mrf.mxu0
    %v4357 = vpop.f32.mrf.mxu0
    %v4358 = vadd.f32 %v1343, %v4357
    %v4359 = vpop.f32.mrf.mxu0
    %4360 = vdwg.mxu0
    %v4361 = vadd.f32 %v4355, %v3069
    %v4362 = vadd.f32 %v4358, %v3070
    %v4363 = vsel %vm97, %v4361, 0.0
    %4364 = vadd.xlane.f32.xlu0 %v4363
    %v4365 = vpop.xlane.xlu0 %4364
    %v4366 = vsel %vm97, %v4362, 0.0
    %4367 = vadd.xlane.f32.xlu0 %v4366
    %v4368 = vpop.xlane.xlu0 %4367
    %v4369 = vmul.f32 %v4365, %v1413
    %v4370 = vmul.f32 %v4368, %v1413
    %v4371 = vsub.f32 %v4361, %v4369
    %v4372 = vsub.f32 %v4362, %v4370
    %v4373 = vmul.f32 %v4371, %v4371
    %v4374 = vmul.f32 %v4372, %v4372
    %v4375 = vsel %vm97, %v4373, 0.0
    %4376 = vadd.xlane.f32.xlu0 %v4375
    %v4377 = vpop.xlane.xlu0 %4376
    %v4378 = vsel %vm97, %v4374, 0.0
    %4379 = vadd.xlane.f32.xlu0 %v4378
    %v4380 = vpop.xlane.xlu0 %4379
    %v4381 = vmul.f32 %v4377, %v1413
    %v4382 = vmul.f32 %v4380, %v1413
    %v4383 = vadd.f32 %v4381, 1e-05
    %v4384 = vadd.f32 %v4382, 1e-05
    %v4385 = vrsqrt.pop %v4383
    %v4386 = vrsqrt.pop %v4384
    %v4387 = vmul.f32 %v4371, %v4385
    %v4388 = vmul.f32 %v4372, %v4386
    %v4389 = vmul.f32 %v4387, %v1437
    %v4390 = vmul.f32 %v4388, %v1437
    %v4391 = vadd.f32 %v4389, %v1443
    %v4392 = vadd.f32 %v4390, %v1443
    %v4393 = vpack.c.bf16 %v4392, %v4391
    %v4395 = vsel %vm97, %v4393, 0
    %4397 = vmatprep.subr.bf16.mxu0 0
    %4398 = vmatpush1.bf16.msra.mxu0 0
    %4399 = vmatprep.subr.bf16.mxu0 0
    %4400 = vmatpush1.bf16.msra.mxu0 0
    %4401 = vmatprep.subr.bf16.mxu0 0
    %4402 = vmatpush1.bf16.msra.mxu0 0
    %4403 = vmatprep.subr.bf16.mxu0 0
    %4404 = vmatpush1.bf16.msra.mxu0 0
    %4405 = vmatprep.subr.bf16.mxu0 0
    %4406 = vmatpush1.bf16.msra.mxu0 0
    %4407 = vmatprep.subr.bf16.mxu0 0
    %4408 = vmatpush1.bf16.msra.mxu0 0
    %4409 = vmatprep.subr.bf16.mxu0 0
    %4410 = vmatpush1.bf16.msra.mxu0 %v1462
    %4411 = vmatprep.subr.bf16.mxu0 0
    %4412 = vmatpush1.bf16.msra.mxu0 %v1461
    %4413 = vmatprep.subr.bf16.mxu0 0
    %4414 = vmatpush2.bf16.msra.mxu0 0
    %4415 = vmatprep.subr.bf16.mxu0 0
    %4416 = vmatpush2.bf16.msra.mxu0 0
    %4417 = vmatprep.subr.bf16.mxu0 0
    %4418 = vmatpush2.bf16.msra.mxu0 0
    %4419 = vmatprep.subr.bf16.mxu0 0
    %4420 = vmatpush2.bf16.msra.mxu0 0
    %4421 = vmatprep.subr.bf16.mxu0 0
    %4422 = vmatpush2.bf16.msra.mxu0 0
    %4423 = vmatprep.subr.bf16.mxu0 0
    %4424 = vmatpush2.bf16.msra.mxu0 0
    %4425 = vmatprep.subr.bf16.mxu0 0
    %4426 = vmatpush2.bf16.msra.mxu0 0
    %4427 = vmatprep.subr.bf16.mxu0 0
    %4428 = vmatpush2.bf16.msra.mxu0 0
    %4429 = vmatprep.mubr.bf16.mxu0 0
    %4430 = vmatmul.mubr.bf16.gmra.mxu0 %v4395
    %v4431 = vpop.f32.mrf.mxu0
    %v4432 = vadd.f32 %v1451, %v4431
    %v4433 = vpop.f32.mrf.mxu0
    %v4434 = vpop.f32.mrf.mxu0
    %v4435 = vadd.f32 %v1451, %v4434
    %v4436 = vpop.f32.mrf.mxu0
    %4437 = vdwg.mxu0
    %v4438 = vmax.f32 %v4432, 0.0
    %v4439 = vmax.f32 %v4435, 0.0
    %v4440 = vpack.c.bf16 %v4439, %v4438
    %v4442 = vsel %vm1540, %v4440, 0
    %4444 = vmatprep.subr.bf16.mxu0 0
    %4445 = vmatpush1.bf16.msra.mxu0 0
    %4446 = vmatprep.subr.bf16.mxu0 0
    %4447 = vmatpush1.bf16.msra.mxu0 0
    %4448 = vmatprep.subr.bf16.mxu0 0
    %4449 = vmatpush1.bf16.msra.mxu0 0
    %4450 = vmatprep.subr.bf16.mxu0 0
    %4451 = vmatpush1.bf16.msra.mxu0 0
    %4452 = vmatprep.subr.bf16.mxu0 0
    %4453 = vmatpush1.bf16.msra.mxu0 %v1535
    %4454 = vmatprep.subr.bf16.mxu0 0
    %4455 = vmatpush1.bf16.msra.mxu0 %v1534
    %4456 = vmatprep.subr.bf16.mxu0 0
    %4457 = vmatpush1.bf16.msra.mxu0 %v1533
    %4458 = vmatprep.subr.bf16.mxu0 0
    %4459 = vmatpush1.bf16.msra.mxu0 %v1532
    %4460 = vmatprep.subr.bf16.mxu0 0
    %4461 = vmatpush2.bf16.msra.mxu0 0
    %4462 = vmatprep.subr.bf16.mxu0 0
    %4463 = vmatpush2.bf16.msra.mxu0 0
    %4464 = vmatprep.subr.bf16.mxu0 0
    %4465 = vmatpush2.bf16.msra.mxu0 0
    %4466 = vmatprep.subr.bf16.mxu0 0
    %4467 = vmatpush2.bf16.msra.mxu0 0
    %4468 = vmatprep.subr.bf16.mxu0 0
    %4469 = vmatpush2.bf16.msra.mxu0 0
    %4470 = vmatprep.subr.bf16.mxu0 0
    %4471 = vmatpush2.bf16.msra.mxu0 0
    %4472 = vmatprep.subr.bf16.mxu0 0
    %4473 = vmatpush2.bf16.msra.mxu0 0
    %4474 = vmatprep.subr.bf16.mxu0 0
    %4475 = vmatpush2.bf16.msra.mxu0 0
    %4476 = vmatprep.mubr.bf16.mxu0 0
    %4477 = vmatmul.mubr.bf16.gmra.mxu0 %v4442
    %v4478 = vpop.f32.mrf.mxu0
    %v4479 = vadd.f32 %v1515, %v4478
    %v4480 = vpop.f32.mrf.mxu0
    %v4481 = vpop.f32.mrf.mxu0
    %v4482 = vadd.f32 %v1515, %v4481
    %v4483 = vpop.f32.mrf.mxu0
    %4484 = vdwg.mxu0
    %v4485 = vadd.f32 %v4479, %v4391
    %v4486 = vadd.f32 %v4482, %v4392
    %v4487 = vsel %vm97, %v4485, 0.0
    %4488 = vadd.xlane.f32.xlu0 %v4487
    %v4489 = vpop.xlane.xlu0 %4488
    %v4490 = vsel %vm97, %v4486, 0.0
    %4491 = vadd.xlane.f32.xlu0 %v4490
    %v4492 = vpop.xlane.xlu0 %4491
    %v4493 = vmul.f32 %v4489, %v1413
    %v4494 = vmul.f32 %v4492, %v1413
    %v4495 = vsub.f32 %v4485, %v4493
    %v4496 = vsub.f32 %v4486, %v4494
    %v4497 = vmul.f32 %v4495, %v4495
    %v4498 = vmul.f32 %v4496, %v4496
    %v4499 = vsel %vm97, %v4497, 0.0
    %4500 = vadd.xlane.f32.xlu0 %v4499
    %v4501 = vpop.xlane.xlu0 %4500
    %v4502 = vsel %vm97, %v4498, 0.0
    %4503 = vadd.xlane.f32.xlu0 %v4502
    %v4504 = vpop.xlane.xlu0 %4503
    %v4505 = vmul.f32 %v4501, %v1413
    %v4506 = vmul.f32 %v4504, %v1413
    %v4507 = vadd.f32 %v4505, 1e-05
    %v4508 = vadd.f32 %v4506, 1e-05
    %v4509 = vrsqrt.pop %v4507
    %v4510 = vrsqrt.pop %v4508
    %v4511 = vmul.f32 %v4495, %v4509
    %v4512 = vmul.f32 %v4496, %v4510
    %v4513 = vmul.f32 %v4511, %v1616
    %v4514 = vmul.f32 %v4512, %v1616
    %v4515 = vadd.f32 %v4513, %v1622
    %v4516 = vadd.f32 %v4514, %v1622
    %4517 = vst.msk [vmem:[#allocation7] sm:$0xff] %vm97, %v4515
    %4518 = vst.msk [vmem:[#allocation7 + $0x8] sm:$0xff] %vm97, %v4516
    // Predicated region
    $region42: #{tpu_custom_call.1} parent=1 // pred_check
      _
    $region43: #{tpu_custom_call.1} parent=1 // pred_check_branch
      %4520 = sbr.rel (0) target = $region45
    $region44: #{tpu_custom_call.1} parent=1 // pred_region
      %s4522 = ssub.s32 256, 256
      %4523 = vsyncadd [#allocation4], %s4522
      %s4524 = sshll.u32 [#allocation7], 4
      %s4525 = int_to_ptr.vmem [resolvable:$true] %s4524
      %4530 = dma.vmem_to_hbm [thread:$0]  %s4525, 256, %s8, [#allocation4], 128, 128, 8
    $region45: #{tpu_custom_call.1} parent=1 // pred_fallthru
      _
    // Predicated region
    $region46: #{tpu_custom_call.1} parent=1 // pred_check
      _
    $region47: #{tpu_custom_call.1} parent=1 // pred_check_branch
      %4532 = sbr.rel (0) target = $region49
    $region48: #{tpu_custom_call.1} parent=1 // pred_region
      %4533 = dma.done [#allocation4], 256
    $region49: #{tpu_custom_call.1} parent=1 // pred_fallthru
      _
    %4534 = vsyncpa [#allocation3], 1
    %4535 = vsyncpa [#allocation6], 1
    %4536 = vsyncpa [#allocation4], 1

</llo_original>
